<compile_context>
chip_gen: v6e
topology: v6e:2x2x1
jax: 0.10.0
libtpu: 0.0.40
codegen_flags: <defaults>
</compile_context>

<pallas_src>
import numpy as np
import jax
import jax.numpy as jnp
from jax.experimental import pallas as pl
from jax.experimental.pallas import tpu as pltpu

LEAKY_SLOPE = 0.2
BN_EPS = 1e-5
MXU_DTYPE = jnp.bfloat16   # matmul operand dtype (accumulation stays f32)


# ------------------------------ Pallas kernel --------------------------------

def _disc_kernel(x_ref, r1_ref, a1_ref, b1_ref,
                 r2_ref, r3_ref, r4_ref, a234_ref,
                 g_ref, be_ref, mavg_ref,
                 r5_ref, a5_ref, b5_ref, o_ref):
    """Whole discriminator forward, fully VMEM-resident.

    Activation layout: x2d[n*H + h, w*C + c] == x[n, h, w, c].
    A 4x4/s2 conv is     y = sum_kh (R_kh @ x2d) @ A_kh.
    """

    def lrelu(v):
        return jnp.where(v > 0, v, LEAKY_SLOPE * v)

    def conv4(x_bf, r_blocks, a_blocks):
        # x_bf: (N*H_in, W_in*C_in) bf16 -> f32 (N*H_out, W_out*C_out)
        acc = None
        for kh in range(4):
            # row selection (kernel row kh, stride 2, zero pad) -> exact gather
            z = jnp.dot(r_blocks[kh], x_bf, preferred_element_type=jnp.float32)
            t = jnp.dot(z.astype(x_bf.dtype), a_blocks[kh],
                        preferred_element_type=jnp.float32)
            acc = t if acc is None else acc + t
        return acc

    # ---- layer 1: Conv(k4, s2, p1, bias) + LeakyReLU -------------------------
    x = x_ref[...]                                        # bf16 (N*64, 64*Cin)
    y = conv4(x, [r1_ref[k] for k in range(4)], [a1_ref[k] for k in range(4)])
    y = lrelu(y + b1_ref[...])                            # f32 (N*32, 32*C1)

    # ---- layers 2-4: Conv(no bias) + BatchNorm(batch stats) + LeakyReLU ------
    mid_r = (r2_ref, r3_ref, r4_ref)
    for l in range(3):
        x = y.astype(MXU_DTYPE)
        y = conv4(x, [mid_r[l][k] for k in range(4)],
                  [a234_ref[l, k] for k in range(4)])     # f32 (rows, W*C)
        mavg = mavg_ref[l]                                # (W*C, W*C) f32
        # per-channel batch mean / biased variance over (N, H, W)
        mu = jnp.dot(jnp.mean(y, axis=0, keepdims=True), mavg,
                     preferred_element_type=jnp.float32)  # (1, W*C)
        yc = y - mu
        var = jnp.dot(jnp.mean(yc * yc, axis=0, keepdims=True), mavg,
                      preferred_element_type=jnp.float32)
        z = yc * jax.lax.rsqrt(var + BN_EPS) * g_ref[l] + be_ref[l]
        y = lrelu(z)

    # ---- layer 5: Conv(k4, s2, p0, bias), no activation -> (N, 1) ------------
    x = y.astype(MXU_DTYPE)                               # (N*4, 4*C4)
    acc = None
    for kh in range(4):
        z = jnp.dot(r5_ref[kh], x, preferred_element_type=jnp.float32)  # (N, 4*C4)
        t = jnp.sum(z * a5_ref[kh], axis=-1, keepdims=True)             # (N, 1)
        acc = t if acc is None else acc + t
    o_ref[...] = (acc + b5_ref[...]).astype(o_ref.dtype)


# --------------------------- host-side constant builders ---------------------

def _out_size(s, pad):
    return (s + 2 * pad - 4) // 2 + 1


def _build_r(n, h_in, h_out, pad):
    """(4, n*h_out, n*h_in) 0/1 matrices selecting input row 2*i - pad + kh."""
    r = np.zeros((4, n * h_out, n * h_in), np.float32)
    for kh in range(4):
        for b in range(n):
            for i in range(h_out):
                h = 2 * i - pad + kh
                if 0 <= h < h_in:
                    r[kh, b * h_out + i, b * h_in + h] = 1.0
    return jnp.asarray(r, MXU_DTYPE)


def _build_a(w_oihw, w_in, w_out, pad):
    """(4, w_in*Cin, w_out*Cout): conv weight scattered over the W axis.

    A[kh][w*Cin+ci, j*Cout+co] = W[co, ci, kh, w - 2j + pad]  (0 outside kernel)
    """
    co, ci = w_oihw.shape[0], w_oihw.shape[1]
    mask = np.zeros((w_in, w_out, 4), np.float32)
    for j in range(w_out):
        for kw in range(4):
            w = 2 * j - pad + kw
            if 0 <= w < w_in:
                mask[w, j, kw] = 1.0
    a = jnp.einsum('wjq,ockq->kwcjo', jnp.asarray(mask), w_oihw)
    return a.reshape(4, w_in * ci, w_out * co).astype(MXU_DTYPE)


def _build_mavg(w_out, c_out):
    """(W*C, W*C): averages a per-column row over spatial positions of the same
    channel (gives per-channel batch statistics, replicated per column)."""
    m = np.kron(np.ones((w_out, w_out), np.float32),
                np.eye(c_out, dtype=np.float32)) / np.float32(w_out)
    return jnp.asarray(m, jnp.float32)


def _tile_vec(v, w_out):
    # (1, C) -> (1, w_out*C), column index j*C + c
    return jnp.tile(v.astype(jnp.float32), (1, w_out))


# ------------------------------- forward pass --------------------------------

@jax.jit
def discriminator_forward(params, image_nchw):
    N, cin, H, Wd = image_nchw.shape
    assert H == Wd, "square inputs expected"

    w1, w2, w3, w4, w5 = (params[f"w{i}"] for i in range(1, 6))
    c1, c2, c3, c4 = w1.shape[0], w2.shape[0], w3.shape[0], w4.shape[0]

    h0 = H
    h1 = _out_size(h0, 1)
    h2 = _out_size(h1, 1)
    h3 = _out_size(h2, 1)
    h4 = _out_size(h3, 1)
    h5 = _out_size(h4, 0)            # == 1 for 64x64 inputs

    # input NCHW -> 2-D (N*H, W*Cin) layout, bf16 for the MXU
    x2d = jnp.transpose(image_nchw, (0, 2, 3, 1)).reshape(N * h0, h0 * cin)
    x2d = x2d.astype(MXU_DTYPE)

    # layer 1 constants
    r1 = _build_r(N, h0, h1, 1)
    a1 = _build_a(w1, h0, h1, 1)
    b1row = _tile_vec(params["b1"], h1)

    # BN blocks (layers 2-4).  W_out*C_out is identical across blocks (spatial
    # halves while channels double), so their constants stack cleanly.
    r2 = _build_r(N, h1, h2, 1); a2 = _build_a(w2, h1, h2, 1)
    r3 = _build_r(N, h2, h3, 1); a3 = _build_a(w3, h2, h3, 1)
    r4 = _build_r(N, h3, h4, 1); a4 = _build_a(w4, h3, h4, 1)
    a234 = jnp.stack([a2, a3, a4])                               # (3,4,WC,WC) bf16
    grows = jnp.stack([_tile_vec(params["g2"], h2),
                       _tile_vec(params["g3"], h3),
                       _tile_vec(params["g4"], h4)])             # (3,1,WC) f32
    berows = jnp.stack([_tile_vec(params["be2"], h2),
                        _tile_vec(params["be3"], h3),
                        _tile_vec(params["be4"], h4)])           # (3,1,WC) f32
    mavgs = jnp.stack([_build_mavg(h2, c2),
                       _build_mavg(h3, c3),
                       _build_mavg(h4, c4)])                     # (3,WC,WC) f32

    # layer 5 constants (pad 0).  a5[kh, 0, w*C4 + ci] = w5[0, ci, kh, w]
    r5 = _build_r(N, h4, h5, 0)
    a5 = jnp.transpose(w5[0], (1, 2, 0)).reshape(4, 1, 4 * c4).astype(jnp.float32)
    b5 = params["b5"].astype(jnp.float32)

    vmem = pl.BlockSpec(memory_space=pltpu.MemorySpace.VMEM)
    # TODO(synk): for large batch, tile the row (N*H) dimension over a
    # 'parallel' grid and switch BN to accumulated two-pass statistics.
    out = pl.pallas_call(
        _disc_kernel,
        out_shape=jax.ShapeDtypeStruct((N, 1), jnp.float32),
        in_specs=[vmem] * 14,
        out_specs=vmem,
    )(x2d, r1, a1, b1row, r2, r3, r4, a234, grows, berows, mavgs, r5, a5, b5)
    # disc_pred.view(len(disc_pred), -1)
    return out


# ------------------------------- parameters ----------------------------------

def init_params(key, im_chan=3, hidden=8):
    ks = jax.random.split(key, 12)
    conv_w = lambda k, co, ci: (0.02 * jax.random.normal(k, (co, ci, 4, 4))).astype(jnp.float32)
    vec = lambda k, c, base=0.0: (base + 0.01 * jax.random.normal(k, (1, c))).astype(jnp.float32)
    return {
        "w1": conv_w(ks[0], hidden, im_chan), "b1": vec(ks[1], hidden),
        "w2": conv_w(ks[2], hidden * 2, hidden),
        "g2": vec(ks[3], hidden * 2, 1.0), "be2": vec(ks[4], hidden * 2),
        "w3": conv_w(ks[5], hidden * 4, hidden * 2),
        "g3": vec(ks[6], hidden * 4, 1.0), "be3": vec(ks[7], hidden * 4),
        "w4": conv_w(ks[8], hidden * 8, hidden * 4),
        "g4": vec(ks[9], hidden * 8, 1.0), "be4": vec(ks[10], hidden * 8),
        "w5": conv_w(ks[11], 1, hidden * 8), "b5": jnp.zeros((1, 1), jnp.float32),
    }


# ---------------------------- pure-JAX reference -----------------------------

def _reference_forward(params, img):
    def conv(x, w, b=None, pad=1):
        y = jax.lax.conv_general_dilated(
            x, w, (2, 2), [(pad, pad), (pad, pad)],
            dimension_numbers=("NCHW", "OIHW", "NCHW"))
        if b is not None:
            y = y + b.reshape(1, -1, 1, 1)
        return y

    def bn(x, g, be):
        mu = jnp.mean(x, axis=(0, 2, 3), keepdims=True)
        var = jnp.mean((x - mu) ** 2, axis=(0, 2, 3), keepdims=True)
        return (x - mu) * jax.lax.rsqrt(var + BN_EPS) * g.reshape(1, -1, 1, 1) \
            + be.reshape(1, -1, 1, 1)

    lrelu = lambda x: jnp.where(x > 0, x, LEAKY_SLOPE * x)

    x = lrelu(conv(img, params["w1"], params["b1"]))
    for i in (2, 3, 4):
        x = lrelu(bn(conv(x, params[f"w{i}"]), params[f"g{i}"], params[f"be{i}"]))
    x = conv(x, params["w5"], params["b5"], pad=0)
    return x.reshape(x.shape[0], -1)


if __name__ == "__main__":
    key = jax.random.PRNGKey(0)
    k_img, k_par = jax.random.split(key)

    # 64x64 is the minimum spatial size for the final 4x4/s2/p0 conv -> 1x1.
    batch, im_chan, hidden = 2, 3, 8
    image = jax.random.normal(k_img, (batch, im_chan, 64, 64), jnp.float32)
    params = init_params(k_par, im_chan=im_chan, hidden=hidden)

    out = jax.block_until_ready(discriminator_forward(params, image))
    assert out.shape == (batch, 1), out.shape

    ref = jax.block_until_ready(_reference_forward(params, image))
    # bf16 MXU operands (f32 accumulation) -> bf16-appropriate tolerance.
    assert jnp.allclose(out, ref, atol=5e-2, rtol=5e-2), (out, ref)

    print("KERNEL_OK")
</pallas_src>

<mosaic_0001>
module attributes {stable_mosaic.version = 11 : i64} {
  func.func @_disc_kernel(%arg0: memref<128x192xbf16, #tpu.memory_space<vmem>>, %arg1: memref<4x64x128xbf16, #tpu.memory_space<vmem>>, %arg2: memref<4x192x256xbf16, #tpu.memory_space<vmem>>, %arg3: memref<1x256xf32, #tpu.memory_space<vmem>>, %arg4: memref<4x32x64xbf16, #tpu.memory_space<vmem>>, %arg5: memref<4x16x32xbf16, #tpu.memory_space<vmem>>, %arg6: memref<4x8x16xbf16, #tpu.memory_space<vmem>>, %arg7: memref<3x4x256x256xbf16, #tpu.memory_space<vmem>>, %arg8: memref<3x1x256xf32, #tpu.memory_space<vmem>>, %arg9: memref<3x1x256xf32, #tpu.memory_space<vmem>>, %arg10: memref<3x256x256xf32, #tpu.memory_space<vmem>>, %arg11: memref<4x2x8xbf16, #tpu.memory_space<vmem>>, %arg12: memref<4x1x256xf32, #tpu.memory_space<vmem>>, %arg13: memref<1x1xf32, #tpu.memory_space<vmem>>, %arg14: memref<2x1xf32, #tpu.memory_space<vmem>>) attributes {dimension_semantics = [], scalar_prefetch = 0 : i64, scratch_operands = 0 : i64, tpu.core_type = #tpu.core_type<tc>} {
    %c0 = arith.constant 0 : index
    %c0_0 = arith.constant 0 : index
    %0 = vector.load %arg0[%c0, %c0_0] : memref<128x192xbf16, #tpu.memory_space<vmem>>, vector<128x192xbf16>
    %c0_1 = arith.constant 0 : index
    %c0_2 = arith.constant 0 : index
    %c0_3 = arith.constant 0 : index
    %1 = vector.load %arg1[%c0_1, %c0_2, %c0_3] : memref<4x64x128xbf16, #tpu.memory_space<vmem>>, vector<1x64x128xbf16>
    %2 = vector.shape_cast %1 : vector<1x64x128xbf16> to vector<64x128xbf16>
    %c1 = arith.constant 1 : index
    %c0_4 = arith.constant 0 : index
    %c0_5 = arith.constant 0 : index
    %3 = vector.load %arg1[%c1, %c0_4, %c0_5] : memref<4x64x128xbf16, #tpu.memory_space<vmem>>, vector<1x64x128xbf16>
    %4 = vector.shape_cast %3 : vector<1x64x128xbf16> to vector<64x128xbf16>
    %c2 = arith.constant 2 : index
    %c0_6 = arith.constant 0 : index
    %c0_7 = arith.constant 0 : index
    %5 = vector.load %arg1[%c2, %c0_6, %c0_7] : memref<4x64x128xbf16, #tpu.memory_space<vmem>>, vector<1x64x128xbf16>
    %6 = vector.shape_cast %5 : vector<1x64x128xbf16> to vector<64x128xbf16>
    %c3 = arith.constant 3 : index
    %c0_8 = arith.constant 0 : index
    %c0_9 = arith.constant 0 : index
    %7 = vector.load %arg1[%c3, %c0_8, %c0_9] : memref<4x64x128xbf16, #tpu.memory_space<vmem>>, vector<1x64x128xbf16>
    %8 = vector.shape_cast %7 : vector<1x64x128xbf16> to vector<64x128xbf16>
    %c0_10 = arith.constant 0 : index
    %c0_11 = arith.constant 0 : index
    %c0_12 = arith.constant 0 : index
    %9 = vector.load %arg2[%c0_10, %c0_11, %c0_12] : memref<4x192x256xbf16, #tpu.memory_space<vmem>>, vector<1x192x256xbf16>
    %10 = vector.shape_cast %9 : vector<1x192x256xbf16> to vector<192x256xbf16>
    %c1_13 = arith.constant 1 : index
    %c0_14 = arith.constant 0 : index
    %c0_15 = arith.constant 0 : index
    %11 = vector.load %arg2[%c1_13, %c0_14, %c0_15] : memref<4x192x256xbf16, #tpu.memory_space<vmem>>, vector<1x192x256xbf16>
    %12 = vector.shape_cast %11 : vector<1x192x256xbf16> to vector<192x256xbf16>
    %c2_16 = arith.constant 2 : index
    %c0_17 = arith.constant 0 : index
    %c0_18 = arith.constant 0 : index
    %13 = vector.load %arg2[%c2_16, %c0_17, %c0_18] : memref<4x192x256xbf16, #tpu.memory_space<vmem>>, vector<1x192x256xbf16>
    %14 = vector.shape_cast %13 : vector<1x192x256xbf16> to vector<192x256xbf16>
    %c3_19 = arith.constant 3 : index
    %c0_20 = arith.constant 0 : index
    %c0_21 = arith.constant 0 : index
    %15 = vector.load %arg2[%c3_19, %c0_20, %c0_21] : memref<4x192x256xbf16, #tpu.memory_space<vmem>>, vector<1x192x256xbf16>
    %16 = vector.shape_cast %15 : vector<1x192x256xbf16> to vector<192x256xbf16>
    %cst = arith.constant dense<0.000000e+00> : vector<64x192xf32>
    %17 = tpu.matmul %2, %0, %cst {dimension_numbers = #tpu.dot_dimension_numbers<[1], [0], [0], [1], [0, 0, 1, 1], [], []>} : vector<64x128xbf16>, vector<128x192xbf16>, vector<64x192xf32> -> vector<64x192xf32>
    %18 = arith.truncf %17 : vector<64x192xf32> to vector<64x192xbf16>
    %cst_22 = arith.constant dense<0.000000e+00> : vector<64x256xf32>
    %19 = tpu.matmul %18, %10, %cst_22 {dimension_numbers = #tpu.dot_dimension_numbers<[1], [0], [0], [1], [0, 0, 1, 1], [], []>} : vector<64x192xbf16>, vector<192x256xbf16>, vector<64x256xf32> -> vector<64x256xf32>
    %cst_23 = arith.constant dense<0.000000e+00> : vector<64x192xf32>
    %20 = tpu.matmul %4, %0, %cst_23 {dimension_numbers = #tpu.dot_dimension_numbers<[1], [0], [0], [1], [0, 0, 1, 1], [], []>} : vector<64x128xbf16>, vector<128x192xbf16>, vector<64x192xf32> -> vector<64x192xf32>
    %21 = arith.truncf %20 : vector<64x192xf32> to vector<64x192xbf16>
    %cst_24 = arith.constant dense<0.000000e+00> : vector<64x256xf32>
    %22 = tpu.matmul %21, %12, %cst_24 {dimension_numbers = #tpu.dot_dimension_numbers<[1], [0], [0], [1], [0, 0, 1, 1], [], []>} : vector<64x192xbf16>, vector<192x256xbf16>, vector<64x256xf32> -> vector<64x256xf32>
    %23 = arith.addf %19, %22 : vector<64x256xf32>
    %cst_25 = arith.constant dense<0.000000e+00> : vector<64x192xf32>
    %24 = tpu.matmul %6, %0, %cst_25 {dimension_numbers = #tpu.dot_dimension_numbers<[1], [0], [0], [1], [0, 0, 1, 1], [], []>} : vector<64x128xbf16>, vector<128x192xbf16>, vector<64x192xf32> -> vector<64x192xf32>
    %25 = arith.truncf %24 : vector<64x192xf32> to vector<64x192xbf16>
    %cst_26 = arith.constant dense<0.000000e+00> : vector<64x256xf32>
    %26 = tpu.matmul %25, %14, %cst_26 {dimension_numbers = #tpu.dot_dimension_numbers<[1], [0], [0], [1], [0, 0, 1, 1], [], []>} : vector<64x192xbf16>, vector<192x256xbf16>, vector<64x256xf32> -> vector<64x256xf32>
    %27 = arith.addf %23, %26 : vector<64x256xf32>
    %cst_27 = arith.constant dense<0.000000e+00> : vector<64x192xf32>
    %28 = tpu.matmul %8, %0, %cst_27 {dimension_numbers = #tpu.dot_dimension_numbers<[1], [0], [0], [1], [0, 0, 1, 1], [], []>} : vector<64x128xbf16>, vector<128x192xbf16>, vector<64x192xf32> -> vector<64x192xf32>
    %29 = arith.truncf %28 : vector<64x192xf32> to vector<64x192xbf16>
    %cst_28 = arith.constant dense<0.000000e+00> : vector<64x256xf32>
    %30 = tpu.matmul %29, %16, %cst_28 {dimension_numbers = #tpu.dot_dimension_numbers<[1], [0], [0], [1], [0, 0, 1, 1], [], []>} : vector<64x192xbf16>, vector<192x256xbf16>, vector<64x256xf32> -> vector<64x256xf32>
    %31 = arith.addf %27, %30 : vector<64x256xf32>
    %c0_29 = arith.constant 0 : index
    %c0_30 = arith.constant 0 : index
    %32 = vector.load %arg3[%c0_29, %c0_30] : memref<1x256xf32, #tpu.memory_space<vmem>>, vector<1x256xf32>
    %33 = vector.broadcast %32 : vector<1x256xf32> to vector<64x256xf32>
    %34 = arith.addf %31, %33 : vector<64x256xf32>
    %cst_31 = arith.constant 0.000000e+00 : f32
    %35 = vector.broadcast %cst_31 : f32 to vector<64x256xf32>
    %36 = arith.cmpf ogt, %34, %35 : vector<64x256xf32>
    %cst_32 = arith.constant 2.000000e-01 : f32
    %37 = vector.broadcast %cst_32 : f32 to vector<64x256xf32>
    %38 = arith.mulf %37, %34 : vector<64x256xf32>
    %39 = arith.select %36, %34, %38 : vector<64x256xi1>, vector<64x256xf32>
    %40 = arith.truncf %39 : vector<64x256xf32> to vector<64x256xbf16>
    %c0_33 = arith.constant 0 : index
    %c0_34 = arith.constant 0 : index
    %c0_35 = arith.constant 0 : index
    %41 = vector.load %arg4[%c0_33, %c0_34, %c0_35] : memref<4x32x64xbf16, #tpu.memory_space<vmem>>, vector<1x32x64xbf16>
    %42 = vector.shape_cast %41 : vector<1x32x64xbf16> to vector<32x64xbf16>
    %c1_36 = arith.constant 1 : index
    %c0_37 = arith.constant 0 : index
    %c0_38 = arith.constant 0 : index
    %43 = vector.load %arg4[%c1_36, %c0_37, %c0_38] : memref<4x32x64xbf16, #tpu.memory_space<vmem>>, vector<1x32x64xbf16>
    %44 = vector.shape_cast %43 : vector<1x32x64xbf16> to vector<32x64xbf16>
    %c2_39 = arith.constant 2 : index
    %c0_40 = arith.constant 0 : index
    %c0_41 = arith.constant 0 : index
    %45 = vector.load %arg4[%c2_39, %c0_40, %c0_41] : memref<4x32x64xbf16, #tpu.memory_space<vmem>>, vector<1x32x64xbf16>
    %46 = vector.shape_cast %45 : vector<1x32x64xbf16> to vector<32x64xbf16>
    %c3_42 = arith.constant 3 : index
    %c0_43 = arith.constant 0 : index
    %c0_44 = arith.constant 0 : index
    %47 = vector.load %arg4[%c3_42, %c0_43, %c0_44] : memref<4x32x64xbf16, #tpu.memory_space<vmem>>, vector<1x32x64xbf16>
    %48 = vector.shape_cast %47 : vector<1x32x64xbf16> to vector<32x64xbf16>
    %c0_45 = arith.constant 0 : index
    %c0_46 = arith.constant 0 : index
    %c0_47 = arith.constant 0 : index
    %c0_48 = arith.constant 0 : index
    %49 = vector.load %arg7[%c0_45, %c0_46, %c0_47, %c0_48] : memref<3x4x256x256xbf16, #tpu.memory_space<vmem>>, vector<1x1x256x256xbf16>
    %50 = vector.shape_cast %49 : vector<1x1x256x256xbf16> to vector<256x256xbf16>
    %c0_49 = arith.constant 0 : index
    %c1_50 = arith.constant 1 : index
    %c0_51 = arith.constant 0 : index
    %c0_52 = arith.constant 0 : index
    %51 = vector.load %arg7[%c0_49, %c1_50, %c0_51, %c0_52] : memref<3x4x256x256xbf16, #tpu.memory_space<vmem>>, vector<1x1x256x256xbf16>
    %52 = vector.shape_cast %51 : vector<1x1x256x256xbf16> to vector<256x256xbf16>
    %c0_53 = arith.constant 0 : index
    %c2_54 = arith.constant 2 : index
    %c0_55 = arith.constant 0 : index
    %c0_56 = arith.constant 0 : index
    %53 = vector.load %arg7[%c0_53, %c2_54, %c0_55, %c0_56] : memref<3x4x256x256xbf16, #tpu.memory_space<vmem>>, vector<1x1x256x256xbf16>
    %54 = vector.shape_cast %53 : vector<1x1x256x256xbf16> to vector<256x256xbf16>
    %c0_57 = arith.constant 0 : index
    %c3_58 = arith.constant 3 : index
    %c0_59 = arith.constant 0 : index
    %c0_60 = arith.constant 0 : index
    %55 = vector.load %arg7[%c0_57, %c3_58, %c0_59, %c0_60] : memref<3x4x256x256xbf16, #tpu.memory_space<vmem>>, vector<1x1x256x256xbf16>
    %56 = vector.shape_cast %55 : vector<1x1x256x256xbf16> to vector<256x256xbf16>
    %cst_61 = arith.constant dense<0.000000e+00> : vector<32x256xf32>
    %57 = tpu.matmul %42, %40, %cst_61 {dimension_numbers = #tpu.dot_dimension_numbers<[1], [0], [0], [1], [0, 0, 1, 1], [], []>} : vector<32x64xbf16>, vector<64x256xbf16>, vector<32x256xf32> -> vector<32x256xf32>
    %58 = arith.truncf %57 : vector<32x256xf32> to vector<32x256xbf16>
    %cst_62 = arith.constant dense<0.000000e+00> : vector<32x256xf32>
    %59 = tpu.matmul %58, %50, %cst_62 {dimension_numbers = #tpu.dot_dimension_numbers<[1], [0], [0], [1], [0, 0, 1, 1], [], []>} : vector<32x256xbf16>, vector<256x256xbf16>, vector<32x256xf32> -> vector<32x256xf32>
    %cst_63 = arith.constant dense<0.000000e+00> : vector<32x256xf32>
    %60 = tpu.matmul %44, %40, %cst_63 {dimension_numbers = #tpu.dot_dimension_numbers<[1], [0], [0], [1], [0, 0, 1, 1], [], []>} : vector<32x64xbf16>, vector<64x256xbf16>, vector<32x256xf32> -> vector<32x256xf32>
    %61 = arith.truncf %60 : vector<32x256xf32> to vector<32x256xbf16>
    %cst_64 = arith.constant dense<0.000000e+00> : vector<32x256xf32>
    %62 = tpu.matmul %61, %52, %cst_64 {dimension_numbers = #tpu.dot_dimension_numbers<[1], [0], [0], [1], [0, 0, 1, 1], [], []>} : vector<32x256xbf16>, vector<256x256xbf16>, vector<32x256xf32> -> vector<32x256xf32>
    %63 = arith.addf %59, %62 : vector<32x256xf32>
    %cst_65 = arith.constant dense<0.000000e+00> : vector<32x256xf32>
    %64 = tpu.matmul %46, %40, %cst_65 {dimension_numbers = #tpu.dot_dimension_numbers<[1], [0], [0], [1], [0, 0, 1, 1], [], []>} : vector<32x64xbf16>, vector<64x256xbf16>, vector<32x256xf32> -> vector<32x256xf32>
    %65 = arith.truncf %64 : vector<32x256xf32> to vector<32x256xbf16>
    %cst_66 = arith.constant dense<0.000000e+00> : vector<32x256xf32>
    %66 = tpu.matmul %65, %54, %cst_66 {dimension_numbers = #tpu.dot_dimension_numbers<[1], [0], [0], [1], [0, 0, 1, 1], [], []>} : vector<32x256xbf16>, vector<256x256xbf16>, vector<32x256xf32> -> vector<32x256xf32>
    %67 = arith.addf %63, %66 : vector<32x256xf32>
    %cst_67 = arith.constant dense<0.000000e+00> : vector<32x256xf32>
    %68 = tpu.matmul %48, %40, %cst_67 {dimension_numbers = #tpu.dot_dimension_numbers<[1], [0], [0], [1], [0, 0, 1, 1], [], []>} : vector<32x64xbf16>, vector<64x256xbf16>, vector<32x256xf32> -> vector<32x256xf32>
    %69 = arith.truncf %68 : vector<32x256xf32> to vector<32x256xbf16>
    %cst_68 = arith.constant dense<0.000000e+00> : vector<32x256xf32>
    %70 = tpu.matmul %69, %56, %cst_68 {dimension_numbers = #tpu.dot_dimension_numbers<[1], [0], [0], [1], [0, 0, 1, 1], [], []>} : vector<32x256xbf16>, vector<256x256xbf16>, vector<32x256xf32> -> vector<32x256xf32>
    %71 = arith.addf %67, %70 : vector<32x256xf32>
    %c0_69 = arith.constant 0 : index
    %c0_70 = arith.constant 0 : index
    %c0_71 = arith.constant 0 : index
    %72 = vector.load %arg10[%c0_69, %c0_70, %c0_71] : memref<3x256x256xf32, #tpu.memory_space<vmem>>, vector<1x256x256xf32>
    %73 = vector.shape_cast %72 : vector<1x256x256xf32> to vector<256x256xf32>
    %cst_72 = arith.constant dense<0.000000e+00> : vector<256xf32>
    %74 = vector.multi_reduction <add>, %71, %cst_72 [0] : vector<32x256xf32> to vector<256xf32>
    %75 = vector.shape_cast %74 : vector<256xf32> to vector<1x256xf32>
    %cst_73 = arith.constant 3.200000e+01 : f32
    %76 = vector.broadcast %cst_73 : f32 to vector<1x256xf32>
    %77 = arith.divf %75, %76 : vector<1x256xf32>
    %cst_74 = arith.constant dense<0.000000e+00> : vector<1x256xf32>
    %78 = tpu.matmul %77, %73, %cst_74 {dimension_numbers = #tpu.dot_dimension_numbers<[1], [0], [0], [1], [0, 0, 1, 1], [], []>} : vector<1x256xf32>, vector<256x256xf32>, vector<1x256xf32> -> vector<1x256xf32>
    %79 = vector.broadcast %78 : vector<1x256xf32> to vector<32x256xf32>
    %80 = arith.subf %71, %79 : vector<32x256xf32>
    %81 = arith.mulf %80, %80 : vector<32x256xf32>
    %cst_75 = arith.constant dense<0.000000e+00> : vector<256xf32>
    %82 = vector.multi_reduction <add>, %81, %cst_75 [0] : vector<32x256xf32> to vector<256xf32>
    %83 = vector.shape_cast %82 : vector<256xf32> to vector<1x256xf32>
    %cst_76 = arith.constant 3.200000e+01 : f32
    %84 = vector.broadcast %cst_76 : f32 to vector<1x256xf32>
    %85 = arith.divf %83, %84 : vector<1x256xf32>
    %cst_77 = arith.constant dense<0.000000e+00> : vector<1x256xf32>
    %86 = tpu.matmul %85, %73, %cst_77 {dimension_numbers = #tpu.dot_dimension_numbers<[1], [0], [0], [1], [0, 0, 1, 1], [], []>} : vector<1x256xf32>, vector<256x256xf32>, vector<1x256xf32> -> vector<1x256xf32>
    %cst_78 = arith.constant 9.99999974E-6 : f32
    %87 = vector.broadcast %cst_78 : f32 to vector<1x256xf32>
    %88 = arith.addf %86, %87 : vector<1x256xf32>
    %89 = math.rsqrt %88 : vector<1x256xf32>
    %90 = vector.broadcast %89 : vector<1x256xf32> to vector<32x256xf32>
    %91 = arith.mulf %80, %90 : vector<32x256xf32>
    %c0_79 = arith.constant 0 : index
    %c0_80 = arith.constant 0 : index
    %c0_81 = arith.constant 0 : index
    %92 = vector.load %arg8[%c0_79, %c0_80, %c0_81] : memref<3x1x256xf32, #tpu.memory_space<vmem>>, vector<1x1x256xf32>
    %93 = vector.shape_cast %92 : vector<1x1x256xf32> to vector<1x256xf32>
    %94 = vector.broadcast %93 : vector<1x256xf32> to vector<32x256xf32>
    %95 = arith.mulf %91, %94 : vector<32x256xf32>
    %c0_82 = arith.constant 0 : index
    %c0_83 = arith.constant 0 : index
    %c0_84 = arith.constant 0 : index
    %96 = vector.load %arg9[%c0_82, %c0_83, %c0_84] : memref<3x1x256xf32, #tpu.memory_space<vmem>>, vector<1x1x256xf32>
    %97 = vector.shape_cast %96 : vector<1x1x256xf32> to vector<1x256xf32>
    %98 = vector.broadcast %97 : vector<1x256xf32> to vector<32x256xf32>
    %99 = arith.addf %95, %98 : vector<32x256xf32>
    %cst_85 = arith.constant 0.000000e+00 : f32
    %100 = vector.broadcast %cst_85 : f32 to vector<32x256xf32>
    %101 = arith.cmpf ogt, %99, %100 : vector<32x256xf32>
    %cst_86 = arith.constant 2.000000e-01 : f32
    %102 = vector.broadcast %cst_86 : f32 to vector<32x256xf32>
    %103 = arith.mulf %102, %99 : vector<32x256xf32>
    %104 = arith.select %101, %99, %103 : vector<32x256xi1>, vector<32x256xf32>
    %105 = arith.truncf %104 : vector<32x256xf32> to vector<32x256xbf16>
    %c0_87 = arith.constant 0 : index
    %c0_88 = arith.constant 0 : index
    %c0_89 = arith.constant 0 : index
    %106 = vector.load %arg5[%c0_87, %c0_88, %c0_89] : memref<4x16x32xbf16, #tpu.memory_space<vmem>>, vector<1x16x32xbf16>
    %107 = vector.shape_cast %106 : vector<1x16x32xbf16> to vector<16x32xbf16>
    %c1_90 = arith.constant 1 : index
    %c0_91 = arith.constant 0 : index
    %c0_92 = arith.constant 0 : index
    %108 = vector.load %arg5[%c1_90, %c0_91, %c0_92] : memref<4x16x32xbf16, #tpu.memory_space<vmem>>, vector<1x16x32xbf16>
    %109 = vector.shape_cast %108 : vector<1x16x32xbf16> to vector<16x32xbf16>
    %c2_93 = arith.constant 2 : index
    %c0_94 = arith.constant 0 : index
    %c0_95 = arith.constant 0 : index
    %110 = vector.load %arg5[%c2_93, %c0_94, %c0_95] : memref<4x16x32xbf16, #tpu.memory_space<vmem>>, vector<1x16x32xbf16>
    %111 = vector.shape_cast %110 : vector<1x16x32xbf16> to vector<16x32xbf16>
    %c3_96 = arith.constant 3 : index
    %c0_97 = arith.constant 0 : index
    %c0_98 = arith.constant 0 : index
    %112 = vector.load %arg5[%c3_96, %c0_97, %c0_98] : memref<4x16x32xbf16, #tpu.memory_space<vmem>>, vector<1x16x32xbf16>
    %113 = vector.shape_cast %112 : vector<1x16x32xbf16> to vector<16x32xbf16>
    %c1_99 = arith.constant 1 : index
    %c0_100 = arith.constant 0 : index
    %c0_101 = arith.constant 0 : index
    %c0_102 = arith.constant 0 : index
    %114 = vector.load %arg7[%c1_99, %c0_100, %c0_101, %c0_102] : memref<3x4x256x256xbf16, #tpu.memory_space<vmem>>, vector<1x1x256x256xbf16>
    %115 = vector.shape_cast %114 : vector<1x1x256x256xbf16> to vector<256x256xbf16>
    %c1_103 = arith.constant 1 : index
    %c1_104 = arith.constant 1 : index
    %c0_105 = arith.constant 0 : index
    %c0_106 = arith.constant 0 : index
    %116 = vector.load %arg7[%c1_103, %c1_104, %c0_105, %c0_106] : memref<3x4x256x256xbf16, #tpu.memory_space<vmem>>, vector<1x1x256x256xbf16>
    %117 = vector.shape_cast %116 : vector<1x1x256x256xbf16> to vector<256x256xbf16>
    %c1_107 = arith.constant 1 : index
    %c2_108 = arith.constant 2 : index
    %c0_109 = arith.constant 0 : index
    %c0_110 = arith.constant 0 : index
    %118 = vector.load %arg7[%c1_107, %c2_108, %c0_109, %c0_110] : memref<3x4x256x256xbf16, #tpu.memory_space<vmem>>, vector<1x1x256x256xbf16>
    %119 = vector.shape_cast %118 : vector<1x1x256x256xbf16> to vector<256x256xbf16>
    %c1_111 = arith.constant 1 : index
    %c3_112 = arith.constant 3 : index
    %c0_113 = arith.constant 0 : index
    %c0_114 = arith.constant 0 : index
    %120 = vector.load %arg7[%c1_111, %c3_112, %c0_113, %c0_114] : memref<3x4x256x256xbf16, #tpu.memory_space<vmem>>, vector<1x1x256x256xbf16>
    %121 = vector.shape_cast %120 : vector<1x1x256x256xbf16> to vector<256x256xbf16>
    %cst_115 = arith.constant dense<0.000000e+00> : vector<16x256xf32>
    %122 = tpu.matmul %107, %105, %cst_115 {dimension_numbers = #tpu.dot_dimension_numbers<[1], [0], [0], [1], [0, 0, 1, 1], [], []>} : vector<16x32xbf16>, vector<32x256xbf16>, vector<16x256xf32> -> vector<16x256xf32>
    %123 = arith.truncf %122 : vector<16x256xf32> to vector<16x256xbf16>
    %cst_116 = arith.constant dense<0.000000e+00> : vector<16x256xf32>
    %124 = tpu.matmul %123, %115, %cst_116 {dimension_numbers = #tpu.dot_dimension_numbers<[1], [0], [0], [1], [0, 0, 1, 1], [], []>} : vector<16x256xbf16>, vector<256x256xbf16>, vector<16x256xf32> -> vector<16x256xf32>
    %cst_117 = arith.constant dense<0.000000e+00> : vector<16x256xf32>
    %125 = tpu.matmul %109, %105, %cst_117 {dimension_numbers = #tpu.dot_dimension_numbers<[1], [0], [0], [1], [0, 0, 1, 1], [], []>} : vector<16x32xbf16>, vector<32x256xbf16>, vector<16x256xf32> -> vector<16x256xf32>
    %126 = arith.truncf %125 : vector<16x256xf32> to vector<16x256xbf16>
    %cst_118 = arith.constant dense<0.000000e+00> : vector<16x256xf32>
    %127 = tpu.matmul %126, %117, %cst_118 {dimension_numbers = #tpu.dot_dimension_numbers<[1], [0], [0], [1], [0, 0, 1, 1], [], []>} : vector<16x256xbf16>, vector<256x256xbf16>, vector<16x256xf32> -> vector<16x256xf32>
    %128 = arith.addf %124, %127 : vector<16x256xf32>
    %cst_119 = arith.constant dense<0.000000e+00> : vector<16x256xf32>
    %129 = tpu.matmul %111, %105, %cst_119 {dimension_numbers = #tpu.dot_dimension_numbers<[1], [0], [0], [1], [0, 0, 1, 1], [], []>} : vector<16x32xbf16>, vector<32x256xbf16>, vector<16x256xf32> -> vector<16x256xf32>
    %130 = arith.truncf %129 : vector<16x256xf32> to vector<16x256xbf16>
    %cst_120 = arith.constant dense<0.000000e+00> : vector<16x256xf32>
    %131 = tpu.matmul %130, %119, %cst_120 {dimension_numbers = #tpu.dot_dimension_numbers<[1], [0], [0], [1], [0, 0, 1, 1], [], []>} : vector<16x256xbf16>, vector<256x256xbf16>, vector<16x256xf32> -> vector<16x256xf32>
    %132 = arith.addf %128, %131 : vector<16x256xf32>
    %cst_121 = arith.constant dense<0.000000e+00> : vector<16x256xf32>
    %133 = tpu.matmul %113, %105, %cst_121 {dimension_numbers = #tpu.dot_dimension_numbers<[1], [0], [0], [1], [0, 0, 1, 1], [], []>} : vector<16x32xbf16>, vector<32x256xbf16>, vector<16x256xf32> -> vector<16x256xf32>
    %134 = arith.truncf %133 : vector<16x256xf32> to vector<16x256xbf16>
    %cst_122 = arith.constant dense<0.000000e+00> : vector<16x256xf32>
    %135 = tpu.matmul %134, %121, %cst_122 {dimension_numbers = #tpu.dot_dimension_numbers<[1], [0], [0], [1], [0, 0, 1, 1], [], []>} : vector<16x256xbf16>, vector<256x256xbf16>, vector<16x256xf32> -> vector<16x256xf32>
    %136 = arith.addf %132, %135 : vector<16x256xf32>
    %c1_123 = arith.constant 1 : index
    %c0_124 = arith.constant 0 : index
    %c0_125 = arith.constant 0 : index
    %137 = vector.load %arg10[%c1_123, %c0_124, %c0_125] : memref<3x256x256xf32, #tpu.memory_space<vmem>>, vector<1x256x256xf32>
    %138 = vector.shape_cast %137 : vector<1x256x256xf32> to vector<256x256xf32>
    %cst_126 = arith.constant dense<0.000000e+00> : vector<256xf32>
    %139 = vector.multi_reduction <add>, %136, %cst_126 [0] : vector<16x256xf32> to vector<256xf32>
    %140 = vector.shape_cast %139 : vector<256xf32> to vector<1x256xf32>
    %cst_127 = arith.constant 1.600000e+01 : f32
    %141 = vector.broadcast %cst_127 : f32 to vector<1x256xf32>
    %142 = arith.divf %140, %141 : vector<1x256xf32>
    %cst_128 = arith.constant dense<0.000000e+00> : vector<1x256xf32>
    %143 = tpu.matmul %142, %138, %cst_128 {dimension_numbers = #tpu.dot_dimension_numbers<[1], [0], [0], [1], [0, 0, 1, 1], [], []>} : vector<1x256xf32>, vector<256x256xf32>, vector<1x256xf32> -> vector<1x256xf32>
    %144 = vector.broadcast %143 : vector<1x256xf32> to vector<16x256xf32>
    %145 = arith.subf %136, %144 : vector<16x256xf32>
    %146 = arith.mulf %145, %145 : vector<16x256xf32>
    %cst_129 = arith.constant dense<0.000000e+00> : vector<256xf32>
    %147 = vector.multi_reduction <add>, %146, %cst_129 [0] : vector<16x256xf32> to vector<256xf32>
    %148 = vector.shape_cast %147 : vector<256xf32> to vector<1x256xf32>
    %cst_130 = arith.constant 1.600000e+01 : f32
    %149 = vector.broadcast %cst_130 : f32 to vector<1x256xf32>
    %150 = arith.divf %148, %149 : vector<1x256xf32>
    %cst_131 = arith.constant dense<0.000000e+00> : vector<1x256xf32>
    %151 = tpu.matmul %150, %138, %cst_131 {dimension_numbers = #tpu.dot_dimension_numbers<[1], [0], [0], [1], [0, 0, 1, 1], [], []>} : vector<1x256xf32>, vector<256x256xf32>, vector<1x256xf32> -> vector<1x256xf32>
    %cst_132 = arith.constant 9.99999974E-6 : f32
    %152 = vector.broadcast %cst_132 : f32 to vector<1x256xf32>
    %153 = arith.addf %151, %152 : vector<1x256xf32>
    %154 = math.rsqrt %153 : vector<1x256xf32>
    %155 = vector.broadcast %154 : vector<1x256xf32> to vector<16x256xf32>
    %156 = arith.mulf %145, %155 : vector<16x256xf32>
    %c1_133 = arith.constant 1 : index
    %c0_134 = arith.constant 0 : index
    %c0_135 = arith.constant 0 : index
    %157 = vector.load %arg8[%c1_133, %c0_134, %c0_135] : memref<3x1x256xf32, #tpu.memory_space<vmem>>, vector<1x1x256xf32>
    %158 = vector.shape_cast %157 : vector<1x1x256xf32> to vector<1x256xf32>
    %159 = vector.broadcast %158 : vector<1x256xf32> to vector<16x256xf32>
    %160 = arith.mulf %156, %159 : vector<16x256xf32>
    %c1_136 = arith.constant 1 : index
    %c0_137 = arith.constant 0 : index
    %c0_138 = arith.constant 0 : index
    %161 = vector.load %arg9[%c1_136, %c0_137, %c0_138] : memref<3x1x256xf32, #tpu.memory_space<vmem>>, vector<1x1x256xf32>
    %162 = vector.shape_cast %161 : vector<1x1x256xf32> to vector<1x256xf32>
    %163 = vector.broadcast %162 : vector<1x256xf32> to vector<16x256xf32>
    %164 = arith.addf %160, %163 : vector<16x256xf32>
    %cst_139 = arith.constant 0.000000e+00 : f32
    %165 = vector.broadcast %cst_139 : f32 to vector<16x256xf32>
    %166 = arith.cmpf ogt, %164, %165 : vector<16x256xf32>
    %cst_140 = arith.constant 2.000000e-01 : f32
    %167 = vector.broadcast %cst_140 : f32 to vector<16x256xf32>
    %168 = arith.mulf %167, %164 : vector<16x256xf32>
    %169 = arith.select %166, %164, %168 : vector<16x256xi1>, vector<16x256xf32>
    %170 = arith.truncf %169 : vector<16x256xf32> to vector<16x256xbf16>
    %c0_141 = arith.constant 0 : index
    %c0_142 = arith.constant 0 : index
    %c0_143 = arith.constant 0 : index
    %171 = vector.load %arg6[%c0_141, %c0_142, %c0_143] : memref<4x8x16xbf16, #tpu.memory_space<vmem>>, vector<1x8x16xbf16>
    %172 = vector.shape_cast %171 : vector<1x8x16xbf16> to vector<8x16xbf16>
    %c1_144 = arith.constant 1 : index
    %c0_145 = arith.constant 0 : index
    %c0_146 = arith.constant 0 : index
    %173 = vector.load %arg6[%c1_144, %c0_145, %c0_146] : memref<4x8x16xbf16, #tpu.memory_space<vmem>>, vector<1x8x16xbf16>
    %174 = vector.shape_cast %173 : vector<1x8x16xbf16> to vector<8x16xbf16>
    %c2_147 = arith.constant 2 : index
    %c0_148 = arith.constant 0 : index
    %c0_149 = arith.constant 0 : index
    %175 = vector.load %arg6[%c2_147, %c0_148, %c0_149] : memref<4x8x16xbf16, #tpu.memory_space<vmem>>, vector<1x8x16xbf16>
    %176 = vector.shape_cast %175 : vector<1x8x16xbf16> to vector<8x16xbf16>
    %c3_150 = arith.constant 3 : index
    %c0_151 = arith.constant 0 : index
    %c0_152 = arith.constant 0 : index
    %177 = vector.load %arg6[%c3_150, %c0_151, %c0_152] : memref<4x8x16xbf16, #tpu.memory_space<vmem>>, vector<1x8x16xbf16>
    %178 = vector.shape_cast %177 : vector<1x8x16xbf16> to vector<8x16xbf16>
    %c2_153 = arith.constant 2 : index
    %c0_154 = arith.constant 0 : index
    %c0_155 = arith.constant 0 : index
    %c0_156 = arith.constant 0 : index
    %179 = vector.load %arg7[%c2_153, %c0_154, %c0_155, %c0_156] : memref<3x4x256x256xbf16, #tpu.memory_space<vmem>>, vector<1x1x256x256xbf16>
    %180 = vector.shape_cast %179 : vector<1x1x256x256xbf16> to vector<256x256xbf16>
    %c2_157 = arith.constant 2 : index
    %c1_158 = arith.constant 1 : index
    %c0_159 = arith.constant 0 : index
    %c0_160 = arith.constant 0 : index
    %181 = vector.load %arg7[%c2_157, %c1_158, %c0_159, %c0_160] : memref<3x4x256x256xbf16, #tpu.memory_space<vmem>>, vector<1x1x256x256xbf16>
    %182 = vector.shape_cast %181 : vector<1x1x256x256xbf16> to vector<256x256xbf16>
    %c2_161 = arith.constant 2 : index
    %c2_162 = arith.constant 2 : index
    %c0_163 = arith.constant 0 : index
    %c0_164 = arith.constant 0 : index
    %183 = vector.load %arg7[%c2_161, %c2_162, %c0_163, %c0_164] : memref<3x4x256x256xbf16, #tpu.memory_space<vmem>>, vector<1x1x256x256xbf16>
    %184 = vector.shape_cast %183 : vector<1x1x256x256xbf16> to vector<256x256xbf16>
    %c2_165 = arith.constant 2 : index
    %c3_166 = arith.constant 3 : index
    %c0_167 = arith.constant 0 : index
    %c0_168 = arith.constant 0 : index
    %185 = vector.load %arg7[%c2_165, %c3_166, %c0_167, %c0_168] : memref<3x4x256x256xbf16, #tpu.memory_space<vmem>>, vector<1x1x256x256xbf16>
    %186 = vector.shape_cast %185 : vector<1x1x256x256xbf16> to vector<256x256xbf16>
    %cst_169 = arith.constant dense<0.000000e+00> : vector<8x256xf32>
    %187 = tpu.matmul %172, %170, %cst_169 {dimension_numbers = #tpu.dot_dimension_numbers<[1], [0], [0], [1], [0, 0, 1, 1], [], []>} : vector<8x16xbf16>, vector<16x256xbf16>, vector<8x256xf32> -> vector<8x256xf32>
    %188 = arith.truncf %187 : vector<8x256xf32> to vector<8x256xbf16>
    %cst_170 = arith.constant dense<0.000000e+00> : vector<8x256xf32>
    %189 = tpu.matmul %188, %180, %cst_170 {dimension_numbers = #tpu.dot_dimension_numbers<[1], [0], [0], [1], [0, 0, 1, 1], [], []>} : vector<8x256xbf16>, vector<256x256xbf16>, vector<8x256xf32> -> vector<8x256xf32>
    %cst_171 = arith.constant dense<0.000000e+00> : vector<8x256xf32>
    %190 = tpu.matmul %174, %170, %cst_171 {dimension_numbers = #tpu.dot_dimension_numbers<[1], [0], [0], [1], [0, 0, 1, 1], [], []>} : vector<8x16xbf16>, vector<16x256xbf16>, vector<8x256xf32> -> vector<8x256xf32>
    %191 = arith.truncf %190 : vector<8x256xf32> to vector<8x256xbf16>
    %cst_172 = arith.constant dense<0.000000e+00> : vector<8x256xf32>
    %192 = tpu.matmul %191, %182, %cst_172 {dimension_numbers = #tpu.dot_dimension_numbers<[1], [0], [0], [1], [0, 0, 1, 1], [], []>} : vector<8x256xbf16>, vector<256x256xbf16>, vector<8x256xf32> -> vector<8x256xf32>
    %193 = arith.addf %189, %192 : vector<8x256xf32>
    %cst_173 = arith.constant dense<0.000000e+00> : vector<8x256xf32>
    %194 = tpu.matmul %176, %170, %cst_173 {dimension_numbers = #tpu.dot_dimension_numbers<[1], [0], [0], [1], [0, 0, 1, 1], [], []>} : vector<8x16xbf16>, vector<16x256xbf16>, vector<8x256xf32> -> vector<8x256xf32>
    %195 = arith.truncf %194 : vector<8x256xf32> to vector<8x256xbf16>
    %cst_174 = arith.constant dense<0.000000e+00> : vector<8x256xf32>
    %196 = tpu.matmul %195, %184, %cst_174 {dimension_numbers = #tpu.dot_dimension_numbers<[1], [0], [0], [1], [0, 0, 1, 1], [], []>} : vector<8x256xbf16>, vector<256x256xbf16>, vector<8x256xf32> -> vector<8x256xf32>
    %197 = arith.addf %193, %196 : vector<8x256xf32>
    %cst_175 = arith.constant dense<0.000000e+00> : vector<8x256xf32>
    %198 = tpu.matmul %178, %170, %cst_175 {dimension_numbers = #tpu.dot_dimension_numbers<[1], [0], [0], [1], [0, 0, 1, 1], [], []>} : vector<8x16xbf16>, vector<16x256xbf16>, vector<8x256xf32> -> vector<8x256xf32>
    %199 = arith.truncf %198 : vector<8x256xf32> to vector<8x256xbf16>
    %cst_176 = arith.constant dense<0.000000e+00> : vector<8x256xf32>
    %200 = tpu.matmul %199, %186, %cst_176 {dimension_numbers = #tpu.dot_dimension_numbers<[1], [0], [0], [1], [0, 0, 1, 1], [], []>} : vector<8x256xbf16>, vector<256x256xbf16>, vector<8x256xf32> -> vector<8x256xf32>
    %201 = arith.addf %197, %200 : vector<8x256xf32>
    %c2_177 = arith.constant 2 : index
    %c0_178 = arith.constant 0 : index
    %c0_179 = arith.constant 0 : index
    %202 = vector.load %arg10[%c2_177, %c0_178, %c0_179] : memref<3x256x256xf32, #tpu.memory_space<vmem>>, vector<1x256x256xf32>
    %203 = vector.shape_cast %202 : vector<1x256x256xf32> to vector<256x256xf32>
    %cst_180 = arith.constant dense<0.000000e+00> : vector<256xf32>
    %204 = vector.multi_reduction <add>, %201, %cst_180 [0] : vector<8x256xf32> to vector<256xf32>
    %205 = vector.shape_cast %204 : vector<256xf32> to vector<1x256xf32>
    %cst_181 = arith.constant 8.000000e+00 : f32
    %206 = vector.broadcast %cst_181 : f32 to vector<1x256xf32>
    %207 = arith.divf %205, %206 : vector<1x256xf32>
    %cst_182 = arith.constant dense<0.000000e+00> : vector<1x256xf32>
    %208 = tpu.matmul %207, %203, %cst_182 {dimension_numbers = #tpu.dot_dimension_numbers<[1], [0], [0], [1], [0, 0, 1, 1], [], []>} : vector<1x256xf32>, vector<256x256xf32>, vector<1x256xf32> -> vector<1x256xf32>
    %209 = vector.broadcast %208 : vector<1x256xf32> to vector<8x256xf32>
    %210 = arith.subf %201, %209 : vector<8x256xf32>
    %211 = arith.mulf %210, %210 : vector<8x256xf32>
    %cst_183 = arith.constant dense<0.000000e+00> : vector<256xf32>
    %212 = vector.multi_reduction <add>, %211, %cst_183 [0] : vector<8x256xf32> to vector<256xf32>
    %213 = vector.shape_cast %212 : vector<256xf32> to vector<1x256xf32>
    %cst_184 = arith.constant 8.000000e+00 : f32
    %214 = vector.broadcast %cst_184 : f32 to vector<1x256xf32>
    %215 = arith.divf %213, %214 : vector<1x256xf32>
    %cst_185 = arith.constant dense<0.000000e+00> : vector<1x256xf32>
    %216 = tpu.matmul %215, %203, %cst_185 {dimension_numbers = #tpu.dot_dimension_numbers<[1], [0], [0], [1], [0, 0, 1, 1], [], []>} : vector<1x256xf32>, vector<256x256xf32>, vector<1x256xf32> -> vector<1x256xf32>
    %cst_186 = arith.constant 9.99999974E-6 : f32
    %217 = vector.broadcast %cst_186 : f32 to vector<1x256xf32>
    %218 = arith.addf %216, %217 : vector<1x256xf32>
    %219 = math.rsqrt %218 : vector<1x256xf32>
    %220 = vector.broadcast %219 : vector<1x256xf32> to vector<8x256xf32>
    %221 = arith.mulf %210, %220 : vector<8x256xf32>
    %c2_187 = arith.constant 2 : index
    %c0_188 = arith.constant 0 : index
    %c0_189 = arith.constant 0 : index
    %222 = vector.load %arg8[%c2_187, %c0_188, %c0_189] : memref<3x1x256xf32, #tpu.memory_space<vmem>>, vector<1x1x256xf32>
    %223 = vector.shape_cast %222 : vector<1x1x256xf32> to vector<1x256xf32>
    %224 = vector.broadcast %223 : vector<1x256xf32> to vector<8x256xf32>
    %225 = arith.mulf %221, %224 : vector<8x256xf32>
    %c2_190 = arith.constant 2 : index
    %c0_191 = arith.constant 0 : index
    %c0_192 = arith.constant 0 : index
    %226 = vector.load %arg9[%c2_190, %c0_191, %c0_192] : memref<3x1x256xf32, #tpu.memory_space<vmem>>, vector<1x1x256xf32>
    %227 = vector.shape_cast %226 : vector<1x1x256xf32> to vector<1x256xf32>
    %228 = vector.broadcast %227 : vector<1x256xf32> to vector<8x256xf32>
    %229 = arith.addf %225, %228 : vector<8x256xf32>
    %cst_193 = arith.constant 0.000000e+00 : f32
    %230 = vector.broadcast %cst_193 : f32 to vector<8x256xf32>
    %231 = arith.cmpf ogt, %229, %230 : vector<8x256xf32>
    %cst_194 = arith.constant 2.000000e-01 : f32
    %232 = vector.broadcast %cst_194 : f32 to vector<8x256xf32>
    %233 = arith.mulf %232, %229 : vector<8x256xf32>
    %234 = arith.select %231, %229, %233 : vector<8x256xi1>, vector<8x256xf32>
    %235 = arith.truncf %234 : vector<8x256xf32> to vector<8x256xbf16>
    %c0_195 = arith.constant 0 : index
    %c0_196 = arith.constant 0 : index
    %c0_197 = arith.constant 0 : index
    %236 = vector.load %arg11[%c0_195, %c0_196, %c0_197] : memref<4x2x8xbf16, #tpu.memory_space<vmem>>, vector<1x2x8xbf16>
    %237 = vector.shape_cast %236 : vector<1x2x8xbf16> to vector<2x8xbf16>
    %cst_198 = arith.constant dense<0.000000e+00> : vector<2x256xf32>
    %238 = tpu.matmul %237, %235, %cst_198 {dimension_numbers = #tpu.dot_dimension_numbers<[1], [0], [0], [1], [0, 0, 1, 1], [], []>} : vector<2x8xbf16>, vector<8x256xbf16>, vector<2x256xf32> -> vector<2x256xf32>
    %c0_199 = arith.constant 0 : index
    %c0_200 = arith.constant 0 : index
    %c0_201 = arith.constant 0 : index
    %239 = vector.load %arg12[%c0_199, %c0_200, %c0_201] : memref<4x1x256xf32, #tpu.memory_space<vmem>>, vector<1x1x256xf32>
    %240 = vector.shape_cast %239 : vector<1x1x256xf32> to vector<1x256xf32>
    %241 = vector.broadcast %240 : vector<1x256xf32> to vector<2x256xf32>
    %242 = arith.mulf %238, %241 : vector<2x256xf32>
    %cst_202 = arith.constant dense<0.000000e+00> : vector<2xf32>
    %243 = vector.multi_reduction <add>, %242, %cst_202 [1] : vector<2x256xf32> to vector<2xf32>
    %244 = vector.shape_cast %243 : vector<2xf32> to vector<2x1xf32>
    %c1_203 = arith.constant 1 : index
    %c0_204 = arith.constant 0 : index
    %c0_205 = arith.constant 0 : index
    %245 = vector.load %arg11[%c1_203, %c0_204, %c0_205] : memref<4x2x8xbf16, #tpu.memory_space<vmem>>, vector<1x2x8xbf16>
    %246 = vector.shape_cast %245 : vector<1x2x8xbf16> to vector<2x8xbf16>
    %cst_206 = arith.constant dense<0.000000e+00> : vector<2x256xf32>
    %247 = tpu.matmul %246, %235, %cst_206 {dimension_numbers = #tpu.dot_dimension_numbers<[1], [0], [0], [1], [0, 0, 1, 1], [], []>} : vector<2x8xbf16>, vector<8x256xbf16>, vector<2x256xf32> -> vector<2x256xf32>
    %c1_207 = arith.constant 1 : index
    %c0_208 = arith.constant 0 : index
    %c0_209 = arith.constant 0 : index
    %248 = vector.load %arg12[%c1_207, %c0_208, %c0_209] : memref<4x1x256xf32, #tpu.memory_space<vmem>>, vector<1x1x256xf32>
    %249 = vector.shape_cast %248 : vector<1x1x256xf32> to vector<1x256xf32>
    %250 = vector.broadcast %249 : vector<1x256xf32> to vector<2x256xf32>
    %251 = arith.mulf %247, %250 : vector<2x256xf32>
    %cst_210 = arith.constant dense<0.000000e+00> : vector<2xf32>
    %252 = vector.multi_reduction <add>, %251, %cst_210 [1] : vector<2x256xf32> to vector<2xf32>
    %253 = vector.shape_cast %252 : vector<2xf32> to vector<2x1xf32>
    %254 = arith.addf %244, %253 : vector<2x1xf32>
    %c2_211 = arith.constant 2 : index
    %c0_212 = arith.constant 0 : index
    %c0_213 = arith.constant 0 : index
    %255 = vector.load %arg11[%c2_211, %c0_212, %c0_213] : memref<4x2x8xbf16, #tpu.memory_space<vmem>>, vector<1x2x8xbf16>
    %256 = vector.shape_cast %255 : vector<1x2x8xbf16> to vector<2x8xbf16>
    %cst_214 = arith.constant dense<0.000000e+00> : vector<2x256xf32>
    %257 = tpu.matmul %256, %235, %cst_214 {dimension_numbers = #tpu.dot_dimension_numbers<[1], [0], [0], [1], [0, 0, 1, 1], [], []>} : vector<2x8xbf16>, vector<8x256xbf16>, vector<2x256xf32> -> vector<2x256xf32>
    %c2_215 = arith.constant 2 : index
    %c0_216 = arith.constant 0 : index
    %c0_217 = arith.constant 0 : index
    %258 = vector.load %arg12[%c2_215, %c0_216, %c0_217] : memref<4x1x256xf32, #tpu.memory_space<vmem>>, vector<1x1x256xf32>
    %259 = vector.shape_cast %258 : vector<1x1x256xf32> to vector<1x256xf32>
    %260 = vector.broadcast %259 : vector<1x256xf32> to vector<2x256xf32>
    %261 = arith.mulf %257, %260 : vector<2x256xf32>
    %cst_218 = arith.constant dense<0.000000e+00> : vector<2xf32>
    %262 = vector.multi_reduction <add>, %261, %cst_218 [1] : vector<2x256xf32> to vector<2xf32>
    %263 = vector.shape_cast %262 : vector<2xf32> to vector<2x1xf32>
    %264 = arith.addf %254, %263 : vector<2x1xf32>
    %c3_219 = arith.constant 3 : index
    %c0_220 = arith.constant 0 : index
    %c0_221 = arith.constant 0 : index
    %265 = vector.load %arg11[%c3_219, %c0_220, %c0_221] : memref<4x2x8xbf16, #tpu.memory_space<vmem>>, vector<1x2x8xbf16>
    %266 = vector.shape_cast %265 : vector<1x2x8xbf16> to vector<2x8xbf16>
    %cst_222 = arith.constant dense<0.000000e+00> : vector<2x256xf32>
    %267 = tpu.matmul %266, %235, %cst_222 {dimension_numbers = #tpu.dot_dimension_numbers<[1], [0], [0], [1], [0, 0, 1, 1], [], []>} : vector<2x8xbf16>, vector<8x256xbf16>, vector<2x256xf32> -> vector<2x256xf32>
    %c3_223 = arith.constant 3 : index
    %c0_224 = arith.constant 0 : index
    %c0_225 = arith.constant 0 : index
    %268 = vector.load %arg12[%c3_223, %c0_224, %c0_225] : memref<4x1x256xf32, #tpu.memory_space<vmem>>, vector<1x1x256xf32>
    %269 = vector.shape_cast %268 : vector<1x1x256xf32> to vector<1x256xf32>
    %270 = vector.broadcast %269 : vector<1x256xf32> to vector<2x256xf32>
    %271 = arith.mulf %267, %270 : vector<2x256xf32>
    %cst_226 = arith.constant dense<0.000000e+00> : vector<2xf32>
    %272 = vector.multi_reduction <add>, %271, %cst_226 [1] : vector<2x256xf32> to vector<2xf32>
    %273 = vector.shape_cast %272 : vector<2xf32> to vector<2x1xf32>
    %274 = arith.addf %264, %273 : vector<2x1xf32>
    %c0_227 = arith.constant 0 : index
    %c0_228 = arith.constant 0 : index
    %275 = vector.load %arg13[%c0_227, %c0_228] : memref<1x1xf32, #tpu.memory_space<vmem>>, vector<1x1xf32>
    %276 = vector.broadcast %275 : vector<1x1xf32> to vector<2x1xf32>
    %277 = arith.addf %274, %276 : vector<2x1xf32>
    %c0_229 = arith.constant 0 : index
    %c0_230 = arith.constant 0 : index
    %278 = vector.load %arg14[%c0_229, %c0_230] : memref<2x1xf32, #tpu.memory_space<vmem>>, vector<2x1xf32>
    tpu.vector_store %arg14[%c0_229, %c0_230], %277 {strides = array<i32>} : memref<2x1xf32, #tpu.memory_space<vmem>>, vector<2x1xf32>,
    return
  }
}

</mosaic_0001>

<llo_original>
// kernel: discriminator_forward.1
$region0: #{discriminator_forward.1}
  #allocation0 [shape = 'u32[]', space=smem, size = 0x4, offset = 0x4, fixed_abs, tag = 'smem constant byte address 0x4 - core index']
  #allocation1 [shape = 'u32[144,128]{1,0:T(1,128)}', space=vmem, size = 0x12000, scoped, tag = 'internal scratch']
  #allocation2 [shape = 'f32[1,1]{1,0:T(1,128)S(1)}', space=vmem, size = 0x200, scoped, tag = 'scoped memory for discriminator_forward.1']
  %s0 = inlined_call_operand.vmem [shape: bf16[128,192], index: 0, kind: input, shape index: {}]
  %s1 = inlined_call_operand.vmem [shape: bf16[4,64,128], index: 1, kind: input, shape index: {}]
  %s2 = inlined_call_operand.vmem [shape: bf16[4,192,256], index: 2, kind: input, shape index: {}]
  %s3 = inlined_call_operand.vmem [shape: f32[1,256], index: 3, kind: input, shape index: {}]
  %s4 = inlined_call_operand.vmem [shape: bf16[4,32,64], index: 4, kind: input, shape index: {}]
  %s5 = inlined_call_operand.vmem [shape: bf16[4,16,32], index: 5, kind: input, shape index: {}]
  %s6 = inlined_call_operand.vmem [shape: bf16[4,8,16], index: 6, kind: input, shape index: {}]
  %s7 = inlined_call_operand.vmem [shape: bf16[3,4,256,256], index: 7, kind: input, shape index: {}]
  %s8 = inlined_call_operand.vmem [shape: f32[3,1,256], index: 8, kind: input, shape index: {}]
  %s9 = inlined_call_operand.vmem [shape: f32[3,1,256], index: 9, kind: input, shape index: {}]
  %s10 = inlined_call_operand.vmem [shape: f32[3,256,256], index: 10, kind: input, shape index: {}]
  %s11 = inlined_call_operand.vmem [shape: bf16[4,2,8], index: 11, kind: input, shape index: {}]
  %s12 = inlined_call_operand.vmem [shape: f32[4,1,256], index: 12, kind: input, shape index: {}]
  %s13 = inlined_call_operand.<no memory space> [shape: f32[1,1], index: 13, kind: input, shape index: {}]
  %s14 = inlined_call_operand.vmem [shape: f32[2,1], index: 14, kind: output, shape index: {}]
  %s15 = sld [smem:[#allocation0]]
  $region66: #{discriminator_forward.1} parent=0
    _
  %s17 = ssub.s32 1, %s15
  %s18 = scalar_select 0, %s17, %s15
  %v19 = vstv %s13
  %20 = vst [vmem:[#allocation2] sm:$0x1] %v19
  // Predicated region
  $region2: #{discriminator_forward.1} parent=0 // pred_check
    _
  $region3: #{discriminator_forward.1} parent=0 // pred_check_branch
    %22 = sbr.rel (0) target = $region5
  $region4: #{discriminator_forward.1} parent=0 // pred_region
    _
  $region5: #{discriminator_forward.1} parent=0 // pred_fallthru
    _
  // Predicated region
  $region6: #{discriminator_forward.1} parent=0 // pred_check
    _
  $region7: #{discriminator_forward.1} parent=0 // pred_check_branch
    %24 = sbr.rel (0) target = $region9
  $region8: #{discriminator_forward.1} parent=0 // pred_region
    _
  $region9: #{discriminator_forward.1} parent=0 // pred_fallthru
    _
  // Predicated region
  $region10: #{discriminator_forward.1} parent=0 // pred_check
    _
  $region11: #{discriminator_forward.1} parent=0 // pred_check_branch
    %26 = sbr.rel (0) target = $region13
  $region12: #{discriminator_forward.1} parent=0 // pred_region
    _
  $region13: #{discriminator_forward.1} parent=0 // pred_fallthru
    _
  // Predicated region
  $region14: #{discriminator_forward.1} parent=0 // pred_check
    _
  $region15: #{discriminator_forward.1} parent=0 // pred_check_branch
    %28 = sbr.rel (0) target = $region17
  $region16: #{discriminator_forward.1} parent=0 // pred_region
    _
  $region17: #{discriminator_forward.1} parent=0 // pred_fallthru
    _
  // Predicated region
  $region18: #{discriminator_forward.1} parent=0 // pred_check
    _
  $region19: #{discriminator_forward.1} parent=0 // pred_check_branch
    %30 = sbr.rel (0) target = $region21
  $region20: #{discriminator_forward.1} parent=0 // pred_region
    _
  $region21: #{discriminator_forward.1} parent=0 // pred_fallthru
    _
  // Predicated region
  $region22: #{discriminator_forward.1} parent=0 // pred_check
    _
  $region23: #{discriminator_forward.1} parent=0 // pred_check_branch
    %32 = sbr.rel (0) target = $region25
  $region24: #{discriminator_forward.1} parent=0 // pred_region
    _
  $region25: #{discriminator_forward.1} parent=0 // pred_fallthru
    _
  // Predicated region
  $region26: #{discriminator_forward.1} parent=0 // pred_check
    _
  $region27: #{discriminator_forward.1} parent=0 // pred_check_branch
    %34 = sbr.rel (0) target = $region29
  $region28: #{discriminator_forward.1} parent=0 // pred_region
    _
  $region29: #{discriminator_forward.1} parent=0 // pred_fallthru
    _
  // Predicated region
  $region30: #{discriminator_forward.1} parent=0 // pred_check
    _
  $region31: #{discriminator_forward.1} parent=0 // pred_check_branch
    %36 = sbr.rel (0) target = $region33
  $region32: #{discriminator_forward.1} parent=0 // pred_region
    _
  $region33: #{discriminator_forward.1} parent=0 // pred_fallthru
    _
  // Predicated region
  $region34: #{discriminator_forward.1} parent=0 // pred_check
    _
  $region35: #{discriminator_forward.1} parent=0 // pred_check_branch
    %38 = sbr.rel (0) target = $region37
  $region36: #{discriminator_forward.1} parent=0 // pred_region
    _
  $region37: #{discriminator_forward.1} parent=0 // pred_fallthru
    _
  // Predicated region
  $region38: #{discriminator_forward.1} parent=0 // pred_check
    _
  $region39: #{discriminator_forward.1} parent=0 // pred_check_branch
    %40 = sbr.rel (0) target = $region41
  $region40: #{discriminator_forward.1} parent=0 // pred_region
    _
  $region41: #{discriminator_forward.1} parent=0 // pred_fallthru
    _
  // Predicated region
  $region42: #{discriminator_forward.1} parent=0 // pred_check
    _
  $region43: #{discriminator_forward.1} parent=0 // pred_check_branch
    %42 = sbr.rel (0) target = $region45
  $region44: #{discriminator_forward.1} parent=0 // pred_region
    _
  $region45: #{discriminator_forward.1} parent=0 // pred_fallthru
    _
  // Predicated region
  $region46: #{discriminator_forward.1} parent=0 // pred_check
    _
  $region47: #{discriminator_forward.1} parent=0 // pred_check_branch
    %44 = sbr.rel (0) target = $region49
  $region48: #{discriminator_forward.1} parent=0 // pred_region
    _
  $region49: #{discriminator_forward.1} parent=0 // pred_fallthru
    _
  // Predicated region
  $region50: #{discriminator_forward.1} parent=0 // pred_check
    _
  $region51: #{discriminator_forward.1} parent=0 // pred_check_branch
    %46 = sbr.rel (0) target = $region53
  $region52: #{discriminator_forward.1} parent=0 // pred_region
    _
  $region53: #{discriminator_forward.1} parent=0 // pred_fallthru
    _
  // Predicated region
  $region54: #{discriminator_forward.1} parent=0 // pred_check
    _
  $region55: #{discriminator_forward.1} parent=0 // pred_check_branch
    %48 = sbr.rel (0) target = $region57
  $region56: #{discriminator_forward.1} parent=0 // pred_region
    _
  $region57: #{discriminator_forward.1} parent=0 // pred_fallthru
    _
  %v50 = vld [vmem:[%s0] sm:$0xff]
  %v51 = vld [vmem:[%s0 + $0x8] sm:$0xff]
  %v52 = vld [vmem:[%s0 + $0x10] sm:$0xff]
  %v53 = vld [vmem:[%s0 + $0x18] sm:$0xff]
  %v54 = vld [vmem:[%s0 + $0x20] sm:$0xff]
  %v55 = vld [vmem:[%s0 + $0x28] sm:$0xff]
  %v56 = vld [vmem:[%s0 + $0x30] sm:$0xff]
  %v57 = vld [vmem:[%s0 + $0x38] sm:$0xff]
  %v58 = vld [vmem:[%s0 + $0x40] sm:$0xff]
  %v59 = vld [vmem:[%s0 + $0x48] sm:$0xff]
  %v60 = vld [vmem:[%s0 + $0x50] sm:$0xff]
  %v61 = vld [vmem:[%s0 + $0x58] sm:$0xff]
  %v62 = vld [vmem:[%s0 + $0x60] sm:$0xff]
  %v63 = vld [vmem:[%s0 + $0x68] sm:$0xff]
  %v64 = vld [vmem:[%s0 + $0x70] sm:$0xff]
  %v65 = vld [vmem:[%s0 + $0x78] sm:$0xff]
  %v66 = vld [vmem:[%s1] sm:$0xf]
  %v67 = vld [vmem:[%s1 + $0x4] sm:$0xf]
  %v68 = vld [vmem:[%s1 + $0x8] sm:$0xf]
  %v69 = vld [vmem:[%s1 + $0xc] sm:$0xf]
  %v70 = vld [vmem:[%s1 + $0x10] sm:$0xf]
  %v71 = vld [vmem:[%s1 + $0x14] sm:$0xf]
  %v72 = vld [vmem:[%s1 + $0x18] sm:$0xf]
  %v73 = vld [vmem:[%s1 + $0x1c] sm:$0xf]
  %s74 = scalar_lea.vmem %s1, 32
  %v75 = vld [vmem:[%s74] sm:$0xf]
  %v76 = vld [vmem:[%s74 + $0x4] sm:$0xf]
  %v77 = vld [vmem:[%s74 + $0x8] sm:$0xf]
  %v78 = vld [vmem:[%s74 + $0xc] sm:$0xf]
  %v79 = vld [vmem:[%s74 + $0x10] sm:$0xf]
  %v80 = vld [vmem:[%s74 + $0x14] sm:$0xf]
  %v81 = vld [vmem:[%s74 + $0x18] sm:$0xf]
  %v82 = vld [vmem:[%s74 + $0x1c] sm:$0xf]
  %s83 = scalar_lea.vmem %s1, 64
  %v84 = vld [vmem:[%s83] sm:$0xf]
  %v85 = vld [vmem:[%s83 + $0x4] sm:$0xf]
  %v86 = vld [vmem:[%s83 + $0x8] sm:$0xf]
  %v87 = vld [vmem:[%s83 + $0xc] sm:$0xf]
  %v88 = vld [vmem:[%s83 + $0x10] sm:$0xf]
  %v89 = vld [vmem:[%s83 + $0x14] sm:$0xf]
  %v90 = vld [vmem:[%s83 + $0x18] sm:$0xf]
  %v91 = vld [vmem:[%s83 + $0x1c] sm:$0xf]
  %s92 = scalar_lea.vmem %s1, 96
  %v93 = vld [vmem:[%s92] sm:$0xf]
  %v94 = vld [vmem:[%s92 + $0x4] sm:$0xf]
  %v95 = vld [vmem:[%s92 + $0x8] sm:$0xf]
  %v96 = vld [vmem:[%s92 + $0xc] sm:$0xf]
  %v97 = vld [vmem:[%s92 + $0x10] sm:$0xf]
  %v98 = vld [vmem:[%s92 + $0x14] sm:$0xf]
  %v99 = vld [vmem:[%s92 + $0x18] sm:$0xf]
  %v100 = vld [vmem:[%s92 + $0x1c] sm:$0xf]
  %v101 = vld [vmem:[%s2] sm:$0xff]
  %v102 = vld [vmem:[%s2 + $0x8] sm:$0xff]
  %v103 = vld [vmem:[%s2 + $0x10] sm:$0xff]
  %v104 = vld [vmem:[%s2 + $0x18] sm:$0xff]
  %v105 = vld [vmem:[%s2 + $0x20] sm:$0xff]
  %v106 = vld [vmem:[%s2 + $0x28] sm:$0xff]
  %v107 = vld [vmem:[%s2 + $0x30] sm:$0xff]
  %v108 = vld [vmem:[%s2 + $0x38] sm:$0xff]
  %v109 = vld [vmem:[%s2 + $0x40] sm:$0xff]
  %v110 = vld [vmem:[%s2 + $0x48] sm:$0xff]
  %v111 = vld [vmem:[%s2 + $0x50] sm:$0xff]
  %v112 = vld [vmem:[%s2 + $0x58] sm:$0xff]
  %v113 = vld [vmem:[%s2 + $0x60] sm:$0xff]
  %v114 = vld [vmem:[%s2 + $0x68] sm:$0xff]
  %v115 = vld [vmem:[%s2 + $0x70] sm:$0xff]
  %v116 = vld [vmem:[%s2 + $0x78] sm:$0xff]
  %v117 = vld [vmem:[%s2 + $0x80] sm:$0xff]
  %v118 = vld [vmem:[%s2 + $0x88] sm:$0xff]
  %v119 = vld [vmem:[%s2 + $0x90] sm:$0xff]
  %v120 = vld [vmem:[%s2 + $0x98] sm:$0xff]
  %v121 = vld [vmem:[%s2 + $0xa0] sm:$0xff]
  %v122 = vld [vmem:[%s2 + $0xa8] sm:$0xff]
  %v123 = vld [vmem:[%s2 + $0xb0] sm:$0xff]
  %v124 = vld [vmem:[%s2 + $0xb8] sm:$0xff]
  %s125 = scalar_lea.vmem %s2, 192
  %v126 = vld [vmem:[%s125] sm:$0xff]
  %v127 = vld [vmem:[%s125 + $0x8] sm:$0xff]
  %v128 = vld [vmem:[%s125 + $0x10] sm:$0xff]
  %v129 = vld [vmem:[%s125 + $0x18] sm:$0xff]
  %v130 = vld [vmem:[%s125 + $0x20] sm:$0xff]
  %v131 = vld [vmem:[%s125 + $0x28] sm:$0xff]
  %v132 = vld [vmem:[%s125 + $0x30] sm:$0xff]
  %v133 = vld [vmem:[%s125 + $0x38] sm:$0xff]
  %v134 = vld [vmem:[%s125 + $0x40] sm:$0xff]
  %v135 = vld [vmem:[%s125 + $0x48] sm:$0xff]
  %v136 = vld [vmem:[%s125 + $0x50] sm:$0xff]
  %v137 = vld [vmem:[%s125 + $0x58] sm:$0xff]
  %v138 = vld [vmem:[%s125 + $0x60] sm:$0xff]
  %v139 = vld [vmem:[%s125 + $0x68] sm:$0xff]
  %v140 = vld [vmem:[%s125 + $0x70] sm:$0xff]
  %v141 = vld [vmem:[%s125 + $0x78] sm:$0xff]
  %v142 = vld [vmem:[%s125 + $0x80] sm:$0xff]
  %v143 = vld [vmem:[%s125 + $0x88] sm:$0xff]
  %v144 = vld [vmem:[%s125 + $0x90] sm:$0xff]
  %v145 = vld [vmem:[%s125 + $0x98] sm:$0xff]
  %v146 = vld [vmem:[%s125 + $0xa0] sm:$0xff]
  %v147 = vld [vmem:[%s125 + $0xa8] sm:$0xff]
  %v148 = vld [vmem:[%s125 + $0xb0] sm:$0xff]
  %v149 = vld [vmem:[%s125 + $0xb8] sm:$0xff]
  %s150 = scalar_lea.vmem %s2, 384
  %v151 = vld [vmem:[%s150] sm:$0xff]
  %v152 = vld [vmem:[%s150 + $0x8] sm:$0xff]
  %v153 = vld [vmem:[%s150 + $0x10] sm:$0xff]
  %v154 = vld [vmem:[%s150 + $0x18] sm:$0xff]
  %v155 = vld [vmem:[%s150 + $0x20] sm:$0xff]
  %v156 = vld [vmem:[%s150 + $0x28] sm:$0xff]
  %v157 = vld [vmem:[%s150 + $0x30] sm:$0xff]
  %v158 = vld [vmem:[%s150 + $0x38] sm:$0xff]
  %v159 = vld [vmem:[%s150 + $0x40] sm:$0xff]
  %v160 = vld [vmem:[%s150 + $0x48] sm:$0xff]
  %v161 = vld [vmem:[%s150 + $0x50] sm:$0xff]
  %v162 = vld [vmem:[%s150 + $0x58] sm:$0xff]
  %v163 = vld [vmem:[%s150 + $0x60] sm:$0xff]
  %v164 = vld [vmem:[%s150 + $0x68] sm:$0xff]
  %v165 = vld [vmem:[%s150 + $0x70] sm:$0xff]
  %v166 = vld [vmem:[%s150 + $0x78] sm:$0xff]
  %v167 = vld [vmem:[%s150 + $0x80] sm:$0xff]
  %v168 = vld [vmem:[%s150 + $0x88] sm:$0xff]
  %v169 = vld [vmem:[%s150 + $0x90] sm:$0xff]
  %v170 = vld [vmem:[%s150 + $0x98] sm:$0xff]
  %v171 = vld [vmem:[%s150 + $0xa0] sm:$0xff]
  %v172 = vld [vmem:[%s150 + $0xa8] sm:$0xff]
  %v173 = vld [vmem:[%s150 + $0xb0] sm:$0xff]
  %v174 = vld [vmem:[%s150 + $0xb8] sm:$0xff]
  %s175 = scalar_lea.vmem %s2, 576
  %v176 = vld [vmem:[%s175] sm:$0xff]
  %v177 = vld [vmem:[%s175 + $0x8] sm:$0xff]
  %v178 = vld [vmem:[%s175 + $0x10] sm:$0xff]
  %v179 = vld [vmem:[%s175 + $0x18] sm:$0xff]
  %v180 = vld [vmem:[%s175 + $0x20] sm:$0xff]
  %v181 = vld [vmem:[%s175 + $0x28] sm:$0xff]
  %v182 = vld [vmem:[%s175 + $0x30] sm:$0xff]
  %v183 = vld [vmem:[%s175 + $0x38] sm:$0xff]
  %v184 = vld [vmem:[%s175 + $0x40] sm:$0xff]
  %v185 = vld [vmem:[%s175 + $0x48] sm:$0xff]
  %v186 = vld [vmem:[%s175 + $0x50] sm:$0xff]
  %v187 = vld [vmem:[%s175 + $0x58] sm:$0xff]
  %v188 = vld [vmem:[%s175 + $0x60] sm:$0xff]
  %v189 = vld [vmem:[%s175 + $0x68] sm:$0xff]
  %v190 = vld [vmem:[%s175 + $0x70] sm:$0xff]
  %v191 = vld [vmem:[%s175 + $0x78] sm:$0xff]
  %v192 = vld [vmem:[%s175 + $0x80] sm:$0xff]
  %v193 = vld [vmem:[%s175 + $0x88] sm:$0xff]
  %v194 = vld [vmem:[%s175 + $0x90] sm:$0xff]
  %v195 = vld [vmem:[%s175 + $0x98] sm:$0xff]
  %v196 = vld [vmem:[%s175 + $0xa0] sm:$0xff]
  %v197 = vld [vmem:[%s175 + $0xa8] sm:$0xff]
  %v198 = vld [vmem:[%s175 + $0xb0] sm:$0xff]
  %v199 = vld [vmem:[%s175 + $0xb8] sm:$0xff]
  %v208 = vunpack.c.l.b16 %v66
  %v209 = vunpack.c.l.b16 %v67
  %v210 = vunpack.c.l.b16 %v68
  %v211 = vunpack.c.l.b16 %v69
  %v212 = vunpack.c.l.b16 %v70
  %v213 = vunpack.c.l.b16 %v71
  %v214 = vunpack.c.l.b16 %v72
  %v215 = vunpack.c.l.b16 %v73
  %v216 = vpack.c.b16 %v209, %v208
  %v217 = vpack.c.b16 %v211, %v210
  %v218 = vpack.c.b16 %v213, %v212
  %v219 = vpack.c.b16 %v215, %v214
  %v240 = vunpack.c.l.b16 %v50
  %v241 = vunpack.c.h.b16 %v50
  %v242 = vunpack.c.l.b16 %v51
  %v243 = vunpack.c.h.b16 %v51
  %v244 = vunpack.c.l.b16 %v52
  %v245 = vunpack.c.h.b16 %v52
  %v246 = vunpack.c.l.b16 %v53
  %v247 = vunpack.c.h.b16 %v53
  %v248 = vunpack.c.l.b16 %v54
  %v249 = vunpack.c.h.b16 %v54
  %v250 = vunpack.c.l.b16 %v55
  %v251 = vunpack.c.h.b16 %v55
  %v252 = vunpack.c.l.b16 %v56
  %v253 = vunpack.c.h.b16 %v56
  %v254 = vunpack.c.l.b16 %v57
  %v255 = vunpack.c.h.b16 %v57
  %v256 = vunpack.c.l.b16 %v58
  %v257 = vunpack.c.h.b16 %v58
  %v258 = vunpack.c.l.b16 %v59
  %v259 = vunpack.c.h.b16 %v59
  %v260 = vunpack.c.l.b16 %v60
  %v261 = vunpack.c.h.b16 %v60
  %v262 = vunpack.c.l.b16 %v61
  %v263 = vunpack.c.h.b16 %v61
  %v264 = vunpack.c.l.b16 %v62
  %v265 = vunpack.c.h.b16 %v62
  %v266 = vunpack.c.l.b16 %v63
  %v267 = vunpack.c.h.b16 %v63
  %v268 = vunpack.c.l.b16 %v64
  %v269 = vunpack.c.h.b16 %v64
  %v270 = vunpack.c.l.b16 %v65
  %v271 = vunpack.c.h.b16 %v65
  %v272 = vpack.c.b16 %v242, %v240
  %v273 = vpack.c.b16 %v243, %v241
  %v274 = vpack.c.b16 %v246, %v244
  %v275 = vpack.c.b16 %v247, %v245
  %v276 = vpack.c.b16 %v250, %v248
  %v277 = vpack.c.b16 %v251, %v249
  %v278 = vpack.c.b16 %v254, %v252
  %v279 = vpack.c.b16 %v255, %v253
  %v280 = vpack.c.b16 %v258, %v256
  %v281 = vpack.c.b16 %v259, %v257
  %v282 = vpack.c.b16 %v262, %v260
  %v283 = vpack.c.b16 %v263, %v261
  %v284 = vpack.c.b16 %v266, %v264
  %v285 = vpack.c.b16 %v267, %v265
  %v286 = vpack.c.b16 %v270, %v268
  %v287 = vpack.c.b16 %v271, %v269
  %304 = vmatprep.subr.bf16.mxu0 %v287
  %305 = vmatpush1.bf16.msra.mxu0 %v286
  %306 = vmatprep.subr.bf16.mxu0 %v285
  %307 = vmatpush1.bf16.msra.mxu0 %v284
  %308 = vmatprep.subr.bf16.mxu0 %v283
  %309 = vmatpush1.bf16.msra.mxu0 %v282
  %310 = vmatprep.subr.bf16.mxu0 %v281
  %311 = vmatpush1.bf16.msra.mxu0 %v280
  %312 = vmatprep.subr.bf16.mxu0 %v279
  %313 = vmatpush1.bf16.msra.mxu0 %v278
  %314 = vmatprep.subr.bf16.mxu0 %v277
  %315 = vmatpush1.bf16.msra.mxu0 %v276
  %316 = vmatprep.subr.bf16.mxu0 %v275
  %317 = vmatpush1.bf16.msra.mxu0 %v274
  %318 = vmatprep.subr.bf16.mxu0 %v273
  %319 = vmatpush1.bf16.msra.mxu0 %v272
  %320 = vmatprep.subr.bf16.mxu0 0
  %321 = vmatpush2.bf16.msra.mxu0 0
  %322 = vmatprep.subr.bf16.mxu0 0
  %323 = vmatpush2.bf16.msra.mxu0 0
  %324 = vmatprep.subr.bf16.mxu0 0
  %325 = vmatpush2.bf16.msra.mxu0 0
  %326 = vmatprep.subr.bf16.mxu0 0
  %327 = vmatpush2.bf16.msra.mxu0 0
  %328 = vmatprep.subr.bf16.mxu0 0
  %329 = vmatpush2.bf16.msra.mxu0 0
  %330 = vmatprep.subr.bf16.mxu0 0
  %331 = vmatpush2.bf16.msra.mxu0 0
  %332 = vmatprep.subr.bf16.mxu0 0
  %333 = vmatpush2.bf16.msra.mxu0 0
  %334 = vmatprep.subr.bf16.mxu0 0
  %335 = vmatpush2.bf16.msra.mxu0 0
  %336 = vmatprep.mubr.bf16.mxu0 0
  %337 = vmatmul.mubr.bf16.gmra.mxu0 %v216
  %v338 = vpop.f32.mrf.mxu0
  %v339 = vadd.f32 0.0, %v338
  %v340 = vpop.f32.mrf.mxu0
  %v341 = vadd.f32 0.0, %v340
  %v342 = vpop.f32.mrf.mxu0
  %v343 = vadd.f32 0.0, %v342
  %v344 = vpop.f32.mrf.mxu0
  %v345 = vadd.f32 0.0, %v344
  %346 = vmatprep.mubr.bf16.mxu0 0
  %347 = vmatmul.mubr.bf16.gmra.mxu0 %v217
  %v348 = vpop.f32.mrf.mxu0
  %v349 = vadd.f32 0.0, %v348
  %v350 = vpop.f32.mrf.mxu0
  %v351 = vadd.f32 0.0, %v350
  %v352 = vpop.f32.mrf.mxu0
  %v353 = vadd.f32 0.0, %v352
  %v354 = vpop.f32.mrf.mxu0
  %v355 = vadd.f32 0.0, %v354
  %356 = vmatprep.mubr.bf16.mxu0 0
  %357 = vmatmul.mubr.bf16.gmra.mxu0 %v218
  %v358 = vpop.f32.mrf.mxu0
  %v359 = vadd.f32 0.0, %v358
  %v360 = vpop.f32.mrf.mxu0
  %v361 = vadd.f32 0.0, %v360
  %v362 = vpop.f32.mrf.mxu0
  %v363 = vadd.f32 0.0, %v362
  %v364 = vpop.f32.mrf.mxu0
  %v365 = vadd.f32 0.0, %v364
  %366 = vmatprep.mubr.bf16.mxu0 0
  %367 = vmatmul.mubr.bf16.gmra.mxu0 %v219
  %v368 = vpop.f32.mrf.mxu0
  %v369 = vadd.f32 0.0, %v368
  %v370 = vpop.f32.mrf.mxu0
  %v371 = vadd.f32 0.0, %v370
  %v372 = vpop.f32.mrf.mxu0
  %v373 = vadd.f32 0.0, %v372
  %v374 = vpop.f32.mrf.mxu0
  %v375 = vadd.f32 0.0, %v374
  %376 = vdwg.mxu0
  %v377 = vpack.c.bf16 %v343, %v339
  %v378 = vpack.c.bf16 %v345, %v341
  %v379 = vpack.c.bf16 %v353, %v349
  %v380 = vpack.c.bf16 %v355, %v351
  %v381 = vpack.c.bf16 %v363, %v359
  %v382 = vpack.c.bf16 %v365, %v361
  %v383 = vpack.c.bf16 %v373, %v369
  %v384 = vpack.c.bf16 %v375, %v371
  %v393 = vunpack.c.l.b16 %v75
  %v394 = vunpack.c.l.b16 %v76
  %v395 = vunpack.c.l.b16 %v77
  %v396 = vunpack.c.l.b16 %v78
  %v397 = vunpack.c.l.b16 %v79
  %v398 = vunpack.c.l.b16 %v80
  %v399 = vunpack.c.l.b16 %v81
  %v400 = vunpack.c.l.b16 %v82
  %v401 = vpack.c.b16 %v394, %v393
  %v402 = vpack.c.b16 %v396, %v395
  %v403 = vpack.c.b16 %v398, %v397
  %v404 = vpack.c.b16 %v400, %v399
  %409 = vmatprep.subr.bf16.mxu0 %v287
  %410 = vmatpush1.bf16.msra.mxu0 %v286
  %411 = vmatprep.subr.bf16.mxu0 %v285
  %412 = vmatpush1.bf16.msra.mxu0 %v284
  %413 = vmatprep.subr.bf16.mxu0 %v283
  %414 = vmatpush1.bf16.msra.mxu0 %v282
  %415 = vmatprep.subr.bf16.mxu0 %v281
  %416 = vmatpush1.bf16.msra.mxu0 %v280
  %417 = vmatprep.subr.bf16.mxu0 %v279
  %418 = vmatpush1.bf16.msra.mxu0 %v278
  %419 = vmatprep.subr.bf16.mxu0 %v277
  %420 = vmatpush1.bf16.msra.mxu0 %v276
  %421 = vmatprep.subr.bf16.mxu0 %v275
  %422 = vmatpush1.bf16.msra.mxu0 %v274
  %423 = vmatprep.subr.bf16.mxu0 %v273
  %424 = vmatpush1.bf16.msra.mxu0 %v272
  %425 = vmatprep.subr.bf16.mxu0 0
  %426 = vmatpush2.bf16.msra.mxu0 0
  %427 = vmatprep.subr.bf16.mxu0 0
  %428 = vmatpush2.bf16.msra.mxu0 0
  %429 = vmatprep.subr.bf16.mxu0 0
  %430 = vmatpush2.bf16.msra.mxu0 0
  %431 = vmatprep.subr.bf16.mxu0 0
  %432 = vmatpush2.bf16.msra.mxu0 0
  %433 = vmatprep.subr.bf16.mxu0 0
  %434 = vmatpush2.bf16.msra.mxu0 0
  %435 = vmatprep.subr.bf16.mxu0 0
  %436 = vmatpush2.bf16.msra.mxu0 0
  %437 = vmatprep.subr.bf16.mxu0 0
  %438 = vmatpush2.bf16.msra.mxu0 0
  %439 = vmatprep.subr.bf16.mxu0 0
  %440 = vmatpush2.bf16.msra.mxu0 0
  %441 = vmatprep.mubr.bf16.mxu0 0
  %442 = vmatmul.mubr.bf16.gmra.mxu0 %v401
  %v443 = vpop.f32.mrf.mxu0
  %v444 = vadd.f32 0.0, %v443
  %v445 = vpop.f32.mrf.mxu0
  %v446 = vadd.f32 0.0, %v445
  %v447 = vpop.f32.mrf.mxu0
  %v448 = vadd.f32 0.0, %v447
  %v449 = vpop.f32.mrf.mxu0
  %v450 = vadd.f32 0.0, %v449
  %451 = vmatprep.mubr.bf16.mxu0 0
  %452 = vmatmul.mubr.bf16.gmra.mxu0 %v402
  %v453 = vpop.f32.mrf.mxu0
  %v454 = vadd.f32 0.0, %v453
  %v455 = vpop.f32.mrf.mxu0
  %v456 = vadd.f32 0.0, %v455
  %v457 = vpop.f32.mrf.mxu0
  %v458 = vadd.f32 0.0, %v457
  %v459 = vpop.f32.mrf.mxu0
  %v460 = vadd.f32 0.0, %v459
  %461 = vmatprep.mubr.bf16.mxu0 0
  %462 = vmatmul.mubr.bf16.gmra.mxu0 %v403
  %v463 = vpop.f32.mrf.mxu0
  %v464 = vadd.f32 0.0, %v463
  %v465 = vpop.f32.mrf.mxu0
  %v466 = vadd.f32 0.0, %v465
  %v467 = vpop.f32.mrf.mxu0
  %v468 = vadd.f32 0.0, %v467
  %v469 = vpop.f32.mrf.mxu0
  %v470 = vadd.f32 0.0, %v469
  %471 = vmatprep.mubr.bf16.mxu0 0
  %472 = vmatmul.mubr.bf16.gmra.mxu0 %v404
  %v473 = vpop.f32.mrf.mxu0
  %v474 = vadd.f32 0.0, %v473
  %v475 = vpop.f32.mrf.mxu0
  %v476 = vadd.f32 0.0, %v475
  %v477 = vpop.f32.mrf.mxu0
  %v478 = vadd.f32 0.0, %v477
  %v479 = vpop.f32.mrf.mxu0
  %v480 = vadd.f32 0.0, %v479
  %481 = vdwg.mxu0
  %v482 = vpack.c.bf16 %v448, %v444
  %v483 = vpack.c.bf16 %v450, %v446
  %v484 = vpack.c.bf16 %v458, %v454
  %v485 = vpack.c.bf16 %v460, %v456
  %v486 = vpack.c.bf16 %v468, %v464
  %v487 = vpack.c.bf16 %v470, %v466
  %v488 = vpack.c.bf16 %v478, %v474
  %v489 = vpack.c.bf16 %v480, %v476
  %v514 = vunpack.c.l.b16 %v126
  %v515 = vunpack.c.h.b16 %v126
  %v516 = vunpack.c.l.b16 %v127
  %v517 = vunpack.c.h.b16 %v127
  %v518 = vunpack.c.l.b16 %v128
  %v519 = vunpack.c.h.b16 %v128
  %v520 = vunpack.c.l.b16 %v129
  %v521 = vunpack.c.h.b16 %v129
  %v522 = vunpack.c.l.b16 %v130
  %v523 = vunpack.c.h.b16 %v130
  %v524 = vunpack.c.l.b16 %v131
  %v525 = vunpack.c.h.b16 %v131
  %v526 = vunpack.c.l.b16 %v132
  %v527 = vunpack.c.h.b16 %v132
  %v528 = vunpack.c.l.b16 %v133
  %v529 = vunpack.c.h.b16 %v133
  %v530 = vunpack.c.l.b16 %v134
  %v531 = vunpack.c.h.b16 %v134
  %v532 = vunpack.c.l.b16 %v135
  %v533 = vunpack.c.h.b16 %v135
  %v534 = vunpack.c.l.b16 %v136
  %v535 = vunpack.c.h.b16 %v136
  %v536 = vunpack.c.l.b16 %v137
  %v537 = vunpack.c.h.b16 %v137
  %v538 = vunpack.c.l.b16 %v138
  %v539 = vunpack.c.h.b16 %v138
  %v540 = vunpack.c.l.b16 %v139
  %v541 = vunpack.c.h.b16 %v139
  %v542 = vunpack.c.l.b16 %v140
  %v543 = vunpack.c.h.b16 %v140
  %v544 = vunpack.c.l.b16 %v141
  %v545 = vunpack.c.h.b16 %v141
  %v546 = vunpack.c.l.b16 %v142
  %v547 = vunpack.c.h.b16 %v142
  %v548 = vunpack.c.l.b16 %v143
  %v549 = vunpack.c.h.b16 %v143
  %v550 = vunpack.c.l.b16 %v144
  %v551 = vunpack.c.h.b16 %v144
  %v552 = vunpack.c.l.b16 %v145
  %v553 = vunpack.c.h.b16 %v145
  %v554 = vunpack.c.l.b16 %v146
  %v555 = vunpack.c.h.b16 %v146
  %v556 = vunpack.c.l.b16 %v147
  %v557 = vunpack.c.h.b16 %v147
  %v558 = vunpack.c.l.b16 %v148
  %v559 = vunpack.c.h.b16 %v148
  %v560 = vunpack.c.l.b16 %v149
  %v561 = vunpack.c.h.b16 %v149
  %v562 = vpack.c.b16 %v516, %v514
  %v563 = vpack.c.b16 %v517, %v515
  %v564 = vpack.c.b16 %v520, %v518
  %v565 = vpack.c.b16 %v521, %v519
  %v566 = vpack.c.b16 %v524, %v522
  %v567 = vpack.c.b16 %v525, %v523
  %v568 = vpack.c.b16 %v528, %v526
  %v569 = vpack.c.b16 %v529, %v527
  %v570 = vpack.c.b16 %v532, %v530
  %v571 = vpack.c.b16 %v533, %v531
  %v572 = vpack.c.b16 %v536, %v534
  %v573 = vpack.c.b16 %v537, %v535
  %v574 = vpack.c.b16 %v540, %v538
  %v575 = vpack.c.b16 %v541, %v539
  %v576 = vpack.c.b16 %v544, %v542
  %v577 = vpack.c.b16 %v545, %v543
  %v578 = vpack.c.b16 %v548, %v546
  %v579 = vpack.c.b16 %v549, %v547
  %v580 = vpack.c.b16 %v552, %v550
  %v581 = vpack.c.b16 %v553, %v551
  %v582 = vpack.c.b16 %v556, %v554
  %v583 = vpack.c.b16 %v557, %v555
  %v584 = vpack.c.b16 %v560, %v558
  %v585 = vpack.c.b16 %v561, %v559
  %vm610 = vcmask 523264
  %v612 = vsel %vm610, %v483, 0
  %v615 = vsel %vm610, %v485, 0
  %v618 = vsel %vm610, %v487, 0
  %v621 = vsel %vm610, %v489, 0
  %623 = vmatprep.subr.bf16.mxu0 %v577
  %624 = vmatpush1.bf16.msra.mxu0 %v576
  %625 = vmatprep.subr.bf16.mxu0 %v575
  %626 = vmatpush1.bf16.msra.mxu0 %v574
  %627 = vmatprep.subr.bf16.mxu0 %v573
  %628 = vmatpush1.bf16.msra.mxu0 %v572
  %629 = vmatprep.subr.bf16.mxu0 %v571
  %630 = vmatpush1.bf16.msra.mxu0 %v570
  %631 = vmatprep.subr.bf16.mxu0 %v569
  %632 = vmatpush1.bf16.msra.mxu0 %v568
  %633 = vmatprep.subr.bf16.mxu0 %v567
  %634 = vmatpush1.bf16.msra.mxu0 %v566
  %635 = vmatprep.subr.bf16.mxu0 %v565
  %636 = vmatpush1.bf16.msra.mxu0 %v564
  %637 = vmatprep.subr.bf16.mxu0 %v563
  %638 = vmatpush1.bf16.msra.mxu0 %v562
  %639 = vmatprep.subr.bf16.mxu0 0
  %640 = vmatpush2.bf16.msra.mxu0 0
  %641 = vmatprep.subr.bf16.mxu0 0
  %642 = vmatpush2.bf16.msra.mxu0 0
  %643 = vmatprep.subr.bf16.mxu0 0
  %644 = vmatpush2.bf16.msra.mxu0 0
  %645 = vmatprep.subr.bf16.mxu0 0
  %646 = vmatpush2.bf16.msra.mxu0 0
  %647 = vmatprep.subr.bf16.mxu0 %v585
  %648 = vmatpush2.bf16.msra.mxu0 %v584
  %649 = vmatprep.subr.bf16.mxu0 %v583
  %650 = vmatpush2.bf16.msra.mxu0 %v582
  %651 = vmatprep.subr.bf16.mxu0 %v581
  %652 = vmatpush2.bf16.msra.mxu0 %v580
  %653 = vmatprep.subr.bf16.mxu0 %v579
  %654 = vmatpush2.bf16.msra.mxu0 %v578
  %655 = vmatprep.mubr.bf16.mxu0 %v612
  %656 = vmatmul.mubr.bf16.gmra.mxu0 %v482
  %v657 = vpop.f32.mrf.mxu0
  %v658 = vadd.f32 0.0, %v657
  %v659 = vpop.f32.mrf.mxu0
  %v660 = vadd.f32 0.0, %v659
  %v661 = vpop.f32.mrf.mxu0
  %v662 = vadd.f32 0.0, %v661
  %v663 = vpop.f32.mrf.mxu0
  %v664 = vadd.f32 0.0, %v663
  %665 = vmatprep.mubr.bf16.mxu0 %v615
  %666 = vmatmul.mubr.bf16.gmra.mxu0 %v484
  %v667 = vpop.f32.mrf.mxu0
  %v668 = vadd.f32 0.0, %v667
  %v669 = vpop.f32.mrf.mxu0
  %v670 = vadd.f32 0.0, %v669
  %v671 = vpop.f32.mrf.mxu0
  %v672 = vadd.f32 0.0, %v671
  %v673 = vpop.f32.mrf.mxu0
  %v674 = vadd.f32 0.0, %v673
  %675 = vmatprep.mubr.bf16.mxu0 %v618
  %676 = vmatmul.mubr.bf16.gmra.mxu0 %v486
  %v677 = vpop.f32.mrf.mxu0
  %v678 = vadd.f32 0.0, %v677
  %v679 = vpop.f32.mrf.mxu0
  %v680 = vadd.f32 0.0, %v679
  %v681 = vpop.f32.mrf.mxu0
  %v682 = vadd.f32 0.0, %v681
  %v683 = vpop.f32.mrf.mxu0
  %v684 = vadd.f32 0.0, %v683
  %685 = vmatprep.mubr.bf16.mxu0 %v621
  %686 = vmatmul.mubr.bf16.gmra.mxu0 %v488
  %v687 = vpop.f32.mrf.mxu0
  %v688 = vadd.f32 0.0, %v687
  %v689 = vpop.f32.mrf.mxu0
  %v690 = vadd.f32 0.0, %v689
  %v691 = vpop.f32.mrf.mxu0
  %v692 = vadd.f32 0.0, %v691
  %v693 = vpop.f32.mrf.mxu0
  %v694 = vadd.f32 0.0, %v693
  %695 = vdwg.mxu0
  %v720 = vunpack.c.l.b16 %v101
  %v721 = vunpack.c.h.b16 %v101
  %v722 = vunpack.c.l.b16 %v102
  %v723 = vunpack.c.h.b16 %v102
  %v724 = vunpack.c.l.b16 %v103
  %v725 = vunpack.c.h.b16 %v103
  %v726 = vunpack.c.l.b16 %v104
  %v727 = vunpack.c.h.b16 %v104
  %v728 = vunpack.c.l.b16 %v105
  %v729 = vunpack.c.h.b16 %v105
  %v730 = vunpack.c.l.b16 %v106
  %v731 = vunpack.c.h.b16 %v106
  %v732 = vunpack.c.l.b16 %v107
  %v733 = vunpack.c.h.b16 %v107
  %v734 = vunpack.c.l.b16 %v108
  %v735 = vunpack.c.h.b16 %v108
  %v736 = vunpack.c.l.b16 %v109
  %v737 = vunpack.c.h.b16 %v109
  %v738 = vunpack.c.l.b16 %v110
  %v739 = vunpack.c.h.b16 %v110
  %v740 = vunpack.c.l.b16 %v111
  %v741 = vunpack.c.h.b16 %v111
  %v742 = vunpack.c.l.b16 %v112
  %v743 = vunpack.c.h.b16 %v112
  %v744 = vunpack.c.l.b16 %v113
  %v745 = vunpack.c.h.b16 %v113
  %v746 = vunpack.c.l.b16 %v114
  %v747 = vunpack.c.h.b16 %v114
  %v748 = vunpack.c.l.b16 %v115
  %v749 = vunpack.c.h.b16 %v115
  %v750 = vunpack.c.l.b16 %v116
  %v751 = vunpack.c.h.b16 %v116
  %v752 = vunpack.c.l.b16 %v117
  %v753 = vunpack.c.h.b16 %v117
  %v754 = vunpack.c.l.b16 %v118
  %v755 = vunpack.c.h.b16 %v118
  %v756 = vunpack.c.l.b16 %v119
  %v757 = vunpack.c.h.b16 %v119
  %v758 = vunpack.c.l.b16 %v120
  %v759 = vunpack.c.h.b16 %v120
  %v760 = vunpack.c.l.b16 %v121
  %v761 = vunpack.c.h.b16 %v121
  %v762 = vunpack.c.l.b16 %v122
  %v763 = vunpack.c.h.b16 %v122
  %v764 = vunpack.c.l.b16 %v123
  %v765 = vunpack.c.h.b16 %v123
  %v766 = vunpack.c.l.b16 %v124
  %v767 = vunpack.c.h.b16 %v124
  %v768 = vpack.c.b16 %v722, %v720
  %v769 = vpack.c.b16 %v723, %v721
  %v770 = vpack.c.b16 %v726, %v724
  %v771 = vpack.c.b16 %v727, %v725
  %v772 = vpack.c.b16 %v730, %v728
  %v773 = vpack.c.b16 %v731, %v729
  %v774 = vpack.c.b16 %v734, %v732
  %v775 = vpack.c.b16 %v735, %v733
  %v776 = vpack.c.b16 %v738, %v736
  %v777 = vpack.c.b16 %v739, %v737
  %v778 = vpack.c.b16 %v742, %v740
  %v779 = vpack.c.b16 %v743, %v741
  %v780 = vpack.c.b16 %v746, %v744
  %v781 = vpack.c.b16 %v747, %v745
  %v782 = vpack.c.b16 %v750, %v748
  %v783 = vpack.c.b16 %v751, %v749
  %v784 = vpack.c.b16 %v754, %v752
  %v785 = vpack.c.b16 %v755, %v753
  %v786 = vpack.c.b16 %v758, %v756
  %v787 = vpack.c.b16 %v759, %v757
  %v788 = vpack.c.b16 %v762, %v760
  %v789 = vpack.c.b16 %v763, %v761
  %v790 = vpack.c.b16 %v766, %v764
  %v791 = vpack.c.b16 %v767, %v765
  %v817 = vsel %vm610, %v378, 0
  %v820 = vsel %vm610, %v380, 0
  %v823 = vsel %vm610, %v382, 0
  %v826 = vsel %vm610, %v384, 0
  %828 = vmatprep.subr.bf16.mxu0 %v783
  %829 = vmatpush1.bf16.msra.mxu0 %v782
  %830 = vmatprep.subr.bf16.mxu0 %v781
  %831 = vmatpush1.bf16.msra.mxu0 %v780
  %832 = vmatprep.subr.bf16.mxu0 %v779
  %833 = vmatpush1.bf16.msra.mxu0 %v778
  %834 = vmatprep.subr.bf16.mxu0 %v777
  %835 = vmatpush1.bf16.msra.mxu0 %v776
  %836 = vmatprep.subr.bf16.mxu0 %v775
  %837 = vmatpush1.bf16.msra.mxu0 %v774
  %838 = vmatprep.subr.bf16.mxu0 %v773
  %839 = vmatpush1.bf16.msra.mxu0 %v772
  %840 = vmatprep.subr.bf16.mxu0 %v771
  %841 = vmatpush1.bf16.msra.mxu0 %v770
  %842 = vmatprep.subr.bf16.mxu0 %v769
  %843 = vmatpush1.bf16.msra.mxu0 %v768
  %844 = vmatprep.subr.bf16.mxu0 0
  %845 = vmatpush2.bf16.msra.mxu0 0
  %846 = vmatprep.subr.bf16.mxu0 0
  %847 = vmatpush2.bf16.msra.mxu0 0
  %848 = vmatprep.subr.bf16.mxu0 0
  %849 = vmatpush2.bf16.msra.mxu0 0
  %850 = vmatprep.subr.bf16.mxu0 0
  %851 = vmatpush2.bf16.msra.mxu0 0
  %852 = vmatprep.subr.bf16.mxu0 %v791
  %853 = vmatpush2.bf16.msra.mxu0 %v790
  %854 = vmatprep.subr.bf16.mxu0 %v789
  %855 = vmatpush2.bf16.msra.mxu0 %v788
  %856 = vmatprep.subr.bf16.mxu0 %v787
  %857 = vmatpush2.bf16.msra.mxu0 %v786
  %858 = vmatprep.subr.bf16.mxu0 %v785
  %859 = vmatpush2.bf16.msra.mxu0 %v784
  %860 = vmatprep.mubr.bf16.mxu0 %v817
  %861 = vmatmul.mubr.bf16.gmra.mxu0 %v377
  %v862 = vpop.f32.mrf.mxu0
  %v863 = vadd.f32 %v658, %v862
  %v864 = vpop.f32.mrf.mxu0
  %v865 = vadd.f32 %v660, %v864
  %v866 = vpop.f32.mrf.mxu0
  %v867 = vadd.f32 %v662, %v866
  %v868 = vpop.f32.mrf.mxu0
  %v869 = vadd.f32 %v664, %v868
  %870 = vmatprep.mubr.bf16.mxu0 %v820
  %871 = vmatmul.mubr.bf16.gmra.mxu0 %v379
  %v872 = vpop.f32.mrf.mxu0
  %v873 = vadd.f32 %v668, %v872
  %v874 = vpop.f32.mrf.mxu0
  %v875 = vadd.f32 %v670, %v874
  %v876 = vpop.f32.mrf.mxu0
  %v877 = vadd.f32 %v672, %v876
  %v878 = vpop.f32.mrf.mxu0
  %v879 = vadd.f32 %v674, %v878
  %880 = vmatprep.mubr.bf16.mxu0 %v823
  %881 = vmatmul.mubr.bf16.gmra.mxu0 %v381
  %v882 = vpop.f32.mrf.mxu0
  %v883 = vadd.f32 %v678, %v882
  %v884 = vpop.f32.mrf.mxu0
  %v885 = vadd.f32 %v680, %v884
  %v886 = vpop.f32.mrf.mxu0
  %v887 = vadd.f32 %v682, %v886
  %v888 = vpop.f32.mrf.mxu0
  %v889 = vadd.f32 %v684, %v888
  %890 = vmatprep.mubr.bf16.mxu0 %v826
  %891 = vmatmul.mubr.bf16.gmra.mxu0 %v383
  %v892 = vpop.f32.mrf.mxu0
  %v893 = vadd.f32 %v688, %v892
  %v894 = vpop.f32.mrf.mxu0
  %v895 = vadd.f32 %v690, %v894
  %v896 = vpop.f32.mrf.mxu0
  %v897 = vadd.f32 %v692, %v896
  %v898 = vpop.f32.mrf.mxu0
  %v899 = vadd.f32 %v694, %v898
  %900 = vdwg.mxu0
  %v909 = vunpack.c.l.b16 %v84
  %v910 = vunpack.c.l.b16 %v85
  %v911 = vunpack.c.l.b16 %v86
  %v912 = vunpack.c.l.b16 %v87
  %v913 = vunpack.c.l.b16 %v88
  %v914 = vunpack.c.l.b16 %v89
  %v915 = vunpack.c.l.b16 %v90
  %v916 = vunpack.c.l.b16 %v91
  %v917 = vpack.c.b16 %v910, %v909
  %v918 = vpack.c.b16 %v912, %v911
  %v919 = vpack.c.b16 %v914, %v913
  %v920 = vpack.c.b16 %v916, %v915
  %925 = vmatprep.subr.bf16.mxu0 %v287
  %926 = vmatpush1.bf16.msra.mxu0 %v286
  %927 = vmatprep.subr.bf16.mxu0 %v285
  %928 = vmatpush1.bf16.msra.mxu0 %v284
  %929 = vmatprep.subr.bf16.mxu0 %v283
  %930 = vmatpush1.bf16.msra.mxu0 %v282
  %931 = vmatprep.subr.bf16.mxu0 %v281
  %932 = vmatpush1.bf16.msra.mxu0 %v280
  %933 = vmatprep.subr.bf16.mxu0 %v279
  %934 = vmatpush1.bf16.msra.mxu0 %v278
  %935 = vmatprep.subr.bf16.mxu0 %v277
  %936 = vmatpush1.bf16.msra.mxu0 %v276
  %937 = vmatprep.subr.bf16.mxu0 %v275
  %938 = vmatpush1.bf16.msra.mxu0 %v274
  %939 = vmatprep.subr.bf16.mxu0 %v273
  %940 = vmatpush1.bf16.msra.mxu0 %v272
  %941 = vmatprep.subr.bf16.mxu0 0
  %942 = vmatpush2.bf16.msra.mxu0 0
  %943 = vmatprep.subr.bf16.mxu0 0
  %944 = vmatpush2.bf16.msra.mxu0 0
  %945 = vmatprep.subr.bf16.mxu0 0
  %946 = vmatpush2.bf16.msra.mxu0 0
  %947 = vmatprep.subr.bf16.mxu0 0
  %948 = vmatpush2.bf16.msra.mxu0 0
  %949 = vmatprep.subr.bf16.mxu0 0
  %950 = vmatpush2.bf16.msra.mxu0 0
  %951 = vmatprep.subr.bf16.mxu0 0
  %952 = vmatpush2.bf16.msra.mxu0 0
  %953 = vmatprep.subr.bf16.mxu0 0
  %954 = vmatpush2.bf16.msra.mxu0 0
  %955 = vmatprep.subr.bf16.mxu0 0
  %956 = vmatpush2.bf16.msra.mxu0 0
  %957 = vmatprep.mubr.bf16.mxu0 0
  %958 = vmatmul.mubr.bf16.gmra.mxu0 %v917
  %v959 = vpop.f32.mrf.mxu0
  %v960 = vadd.f32 0.0, %v959
  %v961 = vpop.f32.mrf.mxu0
  %v962 = vadd.f32 0.0, %v961
  %v963 = vpop.f32.mrf.mxu0
  %v964 = vadd.f32 0.0, %v963
  %v965 = vpop.f32.mrf.mxu0
  %v966 = vadd.f32 0.0, %v965
  %967 = vmatprep.mubr.bf16.mxu0 0
  %968 = vmatmul.mubr.bf16.gmra.mxu0 %v918
  %v969 = vpop.f32.mrf.mxu0
  %v970 = vadd.f32 0.0, %v969
  %v971 = vpop.f32.mrf.mxu0
  %v972 = vadd.f32 0.0, %v971
  %v973 = vpop.f32.mrf.mxu0
  %v974 = vadd.f32 0.0, %v973
  %v975 = vpop.f32.mrf.mxu0
  %v976 = vadd.f32 0.0, %v975
  %977 = vmatprep.mubr.bf16.mxu0 0
  %978 = vmatmul.mubr.bf16.gmra.mxu0 %v919
  %v979 = vpop.f32.mrf.mxu0
  %v980 = vadd.f32 0.0, %v979
  %v981 = vpop.f32.mrf.mxu0
  %v982 = vadd.f32 0.0, %v981
  %v983 = vpop.f32.mrf.mxu0
  %v984 = vadd.f32 0.0, %v983
  %v985 = vpop.f32.mrf.mxu0
  %v986 = vadd.f32 0.0, %v985
  %987 = vmatprep.mubr.bf16.mxu0 0
  %988 = vmatmul.mubr.bf16.gmra.mxu0 %v920
  %v989 = vpop.f32.mrf.mxu0
  %v990 = vadd.f32 0.0, %v989
  %v991 = vpop.f32.mrf.mxu0
  %v992 = vadd.f32 0.0, %v991
  %v993 = vpop.f32.mrf.mxu0
  %v994 = vadd.f32 0.0, %v993
  %v995 = vpop.f32.mrf.mxu0
  %v996 = vadd.f32 0.0, %v995
  %997 = vdwg.mxu0
  %v998 = vpack.c.bf16 %v964, %v960
  %v999 = vpack.c.bf16 %v966, %v962
  %v1000 = vpack.c.bf16 %v974, %v970
  %v1001 = vpack.c.bf16 %v976, %v972
  %v1002 = vpack.c.bf16 %v984, %v980
  %v1003 = vpack.c.bf16 %v986, %v982
  %v1004 = vpack.c.bf16 %v994, %v990
  %v1005 = vpack.c.bf16 %v996, %v992
  %v1030 = vunpack.c.l.b16 %v151
  %v1031 = vunpack.c.h.b16 %v151
  %v1032 = vunpack.c.l.b16 %v152
  %v1033 = vunpack.c.h.b16 %v152
  %v1034 = vunpack.c.l.b16 %v153
  %v1035 = vunpack.c.h.b16 %v153
  %v1036 = vunpack.c.l.b16 %v154
  %v1037 = vunpack.c.h.b16 %v154
  %v1038 = vunpack.c.l.b16 %v155
  %v1039 = vunpack.c.h.b16 %v155
  %v1040 = vunpack.c.l.b16 %v156
  %v1041 = vunpack.c.h.b16 %v156
  %v1042 = vunpack.c.l.b16 %v157
  %v1043 = vunpack.c.h.b16 %v157
  %v1044 = vunpack.c.l.b16 %v158
  %v1045 = vunpack.c.h.b16 %v158
  %v1046 = vunpack.c.l.b16 %v159
  %v1047 = vunpack.c.h.b16 %v159
  %v1048 = vunpack.c.l.b16 %v160
  %v1049 = vunpack.c.h.b16 %v160
  %v1050 = vunpack.c.l.b16 %v161
  %v1051 = vunpack.c.h.b16 %v161
  %v1052 = vunpack.c.l.b16 %v162
  %v1053 = vunpack.c.h.b16 %v162
  %v1054 = vunpack.c.l.b16 %v163
  %v1055 = vunpack.c.h.b16 %v163
  %v1056 = vunpack.c.l.b16 %v164
  %v1057 = vunpack.c.h.b16 %v164
  %v1058 = vunpack.c.l.b16 %v165
  %v1059 = vunpack.c.h.b16 %v165
  %v1060 = vunpack.c.l.b16 %v166
  %v1061 = vunpack.c.h.b16 %v166
  %v1062 = vunpack.c.l.b16 %v167
  %v1063 = vunpack.c.h.b16 %v167
  %v1064 = vunpack.c.l.b16 %v168
  %v1065 = vunpack.c.h.b16 %v168
  %v1066 = vunpack.c.l.b16 %v169
  %v1067 = vunpack.c.h.b16 %v169
  %v1068 = vunpack.c.l.b16 %v170
  %v1069 = vunpack.c.h.b16 %v170
  %v1070 = vunpack.c.l.b16 %v171
  %v1071 = vunpack.c.h.b16 %v171
  %v1072 = vunpack.c.l.b16 %v172
  %v1073 = vunpack.c.h.b16 %v172
  %v1074 = vunpack.c.l.b16 %v173
  %v1075 = vunpack.c.h.b16 %v173
  %v1076 = vunpack.c.l.b16 %v174
  %v1077 = vunpack.c.h.b16 %v174
  %v1078 = vpack.c.b16 %v1032, %v1030
  %v1079 = vpack.c.b16 %v1033, %v1031
  %v1080 = vpack.c.b16 %v1036, %v1034
  %v1081 = vpack.c.b16 %v1037, %v1035
  %v1082 = vpack.c.b16 %v1040, %v1038
  %v1083 = vpack.c.b16 %v1041, %v1039
  %v1084 = vpack.c.b16 %v1044, %v1042
  %v1085 = vpack.c.b16 %v1045, %v1043
  %v1086 = vpack.c.b16 %v1048, %v1046
  %v1087 = vpack.c.b16 %v1049, %v1047
  %v1088 = vpack.c.b16 %v1052, %v1050
  %v1089 = vpack.c.b16 %v1053, %v1051
  %v1090 = vpack.c.b16 %v1056, %v1054
  %v1091 = vpack.c.b16 %v1057, %v1055
  %v1092 = vpack.c.b16 %v1060, %v1058
  %v1093 = vpack.c.b16 %v1061, %v1059
  %v1094 = vpack.c.b16 %v1064, %v1062
  %v1095 = vpack.c.b16 %v1065, %v1063
  %v1096 = vpack.c.b16 %v1068, %v1066
  %v1097 = vpack.c.b16 %v1069, %v1067
  %v1098 = vpack.c.b16 %v1072, %v1070
  %v1099 = vpack.c.b16 %v1073, %v1071
  %v1100 = vpack.c.b16 %v1076, %v1074
  %v1101 = vpack.c.b16 %v1077, %v1075
  %v1127 = vsel %vm610, %v999, 0
  %v1130 = vsel %vm610, %v1001, 0
  %v1133 = vsel %vm610, %v1003, 0
  %v1136 = vsel %vm610, %v1005, 0
  %1138 = vmatprep.subr.bf16.mxu0 %v1093
  %1139 = vmatpush1.bf16.msra.mxu0 %v1092
  %1140 = vmatprep.subr.bf16.mxu0 %v1091
  %1141 = vmatpush1.bf16.msra.mxu0 %v1090
  %1142 = vmatprep.subr.bf16.mxu0 %v1089
  %1143 = vmatpush1.bf16.msra.mxu0 %v1088
  %1144 = vmatprep.subr.bf16.mxu0 %v1087
  %1145 = vmatpush1.bf16.msra.mxu0 %v1086
  %1146 = vmatprep.subr.bf16.mxu0 %v1085
  %1147 = vmatpush1.bf16.msra.mxu0 %v1084
  %1148 = vmatprep.subr.bf16.mxu0 %v1083
  %1149 = vmatpush1.bf16.msra.mxu0 %v1082
  %1150 = vmatprep.subr.bf16.mxu0 %v1081
  %1151 = vmatpush1.bf16.msra.mxu0 %v1080
  %1152 = vmatprep.subr.bf16.mxu0 %v1079
  %1153 = vmatpush1.bf16.msra.mxu0 %v1078
  %1154 = vmatprep.subr.bf16.mxu0 0
  %1155 = vmatpush2.bf16.msra.mxu0 0
  %1156 = vmatprep.subr.bf16.mxu0 0
  %1157 = vmatpush2.bf16.msra.mxu0 0
  %1158 = vmatprep.subr.bf16.mxu0 0
  %1159 = vmatpush2.bf16.msra.mxu0 0
  %1160 = vmatprep.subr.bf16.mxu0 0
  %1161 = vmatpush2.bf16.msra.mxu0 0
  %1162 = vmatprep.subr.bf16.mxu0 %v1101
  %1163 = vmatpush2.bf16.msra.mxu0 %v1100
  %1164 = vmatprep.subr.bf16.mxu0 %v1099
  %1165 = vmatpush2.bf16.msra.mxu0 %v1098
  %1166 = vmatprep.subr.bf16.mxu0 %v1097
  %1167 = vmatpush2.bf16.msra.mxu0 %v1096
  %1168 = vmatprep.subr.bf16.mxu0 %v1095
  %1169 = vmatpush2.bf16.msra.mxu0 %v1094
  %1170 = vmatprep.mubr.bf16.mxu0 %v1127
  %1171 = vmatmul.mubr.bf16.gmra.mxu0 %v998
  %v1172 = vpop.f32.mrf.mxu0
  %v1173 = vadd.f32 0.0, %v1172
  %v1174 = vpop.f32.mrf.mxu0
  %v1175 = vadd.f32 0.0, %v1174
  %v1176 = vpop.f32.mrf.mxu0
  %v1177 = vadd.f32 0.0, %v1176
  %v1178 = vpop.f32.mrf.mxu0
  %v1179 = vadd.f32 0.0, %v1178
  %1180 = vmatprep.mubr.bf16.mxu0 %v1130
  %1181 = vmatmul.mubr.bf16.gmra.mxu0 %v1000
  %v1182 = vpop.f32.mrf.mxu0
  %v1183 = vadd.f32 0.0, %v1182
  %v1184 = vpop.f32.mrf.mxu0
  %v1185 = vadd.f32 0.0, %v1184
  %v1186 = vpop.f32.mrf.mxu0
  %v1187 = vadd.f32 0.0, %v1186
  %v1188 = vpop.f32.mrf.mxu0
  %v1189 = vadd.f32 0.0, %v1188
  %1190 = vmatprep.mubr.bf16.mxu0 %v1133
  %1191 = vmatmul.mubr.bf16.gmra.mxu0 %v1002
  %v1192 = vpop.f32.mrf.mxu0
  %v1193 = vadd.f32 0.0, %v1192
  %v1194 = vpop.f32.mrf.mxu0
  %v1195 = vadd.f32 0.0, %v1194
  %v1196 = vpop.f32.mrf.mxu0
  %v1197 = vadd.f32 0.0, %v1196
  %v1198 = vpop.f32.mrf.mxu0
  %v1199 = vadd.f32 0.0, %v1198
  %1200 = vmatprep.mubr.bf16.mxu0 %v1136
  %1201 = vmatmul.mubr.bf16.gmra.mxu0 %v1004
  %v1202 = vpop.f32.mrf.mxu0
  %v1203 = vadd.f32 0.0, %v1202
  %v1204 = vpop.f32.mrf.mxu0
  %v1205 = vadd.f32 0.0, %v1204
  %v1206 = vpop.f32.mrf.mxu0
  %v1207 = vadd.f32 0.0, %v1206
  %v1208 = vpop.f32.mrf.mxu0
  %v1209 = vadd.f32 0.0, %v1208
  %1210 = vdwg.mxu0
  %v1211 = vadd.f32 %v863, %v1173
  %v1212 = vadd.f32 %v865, %v1175
  %v1213 = vadd.f32 %v867, %v1177
  %v1214 = vadd.f32 %v869, %v1179
  %v1215 = vadd.f32 %v873, %v1183
  %v1216 = vadd.f32 %v875, %v1185
  %v1217 = vadd.f32 %v877, %v1187
  %v1218 = vadd.f32 %v879, %v1189
  %v1219 = vadd.f32 %v883, %v1193
  %v1220 = vadd.f32 %v885, %v1195
  %v1221 = vadd.f32 %v887, %v1197
  %v1222 = vadd.f32 %v889, %v1199
  %v1223 = vadd.f32 %v893, %v1203
  %v1224 = vadd.f32 %v895, %v1205
  %v1225 = vadd.f32 %v897, %v1207
  %v1226 = vadd.f32 %v899, %v1209
  %v1235 = vunpack.c.l.b16 %v93
  %v1236 = vunpack.c.l.b16 %v94
  %v1237 = vunpack.c.l.b16 %v95
  %v1238 = vunpack.c.l.b16 %v96
  %v1239 = vunpack.c.l.b16 %v97
  %v1240 = vunpack.c.l.b16 %v98
  %v1241 = vunpack.c.l.b16 %v99
  %v1242 = vunpack.c.l.b16 %v100
  %v1243 = vpack.c.b16 %v1236, %v1235
  %v1244 = vpack.c.b16 %v1238, %v1237
  %v1245 = vpack.c.b16 %v1240, %v1239
  %v1246 = vpack.c.b16 %v1242, %v1241
  %1251 = vmatprep.subr.bf16.mxu0 %v287
  %1252 = vmatpush1.bf16.msra.mxu0 %v286
  %1253 = vmatprep.subr.bf16.mxu0 %v285
  %1254 = vmatpush1.bf16.msra.mxu0 %v284
  %1255 = vmatprep.subr.bf16.mxu0 %v283
  %1256 = vmatpush1.bf16.msra.mxu0 %v282
  %1257 = vmatprep.subr.bf16.mxu0 %v281
  %1258 = vmatpush1.bf16.msra.mxu0 %v280
  %1259 = vmatprep.subr.bf16.mxu0 %v279
  %1260 = vmatpush1.bf16.msra.mxu0 %v278
  %1261 = vmatprep.subr.bf16.mxu0 %v277
  %1262 = vmatpush1.bf16.msra.mxu0 %v276
  %1263 = vmatprep.subr.bf16.mxu0 %v275
  %1264 = vmatpush1.bf16.msra.mxu0 %v274
  %1265 = vmatprep.subr.bf16.mxu0 %v273
  %1266 = vmatpush1.bf16.msra.mxu0 %v272
  %1267 = vmatprep.subr.bf16.mxu0 0
  %1268 = vmatpush2.bf16.msra.mxu0 0
  %1269 = vmatprep.subr.bf16.mxu0 0
  %1270 = vmatpush2.bf16.msra.mxu0 0
  %1271 = vmatprep.subr.bf16.mxu0 0
  %1272 = vmatpush2.bf16.msra.mxu0 0
  %1273 = vmatprep.subr.bf16.mxu0 0
  %1274 = vmatpush2.bf16.msra.mxu0 0
  %1275 = vmatprep.subr.bf16.mxu0 0
  %1276 = vmatpush2.bf16.msra.mxu0 0
  %1277 = vmatprep.subr.bf16.mxu0 0
  %1278 = vmatpush2.bf16.msra.mxu0 0
  %1279 = vmatprep.subr.bf16.mxu0 0
  %1280 = vmatpush2.bf16.msra.mxu0 0
  %1281 = vmatprep.subr.bf16.mxu0 0
  %1282 = vmatpush2.bf16.msra.mxu0 0
  %1283 = vmatprep.mubr.bf16.mxu0 0
  %1284 = vmatmul.mubr.bf16.gmra.mxu0 %v1243
  %v1285 = vpop.f32.mrf.mxu0
  %v1286 = vadd.f32 0.0, %v1285
  %v1287 = vpop.f32.mrf.mxu0
  %v1288 = vadd.f32 0.0, %v1287
  %v1289 = vpop.f32.mrf.mxu0
  %v1290 = vadd.f32 0.0, %v1289
  %v1291 = vpop.f32.mrf.mxu0
  %v1292 = vadd.f32 0.0, %v1291
  %1293 = vmatprep.mubr.bf16.mxu0 0
  %1294 = vmatmul.mubr.bf16.gmra.mxu0 %v1244
  %v1295 = vpop.f32.mrf.mxu0
  %v1296 = vadd.f32 0.0, %v1295
  %v1297 = vpop.f32.mrf.mxu0
  %v1298 = vadd.f32 0.0, %v1297
  %v1299 = vpop.f32.mrf.mxu0
  %v1300 = vadd.f32 0.0, %v1299
  %v1301 = vpop.f32.mrf.mxu0
  %v1302 = vadd.f32 0.0, %v1301
  %1303 = vmatprep.mubr.bf16.mxu0 0
  %1304 = vmatmul.mubr.bf16.gmra.mxu0 %v1245
  %v1305 = vpop.f32.mrf.mxu0
  %v1306 = vadd.f32 0.0, %v1305
  %v1307 = vpop.f32.mrf.mxu0
  %v1308 = vadd.f32 0.0, %v1307
  %v1309 = vpop.f32.mrf.mxu0
  %v1310 = vadd.f32 0.0, %v1309
  %v1311 = vpop.f32.mrf.mxu0
  %v1312 = vadd.f32 0.0, %v1311
  %1313 = vmatprep.mubr.bf16.mxu0 0
  %1314 = vmatmul.mubr.bf16.gmra.mxu0 %v1246
  %v1315 = vpop.f32.mrf.mxu0
  %v1316 = vadd.f32 0.0, %v1315
  %v1317 = vpop.f32.mrf.mxu0
  %v1318 = vadd.f32 0.0, %v1317
  %v1319 = vpop.f32.mrf.mxu0
  %v1320 = vadd.f32 0.0, %v1319
  %v1321 = vpop.f32.mrf.mxu0
  %v1322 = vadd.f32 0.0, %v1321
  %1323 = vdwg.mxu0
  %v1324 = vpack.c.bf16 %v1290, %v1286
  %v1325 = vpack.c.bf16 %v1292, %v1288
  %v1326 = vpack.c.bf16 %v1300, %v1296
  %v1327 = vpack.c.bf16 %v1302, %v1298
  %v1328 = vpack.c.bf16 %v1310, %v1306
  %v1329 = vpack.c.bf16 %v1312, %v1308
  %v1330 = vpack.c.bf16 %v1320, %v1316
  %v1331 = vpack.c.bf16 %v1322, %v1318
  %v1356 = vunpack.c.l.b16 %v176
  %v1357 = vunpack.c.h.b16 %v176
  %v1358 = vunpack.c.l.b16 %v177
  %v1359 = vunpack.c.h.b16 %v177
  %v1360 = vunpack.c.l.b16 %v178
  %v1361 = vunpack.c.h.b16 %v178
  %v1362 = vunpack.c.l.b16 %v179
  %v1363 = vunpack.c.h.b16 %v179
  %v1364 = vunpack.c.l.b16 %v180
  %v1365 = vunpack.c.h.b16 %v180
  %v1366 = vunpack.c.l.b16 %v181
  %v1367 = vunpack.c.h.b16 %v181
  %v1368 = vunpack.c.l.b16 %v182
  %v1369 = vunpack.c.h.b16 %v182
  %v1370 = vunpack.c.l.b16 %v183
  %v1371 = vunpack.c.h.b16 %v183
  %v1372 = vunpack.c.l.b16 %v184
  %v1373 = vunpack.c.h.b16 %v184
  %v1374 = vunpack.c.l.b16 %v185
  %v1375 = vunpack.c.h.b16 %v185
  %v1376 = vunpack.c.l.b16 %v186
  %v1377 = vunpack.c.h.b16 %v186
  %v1378 = vunpack.c.l.b16 %v187
  %v1379 = vunpack.c.h.b16 %v187
  %v1380 = vunpack.c.l.b16 %v188
  %v1381 = vunpack.c.h.b16 %v188
  %v1382 = vunpack.c.l.b16 %v189
  %v1383 = vunpack.c.h.b16 %v189
  %v1384 = vunpack.c.l.b16 %v190
  %v1385 = vunpack.c.h.b16 %v190
  %v1386 = vunpack.c.l.b16 %v191
  %v1387 = vunpack.c.h.b16 %v191
  %v1388 = vunpack.c.l.b16 %v192
  %v1389 = vunpack.c.h.b16 %v192
  %v1390 = vunpack.c.l.b16 %v193
  %v1391 = vunpack.c.h.b16 %v193
  %v1392 = vunpack.c.l.b16 %v194
  %v1393 = vunpack.c.h.b16 %v194
  %v1394 = vunpack.c.l.b16 %v195
  %v1395 = vunpack.c.h.b16 %v195
  %v1396 = vunpack.c.l.b16 %v196
  %v1397 = vunpack.c.h.b16 %v196
  %v1398 = vunpack.c.l.b16 %v197
  %v1399 = vunpack.c.h.b16 %v197
  %v1400 = vunpack.c.l.b16 %v198
  %v1401 = vunpack.c.h.b16 %v198
  %v1402 = vunpack.c.l.b16 %v199
  %v1403 = vunpack.c.h.b16 %v199
  %v1404 = vpack.c.b16 %v1358, %v1356
  %v1405 = vpack.c.b16 %v1359, %v1357
  %v1406 = vpack.c.b16 %v1362, %v1360
  %v1407 = vpack.c.b16 %v1363, %v1361
  %v1408 = vpack.c.b16 %v1366, %v1364
  %v1409 = vpack.c.b16 %v1367, %v1365
  %v1410 = vpack.c.b16 %v1370, %v1368
  %v1411 = vpack.c.b16 %v1371, %v1369
  %v1412 = vpack.c.b16 %v1374, %v1372
  %v1413 = vpack.c.b16 %v1375, %v1373
  %v1414 = vpack.c.b16 %v1378, %v1376
  %v1415 = vpack.c.b16 %v1379, %v1377
  %v1416 = vpack.c.b16 %v1382, %v1380
  %v1417 = vpack.c.b16 %v1383, %v1381
  %v1418 = vpack.c.b16 %v1386, %v1384
  %v1419 = vpack.c.b16 %v1387, %v1385
  %v1420 = vpack.c.b16 %v1390, %v1388
  %v1421 = vpack.c.b16 %v1391, %v1389
  %v1422 = vpack.c.b16 %v1394, %v1392
  %v1423 = vpack.c.b16 %v1395, %v1393
  %v1424 = vpack.c.b16 %v1398, %v1396
  %v1425 = vpack.c.b16 %v1399, %v1397
  %v1426 = vpack.c.b16 %v1402, %v1400
  %v1427 = vpack.c.b16 %v1403, %v1401
  %v1453 = vsel %vm610, %v1325, 0
  %v1456 = vsel %vm610, %v1327, 0
  %v1459 = vsel %vm610, %v1329, 0
  %v1462 = vsel %vm610, %v1331, 0
  %1464 = vmatprep.subr.bf16.mxu0 %v1419
  %1465 = vmatpush1.bf16.msra.mxu0 %v1418
  %1466 = vmatprep.subr.bf16.mxu0 %v1417
  %1467 = vmatpush1.bf16.msra.mxu0 %v1416
  %1468 = vmatprep.subr.bf16.mxu0 %v1415
  %1469 = vmatpush1.bf16.msra.mxu0 %v1414
  %1470 = vmatprep.subr.bf16.mxu0 %v1413
  %1471 = vmatpush1.bf16.msra.mxu0 %v1412
  %1472 = vmatprep.subr.bf16.mxu0 %v1411
  %1473 = vmatpush1.bf16.msra.mxu0 %v1410
  %1474 = vmatprep.subr.bf16.mxu0 %v1409
  %1475 = vmatpush1.bf16.msra.mxu0 %v1408
  %1476 = vmatprep.subr.bf16.mxu0 %v1407
  %1477 = vmatpush1.bf16.msra.mxu0 %v1406
  %1478 = vmatprep.subr.bf16.mxu0 %v1405
  %1479 = vmatpush1.bf16.msra.mxu0 %v1404
  %1480 = vmatprep.subr.bf16.mxu0 0
  %1481 = vmatpush2.bf16.msra.mxu0 0
  %1482 = vmatprep.subr.bf16.mxu0 0
  %1483 = vmatpush2.bf16.msra.mxu0 0
  %1484 = vmatprep.subr.bf16.mxu0 0
  %1485 = vmatpush2.bf16.msra.mxu0 0
  %1486 = vmatprep.subr.bf16.mxu0 0
  %1487 = vmatpush2.bf16.msra.mxu0 0
  %1488 = vmatprep.subr.bf16.mxu0 %v1427
  %1489 = vmatpush2.bf16.msra.mxu0 %v1426
  %1490 = vmatprep.subr.bf16.mxu0 %v1425
  %1491 = vmatpush2.bf16.msra.mxu0 %v1424
  %1492 = vmatprep.subr.bf16.mxu0 %v1423
  %1493 = vmatpush2.bf16.msra.mxu0 %v1422
  %1494 = vmatprep.subr.bf16.mxu0 %v1421
  %1495 = vmatpush2.bf16.msra.mxu0 %v1420
  %1496 = vmatprep.mubr.bf16.mxu0 %v1453
  %1497 = vmatmul.mubr.bf16.gmra.mxu0 %v1324
  %v1498 = vpop.f32.mrf.mxu0
  %v1499 = vadd.f32 0.0, %v1498
  %v1500 = vpop.f32.mrf.mxu0
  %v1501 = vadd.f32 0.0, %v1500
  %v1502 = vpop.f32.mrf.mxu0
  %v1503 = vadd.f32 0.0, %v1502
  %v1504 = vpop.f32.mrf.mxu0
  %v1505 = vadd.f32 0.0, %v1504
  %1506 = vmatprep.mubr.bf16.mxu0 %v1456
  %1507 = vmatmul.mubr.bf16.gmra.mxu0 %v1326
  %v1508 = vpop.f32.mrf.mxu0
  %v1509 = vadd.f32 0.0, %v1508
  %v1510 = vpop.f32.mrf.mxu0
  %v1511 = vadd.f32 0.0, %v1510
  %v1512 = vpop.f32.mrf.mxu0
  %v1513 = vadd.f32 0.0, %v1512
  %v1514 = vpop.f32.mrf.mxu0
  %v1515 = vadd.f32 0.0, %v1514
  %1516 = vmatprep.mubr.bf16.mxu0 %v1459
  %1517 = vmatmul.mubr.bf16.gmra.mxu0 %v1328
  %v1518 = vpop.f32.mrf.mxu0
  %v1519 = vadd.f32 0.0, %v1518
  %v1520 = vpop.f32.mrf.mxu0
  %v1521 = vadd.f32 0.0, %v1520
  %v1522 = vpop.f32.mrf.mxu0
  %v1523 = vadd.f32 0.0, %v1522
  %v1524 = vpop.f32.mrf.mxu0
  %v1525 = vadd.f32 0.0, %v1524
  %1526 = vmatprep.mubr.bf16.mxu0 %v1462
  %1527 = vmatmul.mubr.bf16.gmra.mxu0 %v1330
  %v1528 = vpop.f32.mrf.mxu0
  %v1529 = vadd.f32 0.0, %v1528
  %v1530 = vpop.f32.mrf.mxu0
  %v1531 = vadd.f32 0.0, %v1530
  %v1532 = vpop.f32.mrf.mxu0
  %v1533 = vadd.f32 0.0, %v1532
  %v1534 = vpop.f32.mrf.mxu0
  %v1535 = vadd.f32 0.0, %v1534
  %1536 = vdwg.mxu0
  %v1537 = vadd.f32 %v1211, %v1499
  %v1538 = vadd.f32 %v1212, %v1501
  %v1539 = vadd.f32 %v1213, %v1503
  %v1540 = vadd.f32 %v1214, %v1505
  %v1541 = vadd.f32 %v1215, %v1509
  %v1542 = vadd.f32 %v1216, %v1511
  %v1543 = vadd.f32 %v1217, %v1513
  %v1544 = vadd.f32 %v1218, %v1515
  %v1545 = vadd.f32 %v1219, %v1519
  %v1546 = vadd.f32 %v1220, %v1521
  %v1547 = vadd.f32 %v1221, %v1523
  %v1548 = vadd.f32 %v1222, %v1525
  %v1549 = vadd.f32 %v1223, %v1529
  %v1550 = vadd.f32 %v1224, %v1531
  %v1551 = vadd.f32 %v1225, %v1533
  %v1552 = vadd.f32 %v1226, %v1535
  %v1553 = vld [vmem:[%s3] sm:$0x3]
  %v1555 = vlaneseq
  %v1556 = vshrl.u32 %v1555, 7
  %v1557 = vsub.s32 0, %v1556
  %v1558 = vrot.slane %v1553, %v1557
  %v1559 = vlaneseq
  %v1560 = vshrl.u32 %v1559, 7
  %v1561 = vsub.s32 1, %v1560
  %v1562 = vrot.slane %v1553, %v1561
  %v1565 = vadd.f32 %v1537, %v1558
  %v1566 = vadd.f32 %v1538, %v1562
  %v1567 = vadd.f32 %v1539, %v1558
  %v1568 = vadd.f32 %v1540, %v1562
  %v1569 = vadd.f32 %v1541, %v1558
  %v1570 = vadd.f32 %v1542, %v1562
  %v1571 = vadd.f32 %v1543, %v1558
  %v1572 = vadd.f32 %v1544, %v1562
  %v1573 = vadd.f32 %v1545, %v1558
  %v1574 = vadd.f32 %v1546, %v1562
  %v1575 = vadd.f32 %v1547, %v1558
  %v1576 = vadd.f32 %v1548, %v1562
  %v1577 = vadd.f32 %v1549, %v1558
  %v1578 = vadd.f32 %v1550, %v1562
  %v1579 = vadd.f32 %v1551, %v1558
  %v1580 = vadd.f32 %v1552, %v1562
  %vm1581 = vcmp.gt.f32.partialorder %v1565, 0.0
  %vm1582 = vcmp.gt.f32.partialorder %v1566, 0.0
  %vm1583 = vcmp.gt.f32.partialorder %v1567, 0.0
  %vm1584 = vcmp.gt.f32.partialorder %v1568, 0.0
  %vm1585 = vcmp.gt.f32.partialorder %v1569, 0.0
  %vm1586 = vcmp.gt.f32.partialorder %v1570, 0.0
  %vm1587 = vcmp.gt.f32.partialorder %v1571, 0.0
  %vm1588 = vcmp.gt.f32.partialorder %v1572, 0.0
  %vm1589 = vcmp.gt.f32.partialorder %v1573, 0.0
  %vm1590 = vcmp.gt.f32.partialorder %v1574, 0.0
  %vm1591 = vcmp.gt.f32.partialorder %v1575, 0.0
  %vm1592 = vcmp.gt.f32.partialorder %v1576, 0.0
  %vm1593 = vcmp.gt.f32.partialorder %v1577, 0.0
  %vm1594 = vcmp.gt.f32.partialorder %v1578, 0.0
  %vm1595 = vcmp.gt.f32.partialorder %v1579, 0.0
  %vm1596 = vcmp.gt.f32.partialorder %v1580, 0.0
  %v1597 = vmul.f32 %v1565, 0.2
  %v1598 = vmul.f32 %v1566, 0.2
  %v1599 = vmul.f32 %v1567, 0.2
  %v1600 = vmul.f32 %v1568, 0.2
  %v1601 = vmul.f32 %v1569, 0.2
  %v1602 = vmul.f32 %v1570, 0.2
  %v1603 = vmul.f32 %v1571, 0.2
  %v1604 = vmul.f32 %v1572, 0.2
  %v1605 = vmul.f32 %v1573, 0.2
  %v1606 = vmul.f32 %v1574, 0.2
  %v1607 = vmul.f32 %v1575, 0.2
  %v1608 = vmul.f32 %v1576, 0.2
  %v1609 = vmul.f32 %v1577, 0.2
  %v1610 = vmul.f32 %v1578, 0.2
  %v1611 = vmul.f32 %v1579, 0.2
  %v1612 = vmul.f32 %v1580, 0.2
  %v1613 = vsel %vm1581, %v1565, %v1597
  %v1614 = vsel %vm1582, %v1566, %v1598
  %v1615 = vsel %vm1583, %v1567, %v1599
  %v1616 = vsel %vm1584, %v1568, %v1600
  %v1617 = vsel %vm1585, %v1569, %v1601
  %v1618 = vsel %vm1586, %v1570, %v1602
  %v1619 = vsel %vm1587, %v1571, %v1603
  %v1620 = vsel %vm1588, %v1572, %v1604
  %v1621 = vsel %vm1589, %v1573, %v1605
  %v1622 = vsel %vm1590, %v1574, %v1606
  %v1623 = vsel %vm1591, %v1575, %v1607
  %v1624 = vsel %vm1592, %v1576, %v1608
  %v1625 = vsel %vm1593, %v1577, %v1609
  %v1626 = vsel %vm1594, %v1578, %v1610
  %v1627 = vsel %vm1595, %v1579, %v1611
  %v1628 = vsel %vm1596, %v1580, %v1612
  %v1629 = vpack.c.bf16 %v1615, %v1613
  %v1630 = vpack.c.bf16 %v1616, %v1614
  %v1631 = vpack.c.bf16 %v1619, %v1617
  %v1632 = vpack.c.bf16 %v1620, %v1618
  %v1633 = vpack.c.bf16 %v1623, %v1621
  %v1634 = vpack.c.bf16 %v1624, %v1622
  %v1635 = vpack.c.bf16 %v1627, %v1625
  %v1636 = vpack.c.bf16 %v1628, %v1626
  %v1637 = vld [vmem:[%s4] sm:$0xf]
  %v1638 = vld [vmem:[%s4 + $0x4] sm:$0xf]
  %v1639 = vld [vmem:[%s4 + $0x8] sm:$0xf]
  %v1640 = vld [vmem:[%s4 + $0xc] sm:$0xf]
  %s1641 = scalar_lea.vmem %s4, 16
  %v1642 = vld [vmem:[%s1641] sm:$0xf]
  %v1643 = vld [vmem:[%s1641 + $0x4] sm:$0xf]
  %v1644 = vld [vmem:[%s1641 + $0x8] sm:$0xf]
  %v1645 = vld [vmem:[%s1641 + $0xc] sm:$0xf]
  %s1646 = scalar_lea.vmem %s4, 32
  %v1647 = vld [vmem:[%s1646] sm:$0xf]
  %v1648 = vld [vmem:[%s1646 + $0x4] sm:$0xf]
  %v1649 = vld [vmem:[%s1646 + $0x8] sm:$0xf]
  %v1650 = vld [vmem:[%s1646 + $0xc] sm:$0xf]
  %s1651 = scalar_lea.vmem %s4, 48
  %v1652 = vld [vmem:[%s1651] sm:$0xf]
  %v1653 = vld [vmem:[%s1651 + $0x4] sm:$0xf]
  %v1654 = vld [vmem:[%s1651 + $0x8] sm:$0xf]
  %v1655 = vld [vmem:[%s1651 + $0xc] sm:$0xf]
  %v1656 = vld [vmem:[%s7] sm:$0xff]
  %v1657 = vld [vmem:[%s7 + $0x8] sm:$0xff]
  %v1658 = vld [vmem:[%s7 + $0x10] sm:$0xff]
  %v1659 = vld [vmem:[%s7 + $0x18] sm:$0xff]
  %v1660 = vld [vmem:[%s7 + $0x20] sm:$0xff]
  %v1661 = vld [vmem:[%s7 + $0x28] sm:$0xff]
  %v1662 = vld [vmem:[%s7 + $0x30] sm:$0xff]
  %v1663 = vld [vmem:[%s7 + $0x38] sm:$0xff]
  %v1664 = vld [vmem:[%s7 + $0x40] sm:$0xff]
  %v1665 = vld [vmem:[%s7 + $0x48] sm:$0xff]
  %v1666 = vld [vmem:[%s7 + $0x50] sm:$0xff]
  %v1667 = vld [vmem:[%s7 + $0x58] sm:$0xff]
  %v1668 = vld [vmem:[%s7 + $0x60] sm:$0xff]
  %v1669 = vld [vmem:[%s7 + $0x68] sm:$0xff]
  %v1670 = vld [vmem:[%s7 + $0x70] sm:$0xff]
  %v1671 = vld [vmem:[%s7 + $0x78] sm:$0xff]
  %v1672 = vld [vmem:[%s7 + $0x80] sm:$0xff]
  %v1673 = vld [vmem:[%s7 + $0x88] sm:$0xff]
  %v1674 = vld [vmem:[%s7 + $0x90] sm:$0xff]
  %v1675 = vld [vmem:[%s7 + $0x98] sm:$0xff]
  %v1676 = vld [vmem:[%s7 + $0xa0] sm:$0xff]
  %v1677 = vld [vmem:[%s7 + $0xa8] sm:$0xff]
  %v1678 = vld [vmem:[%s7 + $0xb0] sm:$0xff]
  %v1679 = vld [vmem:[%s7 + $0xb8] sm:$0xff]
  %v1680 = vld [vmem:[%s7 + $0xc0] sm:$0xff]
  %v1681 = vld [vmem:[%s7 + $0xc8] sm:$0xff]
  %v1682 = vld [vmem:[%s7 + $0xd0] sm:$0xff]
  %v1683 = vld [vmem:[%s7 + $0xd8] sm:$0xff]
  %v1684 = vld [vmem:[%s7 + $0xe0] sm:$0xff]
  %v1685 = vld [vmem:[%s7 + $0xe8] sm:$0xff]
  %v1686 = vld [vmem:[%s7 + $0xf0] sm:$0xff]
  %v1687 = vld [vmem:[%s7 + $0xf8] sm:$0xff]
  %s1688 = scalar_lea.vmem %s7, 256
  %v1689 = vld [vmem:[%s1688] sm:$0xff]
  %v1690 = vld [vmem:[%s1688 + $0x8] sm:$0xff]
  %v1691 = vld [vmem:[%s1688 + $0x10] sm:$0xff]
  %v1692 = vld [vmem:[%s1688 + $0x18] sm:$0xff]
  %v1693 = vld [vmem:[%s1688 + $0x20] sm:$0xff]
  %v1694 = vld [vmem:[%s1688 + $0x28] sm:$0xff]
  %v1695 = vld [vmem:[%s1688 + $0x30] sm:$0xff]
  %v1696 = vld [vmem:[%s1688 + $0x38] sm:$0xff]
  %v1697 = vld [vmem:[%s1688 + $0x40] sm:$0xff]
  %v1698 = vld [vmem:[%s1688 + $0x48] sm:$0xff]
  %v1699 = vld [vmem:[%s1688 + $0x50] sm:$0xff]
  %v1700 = vld [vmem:[%s1688 + $0x58] sm:$0xff]
  %v1701 = vld [vmem:[%s1688 + $0x60] sm:$0xff]
  %v1702 = vld [vmem:[%s1688 + $0x68] sm:$0xff]
  %v1703 = vld [vmem:[%s1688 + $0x70] sm:$0xff]
  %v1704 = vld [vmem:[%s1688 + $0x78] sm:$0xff]
  %v1705 = vld [vmem:[%s1688 + $0x80] sm:$0xff]
  %v1706 = vld [vmem:[%s1688 + $0x88] sm:$0xff]
  %v1707 = vld [vmem:[%s1688 + $0x90] sm:$0xff]
  %v1708 = vld [vmem:[%s1688 + $0x98] sm:$0xff]
  %v1709 = vld [vmem:[%s1688 + $0xa0] sm:$0xff]
  %v1710 = vld [vmem:[%s1688 + $0xa8] sm:$0xff]
  %v1711 = vld [vmem:[%s1688 + $0xb0] sm:$0xff]
  %v1712 = vld [vmem:[%s1688 + $0xb8] sm:$0xff]
  %v1713 = vld [vmem:[%s1688 + $0xc0] sm:$0xff]
  %v1714 = vld [vmem:[%s1688 + $0xc8] sm:$0xff]
  %v1715 = vld [vmem:[%s1688 + $0xd0] sm:$0xff]
  %v1716 = vld [vmem:[%s1688 + $0xd8] sm:$0xff]
  %v1717 = vld [vmem:[%s1688 + $0xe0] sm:$0xff]
  %v1718 = vld [vmem:[%s1688 + $0xe8] sm:$0xff]
  %v1719 = vld [vmem:[%s1688 + $0xf0] sm:$0xff]
  %v1720 = vld [vmem:[%s1688 + $0xf8] sm:$0xff]
  %s1721 = scalar_lea.vmem %s7, 512
  %v1722 = vld [vmem:[%s1721] sm:$0xff]
  %v1723 = vld [vmem:[%s1721 + $0x8] sm:$0xff]
  %v1724 = vld [vmem:[%s1721 + $0x10] sm:$0xff]
  %v1725 = vld [vmem:[%s1721 + $0x18] sm:$0xff]
  %v1726 = vld [vmem:[%s1721 + $0x20] sm:$0xff]
  %v1727 = vld [vmem:[%s1721 + $0x28] sm:$0xff]
  %v1728 = vld [vmem:[%s1721 + $0x30] sm:$0xff]
  %v1729 = vld [vmem:[%s1721 + $0x38] sm:$0xff]
  %v1730 = vld [vmem:[%s1721 + $0x40] sm:$0xff]
  %v1731 = vld [vmem:[%s1721 + $0x48] sm:$0xff]
  %v1732 = vld [vmem:[%s1721 + $0x50] sm:$0xff]
  %v1733 = vld [vmem:[%s1721 + $0x58] sm:$0xff]
  %v1734 = vld [vmem:[%s1721 + $0x60] sm:$0xff]
  %v1735 = vld [vmem:[%s1721 + $0x68] sm:$0xff]
  %v1736 = vld [vmem:[%s1721 + $0x70] sm:$0xff]
  %v1737 = vld [vmem:[%s1721 + $0x78] sm:$0xff]
  %v1738 = vld [vmem:[%s1721 + $0x80] sm:$0xff]
  %v1739 = vld [vmem:[%s1721 + $0x88] sm:$0xff]
  %v1740 = vld [vmem:[%s1721 + $0x90] sm:$0xff]
  %v1741 = vld [vmem:[%s1721 + $0x98] sm:$0xff]
  %v1742 = vld [vmem:[%s1721 + $0xa0] sm:$0xff]
  %v1743 = vld [vmem:[%s1721 + $0xa8] sm:$0xff]
  %v1744 = vld [vmem:[%s1721 + $0xb0] sm:$0xff]
  %v1745 = vld [vmem:[%s1721 + $0xb8] sm:$0xff]
  %v1746 = vld [vmem:[%s1721 + $0xc0] sm:$0xff]
  %v1747 = vld [vmem:[%s1721 + $0xc8] sm:$0xff]
  %v1748 = vld [vmem:[%s1721 + $0xd0] sm:$0xff]
  %v1749 = vld [vmem:[%s1721 + $0xd8] sm:$0xff]
  %v1750 = vld [vmem:[%s1721 + $0xe0] sm:$0xff]
  %v1751 = vld [vmem:[%s1721 + $0xe8] sm:$0xff]
  %v1752 = vld [vmem:[%s1721 + $0xf0] sm:$0xff]
  %v1753 = vld [vmem:[%s1721 + $0xf8] sm:$0xff]
  %s1754 = scalar_lea.vmem %s7, 768
  %v1755 = vld [vmem:[%s1754] sm:$0xff]
  %v1756 = vld [vmem:[%s1754 + $0x8] sm:$0xff]
  %v1757 = vld [vmem:[%s1754 + $0x10] sm:$0xff]
  %v1758 = vld [vmem:[%s1754 + $0x18] sm:$0xff]
  %v1759 = vld [vmem:[%s1754 + $0x20] sm:$0xff]
  %v1760 = vld [vmem:[%s1754 + $0x28] sm:$0xff]
  %v1761 = vld [vmem:[%s1754 + $0x30] sm:$0xff]
  %v1762 = vld [vmem:[%s1754 + $0x38] sm:$0xff]
  %v1763 = vld [vmem:[%s1754 + $0x40] sm:$0xff]
  %v1764 = vld [vmem:[%s1754 + $0x48] sm:$0xff]
  %v1765 = vld [vmem:[%s1754 + $0x50] sm:$0xff]
  %v1766 = vld [vmem:[%s1754 + $0x58] sm:$0xff]
  %v1767 = vld [vmem:[%s1754 + $0x60] sm:$0xff]
  %v1768 = vld [vmem:[%s1754 + $0x68] sm:$0xff]
  %v1769 = vld [vmem:[%s1754 + $0x70] sm:$0xff]
  %v1770 = vld [vmem:[%s1754 + $0x78] sm:$0xff]
  %v1771 = vld [vmem:[%s1754 + $0x80] sm:$0xff]
  %v1772 = vld [vmem:[%s1754 + $0x88] sm:$0xff]
  %v1773 = vld [vmem:[%s1754 + $0x90] sm:$0xff]
  %v1774 = vld [vmem:[%s1754 + $0x98] sm:$0xff]
  %v1775 = vld [vmem:[%s1754 + $0xa0] sm:$0xff]
  %v1776 = vld [vmem:[%s1754 + $0xa8] sm:$0xff]
  %v1777 = vld [vmem:[%s1754 + $0xb0] sm:$0xff]
  %v1778 = vld [vmem:[%s1754 + $0xb8] sm:$0xff]
  %v1779 = vld [vmem:[%s1754 + $0xc0] sm:$0xff]
  %v1780 = vld [vmem:[%s1754 + $0xc8] sm:$0xff]
  %v1781 = vld [vmem:[%s1754 + $0xd0] sm:$0xff]
  %v1782 = vld [vmem:[%s1754 + $0xd8] sm:$0xff]
  %v1783 = vld [vmem:[%s1754 + $0xe0] sm:$0xff]
  %v1784 = vld [vmem:[%s1754 + $0xe8] sm:$0xff]
  %v1785 = vld [vmem:[%s1754 + $0xf0] sm:$0xff]
  %v1786 = vld [vmem:[%s1754 + $0xf8] sm:$0xff]
  %v1791 = vunpack.c.l.b16 %v1637
  %v1792 = vunpack.c.l.b16 %v1638
  %v1793 = vunpack.c.l.b16 %v1639
  %v1794 = vunpack.c.l.b16 %v1640
  %v1795 = vpack.c.b16 %v1792, %v1791
  %v1796 = vpack.c.b16 %v1794, %v1793
  %v1798 = vsel %vm610, %v1795, 0
  %v1801 = vsel %vm610, %v1796, 0
  %1803 = vmatprep.subr.bf16.mxu0 0
  %1804 = vmatpush1.bf16.msra.mxu0 0
  %1805 = vmatprep.subr.bf16.mxu0 0
  %1806 = vmatpush1.bf16.msra.mxu0 0
  %1807 = vmatprep.subr.bf16.mxu0 0
  %1808 = vmatpush1.bf16.msra.mxu0 0
  %1809 = vmatprep.subr.bf16.mxu0 0
  %1810 = vmatpush1.bf16.msra.mxu0 0
  %1811 = vmatprep.subr.bf16.mxu0 %v1636
  %1812 = vmatpush1.bf16.msra.mxu0 %v1635
  %1813 = vmatprep.subr.bf16.mxu0 %v1634
  %1814 = vmatpush1.bf16.msra.mxu0 %v1633
  %1815 = vmatprep.subr.bf16.mxu0 %v1632
  %1816 = vmatpush1.bf16.msra.mxu0 %v1631
  %1817 = vmatprep.subr.bf16.mxu0 %v1630
  %1818 = vmatpush1.bf16.msra.mxu0 %v1629
  %1819 = vmatprep.subr.bf16.mxu0 0
  %1820 = vmatpush2.bf16.msra.mxu0 0
  %1821 = vmatprep.subr.bf16.mxu0 0
  %1822 = vmatpush2.bf16.msra.mxu0 0
  %1823 = vmatprep.subr.bf16.mxu0 0
  %1824 = vmatpush2.bf16.msra.mxu0 0
  %1825 = vmatprep.subr.bf16.mxu0 0
  %1826 = vmatpush2.bf16.msra.mxu0 0
  %1827 = vmatprep.subr.bf16.mxu0 0
  %1828 = vmatpush2.bf16.msra.mxu0 0
  %1829 = vmatprep.subr.bf16.mxu0 0
  %1830 = vmatpush2.bf16.msra.mxu0 0
  %1831 = vmatprep.subr.bf16.mxu0 0
  %1832 = vmatpush2.bf16.msra.mxu0 0
  %1833 = vmatprep.subr.bf16.mxu0 0
  %1834 = vmatpush2.bf16.msra.mxu0 0
  %1835 = vmatprep.mubr.bf16.mxu0 0
  %1836 = vmatmul.mubr.bf16.gmra.mxu0 %v1798
  %v1837 = vpop.f32.mrf.mxu0
  %v1838 = vadd.f32 0.0, %v1837
  %v1839 = vpop.f32.mrf.mxu0
  %v1840 = vadd.f32 0.0, %v1839
  %v1841 = vpop.f32.mrf.mxu0
  %v1842 = vadd.f32 0.0, %v1841
  %v1843 = vpop.f32.mrf.mxu0
  %v1844 = vadd.f32 0.0, %v1843
  %1845 = vmatprep.mubr.bf16.mxu0 0
  %1846 = vmatmul.mubr.bf16.gmra.mxu0 %v1801
  %v1847 = vpop.f32.mrf.mxu0
  %v1848 = vadd.f32 0.0, %v1847
  %v1849 = vpop.f32.mrf.mxu0
  %v1850 = vadd.f32 0.0, %v1849
  %v1851 = vpop.f32.mrf.mxu0
  %v1852 = vadd.f32 0.0, %v1851
  %v1853 = vpop.f32.mrf.mxu0
  %v1854 = vadd.f32 0.0, %v1853
  %1855 = vdwg.mxu0
  %v1856 = vpack.c.bf16 %v1842, %v1838
  %v1857 = vpack.c.bf16 %v1844, %v1840
  %v1858 = vpack.c.bf16 %v1852, %v1848
  %v1859 = vpack.c.bf16 %v1854, %v1850
  %v1864 = vunpack.c.l.b16 %v1642
  %v1865 = vunpack.c.l.b16 %v1643
  %v1866 = vunpack.c.l.b16 %v1644
  %v1867 = vunpack.c.l.b16 %v1645
  %v1868 = vpack.c.b16 %v1865, %v1864
  %v1869 = vpack.c.b16 %v1867, %v1866
  %v1871 = vsel %vm610, %v1868, 0
  %v1874 = vsel %vm610, %v1869, 0
  %1876 = vmatprep.subr.bf16.mxu0 0
  %1877 = vmatpush1.bf16.msra.mxu0 0
  %1878 = vmatprep.subr.bf16.mxu0 0
  %1879 = vmatpush1.bf16.msra.mxu0 0
  %1880 = vmatprep.subr.bf16.mxu0 0
  %1881 = vmatpush1.bf16.msra.mxu0 0
  %1882 = vmatprep.subr.bf16.mxu0 0
  %1883 = vmatpush1.bf16.msra.mxu0 0
  %1884 = vmatprep.subr.bf16.mxu0 %v1636
  %1885 = vmatpush1.bf16.msra.mxu0 %v1635
  %1886 = vmatprep.subr.bf16.mxu0 %v1634
  %1887 = vmatpush1.bf16.msra.mxu0 %v1633
  %1888 = vmatprep.subr.bf16.mxu0 %v1632
  %1889 = vmatpush1.bf16.msra.mxu0 %v1631
  %1890 = vmatprep.subr.bf16.mxu0 %v1630
  %1891 = vmatpush1.bf16.msra.mxu0 %v1629
  %1892 = vmatprep.subr.bf16.mxu0 0
  %1893 = vmatpush2.bf16.msra.mxu0 0
  %1894 = vmatprep.subr.bf16.mxu0 0
  %1895 = vmatpush2.bf16.msra.mxu0 0
  %1896 = vmatprep.subr.bf16.mxu0 0
  %1897 = vmatpush2.bf16.msra.mxu0 0
  %1898 = vmatprep.subr.bf16.mxu0 0
  %1899 = vmatpush2.bf16.msra.mxu0 0
  %1900 = vmatprep.subr.bf16.mxu0 0
  %1901 = vmatpush2.bf16.msra.mxu0 0
  %1902 = vmatprep.subr.bf16.mxu0 0
  %1903 = vmatpush2.bf16.msra.mxu0 0
  %1904 = vmatprep.subr.bf16.mxu0 0
  %1905 = vmatpush2.bf16.msra.mxu0 0
  %1906 = vmatprep.subr.bf16.mxu0 0
  %1907 = vmatpush2.bf16.msra.mxu0 0
  %1908 = vmatprep.mubr.bf16.mxu0 0
  %1909 = vmatmul.mubr.bf16.gmra.mxu0 %v1871
  %v1910 = vpop.f32.mrf.mxu0
  %v1911 = vadd.f32 0.0, %v1910
  %v1912 = vpop.f32.mrf.mxu0
  %v1913 = vadd.f32 0.0, %v1912
  %v1914 = vpop.f32.mrf.mxu0
  %v1915 = vadd.f32 0.0, %v1914
  %v1916 = vpop.f32.mrf.mxu0
  %v1917 = vadd.f32 0.0, %v1916
  %1918 = vmatprep.mubr.bf16.mxu0 0
  %1919 = vmatmul.mubr.bf16.gmra.mxu0 %v1874
  %v1920 = vpop.f32.mrf.mxu0
  %v1921 = vadd.f32 0.0, %v1920
  %v1922 = vpop.f32.mrf.mxu0
  %v1923 = vadd.f32 0.0, %v1922
  %v1924 = vpop.f32.mrf.mxu0
  %v1925 = vadd.f32 0.0, %v1924
  %v1926 = vpop.f32.mrf.mxu0
  %v1927 = vadd.f32 0.0, %v1926
  %1928 = vdwg.mxu0
  %v1929 = vpack.c.bf16 %v1915, %v1911
  %v1930 = vpack.c.bf16 %v1917, %v1913
  %v1931 = vpack.c.bf16 %v1925, %v1921
  %v1932 = vpack.c.bf16 %v1927, %v1923
  %v1965 = vunpack.c.l.b16 %v1689
  %v1966 = vunpack.c.h.b16 %v1689
  %v1967 = vunpack.c.l.b16 %v1690
  %v1968 = vunpack.c.h.b16 %v1690
  %v1969 = vunpack.c.l.b16 %v1691
  %v1970 = vunpack.c.h.b16 %v1691
  %v1971 = vunpack.c.l.b16 %v1692
  %v1972 = vunpack.c.h.b16 %v1692
  %v1973 = vunpack.c.l.b16 %v1693
  %v1974 = vunpack.c.h.b16 %v1693
  %v1975 = vunpack.c.l.b16 %v1694
  %v1976 = vunpack.c.h.b16 %v1694
  %v1977 = vunpack.c.l.b16 %v1695
  %v1978 = vunpack.c.h.b16 %v1695
  %v1979 = vunpack.c.l.b16 %v1696
  %v1980 = vunpack.c.h.b16 %v1696
  %v1981 = vunpack.c.l.b16 %v1697
  %v1982 = vunpack.c.h.b16 %v1697
  %v1983 = vunpack.c.l.b16 %v1698
  %v1984 = vunpack.c.h.b16 %v1698
  %v1985 = vunpack.c.l.b16 %v1699
  %v1986 = vunpack.c.h.b16 %v1699
  %v1987 = vunpack.c.l.b16 %v1700
  %v1988 = vunpack.c.h.b16 %v1700
  %v1989 = vunpack.c.l.b16 %v1701
  %v1990 = vunpack.c.h.b16 %v1701
  %v1991 = vunpack.c.l.b16 %v1702
  %v1992 = vunpack.c.h.b16 %v1702
  %v1993 = vunpack.c.l.b16 %v1703
  %v1994 = vunpack.c.h.b16 %v1703
  %v1995 = vunpack.c.l.b16 %v1704
  %v1996 = vunpack.c.h.b16 %v1704
  %v1997 = vunpack.c.l.b16 %v1705
  %v1998 = vunpack.c.h.b16 %v1705
  %v1999 = vunpack.c.l.b16 %v1706
  %v2000 = vunpack.c.h.b16 %v1706
  %v2001 = vunpack.c.l.b16 %v1707
  %v2002 = vunpack.c.h.b16 %v1707
  %v2003 = vunpack.c.l.b16 %v1708
  %v2004 = vunpack.c.h.b16 %v1708
  %v2005 = vunpack.c.l.b16 %v1709
  %v2006 = vunpack.c.h.b16 %v1709
  %v2007 = vunpack.c.l.b16 %v1710
  %v2008 = vunpack.c.h.b16 %v1710
  %v2009 = vunpack.c.l.b16 %v1711
  %v2010 = vunpack.c.h.b16 %v1711
  %v2011 = vunpack.c.l.b16 %v1712
  %v2012 = vunpack.c.h.b16 %v1712
  %v2013 = vunpack.c.l.b16 %v1713
  %v2014 = vunpack.c.h.b16 %v1713
  %v2015 = vunpack.c.l.b16 %v1714
  %v2016 = vunpack.c.h.b16 %v1714
  %v2017 = vunpack.c.l.b16 %v1715
  %v2018 = vunpack.c.h.b16 %v1715
  %v2019 = vunpack.c.l.b16 %v1716
  %v2020 = vunpack.c.h.b16 %v1716
  %v2021 = vunpack.c.l.b16 %v1717
  %v2022 = vunpack.c.h.b16 %v1717
  %v2023 = vunpack.c.l.b16 %v1718
  %v2024 = vunpack.c.h.b16 %v1718
  %v2025 = vunpack.c.l.b16 %v1719
  %v2026 = vunpack.c.h.b16 %v1719
  %v2027 = vunpack.c.l.b16 %v1720
  %v2028 = vunpack.c.h.b16 %v1720
  %v2029 = vpack.c.b16 %v1967, %v1965
  %v2030 = vpack.c.b16 %v1968, %v1966
  %v2031 = vpack.c.b16 %v1971, %v1969
  %v2032 = vpack.c.b16 %v1972, %v1970
  %v2033 = vpack.c.b16 %v1975, %v1973
  %v2034 = vpack.c.b16 %v1976, %v1974
  %v2035 = vpack.c.b16 %v1979, %v1977
  %v2036 = vpack.c.b16 %v1980, %v1978
  %v2037 = vpack.c.b16 %v1983, %v1981
  %v2038 = vpack.c.b16 %v1984, %v1982
  %v2039 = vpack.c.b16 %v1987, %v1985
  %v2040 = vpack.c.b16 %v1988, %v1986
  %v2041 = vpack.c.b16 %v1991, %v1989
  %v2042 = vpack.c.b16 %v1992, %v1990
  %v2043 = vpack.c.b16 %v1995, %v1993
  %v2044 = vpack.c.b16 %v1996, %v1994
  %v2045 = vpack.c.b16 %v1999, %v1997
  %v2046 = vpack.c.b16 %v2000, %v1998
  %v2047 = vpack.c.b16 %v2003, %v2001
  %v2048 = vpack.c.b16 %v2004, %v2002
  %v2049 = vpack.c.b16 %v2007, %v2005
  %v2050 = vpack.c.b16 %v2008, %v2006
  %v2051 = vpack.c.b16 %v2011, %v2009
  %v2052 = vpack.c.b16 %v2012, %v2010
  %v2053 = vpack.c.b16 %v2015, %v2013
  %v2054 = vpack.c.b16 %v2016, %v2014
  %v2055 = vpack.c.b16 %v2019, %v2017
  %v2056 = vpack.c.b16 %v2020, %v2018
  %v2057 = vpack.c.b16 %v2023, %v2021
  %v2058 = vpack.c.b16 %v2024, %v2022
  %v2059 = vpack.c.b16 %v2027, %v2025
  %v2060 = vpack.c.b16 %v2028, %v2026
  %2093 = vmatprep.subr.bf16.mxu0 %v2044
  %2094 = vmatpush1.bf16.msra.mxu0 %v2043
  %2095 = vmatprep.subr.bf16.mxu0 %v2042
  %2096 = vmatpush1.bf16.msra.mxu0 %v2041
  %2097 = vmatprep.subr.bf16.mxu0 %v2040
  %2098 = vmatpush1.bf16.msra.mxu0 %v2039
  %2099 = vmatprep.subr.bf16.mxu0 %v2038
  %2100 = vmatpush1.bf16.msra.mxu0 %v2037
  %2101 = vmatprep.subr.bf16.mxu0 %v2036
  %2102 = vmatpush1.bf16.msra.mxu0 %v2035
  %2103 = vmatprep.subr.bf16.mxu0 %v2034
  %2104 = vmatpush1.bf16.msra.mxu0 %v2033
  %2105 = vmatprep.subr.bf16.mxu0 %v2032
  %2106 = vmatpush1.bf16.msra.mxu0 %v2031
  %2107 = vmatprep.subr.bf16.mxu0 %v2030
  %2108 = vmatpush1.bf16.msra.mxu0 %v2029
  %2109 = vmatprep.subr.bf16.mxu0 %v2060
  %2110 = vmatpush2.bf16.msra.mxu0 %v2059
  %2111 = vmatprep.subr.bf16.mxu0 %v2058
  %2112 = vmatpush2.bf16.msra.mxu0 %v2057
  %2113 = vmatprep.subr.bf16.mxu0 %v2056
  %2114 = vmatpush2.bf16.msra.mxu0 %v2055
  %2115 = vmatprep.subr.bf16.mxu0 %v2054
  %2116 = vmatpush2.bf16.msra.mxu0 %v2053
  %2117 = vmatprep.subr.bf16.mxu0 %v2052
  %2118 = vmatpush2.bf16.msra.mxu0 %v2051
  %2119 = vmatprep.subr.bf16.mxu0 %v2050
  %2120 = vmatpush2.bf16.msra.mxu0 %v2049
  %2121 = vmatprep.subr.bf16.mxu0 %v2048
  %2122 = vmatpush2.bf16.msra.mxu0 %v2047
  %2123 = vmatprep.subr.bf16.mxu0 %v2046
  %2124 = vmatpush2.bf16.msra.mxu0 %v2045
  %2125 = vmatprep.mubr.bf16.mxu0 %v1930
  %2126 = vmatmul.mubr.bf16.gmra.mxu0 %v1929
  %v2127 = vpop.f32.mrf.mxu0
  %v2128 = vadd.f32 0.0, %v2127
  %v2129 = vpop.f32.mrf.mxu0
  %v2130 = vadd.f32 0.0, %v2129
  %v2131 = vpop.f32.mrf.mxu0
  %v2132 = vadd.f32 0.0, %v2131
  %v2133 = vpop.f32.mrf.mxu0
  %v2134 = vadd.f32 0.0, %v2133
  %2135 = vmatprep.mubr.bf16.mxu0 %v1932
  %2136 = vmatmul.mubr.bf16.gmra.mxu0 %v1931
  %v2137 = vpop.f32.mrf.mxu0
  %v2138 = vadd.f32 0.0, %v2137
  %v2139 = vpop.f32.mrf.mxu0
  %v2140 = vadd.f32 0.0, %v2139
  %v2141 = vpop.f32.mrf.mxu0
  %v2142 = vadd.f32 0.0, %v2141
  %v2143 = vpop.f32.mrf.mxu0
  %v2144 = vadd.f32 0.0, %v2143
  %2145 = vdwg.mxu0
  %v2178 = vunpack.c.l.b16 %v1656
  %v2179 = vunpack.c.h.b16 %v1656
  %v2180 = vunpack.c.l.b16 %v1657
  %v2181 = vunpack.c.h.b16 %v1657
  %v2182 = vunpack.c.l.b16 %v1658
  %v2183 = vunpack.c.h.b16 %v1658
  %v2184 = vunpack.c.l.b16 %v1659
  %v2185 = vunpack.c.h.b16 %v1659
  %v2186 = vunpack.c.l.b16 %v1660
  %v2187 = vunpack.c.h.b16 %v1660
  %v2188 = vunpack.c.l.b16 %v1661
  %v2189 = vunpack.c.h.b16 %v1661
  %v2190 = vunpack.c.l.b16 %v1662
  %v2191 = vunpack.c.h.b16 %v1662
  %v2192 = vunpack.c.l.b16 %v1663
  %v2193 = vunpack.c.h.b16 %v1663
  %v2194 = vunpack.c.l.b16 %v1664
  %v2195 = vunpack.c.h.b16 %v1664
  %v2196 = vunpack.c.l.b16 %v1665
  %v2197 = vunpack.c.h.b16 %v1665
  %v2198 = vunpack.c.l.b16 %v1666
  %v2199 = vunpack.c.h.b16 %v1666
  %v2200 = vunpack.c.l.b16 %v1667
  %v2201 = vunpack.c.h.b16 %v1667
  %v2202 = vunpack.c.l.b16 %v1668
  %v2203 = vunpack.c.h.b16 %v1668
  %v2204 = vunpack.c.l.b16 %v1669
  %v2205 = vunpack.c.h.b16 %v1669
  %v2206 = vunpack.c.l.b16 %v1670
  %v2207 = vunpack.c.h.b16 %v1670
  %v2208 = vunpack.c.l.b16 %v1671
  %v2209 = vunpack.c.h.b16 %v1671
  %v2210 = vunpack.c.l.b16 %v1672
  %v2211 = vunpack.c.h.b16 %v1672
  %v2212 = vunpack.c.l.b16 %v1673
  %v2213 = vunpack.c.h.b16 %v1673
  %v2214 = vunpack.c.l.b16 %v1674
  %v2215 = vunpack.c.h.b16 %v1674
  %v2216 = vunpack.c.l.b16 %v1675
  %v2217 = vunpack.c.h.b16 %v1675
  %v2218 = vunpack.c.l.b16 %v1676
  %v2219 = vunpack.c.h.b16 %v1676
  %v2220 = vunpack.c.l.b16 %v1677
  %v2221 = vunpack.c.h.b16 %v1677
  %v2222 = vunpack.c.l.b16 %v1678
  %v2223 = vunpack.c.h.b16 %v1678
  %v2224 = vunpack.c.l.b16 %v1679
  %v2225 = vunpack.c.h.b16 %v1679
  %v2226 = vunpack.c.l.b16 %v1680
  %v2227 = vunpack.c.h.b16 %v1680
  %v2228 = vunpack.c.l.b16 %v1681
  %v2229 = vunpack.c.h.b16 %v1681
  %v2230 = vunpack.c.l.b16 %v1682
  %v2231 = vunpack.c.h.b16 %v1682
  %v2232 = vunpack.c.l.b16 %v1683
  %v2233 = vunpack.c.h.b16 %v1683
  %v2234 = vunpack.c.l.b16 %v1684
  %v2235 = vunpack.c.h.b16 %v1684
  %v2236 = vunpack.c.l.b16 %v1685
  %v2237 = vunpack.c.h.b16 %v1685
  %v2238 = vunpack.c.l.b16 %v1686
  %v2239 = vunpack.c.h.b16 %v1686
  %v2240 = vunpack.c.l.b16 %v1687
  %v2241 = vunpack.c.h.b16 %v1687
  %v2242 = vpack.c.b16 %v2180, %v2178
  %v2243 = vpack.c.b16 %v2181, %v2179
  %v2244 = vpack.c.b16 %v2184, %v2182
  %v2245 = vpack.c.b16 %v2185, %v2183
  %v2246 = vpack.c.b16 %v2188, %v2186
  %v2247 = vpack.c.b16 %v2189, %v2187
  %v2248 = vpack.c.b16 %v2192, %v2190
  %v2249 = vpack.c.b16 %v2193, %v2191
  %v2250 = vpack.c.b16 %v2196, %v2194
  %v2251 = vpack.c.b16 %v2197, %v2195
  %v2252 = vpack.c.b16 %v2200, %v2198
  %v2253 = vpack.c.b16 %v2201, %v2199
  %v2254 = vpack.c.b16 %v2204, %v2202
  %v2255 = vpack.c.b16 %v2205, %v2203
  %v2256 = vpack.c.b16 %v2208, %v2206
  %v2257 = vpack.c.b16 %v2209, %v2207
  %v2258 = vpack.c.b16 %v2212, %v2210
  %v2259 = vpack.c.b16 %v2213, %v2211
  %v2260 = vpack.c.b16 %v2216, %v2214
  %v2261 = vpack.c.b16 %v2217, %v2215
  %v2262 = vpack.c.b16 %v2220, %v2218
  %v2263 = vpack.c.b16 %v2221, %v2219
  %v2264 = vpack.c.b16 %v2224, %v2222
  %v2265 = vpack.c.b16 %v2225, %v2223
  %v2266 = vpack.c.b16 %v2228, %v2226
  %v2267 = vpack.c.b16 %v2229, %v2227
  %v2268 = vpack.c.b16 %v2232, %v2230
  %v2269 = vpack.c.b16 %v2233, %v2231
  %v2270 = vpack.c.b16 %v2236, %v2234
  %v2271 = vpack.c.b16 %v2237, %v2235
  %v2272 = vpack.c.b16 %v2240, %v2238
  %v2273 = vpack.c.b16 %v2241, %v2239
  %2306 = vmatprep.subr.bf16.mxu0 %v2257
  %2307 = vmatpush1.bf16.msra.mxu0 %v2256
  %2308 = vmatprep.subr.bf16.mxu0 %v2255
  %2309 = vmatpush1.bf16.msra.mxu0 %v2254
  %2310 = vmatprep.subr.bf16.mxu0 %v2253
  %2311 = vmatpush1.bf16.msra.mxu0 %v2252
  %2312 = vmatprep.subr.bf16.mxu0 %v2251
  %2313 = vmatpush1.bf16.msra.mxu0 %v2250
  %2314 = vmatprep.subr.bf16.mxu0 %v2249
  %2315 = vmatpush1.bf16.msra.mxu0 %v2248
  %2316 = vmatprep.subr.bf16.mxu0 %v2247
  %2317 = vmatpush1.bf16.msra.mxu0 %v2246
  %2318 = vmatprep.subr.bf16.mxu0 %v2245
  %2319 = vmatpush1.bf16.msra.mxu0 %v2244
  %2320 = vmatprep.subr.bf16.mxu0 %v2243
  %2321 = vmatpush1.bf16.msra.mxu0 %v2242
  %2322 = vmatprep.subr.bf16.mxu0 %v2273
  %2323 = vmatpush2.bf16.msra.mxu0 %v2272
  %2324 = vmatprep.subr.bf16.mxu0 %v2271
  %2325 = vmatpush2.bf16.msra.mxu0 %v2270
  %2326 = vmatprep.subr.bf16.mxu0 %v2269
  %2327 = vmatpush2.bf16.msra.mxu0 %v2268
  %2328 = vmatprep.subr.bf16.mxu0 %v2267
  %2329 = vmatpush2.bf16.msra.mxu0 %v2266
  %2330 = vmatprep.subr.bf16.mxu0 %v2265
  %2331 = vmatpush2.bf16.msra.mxu0 %v2264
  %2332 = vmatprep.subr.bf16.mxu0 %v2263
  %2333 = vmatpush2.bf16.msra.mxu0 %v2262
  %2334 = vmatprep.subr.bf16.mxu0 %v2261
  %2335 = vmatpush2.bf16.msra.mxu0 %v2260
  %2336 = vmatprep.subr.bf16.mxu0 %v2259
  %2337 = vmatpush2.bf16.msra.mxu0 %v2258
  %2338 = vmatprep.mubr.bf16.mxu0 %v1857
  %2339 = vmatmul.mubr.bf16.gmra.mxu0 %v1856
  %v2340 = vpop.f32.mrf.mxu0
  %v2341 = vadd.f32 %v2128, %v2340
  %v2342 = vpop.f32.mrf.mxu0
  %v2343 = vadd.f32 %v2130, %v2342
  %v2344 = vpop.f32.mrf.mxu0
  %v2345 = vadd.f32 %v2132, %v2344
  %v2346 = vpop.f32.mrf.mxu0
  %v2347 = vadd.f32 %v2134, %v2346
  %2348 = vmatprep.mubr.bf16.mxu0 %v1859
  %2349 = vmatmul.mubr.bf16.gmra.mxu0 %v1858
  %v2350 = vpop.f32.mrf.mxu0
  %v2351 = vadd.f32 %v2138, %v2350
  %v2352 = vpop.f32.mrf.mxu0
  %v2353 = vadd.f32 %v2140, %v2352
  %v2354 = vpop.f32.mrf.mxu0
  %v2355 = vadd.f32 %v2142, %v2354
  %v2356 = vpop.f32.mrf.mxu0
  %v2357 = vadd.f32 %v2144, %v2356
  %2358 = vdwg.mxu0
  %v2363 = vunpack.c.l.b16 %v1647
  %v2364 = vunpack.c.l.b16 %v1648
  %v2365 = vunpack.c.l.b16 %v1649
  %v2366 = vunpack.c.l.b16 %v1650
  %v2367 = vpack.c.b16 %v2364, %v2363
  %v2368 = vpack.c.b16 %v2366, %v2365
  %v2370 = vsel %vm610, %v2367, 0
  %v2373 = vsel %vm610, %v2368, 0
  %2375 = vmatprep.subr.bf16.mxu0 0
  %2376 = vmatpush1.bf16.msra.mxu0 0
  %2377 = vmatprep.subr.bf16.mxu0 0
  %2378 = vmatpush1.bf16.msra.mxu0 0
  %2379 = vmatprep.subr.bf16.mxu0 0
  %2380 = vmatpush1.bf16.msra.mxu0 0
  %2381 = vmatprep.subr.bf16.mxu0 0
  %2382 = vmatpush1.bf16.msra.mxu0 0
  %2383 = vmatprep.subr.bf16.mxu0 %v1636
  %2384 = vmatpush1.bf16.msra.mxu0 %v1635
  %2385 = vmatprep.subr.bf16.mxu0 %v1634
  %2386 = vmatpush1.bf16.msra.mxu0 %v1633
  %2387 = vmatprep.subr.bf16.mxu0 %v1632
  %2388 = vmatpush1.bf16.msra.mxu0 %v1631
  %2389 = vmatprep.subr.bf16.mxu0 %v1630
  %2390 = vmatpush1.bf16.msra.mxu0 %v1629
  %2391 = vmatprep.subr.bf16.mxu0 0
  %2392 = vmatpush2.bf16.msra.mxu0 0
  %2393 = vmatprep.subr.bf16.mxu0 0
  %2394 = vmatpush2.bf16.msra.mxu0 0
  %2395 = vmatprep.subr.bf16.mxu0 0
  %2396 = vmatpush2.bf16.msra.mxu0 0
  %2397 = vmatprep.subr.bf16.mxu0 0
  %2398 = vmatpush2.bf16.msra.mxu0 0
  %2399 = vmatprep.subr.bf16.mxu0 0
  %2400 = vmatpush2.bf16.msra.mxu0 0
  %2401 = vmatprep.subr.bf16.mxu0 0
  %2402 = vmatpush2.bf16.msra.mxu0 0
  %2403 = vmatprep.subr.bf16.mxu0 0
  %2404 = vmatpush2.bf16.msra.mxu0 0
  %2405 = vmatprep.subr.bf16.mxu0 0
  %2406 = vmatpush2.bf16.msra.mxu0 0
  %2407 = vmatprep.mubr.bf16.mxu0 0
  %2408 = vmatmul.mubr.bf16.gmra.mxu0 %v2370
  %v2409 = vpop.f32.mrf.mxu0
  %v2410 = vadd.f32 0.0, %v2409
  %v2411 = vpop.f32.mrf.mxu0
  %v2412 = vadd.f32 0.0, %v2411
  %v2413 = vpop.f32.mrf.mxu0
  %v2414 = vadd.f32 0.0, %v2413
  %v2415 = vpop.f32.mrf.mxu0
  %v2416 = vadd.f32 0.0, %v2415
  %2417 = vmatprep.mubr.bf16.mxu0 0
  %2418 = vmatmul.mubr.bf16.gmra.mxu0 %v2373
  %v2419 = vpop.f32.mrf.mxu0
  %v2420 = vadd.f32 0.0, %v2419
  %v2421 = vpop.f32.mrf.mxu0
  %v2422 = vadd.f32 0.0, %v2421
  %v2423 = vpop.f32.mrf.mxu0
  %v2424 = vadd.f32 0.0, %v2423
  %v2425 = vpop.f32.mrf.mxu0
  %v2426 = vadd.f32 0.0, %v2425
  %2427 = vdwg.mxu0
  %v2428 = vpack.c.bf16 %v2414, %v2410
  %v2429 = vpack.c.bf16 %v2416, %v2412
  %v2430 = vpack.c.bf16 %v2424, %v2420
  %v2431 = vpack.c.bf16 %v2426, %v2422
  %v2464 = vunpack.c.l.b16 %v1722
  %v2465 = vunpack.c.h.b16 %v1722
  %v2466 = vunpack.c.l.b16 %v1723
  %v2467 = vunpack.c.h.b16 %v1723
  %v2468 = vunpack.c.l.b16 %v1724
  %v2469 = vunpack.c.h.b16 %v1724
  %v2470 = vunpack.c.l.b16 %v1725
  %v2471 = vunpack.c.h.b16 %v1725
  %v2472 = vunpack.c.l.b16 %v1726
  %v2473 = vunpack.c.h.b16 %v1726
  %v2474 = vunpack.c.l.b16 %v1727
  %v2475 = vunpack.c.h.b16 %v1727
  %v2476 = vunpack.c.l.b16 %v1728
  %v2477 = vunpack.c.h.b16 %v1728
  %v2478 = vunpack.c.l.b16 %v1729
  %v2479 = vunpack.c.h.b16 %v1729
  %v2480 = vunpack.c.l.b16 %v1730
  %v2481 = vunpack.c.h.b16 %v1730
  %v2482 = vunpack.c.l.b16 %v1731
  %v2483 = vunpack.c.h.b16 %v1731
  %v2484 = vunpack.c.l.b16 %v1732
  %v2485 = vunpack.c.h.b16 %v1732
  %v2486 = vunpack.c.l.b16 %v1733
  %v2487 = vunpack.c.h.b16 %v1733
  %v2488 = vunpack.c.l.b16 %v1734
  %v2489 = vunpack.c.h.b16 %v1734
  %v2490 = vunpack.c.l.b16 %v1735
  %v2491 = vunpack.c.h.b16 %v1735
  %v2492 = vunpack.c.l.b16 %v1736
  %v2493 = vunpack.c.h.b16 %v1736
  %v2494 = vunpack.c.l.b16 %v1737
  %v2495 = vunpack.c.h.b16 %v1737
  %v2496 = vunpack.c.l.b16 %v1738
  %v2497 = vunpack.c.h.b16 %v1738
  %v2498 = vunpack.c.l.b16 %v1739
  %v2499 = vunpack.c.h.b16 %v1739
  %v2500 = vunpack.c.l.b16 %v1740
  %v2501 = vunpack.c.h.b16 %v1740
  %v2502 = vunpack.c.l.b16 %v1741
  %v2503 = vunpack.c.h.b16 %v1741
  %v2504 = vunpack.c.l.b16 %v1742
  %v2505 = vunpack.c.h.b16 %v1742
  %v2506 = vunpack.c.l.b16 %v1743
  %v2507 = vunpack.c.h.b16 %v1743
  %v2508 = vunpack.c.l.b16 %v1744
  %v2509 = vunpack.c.h.b16 %v1744
  %v2510 = vunpack.c.l.b16 %v1745
  %v2511 = vunpack.c.h.b16 %v1745
  %v2512 = vunpack.c.l.b16 %v1746
  %v2513 = vunpack.c.h.b16 %v1746
  %v2514 = vunpack.c.l.b16 %v1747
  %v2515 = vunpack.c.h.b16 %v1747
  %v2516 = vunpack.c.l.b16 %v1748
  %v2517 = vunpack.c.h.b16 %v1748
  %v2518 = vunpack.c.l.b16 %v1749
  %v2519 = vunpack.c.h.b16 %v1749
  %v2520 = vunpack.c.l.b16 %v1750
  %v2521 = vunpack.c.h.b16 %v1750
  %v2522 = vunpack.c.l.b16 %v1751
  %v2523 = vunpack.c.h.b16 %v1751
  %v2524 = vunpack.c.l.b16 %v1752
  %v2525 = vunpack.c.h.b16 %v1752
  %v2526 = vunpack.c.l.b16 %v1753
  %v2527 = vunpack.c.h.b16 %v1753
  %v2528 = vpack.c.b16 %v2466, %v2464
  %v2529 = vpack.c.b16 %v2467, %v2465
  %v2530 = vpack.c.b16 %v2470, %v2468
  %v2531 = vpack.c.b16 %v2471, %v2469
  %v2532 = vpack.c.b16 %v2474, %v2472
  %v2533 = vpack.c.b16 %v2475, %v2473
  %v2534 = vpack.c.b16 %v2478, %v2476
  %v2535 = vpack.c.b16 %v2479, %v2477
  %v2536 = vpack.c.b16 %v2482, %v2480
  %v2537 = vpack.c.b16 %v2483, %v2481
  %v2538 = vpack.c.b16 %v2486, %v2484
  %v2539 = vpack.c.b16 %v2487, %v2485
  %v2540 = vpack.c.b16 %v2490, %v2488
  %v2541 = vpack.c.b16 %v2491, %v2489
  %v2542 = vpack.c.b16 %v2494, %v2492
  %v2543 = vpack.c.b16 %v2495, %v2493
  %v2544 = vpack.c.b16 %v2498, %v2496
  %v2545 = vpack.c.b16 %v2499, %v2497
  %v2546 = vpack.c.b16 %v2502, %v2500
  %v2547 = vpack.c.b16 %v2503, %v2501
  %v2548 = vpack.c.b16 %v2506, %v2504
  %v2549 = vpack.c.b16 %v2507, %v2505
  %v2550 = vpack.c.b16 %v2510, %v2508
  %v2551 = vpack.c.b16 %v2511, %v2509
  %v2552 = vpack.c.b16 %v2514, %v2512
  %v2553 = vpack.c.b16 %v2515, %v2513
  %v2554 = vpack.c.b16 %v2518, %v2516
  %v2555 = vpack.c.b16 %v2519, %v2517
  %v2556 = vpack.c.b16 %v2522, %v2520
  %v2557 = vpack.c.b16 %v2523, %v2521
  %v2558 = vpack.c.b16 %v2526, %v2524
  %v2559 = vpack.c.b16 %v2527, %v2525
  %2592 = vmatprep.subr.bf16.mxu0 %v2543
  %2593 = vmatpush1.bf16.msra.mxu0 %v2542
  %2594 = vmatprep.subr.bf16.mxu0 %v2541
  %2595 = vmatpush1.bf16.msra.mxu0 %v2540
  %2596 = vmatprep.subr.bf16.mxu0 %v2539
  %2597 = vmatpush1.bf16.msra.mxu0 %v2538
  %2598 = vmatprep.subr.bf16.mxu0 %v2537
  %2599 = vmatpush1.bf16.msra.mxu0 %v2536
  %2600 = vmatprep.subr.bf16.mxu0 %v2535
  %2601 = vmatpush1.bf16.msra.mxu0 %v2534
  %2602 = vmatprep.subr.bf16.mxu0 %v2533
  %2603 = vmatpush1.bf16.msra.mxu0 %v2532
  %2604 = vmatprep.subr.bf16.mxu0 %v2531
  %2605 = vmatpush1.bf16.msra.mxu0 %v2530
  %2606 = vmatprep.subr.bf16.mxu0 %v2529
  %2607 = vmatpush1.bf16.msra.mxu0 %v2528
  %2608 = vmatprep.subr.bf16.mxu0 %v2559
  %2609 = vmatpush2.bf16.msra.mxu0 %v2558
  %2610 = vmatprep.subr.bf16.mxu0 %v2557
  %2611 = vmatpush2.bf16.msra.mxu0 %v2556
  %2612 = vmatprep.subr.bf16.mxu0 %v2555
  %2613 = vmatpush2.bf16.msra.mxu0 %v2554
  %2614 = vmatprep.subr.bf16.mxu0 %v2553
  %2615 = vmatpush2.bf16.msra.mxu0 %v2552
  %2616 = vmatprep.subr.bf16.mxu0 %v2551
  %2617 = vmatpush2.bf16.msra.mxu0 %v2550
  %2618 = vmatprep.subr.bf16.mxu0 %v2549
  %2619 = vmatpush2.bf16.msra.mxu0 %v2548
  %2620 = vmatprep.subr.bf16.mxu0 %v2547
  %2621 = vmatpush2.bf16.msra.mxu0 %v2546
  %2622 = vmatprep.subr.bf16.mxu0 %v2545
  %2623 = vmatpush2.bf16.msra.mxu0 %v2544
  %2624 = vmatprep.mubr.bf16.mxu0 %v2429
  %2625 = vmatmul.mubr.bf16.gmra.mxu0 %v2428
  %v2626 = vpop.f32.mrf.mxu0
  %v2627 = vadd.f32 0.0, %v2626
  %v2628 = vpop.f32.mrf.mxu0
  %v2629 = vadd.f32 0.0, %v2628
  %v2630 = vpop.f32.mrf.mxu0
  %v2631 = vadd.f32 0.0, %v2630
  %v2632 = vpop.f32.mrf.mxu0
  %v2633 = vadd.f32 0.0, %v2632
  %2634 = vmatprep.mubr.bf16.mxu0 %v2431
  %2635 = vmatmul.mubr.bf16.gmra.mxu0 %v2430
  %v2636 = vpop.f32.mrf.mxu0
  %v2637 = vadd.f32 0.0, %v2636
  %v2638 = vpop.f32.mrf.mxu0
  %v2639 = vadd.f32 0.0, %v2638
  %v2640 = vpop.f32.mrf.mxu0
  %v2641 = vadd.f32 0.0, %v2640
  %v2642 = vpop.f32.mrf.mxu0
  %v2643 = vadd.f32 0.0, %v2642
  %2644 = vdwg.mxu0
  %v2645 = vadd.f32 %v2341, %v2627
  %v2646 = vadd.f32 %v2343, %v2629
  %v2647 = vadd.f32 %v2345, %v2631
  %v2648 = vadd.f32 %v2347, %v2633
  %v2649 = vadd.f32 %v2351, %v2637
  %v2650 = vadd.f32 %v2353, %v2639
  %v2651 = vadd.f32 %v2355, %v2641
  %v2652 = vadd.f32 %v2357, %v2643
  %v2657 = vunpack.c.l.b16 %v1652
  %v2658 = vunpack.c.l.b16 %v1653
  %v2659 = vunpack.c.l.b16 %v1654
  %v2660 = vunpack.c.l.b16 %v1655
  %v2661 = vpack.c.b16 %v2658, %v2657
  %v2662 = vpack.c.b16 %v2660, %v2659
  %v2664 = vsel %vm610, %v2661, 0
  %v2667 = vsel %vm610, %v2662, 0
  %2669 = vmatprep.subr.bf16.mxu0 0
  %2670 = vmatpush1.bf16.msra.mxu0 0
  %2671 = vmatprep.subr.bf16.mxu0 0
  %2672 = vmatpush1.bf16.msra.mxu0 0
  %2673 = vmatprep.subr.bf16.mxu0 0
  %2674 = vmatpush1.bf16.msra.mxu0 0
  %2675 = vmatprep.subr.bf16.mxu0 0
  %2676 = vmatpush1.bf16.msra.mxu0 0
  %2677 = vmatprep.subr.bf16.mxu0 %v1636
  %2678 = vmatpush1.bf16.msra.mxu0 %v1635
  %2679 = vmatprep.subr.bf16.mxu0 %v1634
  %2680 = vmatpush1.bf16.msra.mxu0 %v1633
  %2681 = vmatprep.subr.bf16.mxu0 %v1632
  %2682 = vmatpush1.bf16.msra.mxu0 %v1631
  %2683 = vmatprep.subr.bf16.mxu0 %v1630
  %2684 = vmatpush1.bf16.msra.mxu0 %v1629
  %2685 = vmatprep.subr.bf16.mxu0 0
  %2686 = vmatpush2.bf16.msra.mxu0 0
  %2687 = vmatprep.subr.bf16.mxu0 0
  %2688 = vmatpush2.bf16.msra.mxu0 0
  %2689 = vmatprep.subr.bf16.mxu0 0
  %2690 = vmatpush2.bf16.msra.mxu0 0
  %2691 = vmatprep.subr.bf16.mxu0 0
  %2692 = vmatpush2.bf16.msra.mxu0 0
  %2693 = vmatprep.subr.bf16.mxu0 0
  %2694 = vmatpush2.bf16.msra.mxu0 0
  %2695 = vmatprep.subr.bf16.mxu0 0
  %2696 = vmatpush2.bf16.msra.mxu0 0
  %2697 = vmatprep.subr.bf16.mxu0 0
  %2698 = vmatpush2.bf16.msra.mxu0 0
  %2699 = vmatprep.subr.bf16.mxu0 0
  %2700 = vmatpush2.bf16.msra.mxu0 0
  %2701 = vmatprep.mubr.bf16.mxu0 0
  %2702 = vmatmul.mubr.bf16.gmra.mxu0 %v2664
  %v2703 = vpop.f32.mrf.mxu0
  %v2704 = vadd.f32 0.0, %v2703
  %v2705 = vpop.f32.mrf.mxu0
  %v2706 = vadd.f32 0.0, %v2705
  %v2707 = vpop.f32.mrf.mxu0
  %v2708 = vadd.f32 0.0, %v2707
  %v2709 = vpop.f32.mrf.mxu0
  %v2710 = vadd.f32 0.0, %v2709
  %2711 = vmatprep.mubr.bf16.mxu0 0
  %2712 = vmatmul.mubr.bf16.gmra.mxu0 %v2667
  %v2713 = vpop.f32.mrf.mxu0
  %v2714 = vadd.f32 0.0, %v2713
  %v2715 = vpop.f32.mrf.mxu0
  %v2716 = vadd.f32 0.0, %v2715
  %v2717 = vpop.f32.mrf.mxu0
  %v2718 = vadd.f32 0.0, %v2717
  %v2719 = vpop.f32.mrf.mxu0
  %v2720 = vadd.f32 0.0, %v2719
  %2721 = vdwg.mxu0
  %v2722 = vpack.c.bf16 %v2708, %v2704
  %v2723 = vpack.c.bf16 %v2710, %v2706
  %v2724 = vpack.c.bf16 %v2718, %v2714
  %v2725 = vpack.c.bf16 %v2720, %v2716
  %v2758 = vunpack.c.l.b16 %v1755
  %v2759 = vunpack.c.h.b16 %v1755
  %v2760 = vunpack.c.l.b16 %v1756
  %v2761 = vunpack.c.h.b16 %v1756
  %v2762 = vunpack.c.l.b16 %v1757
  %v2763 = vunpack.c.h.b16 %v1757
  %v2764 = vunpack.c.l.b16 %v1758
  %v2765 = vunpack.c.h.b16 %v1758
  %v2766 = vunpack.c.l.b16 %v1759
  %v2767 = vunpack.c.h.b16 %v1759
  %v2768 = vunpack.c.l.b16 %v1760
  %v2769 = vunpack.c.h.b16 %v1760
  %v2770 = vunpack.c.l.b16 %v1761
  %v2771 = vunpack.c.h.b16 %v1761
  %v2772 = vunpack.c.l.b16 %v1762
  %v2773 = vunpack.c.h.b16 %v1762
  %v2774 = vunpack.c.l.b16 %v1763
  %v2775 = vunpack.c.h.b16 %v1763
  %v2776 = vunpack.c.l.b16 %v1764
  %v2777 = vunpack.c.h.b16 %v1764
  %v2778 = vunpack.c.l.b16 %v1765
  %v2779 = vunpack.c.h.b16 %v1765
  %v2780 = vunpack.c.l.b16 %v1766
  %v2781 = vunpack.c.h.b16 %v1766
  %v2782 = vunpack.c.l.b16 %v1767
  %v2783 = vunpack.c.h.b16 %v1767
  %v2784 = vunpack.c.l.b16 %v1768
  %v2785 = vunpack.c.h.b16 %v1768
  %v2786 = vunpack.c.l.b16 %v1769
  %v2787 = vunpack.c.h.b16 %v1769
  %v2788 = vunpack.c.l.b16 %v1770
  %v2789 = vunpack.c.h.b16 %v1770
  %v2790 = vunpack.c.l.b16 %v1771
  %v2791 = vunpack.c.h.b16 %v1771
  %v2792 = vunpack.c.l.b16 %v1772
  %v2793 = vunpack.c.h.b16 %v1772
  %v2794 = vunpack.c.l.b16 %v1773
  %v2795 = vunpack.c.h.b16 %v1773
  %v2796 = vunpack.c.l.b16 %v1774
  %v2797 = vunpack.c.h.b16 %v1774
  %v2798 = vunpack.c.l.b16 %v1775
  %v2799 = vunpack.c.h.b16 %v1775
  %v2800 = vunpack.c.l.b16 %v1776
  %v2801 = vunpack.c.h.b16 %v1776
  %v2802 = vunpack.c.l.b16 %v1777
  %v2803 = vunpack.c.h.b16 %v1777
  %v2804 = vunpack.c.l.b16 %v1778
  %v2805 = vunpack.c.h.b16 %v1778
  %v2806 = vunpack.c.l.b16 %v1779
  %v2807 = vunpack.c.h.b16 %v1779
  %v2808 = vunpack.c.l.b16 %v1780
  %v2809 = vunpack.c.h.b16 %v1780
  %v2810 = vunpack.c.l.b16 %v1781
  %v2811 = vunpack.c.h.b16 %v1781
  %v2812 = vunpack.c.l.b16 %v1782
  %v2813 = vunpack.c.h.b16 %v1782
  %v2814 = vunpack.c.l.b16 %v1783
  %v2815 = vunpack.c.h.b16 %v1783
  %v2816 = vunpack.c.l.b16 %v1784
  %v2817 = vunpack.c.h.b16 %v1784
  %v2818 = vunpack.c.l.b16 %v1785
  %v2819 = vunpack.c.h.b16 %v1785
  %v2820 = vunpack.c.l.b16 %v1786
  %v2821 = vunpack.c.h.b16 %v1786
  %v2822 = vpack.c.b16 %v2760, %v2758
  %v2823 = vpack.c.b16 %v2761, %v2759
  %v2824 = vpack.c.b16 %v2764, %v2762
  %v2825 = vpack.c.b16 %v2765, %v2763
  %v2826 = vpack.c.b16 %v2768, %v2766
  %v2827 = vpack.c.b16 %v2769, %v2767
  %v2828 = vpack.c.b16 %v2772, %v2770
  %v2829 = vpack.c.b16 %v2773, %v2771
  %v2830 = vpack.c.b16 %v2776, %v2774
  %v2831 = vpack.c.b16 %v2777, %v2775
  %v2832 = vpack.c.b16 %v2780, %v2778
  %v2833 = vpack.c.b16 %v2781, %v2779
  %v2834 = vpack.c.b16 %v2784, %v2782
  %v2835 = vpack.c.b16 %v2785, %v2783
  %v2836 = vpack.c.b16 %v2788, %v2786
  %v2837 = vpack.c.b16 %v2789, %v2787
  %v2838 = vpack.c.b16 %v2792, %v2790
  %v2839 = vpack.c.b16 %v2793, %v2791
  %v2840 = vpack.c.b16 %v2796, %v2794
  %v2841 = vpack.c.b16 %v2797, %v2795
  %v2842 = vpack.c.b16 %v2800, %v2798
  %v2843 = vpack.c.b16 %v2801, %v2799
  %v2844 = vpack.c.b16 %v2804, %v2802
  %v2845 = vpack.c.b16 %v2805, %v2803
  %v2846 = vpack.c.b16 %v2808, %v2806
  %v2847 = vpack.c.b16 %v2809, %v2807
  %v2848 = vpack.c.b16 %v2812, %v2810
  %v2849 = vpack.c.b16 %v2813, %v2811
  %v2850 = vpack.c.b16 %v2816, %v2814
  %v2851 = vpack.c.b16 %v2817, %v2815
  %v2852 = vpack.c.b16 %v2820, %v2818
  %v2853 = vpack.c.b16 %v2821, %v2819
  %2886 = vmatprep.subr.bf16.mxu0 %v2837
  %2887 = vmatpush1.bf16.msra.mxu0 %v2836
  %2888 = vmatprep.subr.bf16.mxu0 %v2835
  %2889 = vmatpush1.bf16.msra.mxu0 %v2834
  %2890 = vmatprep.subr.bf16.mxu0 %v2833
  %2891 = vmatpush1.bf16.msra.mxu0 %v2832
  %2892 = vmatprep.subr.bf16.mxu0 %v2831
  %2893 = vmatpush1.bf16.msra.mxu0 %v2830
  %2894 = vmatprep.subr.bf16.mxu0 %v2829
  %2895 = vmatpush1.bf16.msra.mxu0 %v2828
  %2896 = vmatprep.subr.bf16.mxu0 %v2827
  %2897 = vmatpush1.bf16.msra.mxu0 %v2826
  %2898 = vmatprep.subr.bf16.mxu0 %v2825
  %2899 = vmatpush1.bf16.msra.mxu0 %v2824
  %2900 = vmatprep.subr.bf16.mxu0 %v2823
  %2901 = vmatpush1.bf16.msra.mxu0 %v2822
  %2902 = vmatprep.subr.bf16.mxu0 %v2853
  %2903 = vmatpush2.bf16.msra.mxu0 %v2852
  %2904 = vmatprep.subr.bf16.mxu0 %v2851
  %2905 = vmatpush2.bf16.msra.mxu0 %v2850
  %2906 = vmatprep.subr.bf16.mxu0 %v2849
  %2907 = vmatpush2.bf16.msra.mxu0 %v2848
  %2908 = vmatprep.subr.bf16.mxu0 %v2847
  %2909 = vmatpush2.bf16.msra.mxu0 %v2846
  %2910 = vmatprep.subr.bf16.mxu0 %v2845
  %2911 = vmatpush2.bf16.msra.mxu0 %v2844
  %2912 = vmatprep.subr.bf16.mxu0 %v2843
  %2913 = vmatpush2.bf16.msra.mxu0 %v2842
  %2914 = vmatprep.subr.bf16.mxu0 %v2841
  %2915 = vmatpush2.bf16.msra.mxu0 %v2840
  %2916 = vmatprep.subr.bf16.mxu0 %v2839
  %2917 = vmatpush2.bf16.msra.mxu0 %v2838
  %2918 = vmatprep.mubr.bf16.mxu0 %v2723
  %2919 = vmatmul.mubr.bf16.gmra.mxu0 %v2722
  %v2920 = vpop.f32.mrf.mxu0
  %v2921 = vadd.f32 0.0, %v2920
  %v2922 = vpop.f32.mrf.mxu0
  %v2923 = vadd.f32 0.0, %v2922
  %v2924 = vpop.f32.mrf.mxu0
  %v2925 = vadd.f32 0.0, %v2924
  %v2926 = vpop.f32.mrf.mxu0
  %v2927 = vadd.f32 0.0, %v2926
  %2928 = vmatprep.mubr.bf16.mxu0 %v2725
  %2929 = vmatmul.mubr.bf16.gmra.mxu0 %v2724
  %v2930 = vpop.f32.mrf.mxu0
  %v2931 = vadd.f32 0.0, %v2930
  %v2932 = vpop.f32.mrf.mxu0
  %v2933 = vadd.f32 0.0, %v2932
  %v2934 = vpop.f32.mrf.mxu0
  %v2935 = vadd.f32 0.0, %v2934
  %v2936 = vpop.f32.mrf.mxu0
  %v2937 = vadd.f32 0.0, %v2936
  %2938 = vdwg.mxu0
  %v2939 = vadd.f32 %v2645, %v2921
  %v2940 = vadd.f32 %v2646, %v2923
  %v2941 = vadd.f32 %v2647, %v2925
  %v2942 = vadd.f32 %v2648, %v2927
  %v2943 = vadd.f32 %v2649, %v2931
  %v2944 = vadd.f32 %v2650, %v2933
  %v2945 = vadd.f32 %v2651, %v2935
  %v2946 = vadd.f32 %v2652, %v2937
  %v2947 = vld [vmem:[%s10] sm:$0xff]
  %v2948 = vld [vmem:[%s10 + $0x8] sm:$0xff]
  %v2949 = vld [vmem:[%s10 + $0x10] sm:$0xff]
  %v2950 = vld [vmem:[%s10 + $0x18] sm:$0xff]
  %v2951 = vld [vmem:[%s10 + $0x20] sm:$0xff]
  %v2952 = vld [vmem:[%s10 + $0x28] sm:$0xff]
  %v2953 = vld [vmem:[%s10 + $0x30] sm:$0xff]
  %v2954 = vld [vmem:[%s10 + $0x38] sm:$0xff]
  %v2955 = vld [vmem:[%s10 + $0x40] sm:$0xff]
  %v2956 = vld [vmem:[%s10 + $0x48] sm:$0xff]
  %v2957 = vld [vmem:[%s10 + $0x50] sm:$0xff]
  %v2958 = vld [vmem:[%s10 + $0x58] sm:$0xff]
  %v2959 = vld [vmem:[%s10 + $0x60] sm:$0xff]
  %v2960 = vld [vmem:[%s10 + $0x68] sm:$0xff]
  %v2961 = vld [vmem:[%s10 + $0x70] sm:$0xff]
  %v2962 = vld [vmem:[%s10 + $0x78] sm:$0xff]
  %v2963 = vld [vmem:[%s10 + $0x80] sm:$0xff]
  %v2964 = vld [vmem:[%s10 + $0x88] sm:$0xff]
  %v2965 = vld [vmem:[%s10 + $0x90] sm:$0xff]
  %v2966 = vld [vmem:[%s10 + $0x98] sm:$0xff]
  %v2967 = vld [vmem:[%s10 + $0xa0] sm:$0xff]
  %v2968 = vld [vmem:[%s10 + $0xa8] sm:$0xff]
  %v2969 = vld [vmem:[%s10 + $0xb0] sm:$0xff]
  %v2970 = vld [vmem:[%s10 + $0xb8] sm:$0xff]
  %v2971 = vld [vmem:[%s10 + $0xc0] sm:$0xff]
  %v2972 = vld [vmem:[%s10 + $0xc8] sm:$0xff]
  %v2973 = vld [vmem:[%s10 + $0xd0] sm:$0xff]
  %v2974 = vld [vmem:[%s10 + $0xd8] sm:$0xff]
  %v2975 = vld [vmem:[%s10 + $0xe0] sm:$0xff]
  %v2976 = vld [vmem:[%s10 + $0xe8] sm:$0xff]
  %v2977 = vld [vmem:[%s10 + $0xf0] sm:$0xff]
  %v2978 = vld [vmem:[%s10 + $0xf8] sm:$0xff]
  %v2979 = vld [vmem:[%s10 + $0x100] sm:$0xff]
  %v2980 = vld [vmem:[%s10 + $0x108] sm:$0xff]
  %v2981 = vld [vmem:[%s10 + $0x110] sm:$0xff]
  %v2982 = vld [vmem:[%s10 + $0x118] sm:$0xff]
  %v2983 = vld [vmem:[%s10 + $0x120] sm:$0xff]
  %v2984 = vld [vmem:[%s10 + $0x128] sm:$0xff]
  %v2985 = vld [vmem:[%s10 + $0x130] sm:$0xff]
  %v2986 = vld [vmem:[%s10 + $0x138] sm:$0xff]
  %v2987 = vld [vmem:[%s10 + $0x140] sm:$0xff]
  %v2988 = vld [vmem:[%s10 + $0x148] sm:$0xff]
  %v2989 = vld [vmem:[%s10 + $0x150] sm:$0xff]
  %v2990 = vld [vmem:[%s10 + $0x158] sm:$0xff]
  %v2991 = vld [vmem:[%s10 + $0x160] sm:$0xff]
  %v2992 = vld [vmem:[%s10 + $0x168] sm:$0xff]
  %v2993 = vld [vmem:[%s10 + $0x170] sm:$0xff]
  %v2994 = vld [vmem:[%s10 + $0x178] sm:$0xff]
  %v2995 = vld [vmem:[%s10 + $0x180] sm:$0xff]
  %v2996 = vld [vmem:[%s10 + $0x188] sm:$0xff]
  %v2997 = vld [vmem:[%s10 + $0x190] sm:$0xff]
  %v2998 = vld [vmem:[%s10 + $0x198] sm:$0xff]
  %v2999 = vld [vmem:[%s10 + $0x1a0] sm:$0xff]
  %v3000 = vld [vmem:[%s10 + $0x1a8] sm:$0xff]
  %v3001 = vld [vmem:[%s10 + $0x1b0] sm:$0xff]
  %v3002 = vld [vmem:[%s10 + $0x1b8] sm:$0xff]
  %v3003 = vld [vmem:[%s10 + $0x1c0] sm:$0xff]
  %v3004 = vld [vmem:[%s10 + $0x1c8] sm:$0xff]
  %v3005 = vld [vmem:[%s10 + $0x1d0] sm:$0xff]
  %v3006 = vld [vmem:[%s10 + $0x1d8] sm:$0xff]
  %v3007 = vld [vmem:[%s10 + $0x1e0] sm:$0xff]
  %v3008 = vld [vmem:[%s10 + $0x1e8] sm:$0xff]
  %v3009 = vld [vmem:[%s10 + $0x1f0] sm:$0xff]
  %v3010 = vld [vmem:[%s10 + $0x1f8] sm:$0xff]
  %v3011 = vadd.f32 %v2939, %v2941
  %v3012 = vadd.f32 %v3011, %v2943
  %v3013 = vadd.f32 %v3012, %v2945
  %v3014 = vrot.slane %v3013, 4
  %v3015 = vadd.f32 %v3013, %v3014
  %v3016 = vrot.slane %v3015, 2
  %v3017 = vadd.f32 %v3015, %v3016
  %v3018 = vrot.slane %v3017, 1
  %v3019 = vadd.f32 %v3017, %v3018
  %v3020 = vadd.f32 %v2940, %v2942
  %v3021 = vadd.f32 %v3020, %v2944
  %v3022 = vadd.f32 %v3021, %v2946
  %v3023 = vrot.slane %v3022, 4
  %v3024 = vadd.f32 %v3022, %v3023
  %v3025 = vrot.slane %v3024, 2
  %v3026 = vadd.f32 %v3024, %v3025
  %v3027 = vrot.slane %v3026, 1
  %v3028 = vadd.f32 %v3026, %v3027
  %v3029 = vrcp.pop 32.0
  %v3030 = vmul.f32 %v3019, %v3029
  %v3031 = vmul.f32 %v3028, %v3029
  %3032 = vmatprep.subr.mxu0 %v2978
  %3033 = vmatpush1.msra.mxu0 %v2977
  %3034 = vmatprep.subr.mxu0 %v2976
  %3035 = vmatpush1.msra.mxu0 %v2975
  %3036 = vmatprep.subr.mxu0 %v2974
  %3037 = vmatpush1.msra.mxu0 %v2973
  %3038 = vmatprep.subr.mxu0 %v2972
  %3039 = vmatpush1.msra.mxu0 %v2971
  %3040 = vmatprep.subr.mxu0 %v2970
  %3041 = vmatpush1.msra.mxu0 %v2969
  %3042 = vmatprep.subr.mxu0 %v2968
  %3043 = vmatpush1.msra.mxu0 %v2967
  %3044 = vmatprep.subr.mxu0 %v2966
  %3045 = vmatpush1.msra.mxu0 %v2965
  %3046 = vmatprep.subr.mxu0 %v2964
  %3047 = vmatpush1.msra.mxu0 %v2963
  %3048 = vmatprep.subr.mxu0 %v2962
  %3049 = vmatpush1.msra.mxu0 %v2961
  %3050 = vmatprep.subr.mxu0 %v2960
  %3051 = vmatpush1.msra.mxu0 %v2959
  %3052 = vmatprep.subr.mxu0 %v2958
  %3053 = vmatpush1.msra.mxu0 %v2957
  %3054 = vmatprep.subr.mxu0 %v2956
  %3055 = vmatpush1.msra.mxu0 %v2955
  %3056 = vmatprep.subr.mxu0 %v2954
  %3057 = vmatpush1.msra.mxu0 %v2953
  %3058 = vmatprep.subr.mxu0 %v2952
  %3059 = vmatpush1.msra.mxu0 %v2951
  %3060 = vmatprep.subr.mxu0 %v2950
  %3061 = vmatpush1.msra.mxu0 %v2949
  %3062 = vmatprep.subr.mxu0 %v2948
  %3063 = vmatpush1.msra.mxu0 %v2947
  %3064 = vmatprep.subr.mxu0 %v3010
  %3065 = vmatpush2.msra.mxu0 %v3009
  %3066 = vmatprep.subr.mxu0 %v3008
  %3067 = vmatpush2.msra.mxu0 %v3007
  %3068 = vmatprep.subr.mxu0 %v3006
  %3069 = vmatpush2.msra.mxu0 %v3005
  %3070 = vmatprep.subr.mxu0 %v3004
  %3071 = vmatpush2.msra.mxu0 %v3003
  %3072 = vmatprep.subr.mxu0 %v3002
  %3073 = vmatpush2.msra.mxu0 %v3001
  %3074 = vmatprep.subr.mxu0 %v3000
  %3075 = vmatpush2.msra.mxu0 %v2999
  %3076 = vmatprep.subr.mxu0 %v2998
  %3077 = vmatpush2.msra.mxu0 %v2997
  %3078 = vmatprep.subr.mxu0 %v2996
  %3079 = vmatpush2.msra.mxu0 %v2995
  %3080 = vmatprep.subr.mxu0 %v2994
  %3081 = vmatpush2.msra.mxu0 %v2993
  %3082 = vmatprep.subr.mxu0 %v2992
  %3083 = vmatpush2.msra.mxu0 %v2991
  %3084 = vmatprep.subr.mxu0 %v2990
  %3085 = vmatpush2.msra.mxu0 %v2989
  %3086 = vmatprep.subr.mxu0 %v2988
  %3087 = vmatpush2.msra.mxu0 %v2987
  %3088 = vmatprep.subr.mxu0 %v2986
  %3089 = vmatpush2.msra.mxu0 %v2985
  %3090 = vmatprep.subr.mxu0 %v2984
  %3091 = vmatpush2.msra.mxu0 %v2983
  %3092 = vmatprep.subr.mxu0 %v2982
  %3093 = vmatpush2.msra.mxu0 %v2981
  %3094 = vmatprep.subr.mxu0 %v2980
  %3095 = vmatpush2.msra.mxu0 %v2979
  %3096 = vmatprep.mubr.f32.mxu0 %v3031
  %3097 = vmatmul.mubr.f32.gmra.mxu0 %v3030
  %v3098 = vpop.f32.mrf.mxu0
  %v3099 = vadd.f32 0.0, %v3098
  %v3100 = vpop.f32.mrf.mxu0
  %v3101 = vadd.f32 0.0, %v3100
  %3102 = vdwg.mxu0
  %v3103 = vlaneseq
  %v3104 = vshrl.u32 %v3103, 7
  %v3105 = vsub.s32 0, %v3104
  %v3106 = vrot.slane %v3099, %v3105
  %v3107 = vlaneseq
  %v3108 = vshrl.u32 %v3107, 7
  %v3109 = vsub.s32 0, %v3108
  %v3110 = vrot.slane %v3101, %v3109
  %v3111 = vsub.f32 %v2939, %v3106
  %v3112 = vsub.f32 %v2940, %v3110
  %v3113 = vsub.f32 %v2941, %v3106
  %v3114 = vsub.f32 %v2942, %v3110
  %v3115 = vsub.f32 %v2943, %v3106
  %v3116 = vsub.f32 %v2944, %v3110
  %v3117 = vsub.f32 %v2945, %v3106
  %v3118 = vsub.f32 %v2946, %v3110
  %v3119 = vmul.f32 %v3111, %v3111
  %v3120 = vmul.f32 %v3112, %v3112
  %v3121 = vmul.f32 %v3113, %v3113
  %v3122 = vmul.f32 %v3114, %v3114
  %v3123 = vmul.f32 %v3115, %v3115
  %v3124 = vmul.f32 %v3116, %v3116
  %v3125 = vmul.f32 %v3117, %v3117
  %v3126 = vmul.f32 %v3118, %v3118
  %v3127 = vadd.f32 %v3119, %v3121
  %v3128 = vadd.f32 %v3127, %v3123
  %v3129 = vadd.f32 %v3128, %v3125
  %v3130 = vrot.slane %v3129, 4
  %v3131 = vadd.f32 %v3129, %v3130
  %v3132 = vrot.slane %v3131, 2
  %v3133 = vadd.f32 %v3131, %v3132
  %v3134 = vrot.slane %v3133, 1
  %v3135 = vadd.f32 %v3133, %v3134
  %v3136 = vadd.f32 %v3120, %v3122
  %v3137 = vadd.f32 %v3136, %v3124
  %v3138 = vadd.f32 %v3137, %v3126
  %v3139 = vrot.slane %v3138, 4
  %v3140 = vadd.f32 %v3138, %v3139
  %v3141 = vrot.slane %v3140, 2
  %v3142 = vadd.f32 %v3140, %v3141
  %v3143 = vrot.slane %v3142, 1
  %v3144 = vadd.f32 %v3142, %v3143
  %v3145 = vmul.f32 %v3135, %v3029
  %v3146 = vmul.f32 %v3144, %v3029
  %3147 = vmatprep.subr.mxu0 %v2978
  %3148 = vmatpush1.msra.mxu0 %v2977
  %3149 = vmatprep.subr.mxu0 %v2976
  %3150 = vmatpush1.msra.mxu0 %v2975
  %3151 = vmatprep.subr.mxu0 %v2974
  %3152 = vmatpush1.msra.mxu0 %v2973
  %3153 = vmatprep.subr.mxu0 %v2972
  %3154 = vmatpush1.msra.mxu0 %v2971
  %3155 = vmatprep.subr.mxu0 %v2970
  %3156 = vmatpush1.msra.mxu0 %v2969
  %3157 = vmatprep.subr.mxu0 %v2968
  %3158 = vmatpush1.msra.mxu0 %v2967
  %3159 = vmatprep.subr.mxu0 %v2966
  %3160 = vmatpush1.msra.mxu0 %v2965
  %3161 = vmatprep.subr.mxu0 %v2964
  %3162 = vmatpush1.msra.mxu0 %v2963
  %3163 = vmatprep.subr.mxu0 %v2962
  %3164 = vmatpush1.msra.mxu0 %v2961
  %3165 = vmatprep.subr.mxu0 %v2960
  %3166 = vmatpush1.msra.mxu0 %v2959
  %3167 = vmatprep.subr.mxu0 %v2958
  %3168 = vmatpush1.msra.mxu0 %v2957
  %3169 = vmatprep.subr.mxu0 %v2956
  %3170 = vmatpush1.msra.mxu0 %v2955
  %3171 = vmatprep.subr.mxu0 %v2954
  %3172 = vmatpush1.msra.mxu0 %v2953
  %3173 = vmatprep.subr.mxu0 %v2952
  %3174 = vmatpush1.msra.mxu0 %v2951
  %3175 = vmatprep.subr.mxu0 %v2950
  %3176 = vmatpush1.msra.mxu0 %v2949
  %3177 = vmatprep.subr.mxu0 %v2948
  %3178 = vmatpush1.msra.mxu0 %v2947
  %3179 = vmatprep.subr.mxu0 %v3010
  %3180 = vmatpush2.msra.mxu0 %v3009
  %3181 = vmatprep.subr.mxu0 %v3008
  %3182 = vmatpush2.msra.mxu0 %v3007
  %3183 = vmatprep.subr.mxu0 %v3006
  %3184 = vmatpush2.msra.mxu0 %v3005
  %3185 = vmatprep.subr.mxu0 %v3004
  %3186 = vmatpush2.msra.mxu0 %v3003
  %3187 = vmatprep.subr.mxu0 %v3002
  %3188 = vmatpush2.msra.mxu0 %v3001
  %3189 = vmatprep.subr.mxu0 %v3000
  %3190 = vmatpush2.msra.mxu0 %v2999
  %3191 = vmatprep.subr.mxu0 %v2998
  %3192 = vmatpush2.msra.mxu0 %v2997
  %3193 = vmatprep.subr.mxu0 %v2996
  %3194 = vmatpush2.msra.mxu0 %v2995
  %3195 = vmatprep.subr.mxu0 %v2994
  %3196 = vmatpush2.msra.mxu0 %v2993
  %3197 = vmatprep.subr.mxu0 %v2992
  %3198 = vmatpush2.msra.mxu0 %v2991
  %3199 = vmatprep.subr.mxu0 %v2990
  %3200 = vmatpush2.msra.mxu0 %v2989
  %3201 = vmatprep.subr.mxu0 %v2988
  %3202 = vmatpush2.msra.mxu0 %v2987
  %3203 = vmatprep.subr.mxu0 %v2986
  %3204 = vmatpush2.msra.mxu0 %v2985
  %3205 = vmatprep.subr.mxu0 %v2984
  %3206 = vmatpush2.msra.mxu0 %v2983
  %3207 = vmatprep.subr.mxu0 %v2982
  %3208 = vmatpush2.msra.mxu0 %v2981
  %3209 = vmatprep.subr.mxu0 %v2980
  %3210 = vmatpush2.msra.mxu0 %v2979
  %3211 = vmatprep.mubr.f32.mxu0 %v3146
  %3212 = vmatmul.mubr.f32.gmra.mxu0 %v3145
  %v3213 = vpop.f32.mrf.mxu0
  %v3214 = vadd.f32 1e-05, %v3213
  %v3215 = vpop.f32.mrf.mxu0
  %v3216 = vadd.f32 1e-05, %v3215
  %3217 = vdwg.mxu0
  %v3218 = vrsqrt.pop %v3214
  %v3219 = vrsqrt.pop %v3216
  %v3220 = vlaneseq
  %v3221 = vshrl.u32 %v3220, 7
  %v3222 = vsub.s32 0, %v3221
  %v3223 = vrot.slane %v3218, %v3222
  %v3224 = vlaneseq
  %v3225 = vshrl.u32 %v3224, 7
  %v3226 = vsub.s32 0, %v3225
  %v3227 = vrot.slane %v3219, %v3226
  %v3228 = vmul.f32 %v3111, %v3223
  %v3229 = vmul.f32 %v3112, %v3227
  %v3230 = vmul.f32 %v3113, %v3223
  %v3231 = vmul.f32 %v3114, %v3227
  %v3232 = vmul.f32 %v3115, %v3223
  %v3233 = vmul.f32 %v3116, %v3227
  %v3234 = vmul.f32 %v3117, %v3223
  %v3235 = vmul.f32 %v3118, %v3227
  %v3236 = vld [vmem:[%s8] sm:$0x3]
  %v3238 = vlaneseq
  %v3239 = vshrl.u32 %v3238, 7
  %v3240 = vsub.s32 0, %v3239
  %v3241 = vrot.slane %v3236, %v3240
  %v3242 = vlaneseq
  %v3243 = vshrl.u32 %v3242, 7
  %v3244 = vsub.s32 1, %v3243
  %v3245 = vrot.slane %v3236, %v3244
  %v3248 = vmul.f32 %v3228, %v3241
  %v3249 = vmul.f32 %v3229, %v3245
  %v3250 = vmul.f32 %v3230, %v3241
  %v3251 = vmul.f32 %v3231, %v3245
  %v3252 = vmul.f32 %v3232, %v3241
  %v3253 = vmul.f32 %v3233, %v3245
  %v3254 = vmul.f32 %v3234, %v3241
  %v3255 = vmul.f32 %v3235, %v3245
  %v3256 = vld [vmem:[%s9] sm:$0x3]
  %v3258 = vlaneseq
  %v3259 = vshrl.u32 %v3258, 7
  %v3260 = vsub.s32 0, %v3259
  %v3261 = vrot.slane %v3256, %v3260
  %v3262 = vlaneseq
  %v3263 = vshrl.u32 %v3262, 7
  %v3264 = vsub.s32 1, %v3263
  %v3265 = vrot.slane %v3256, %v3264
  %v3268 = vadd.f32 %v3248, %v3261
  %v3269 = vadd.f32 %v3249, %v3265
  %v3270 = vadd.f32 %v3250, %v3261
  %v3271 = vadd.f32 %v3251, %v3265
  %v3272 = vadd.f32 %v3252, %v3261
  %v3273 = vadd.f32 %v3253, %v3265
  %v3274 = vadd.f32 %v3254, %v3261
  %v3275 = vadd.f32 %v3255, %v3265
  %vm3276 = vcmp.gt.f32.partialorder %v3268, 0.0
  %vm3277 = vcmp.gt.f32.partialorder %v3269, 0.0
  %vm3278 = vcmp.gt.f32.partialorder %v3270, 0.0
  %vm3279 = vcmp.gt.f32.partialorder %v3271, 0.0
  %vm3280 = vcmp.gt.f32.partialorder %v3272, 0.0
  %vm3281 = vcmp.gt.f32.partialorder %v3273, 0.0
  %vm3282 = vcmp.gt.f32.partialorder %v3274, 0.0
  %vm3283 = vcmp.gt.f32.partialorder %v3275, 0.0
  %v3284 = vmul.f32 %v3268, 0.2
  %v3285 = vmul.f32 %v3269, 0.2
  %v3286 = vmul.f32 %v3270, 0.2
  %v3287 = vmul.f32 %v3271, 0.2
  %v3288 = vmul.f32 %v3272, 0.2
  %v3289 = vmul.f32 %v3273, 0.2
  %v3290 = vmul.f32 %v3274, 0.2
  %v3291 = vmul.f32 %v3275, 0.2
  %v3292 = vsel %vm3276, %v3268, %v3284
  %v3293 = vsel %vm3277, %v3269, %v3285
  %v3294 = vsel %vm3278, %v3270, %v3286
  %v3295 = vsel %vm3279, %v3271, %v3287
  %v3296 = vsel %vm3280, %v3272, %v3288
  %v3297 = vsel %vm3281, %v3273, %v3289
  %v3298 = vsel %vm3282, %v3274, %v3290
  %v3299 = vsel %vm3283, %v3275, %v3291
  %v3300 = vpack.c.bf16 %v3294, %v3292
  %v3301 = vpack.c.bf16 %v3295, %v3293
  %v3302 = vpack.c.bf16 %v3298, %v3296
  %v3303 = vpack.c.bf16 %v3299, %v3297
  %v3304 = vld [vmem:[%s5] sm:$0xf]
  %v3305 = vld [vmem:[%s5 + $0x4] sm:$0xf]
  %s3306 = scalar_lea.vmem %s5, 8
  %v3307 = vld [vmem:[%s3306] sm:$0xf]
  %v3308 = vld [vmem:[%s3306 + $0x4] sm:$0xf]
  %s3309 = scalar_lea.vmem %s5, 16
  %v3310 = vld [vmem:[%s3309] sm:$0xf]
  %v3311 = vld [vmem:[%s3309 + $0x4] sm:$0xf]
  %s3312 = scalar_lea.vmem %s5, 24
  %v3313 = vld [vmem:[%s3312] sm:$0xf]
  %v3314 = vld [vmem:[%s3312 + $0x4] sm:$0xf]
  %s3315 = scalar_lea.vmem %s7, 1024
  %v3316 = vld [vmem:[%s3315] sm:$0xff]
  %v3317 = vld [vmem:[%s3315 + $0x8] sm:$0xff]
  %v3318 = vld [vmem:[%s3315 + $0x10] sm:$0xff]
  %v3319 = vld [vmem:[%s3315 + $0x18] sm:$0xff]
  %v3320 = vld [vmem:[%s3315 + $0x20] sm:$0xff]
  %v3321 = vld [vmem:[%s3315 + $0x28] sm:$0xff]
  %v3322 = vld [vmem:[%s3315 + $0x30] sm:$0xff]
  %v3323 = vld [vmem:[%s3315 + $0x38] sm:$0xff]
  %v3324 = vld [vmem:[%s3315 + $0x40] sm:$0xff]
  %v3325 = vld [vmem:[%s3315 + $0x48] sm:$0xff]
  %v3326 = vld [vmem:[%s3315 + $0x50] sm:$0xff]
  %v3327 = vld [vmem:[%s3315 + $0x58] sm:$0xff]
  %v3328 = vld [vmem:[%s3315 + $0x60] sm:$0xff]
  %v3329 = vld [vmem:[%s3315 + $0x68] sm:$0xff]
  %v3330 = vld [vmem:[%s3315 + $0x70] sm:$0xff]
  %v3331 = vld [vmem:[%s3315 + $0x78] sm:$0xff]
  %v3332 = vld [vmem:[%s3315 + $0x80] sm:$0xff]
  %v3333 = vld [vmem:[%s3315 + $0x88] sm:$0xff]
  %v3334 = vld [vmem:[%s3315 + $0x90] sm:$0xff]
  %v3335 = vld [vmem:[%s3315 + $0x98] sm:$0xff]
  %v3336 = vld [vmem:[%s3315 + $0xa0] sm:$0xff]
  %v3337 = vld [vmem:[%s3315 + $0xa8] sm:$0xff]
  %v3338 = vld [vmem:[%s3315 + $0xb0] sm:$0xff]
  %v3339 = vld [vmem:[%s3315 + $0xb8] sm:$0xff]
  %v3340 = vld [vmem:[%s3315 + $0xc0] sm:$0xff]
  %v3341 = vld [vmem:[%s3315 + $0xc8] sm:$0xff]
  %v3342 = vld [vmem:[%s3315 + $0xd0] sm:$0xff]
  %v3343 = vld [vmem:[%s3315 + $0xd8] sm:$0xff]
  %v3344 = vld [vmem:[%s3315 + $0xe0] sm:$0xff]
  %v3345 = vld [vmem:[%s3315 + $0xe8] sm:$0xff]
  %v3346 = vld [vmem:[%s3315 + $0xf0] sm:$0xff]
  %v3347 = vld [vmem:[%s3315 + $0xf8] sm:$0xff]
  %s3348 = scalar_lea.vmem %s7, 1280
  %v3349 = vld [vmem:[%s3348] sm:$0xff]
  %v3350 = vld [vmem:[%s3348 + $0x8] sm:$0xff]
  %v3351 = vld [vmem:[%s3348 + $0x10] sm:$0xff]
  %v3352 = vld [vmem:[%s3348 + $0x18] sm:$0xff]
  %v3353 = vld [vmem:[%s3348 + $0x20] sm:$0xff]
  %v3354 = vld [vmem:[%s3348 + $0x28] sm:$0xff]
  %v3355 = vld [vmem:[%s3348 + $0x30] sm:$0xff]
  %v3356 = vld [vmem:[%s3348 + $0x38] sm:$0xff]
  %v3357 = vld [vmem:[%s3348 + $0x40] sm:$0xff]
  %v3358 = vld [vmem:[%s3348 + $0x48] sm:$0xff]
  %v3359 = vld [vmem:[%s3348 + $0x50] sm:$0xff]
  %v3360 = vld [vmem:[%s3348 + $0x58] sm:$0xff]
  %v3361 = vld [vmem:[%s3348 + $0x60] sm:$0xff]
  %v3362 = vld [vmem:[%s3348 + $0x68] sm:$0xff]
  %v3363 = vld [vmem:[%s3348 + $0x70] sm:$0xff]
  %v3364 = vld [vmem:[%s3348 + $0x78] sm:$0xff]
  %v3365 = vld [vmem:[%s3348 + $0x80] sm:$0xff]
  %v3366 = vld [vmem:[%s3348 + $0x88] sm:$0xff]
  %v3367 = vld [vmem:[%s3348 + $0x90] sm:$0xff]
  %v3368 = vld [vmem:[%s3348 + $0x98] sm:$0xff]
  %v3369 = vld [vmem:[%s3348 + $0xa0] sm:$0xff]
  %v3370 = vld [vmem:[%s3348 + $0xa8] sm:$0xff]
  %v3371 = vld [vmem:[%s3348 + $0xb0] sm:$0xff]
  %v3372 = vld [vmem:[%s3348 + $0xb8] sm:$0xff]
  %v3373 = vld [vmem:[%s3348 + $0xc0] sm:$0xff]
  %v3374 = vld [vmem:[%s3348 + $0xc8] sm:$0xff]
  %v3375 = vld [vmem:[%s3348 + $0xd0] sm:$0xff]
  %v3376 = vld [vmem:[%s3348 + $0xd8] sm:$0xff]
  %v3377 = vld [vmem:[%s3348 + $0xe0] sm:$0xff]
  %v3378 = vld [vmem:[%s3348 + $0xe8] sm:$0xff]
  %v3379 = vld [vmem:[%s3348 + $0xf0] sm:$0xff]
  %v3380 = vld [vmem:[%s3348 + $0xf8] sm:$0xff]
  %s3381 = scalar_lea.vmem %s7, 1536
  %v3382 = vld [vmem:[%s3381] sm:$0xff]
  %v3383 = vld [vmem:[%s3381 + $0x8] sm:$0xff]
  %v3384 = vld [vmem:[%s3381 + $0x10] sm:$0xff]
  %v3385 = vld [vmem:[%s3381 + $0x18] sm:$0xff]
  %v3386 = vld [vmem:[%s3381 + $0x20] sm:$0xff]
  %v3387 = vld [vmem:[%s3381 + $0x28] sm:$0xff]
  %v3388 = vld [vmem:[%s3381 + $0x30] sm:$0xff]
  %v3389 = vld [vmem:[%s3381 + $0x38] sm:$0xff]
  %v3390 = vld [vmem:[%s3381 + $0x40] sm:$0xff]
  %v3391 = vld [vmem:[%s3381 + $0x48] sm:$0xff]
  %v3392 = vld [vmem:[%s3381 + $0x50] sm:$0xff]
  %v3393 = vld [vmem:[%s3381 + $0x58] sm:$0xff]
  %v3394 = vld [vmem:[%s3381 + $0x60] sm:$0xff]
  %v3395 = vld [vmem:[%s3381 + $0x68] sm:$0xff]
  %v3396 = vld [vmem:[%s3381 + $0x70] sm:$0xff]
  %v3397 = vld [vmem:[%s3381 + $0x78] sm:$0xff]
  %v3398 = vld [vmem:[%s3381 + $0x80] sm:$0xff]
  %v3399 = vld [vmem:[%s3381 + $0x88] sm:$0xff]
  %v3400 = vld [vmem:[%s3381 + $0x90] sm:$0xff]
  %v3401 = vld [vmem:[%s3381 + $0x98] sm:$0xff]
  %v3402 = vld [vmem:[%s3381 + $0xa0] sm:$0xff]
  %v3403 = vld [vmem:[%s3381 + $0xa8] sm:$0xff]
  %v3404 = vld [vmem:[%s3381 + $0xb0] sm:$0xff]
  %v3405 = vld [vmem:[%s3381 + $0xb8] sm:$0xff]
  %v3406 = vld [vmem:[%s3381 + $0xc0] sm:$0xff]
  %v3407 = vld [vmem:[%s3381 + $0xc8] sm:$0xff]
  %v3408 = vld [vmem:[%s3381 + $0xd0] sm:$0xff]
  %v3409 = vld [vmem:[%s3381 + $0xd8] sm:$0xff]
  %v3410 = vld [vmem:[%s3381 + $0xe0] sm:$0xff]
  %v3411 = vld [vmem:[%s3381 + $0xe8] sm:$0xff]
  %v3412 = vld [vmem:[%s3381 + $0xf0] sm:$0xff]
  %v3413 = vld [vmem:[%s3381 + $0xf8] sm:$0xff]
  %s3414 = scalar_lea.vmem %s7, 1792
  %v3415 = vld [vmem:[%s3414] sm:$0xff]
  %v3416 = vld [vmem:[%s3414 + $0x8] sm:$0xff]
  %v3417 = vld [vmem:[%s3414 + $0x10] sm:$0xff]
  %v3418 = vld [vmem:[%s3414 + $0x18] sm:$0xff]
  %v3419 = vld [vmem:[%s3414 + $0x20] sm:$0xff]
  %v3420 = vld [vmem:[%s3414 + $0x28] sm:$0xff]
  %v3421 = vld [vmem:[%s3414 + $0x30] sm:$0xff]
  %v3422 = vld [vmem:[%s3414 + $0x38] sm:$0xff]
  %v3423 = vld [vmem:[%s3414 + $0x40] sm:$0xff]
  %v3424 = vld [vmem:[%s3414 + $0x48] sm:$0xff]
  %v3425 = vld [vmem:[%s3414 + $0x50] sm:$0xff]
  %v3426 = vld [vmem:[%s3414 + $0x58] sm:$0xff]
  %v3427 = vld [vmem:[%s3414 + $0x60] sm:$0xff]
  %v3428 = vld [vmem:[%s3414 + $0x68] sm:$0xff]
  %v3429 = vld [vmem:[%s3414 + $0x70] sm:$0xff]
  %v3430 = vld [vmem:[%s3414 + $0x78] sm:$0xff]
  %v3431 = vld [vmem:[%s3414 + $0x80] sm:$0xff]
  %v3432 = vld [vmem:[%s3414 + $0x88] sm:$0xff]
  %v3433 = vld [vmem:[%s3414 + $0x90] sm:$0xff]
  %v3434 = vld [vmem:[%s3414 + $0x98] sm:$0xff]
  %v3435 = vld [vmem:[%s3414 + $0xa0] sm:$0xff]
  %v3436 = vld [vmem:[%s3414 + $0xa8] sm:$0xff]
  %v3437 = vld [vmem:[%s3414 + $0xb0] sm:$0xff]
  %v3438 = vld [vmem:[%s3414 + $0xb8] sm:$0xff]
  %v3439 = vld [vmem:[%s3414 + $0xc0] sm:$0xff]
  %v3440 = vld [vmem:[%s3414 + $0xc8] sm:$0xff]
  %v3441 = vld [vmem:[%s3414 + $0xd0] sm:$0xff]
  %v3442 = vld [vmem:[%s3414 + $0xd8] sm:$0xff]
  %v3443 = vld [vmem:[%s3414 + $0xe0] sm:$0xff]
  %v3444 = vld [vmem:[%s3414 + $0xe8] sm:$0xff]
  %v3445 = vld [vmem:[%s3414 + $0xf0] sm:$0xff]
  %v3446 = vld [vmem:[%s3414 + $0xf8] sm:$0xff]
  %v3449 = vunpack.c.l.b16 %v3304
  %v3450 = vunpack.c.l.b16 %v3305
  %v3451 = vpack.c.b16 %v3450, %v3449
  %vm3452 = vcmask 261120
  %v3454 = vsel %vm3452, %v3451, 0
  %3456 = vmatprep.subr.bf16.mxu0 0
  %3457 = vmatpush1.bf16.msra.mxu0 0
  %3458 = vmatprep.subr.bf16.mxu0 0
  %3459 = vmatpush1.bf16.msra.mxu0 0
  %3460 = vmatprep.subr.bf16.mxu0 0
  %3461 = vmatpush1.bf16.msra.mxu0 0
  %3462 = vmatprep.subr.bf16.mxu0 0
  %3463 = vmatpush1.bf16.msra.mxu0 0
  %3464 = vmatprep.subr.bf16.mxu0 0
  %3465 = vmatpush1.bf16.msra.mxu0 0
  %3466 = vmatprep.subr.bf16.mxu0 0
  %3467 = vmatpush1.bf16.msra.mxu0 0
  %3468 = vmatprep.subr.bf16.mxu0 %v3303
  %3469 = vmatpush1.bf16.msra.mxu0 %v3302
  %3470 = vmatprep.subr.bf16.mxu0 %v3301
  %3471 = vmatpush1.bf16.msra.mxu0 %v3300
  %3472 = vmatprep.subr.bf16.mxu0 0
  %3473 = vmatpush2.bf16.msra.mxu0 0
  %3474 = vmatprep.subr.bf16.mxu0 0
  %3475 = vmatpush2.bf16.msra.mxu0 0
  %3476 = vmatprep.subr.bf16.mxu0 0
  %3477 = vmatpush2.bf16.msra.mxu0 0
  %3478 = vmatprep.subr.bf16.mxu0 0
  %3479 = vmatpush2.bf16.msra.mxu0 0
  %3480 = vmatprep.subr.bf16.mxu0 0
  %3481 = vmatpush2.bf16.msra.mxu0 0
  %3482 = vmatprep.subr.bf16.mxu0 0
  %3483 = vmatpush2.bf16.msra.mxu0 0
  %3484 = vmatprep.subr.bf16.mxu0 0
  %3485 = vmatpush2.bf16.msra.mxu0 0
  %3486 = vmatprep.subr.bf16.mxu0 0
  %3487 = vmatpush2.bf16.msra.mxu0 0
  %3488 = vmatprep.mubr.bf16.mxu0 0
  %3489 = vmatmul.mubr.bf16.gmra.mxu0 %v3454
  %v3490 = vpop.f32.mrf.mxu0
  %v3491 = vadd.f32 0.0, %v3490
  %v3492 = vpop.f32.mrf.mxu0
  %v3493 = vadd.f32 0.0, %v3492
  %v3494 = vpop.f32.mrf.mxu0
  %v3495 = vadd.f32 0.0, %v3494
  %v3496 = vpop.f32.mrf.mxu0
  %v3497 = vadd.f32 0.0, %v3496
  %3498 = vdwg.mxu0
  %v3499 = vpack.c.bf16 %v3495, %v3491
  %v3500 = vpack.c.bf16 %v3497, %v3493
  %v3503 = vunpack.c.l.b16 %v3307
  %v3504 = vunpack.c.l.b16 %v3308
  %v3505 = vpack.c.b16 %v3504, %v3503
  %v3507 = vsel %vm3452, %v3505, 0
  %3509 = vmatprep.subr.bf16.mxu0 0
  %3510 = vmatpush1.bf16.msra.mxu0 0
  %3511 = vmatprep.subr.bf16.mxu0 0
  %3512 = vmatpush1.bf16.msra.mxu0 0
  %3513 = vmatprep.subr.bf16.mxu0 0
  %3514 = vmatpush1.bf16.msra.mxu0 0
  %3515 = vmatprep.subr.bf16.mxu0 0
  %3516 = vmatpush1.bf16.msra.mxu0 0
  %3517 = vmatprep.subr.bf16.mxu0 0
  %3518 = vmatpush1.bf16.msra.mxu0 0
  %3519 = vmatprep.subr.bf16.mxu0 0
  %3520 = vmatpush1.bf16.msra.mxu0 0
  %3521 = vmatprep.subr.bf16.mxu0 %v3303
  %3522 = vmatpush1.bf16.msra.mxu0 %v3302
  %3523 = vmatprep.subr.bf16.mxu0 %v3301
  %3524 = vmatpush1.bf16.msra.mxu0 %v3300
  %3525 = vmatprep.subr.bf16.mxu0 0
  %3526 = vmatpush2.bf16.msra.mxu0 0
  %3527 = vmatprep.subr.bf16.mxu0 0
  %3528 = vmatpush2.bf16.msra.mxu0 0
  %3529 = vmatprep.subr.bf16.mxu0 0
  %3530 = vmatpush2.bf16.msra.mxu0 0
  %3531 = vmatprep.subr.bf16.mxu0 0
  %3532 = vmatpush2.bf16.msra.mxu0 0
  %3533 = vmatprep.subr.bf16.mxu0 0
  %3534 = vmatpush2.bf16.msra.mxu0 0
  %3535 = vmatprep.subr.bf16.mxu0 0
  %3536 = vmatpush2.bf16.msra.mxu0 0
  %3537 = vmatprep.subr.bf16.mxu0 0
  %3538 = vmatpush2.bf16.msra.mxu0 0
  %3539 = vmatprep.subr.bf16.mxu0 0
  %3540 = vmatpush2.bf16.msra.mxu0 0
  %3541 = vmatprep.mubr.bf16.mxu0 0
  %3542 = vmatmul.mubr.bf16.gmra.mxu0 %v3507
  %v3543 = vpop.f32.mrf.mxu0
  %v3544 = vadd.f32 0.0, %v3543
  %v3545 = vpop.f32.mrf.mxu0
  %v3546 = vadd.f32 0.0, %v3545
  %v3547 = vpop.f32.mrf.mxu0
  %v3548 = vadd.f32 0.0, %v3547
  %v3549 = vpop.f32.mrf.mxu0
  %v3550 = vadd.f32 0.0, %v3549
  %3551 = vdwg.mxu0
  %v3552 = vpack.c.bf16 %v3548, %v3544
  %v3553 = vpack.c.bf16 %v3550, %v3546
  %v3586 = vunpack.c.l.b16 %v3349
  %v3587 = vunpack.c.h.b16 %v3349
  %v3588 = vunpack.c.l.b16 %v3350
  %v3589 = vunpack.c.h.b16 %v3350
  %v3590 = vunpack.c.l.b16 %v3351
  %v3591 = vunpack.c.h.b16 %v3351
  %v3592 = vunpack.c.l.b16 %v3352
  %v3593 = vunpack.c.h.b16 %v3352
  %v3594 = vunpack.c.l.b16 %v3353
  %v3595 = vunpack.c.h.b16 %v3353
  %v3596 = vunpack.c.l.b16 %v3354
  %v3597 = vunpack.c.h.b16 %v3354
  %v3598 = vunpack.c.l.b16 %v3355
  %v3599 = vunpack.c.h.b16 %v3355
  %v3600 = vunpack.c.l.b16 %v3356
  %v3601 = vunpack.c.h.b16 %v3356
  %v3602 = vunpack.c.l.b16 %v3357
  %v3603 = vunpack.c.h.b16 %v3357
  %v3604 = vunpack.c.l.b16 %v3358
  %v3605 = vunpack.c.h.b16 %v3358
  %v3606 = vunpack.c.l.b16 %v3359
  %v3607 = vunpack.c.h.b16 %v3359
  %v3608 = vunpack.c.l.b16 %v3360
  %v3609 = vunpack.c.h.b16 %v3360
  %v3610 = vunpack.c.l.b16 %v3361
  %v3611 = vunpack.c.h.b16 %v3361
  %v3612 = vunpack.c.l.b16 %v3362
  %v3613 = vunpack.c.h.b16 %v3362
  %v3614 = vunpack.c.l.b16 %v3363
  %v3615 = vunpack.c.h.b16 %v3363
  %v3616 = vunpack.c.l.b16 %v3364
  %v3617 = vunpack.c.h.b16 %v3364
  %v3618 = vunpack.c.l.b16 %v3365
  %v3619 = vunpack.c.h.b16 %v3365
  %v3620 = vunpack.c.l.b16 %v3366
  %v3621 = vunpack.c.h.b16 %v3366
  %v3622 = vunpack.c.l.b16 %v3367
  %v3623 = vunpack.c.h.b16 %v3367
  %v3624 = vunpack.c.l.b16 %v3368
  %v3625 = vunpack.c.h.b16 %v3368
  %v3626 = vunpack.c.l.b16 %v3369
  %v3627 = vunpack.c.h.b16 %v3369
  %v3628 = vunpack.c.l.b16 %v3370
  %v3629 = vunpack.c.h.b16 %v3370
  %v3630 = vunpack.c.l.b16 %v3371
  %v3631 = vunpack.c.h.b16 %v3371
  %v3632 = vunpack.c.l.b16 %v3372
  %v3633 = vunpack.c.h.b16 %v3372
  %v3634 = vunpack.c.l.b16 %v3373
  %v3635 = vunpack.c.h.b16 %v3373
  %v3636 = vunpack.c.l.b16 %v3374
  %v3637 = vunpack.c.h.b16 %v3374
  %v3638 = vunpack.c.l.b16 %v3375
  %v3639 = vunpack.c.h.b16 %v3375
  %v3640 = vunpack.c.l.b16 %v3376
  %v3641 = vunpack.c.h.b16 %v3376
  %v3642 = vunpack.c.l.b16 %v3377
  %v3643 = vunpack.c.h.b16 %v3377
  %v3644 = vunpack.c.l.b16 %v3378
  %v3645 = vunpack.c.h.b16 %v3378
  %v3646 = vunpack.c.l.b16 %v3379
  %v3647 = vunpack.c.h.b16 %v3379
  %v3648 = vunpack.c.l.b16 %v3380
  %v3649 = vunpack.c.h.b16 %v3380
  %v3650 = vpack.c.b16 %v3588, %v3586
  %v3651 = vpack.c.b16 %v3589, %v3587
  %v3652 = vpack.c.b16 %v3592, %v3590
  %v3653 = vpack.c.b16 %v3593, %v3591
  %v3654 = vpack.c.b16 %v3596, %v3594
  %v3655 = vpack.c.b16 %v3597, %v3595
  %v3656 = vpack.c.b16 %v3600, %v3598
  %v3657 = vpack.c.b16 %v3601, %v3599
  %v3658 = vpack.c.b16 %v3604, %v3602
  %v3659 = vpack.c.b16 %v3605, %v3603
  %v3660 = vpack.c.b16 %v3608, %v3606
  %v3661 = vpack.c.b16 %v3609, %v3607
  %v3662 = vpack.c.b16 %v3612, %v3610
  %v3663 = vpack.c.b16 %v3613, %v3611
  %v3664 = vpack.c.b16 %v3616, %v3614
  %v3665 = vpack.c.b16 %v3617, %v3615
  %v3666 = vpack.c.b16 %v3620, %v3618
  %v3667 = vpack.c.b16 %v3621, %v3619
  %v3668 = vpack.c.b16 %v3624, %v3622
  %v3669 = vpack.c.b16 %v3625, %v3623
  %v3670 = vpack.c.b16 %v3628, %v3626
  %v3671 = vpack.c.b16 %v3629, %v3627
  %v3672 = vpack.c.b16 %v3632, %v3630
  %v3673 = vpack.c.b16 %v3633, %v3631
  %v3674 = vpack.c.b16 %v3636, %v3634
  %v3675 = vpack.c.b16 %v3637, %v3635
  %v3676 = vpack.c.b16 %v3640, %v3638
  %v3677 = vpack.c.b16 %v3641, %v3639
  %v3678 = vpack.c.b16 %v3644, %v3642
  %v3679 = vpack.c.b16 %v3645, %v3643
  %v3680 = vpack.c.b16 %v3648, %v3646
  %v3681 = vpack.c.b16 %v3649, %v3647
  %3714 = vmatprep.subr.bf16.mxu0 %v3665
  %3715 = vmatpush1.bf16.msra.mxu0 %v3664
  %3716 = vmatprep.subr.bf16.mxu0 %v3663
  %3717 = vmatpush1.bf16.msra.mxu0 %v3662
  %3718 = vmatprep.subr.bf16.mxu0 %v3661
  %3719 = vmatpush1.bf16.msra.mxu0 %v3660
  %3720 = vmatprep.subr.bf16.mxu0 %v3659
  %3721 = vmatpush1.bf16.msra.mxu0 %v3658
  %3722 = vmatprep.subr.bf16.mxu0 %v3657
  %3723 = vmatpush1.bf16.msra.mxu0 %v3656
  %3724 = vmatprep.subr.bf16.mxu0 %v3655
  %3725 = vmatpush1.bf16.msra.mxu0 %v3654
  %3726 = vmatprep.subr.bf16.mxu0 %v3653
  %3727 = vmatpush1.bf16.msra.mxu0 %v3652
  %3728 = vmatprep.subr.bf16.mxu0 %v3651
  %3729 = vmatpush1.bf16.msra.mxu0 %v3650
  %3730 = vmatprep.subr.bf16.mxu0 %v3681
  %3731 = vmatpush2.bf16.msra.mxu0 %v3680
  %3732 = vmatprep.subr.bf16.mxu0 %v3679
  %3733 = vmatpush2.bf16.msra.mxu0 %v3678
  %3734 = vmatprep.subr.bf16.mxu0 %v3677
  %3735 = vmatpush2.bf16.msra.mxu0 %v3676
  %3736 = vmatprep.subr.bf16.mxu0 %v3675
  %3737 = vmatpush2.bf16.msra.mxu0 %v3674
  %3738 = vmatprep.subr.bf16.mxu0 %v3673
  %3739 = vmatpush2.bf16.msra.mxu0 %v3672
  %3740 = vmatprep.subr.bf16.mxu0 %v3671
  %3741 = vmatpush2.bf16.msra.mxu0 %v3670
  %3742 = vmatprep.subr.bf16.mxu0 %v3669
  %3743 = vmatpush2.bf16.msra.mxu0 %v3668
  %3744 = vmatprep.subr.bf16.mxu0 %v3667
  %3745 = vmatpush2.bf16.msra.mxu0 %v3666
  %3746 = vmatprep.mubr.bf16.mxu0 %v3553
  %3747 = vmatmul.mubr.bf16.gmra.mxu0 %v3552
  %v3748 = vpop.f32.mrf.mxu0
  %v3749 = vadd.f32 0.0, %v3748
  %v3750 = vpop.f32.mrf.mxu0
  %v3751 = vadd.f32 0.0, %v3750
  %v3752 = vpop.f32.mrf.mxu0
  %v3753 = vadd.f32 0.0, %v3752
  %v3754 = vpop.f32.mrf.mxu0
  %v3755 = vadd.f32 0.0, %v3754
  %3756 = vdwg.mxu0
  %v3789 = vunpack.c.l.b16 %v3316
  %v3790 = vunpack.c.h.b16 %v3316
  %v3791 = vunpack.c.l.b16 %v3317
  %v3792 = vunpack.c.h.b16 %v3317
  %v3793 = vunpack.c.l.b16 %v3318
  %v3794 = vunpack.c.h.b16 %v3318
  %v3795 = vunpack.c.l.b16 %v3319
  %v3796 = vunpack.c.h.b16 %v3319
  %v3797 = vunpack.c.l.b16 %v3320
  %v3798 = vunpack.c.h.b16 %v3320
  %v3799 = vunpack.c.l.b16 %v3321
  %v3800 = vunpack.c.h.b16 %v3321
  %v3801 = vunpack.c.l.b16 %v3322
  %v3802 = vunpack.c.h.b16 %v3322
  %v3803 = vunpack.c.l.b16 %v3323
  %v3804 = vunpack.c.h.b16 %v3323
  %v3805 = vunpack.c.l.b16 %v3324
  %v3806 = vunpack.c.h.b16 %v3324
  %v3807 = vunpack.c.l.b16 %v3325
  %v3808 = vunpack.c.h.b16 %v3325
  %v3809 = vunpack.c.l.b16 %v3326
  %v3810 = vunpack.c.h.b16 %v3326
  %v3811 = vunpack.c.l.b16 %v3327
  %v3812 = vunpack.c.h.b16 %v3327
  %v3813 = vunpack.c.l.b16 %v3328
  %v3814 = vunpack.c.h.b16 %v3328
  %v3815 = vunpack.c.l.b16 %v3329
  %v3816 = vunpack.c.h.b16 %v3329
  %v3817 = vunpack.c.l.b16 %v3330
  %v3818 = vunpack.c.h.b16 %v3330
  %v3819 = vunpack.c.l.b16 %v3331
  %v3820 = vunpack.c.h.b16 %v3331
  %v3821 = vunpack.c.l.b16 %v3332
  %v3822 = vunpack.c.h.b16 %v3332
  %v3823 = vunpack.c.l.b16 %v3333
  %v3824 = vunpack.c.h.b16 %v3333
  %v3825 = vunpack.c.l.b16 %v3334
  %v3826 = vunpack.c.h.b16 %v3334
  %v3827 = vunpack.c.l.b16 %v3335
  %v3828 = vunpack.c.h.b16 %v3335
  %v3829 = vunpack.c.l.b16 %v3336
  %v3830 = vunpack.c.h.b16 %v3336
  %v3831 = vunpack.c.l.b16 %v3337
  %v3832 = vunpack.c.h.b16 %v3337
  %v3833 = vunpack.c.l.b16 %v3338
  %v3834 = vunpack.c.h.b16 %v3338
  %v3835 = vunpack.c.l.b16 %v3339
  %v3836 = vunpack.c.h.b16 %v3339
  %v3837 = vunpack.c.l.b16 %v3340
  %v3838 = vunpack.c.h.b16 %v3340
  %v3839 = vunpack.c.l.b16 %v3341
  %v3840 = vunpack.c.h.b16 %v3341
  %v3841 = vunpack.c.l.b16 %v3342
  %v3842 = vunpack.c.h.b16 %v3342
  %v3843 = vunpack.c.l.b16 %v3343
  %v3844 = vunpack.c.h.b16 %v3343
  %v3845 = vunpack.c.l.b16 %v3344
  %v3846 = vunpack.c.h.b16 %v3344
  %v3847 = vunpack.c.l.b16 %v3345
  %v3848 = vunpack.c.h.b16 %v3345
  %v3849 = vunpack.c.l.b16 %v3346
  %v3850 = vunpack.c.h.b16 %v3346
  %v3851 = vunpack.c.l.b16 %v3347
  %v3852 = vunpack.c.h.b16 %v3347
  %v3853 = vpack.c.b16 %v3791, %v3789
  %v3854 = vpack.c.b16 %v3792, %v3790
  %v3855 = vpack.c.b16 %v3795, %v3793
  %v3856 = vpack.c.b16 %v3796, %v3794
  %v3857 = vpack.c.b16 %v3799, %v3797
  %v3858 = vpack.c.b16 %v3800, %v3798
  %v3859 = vpack.c.b16 %v3803, %v3801
  %v3860 = vpack.c.b16 %v3804, %v3802
  %v3861 = vpack.c.b16 %v3807, %v3805
  %v3862 = vpack.c.b16 %v3808, %v3806
  %v3863 = vpack.c.b16 %v3811, %v3809
  %v3864 = vpack.c.b16 %v3812, %v3810
  %v3865 = vpack.c.b16 %v3815, %v3813
  %v3866 = vpack.c.b16 %v3816, %v3814
  %v3867 = vpack.c.b16 %v3819, %v3817
  %v3868 = vpack.c.b16 %v3820, %v3818
  %v3869 = vpack.c.b16 %v3823, %v3821
  %v3870 = vpack.c.b16 %v3824, %v3822
  %v3871 = vpack.c.b16 %v3827, %v3825
  %v3872 = vpack.c.b16 %v3828, %v3826
  %v3873 = vpack.c.b16 %v3831, %v3829
  %v3874 = vpack.c.b16 %v3832, %v3830
  %v3875 = vpack.c.b16 %v3835, %v3833
  %v3876 = vpack.c.b16 %v3836, %v3834
  %v3877 = vpack.c.b16 %v3839, %v3837
  %v3878 = vpack.c.b16 %v3840, %v3838
  %v3879 = vpack.c.b16 %v3843, %v3841
  %v3880 = vpack.c.b16 %v3844, %v3842
  %v3881 = vpack.c.b16 %v3847, %v3845
  %v3882 = vpack.c.b16 %v3848, %v3846
  %v3883 = vpack.c.b16 %v3851, %v3849
  %v3884 = vpack.c.b16 %v3852, %v3850
  %3917 = vmatprep.subr.bf16.mxu0 %v3868
  %3918 = vmatpush1.bf16.msra.mxu0 %v3867
  %3919 = vmatprep.subr.bf16.mxu0 %v3866
  %3920 = vmatpush1.bf16.msra.mxu0 %v3865
  %3921 = vmatprep.subr.bf16.mxu0 %v3864
  %3922 = vmatpush1.bf16.msra.mxu0 %v3863
  %3923 = vmatprep.subr.bf16.mxu0 %v3862
  %3924 = vmatpush1.bf16.msra.mxu0 %v3861
  %3925 = vmatprep.subr.bf16.mxu0 %v3860
  %3926 = vmatpush1.bf16.msra.mxu0 %v3859
  %3927 = vmatprep.subr.bf16.mxu0 %v3858
  %3928 = vmatpush1.bf16.msra.mxu0 %v3857
  %3929 = vmatprep.subr.bf16.mxu0 %v3856
  %3930 = vmatpush1.bf16.msra.mxu0 %v3855
  %3931 = vmatprep.subr.bf16.mxu0 %v3854
  %3932 = vmatpush1.bf16.msra.mxu0 %v3853
  %3933 = vmatprep.subr.bf16.mxu0 %v3884
  %3934 = vmatpush2.bf16.msra.mxu0 %v3883
  %3935 = vmatprep.subr.bf16.mxu0 %v3882
  %3936 = vmatpush2.bf16.msra.mxu0 %v3881
  %3937 = vmatprep.subr.bf16.mxu0 %v3880
  %3938 = vmatpush2.bf16.msra.mxu0 %v3879
  %3939 = vmatprep.subr.bf16.mxu0 %v3878
  %3940 = vmatpush2.bf16.msra.mxu0 %v3877
  %3941 = vmatprep.subr.bf16.mxu0 %v3876
  %3942 = vmatpush2.bf16.msra.mxu0 %v3875
  %3943 = vmatprep.subr.bf16.mxu0 %v3874
  %3944 = vmatpush2.bf16.msra.mxu0 %v3873
  %3945 = vmatprep.subr.bf16.mxu0 %v3872
  %3946 = vmatpush2.bf16.msra.mxu0 %v3871
  %3947 = vmatprep.subr.bf16.mxu0 %v3870
  %3948 = vmatpush2.bf16.msra.mxu0 %v3869
  %3949 = vmatprep.mubr.bf16.mxu0 %v3500
  %3950 = vmatmul.mubr.bf16.gmra.mxu0 %v3499
  %v3951 = vpop.f32.mrf.mxu0
  %v3952 = vadd.f32 %v3749, %v3951
  %v3953 = vpop.f32.mrf.mxu0
  %v3954 = vadd.f32 %v3751, %v3953
  %v3955 = vpop.f32.mrf.mxu0
  %v3956 = vadd.f32 %v3753, %v3955
  %v3957 = vpop.f32.mrf.mxu0
  %v3958 = vadd.f32 %v3755, %v3957
  %3959 = vdwg.mxu0
  %v3962 = vunpack.c.l.b16 %v3310
  %v3963 = vunpack.c.l.b16 %v3311
  %v3964 = vpack.c.b16 %v3963, %v3962
  %v3966 = vsel %vm3452, %v3964, 0
  %3968 = vmatprep.subr.bf16.mxu0 0
  %3969 = vmatpush1.bf16.msra.mxu0 0
  %3970 = vmatprep.subr.bf16.mxu0 0
  %3971 = vmatpush1.bf16.msra.mxu0 0
  %3972 = vmatprep.subr.bf16.mxu0 0
  %3973 = vmatpush1.bf16.msra.mxu0 0
  %3974 = vmatprep.subr.bf16.mxu0 0
  %3975 = vmatpush1.bf16.msra.mxu0 0
  %3976 = vmatprep.subr.bf16.mxu0 0
  %3977 = vmatpush1.bf16.msra.mxu0 0
  %3978 = vmatprep.subr.bf16.mxu0 0
  %3979 = vmatpush1.bf16.msra.mxu0 0
  %3980 = vmatprep.subr.bf16.mxu0 %v3303
  %3981 = vmatpush1.bf16.msra.mxu0 %v3302
  %3982 = vmatprep.subr.bf16.mxu0 %v3301
  %3983 = vmatpush1.bf16.msra.mxu0 %v3300
  %3984 = vmatprep.subr.bf16.mxu0 0
  %3985 = vmatpush2.bf16.msra.mxu0 0
  %3986 = vmatprep.subr.bf16.mxu0 0
  %3987 = vmatpush2.bf16.msra.mxu0 0
  %3988 = vmatprep.subr.bf16.mxu0 0
  %3989 = vmatpush2.bf16.msra.mxu0 0
  %3990 = vmatprep.subr.bf16.mxu0 0
  %3991 = vmatpush2.bf16.msra.mxu0 0
  %3992 = vmatprep.subr.bf16.mxu0 0
  %3993 = vmatpush2.bf16.msra.mxu0 0
  %3994 = vmatprep.subr.bf16.mxu0 0
  %3995 = vmatpush2.bf16.msra.mxu0 0
  %3996 = vmatprep.subr.bf16.mxu0 0
  %3997 = vmatpush2.bf16.msra.mxu0 0
  %3998 = vmatprep.subr.bf16.mxu0 0
  %3999 = vmatpush2.bf16.msra.mxu0 0
  %4000 = vmatprep.mubr.bf16.mxu0 0
  %4001 = vmatmul.mubr.bf16.gmra.mxu0 %v3966
  %v4002 = vpop.f32.mrf.mxu0
  %v4003 = vadd.f32 0.0, %v4002
  %v4004 = vpop.f32.mrf.mxu0
  %v4005 = vadd.f32 0.0, %v4004
  %v4006 = vpop.f32.mrf.mxu0
  %v4007 = vadd.f32 0.0, %v4006
  %v4008 = vpop.f32.mrf.mxu0
  %v4009 = vadd.f32 0.0, %v4008
  %4010 = vdwg.mxu0
  %v4011 = vpack.c.bf16 %v4007, %v4003
  %v4012 = vpack.c.bf16 %v4009, %v4005
  %v4045 = vunpack.c.l.b16 %v3382
  %v4046 = vunpack.c.h.b16 %v3382
  %v4047 = vunpack.c.l.b16 %v3383
  %v4048 = vunpack.c.h.b16 %v3383
  %v4049 = vunpack.c.l.b16 %v3384
  %v4050 = vunpack.c.h.b16 %v3384
  %v4051 = vunpack.c.l.b16 %v3385
  %v4052 = vunpack.c.h.b16 %v3385
  %v4053 = vunpack.c.l.b16 %v3386
  %v4054 = vunpack.c.h.b16 %v3386
  %v4055 = vunpack.c.l.b16 %v3387
  %v4056 = vunpack.c.h.b16 %v3387
  %v4057 = vunpack.c.l.b16 %v3388
  %v4058 = vunpack.c.h.b16 %v3388
  %v4059 = vunpack.c.l.b16 %v3389
  %v4060 = vunpack.c.h.b16 %v3389
  %v4061 = vunpack.c.l.b16 %v3390
  %v4062 = vunpack.c.h.b16 %v3390
  %v4063 = vunpack.c.l.b16 %v3391
  %v4064 = vunpack.c.h.b16 %v3391
  %v4065 = vunpack.c.l.b16 %v3392
  %v4066 = vunpack.c.h.b16 %v3392
  %v4067 = vunpack.c.l.b16 %v3393
  %v4068 = vunpack.c.h.b16 %v3393
  %v4069 = vunpack.c.l.b16 %v3394
  %v4070 = vunpack.c.h.b16 %v3394
  %v4071 = vunpack.c.l.b16 %v3395
  %v4072 = vunpack.c.h.b16 %v3395
  %v4073 = vunpack.c.l.b16 %v3396
  %v4074 = vunpack.c.h.b16 %v3396
  %v4075 = vunpack.c.l.b16 %v3397
  %v4076 = vunpack.c.h.b16 %v3397
  %v4077 = vunpack.c.l.b16 %v3398
  %v4078 = vunpack.c.h.b16 %v3398
  %v4079 = vunpack.c.l.b16 %v3399
  %v4080 = vunpack.c.h.b16 %v3399
  %v4081 = vunpack.c.l.b16 %v3400
  %v4082 = vunpack.c.h.b16 %v3400
  %v4083 = vunpack.c.l.b16 %v3401
  %v4084 = vunpack.c.h.b16 %v3401
  %v4085 = vunpack.c.l.b16 %v3402
  %v4086 = vunpack.c.h.b16 %v3402
  %v4087 = vunpack.c.l.b16 %v3403
  %v4088 = vunpack.c.h.b16 %v3403
  %v4089 = vunpack.c.l.b16 %v3404
  %v4090 = vunpack.c.h.b16 %v3404
  %v4091 = vunpack.c.l.b16 %v3405
  %v4092 = vunpack.c.h.b16 %v3405
  %v4093 = vunpack.c.l.b16 %v3406
  %v4094 = vunpack.c.h.b16 %v3406
  %v4095 = vunpack.c.l.b16 %v3407
  %v4096 = vunpack.c.h.b16 %v3407
  %v4097 = vunpack.c.l.b16 %v3408
  %v4098 = vunpack.c.h.b16 %v3408
  %v4099 = vunpack.c.l.b16 %v3409
  %v4100 = vunpack.c.h.b16 %v3409
  %v4101 = vunpack.c.l.b16 %v3410
  %v4102 = vunpack.c.h.b16 %v3410
  %v4103 = vunpack.c.l.b16 %v3411
  %v4104 = vunpack.c.h.b16 %v3411
  %v4105 = vunpack.c.l.b16 %v3412
  %v4106 = vunpack.c.h.b16 %v3412
  %v4107 = vunpack.c.l.b16 %v3413
  %v4108 = vunpack.c.h.b16 %v3413
  %v4109 = vpack.c.b16 %v4047, %v4045
  %v4110 = vpack.c.b16 %v4048, %v4046
  %v4111 = vpack.c.b16 %v4051, %v4049
  %v4112 = vpack.c.b16 %v4052, %v4050
  %v4113 = vpack.c.b16 %v4055, %v4053
  %v4114 = vpack.c.b16 %v4056, %v4054
  %v4115 = vpack.c.b16 %v4059, %v4057
  %v4116 = vpack.c.b16 %v4060, %v4058
  %v4117 = vpack.c.b16 %v4063, %v4061
  %v4118 = vpack.c.b16 %v4064, %v4062
  %v4119 = vpack.c.b16 %v4067, %v4065
  %v4120 = vpack.c.b16 %v4068, %v4066
  %v4121 = vpack.c.b16 %v4071, %v4069
  %v4122 = vpack.c.b16 %v4072, %v4070
  %v4123 = vpack.c.b16 %v4075, %v4073
  %v4124 = vpack.c.b16 %v4076, %v4074
  %v4125 = vpack.c.b16 %v4079, %v4077
  %v4126 = vpack.c.b16 %v4080, %v4078
  %v4127 = vpack.c.b16 %v4083, %v4081
  %v4128 = vpack.c.b16 %v4084, %v4082
  %v4129 = vpack.c.b16 %v4087, %v4085
  %v4130 = vpack.c.b16 %v4088, %v4086
  %v4131 = vpack.c.b16 %v4091, %v4089
  %v4132 = vpack.c.b16 %v4092, %v4090
  %v4133 = vpack.c.b16 %v4095, %v4093
  %v4134 = vpack.c.b16 %v4096, %v4094
  %v4135 = vpack.c.b16 %v4099, %v4097
  %v4136 = vpack.c.b16 %v4100, %v4098
  %v4137 = vpack.c.b16 %v4103, %v4101
  %v4138 = vpack.c.b16 %v4104, %v4102
  %v4139 = vpack.c.b16 %v4107, %v4105
  %v4140 = vpack.c.b16 %v4108, %v4106
  %4173 = vmatprep.subr.bf16.mxu0 %v4124
  %4174 = vmatpush1.bf16.msra.mxu0 %v4123
  %4175 = vmatprep.subr.bf16.mxu0 %v4122
  %4176 = vmatpush1.bf16.msra.mxu0 %v4121
  %4177 = vmatprep.subr.bf16.mxu0 %v4120
  %4178 = vmatpush1.bf16.msra.mxu0 %v4119
  %4179 = vmatprep.subr.bf16.mxu0 %v4118
  %4180 = vmatpush1.bf16.msra.mxu0 %v4117
  %4181 = vmatprep.subr.bf16.mxu0 %v4116
  %4182 = vmatpush1.bf16.msra.mxu0 %v4115
  %4183 = vmatprep.subr.bf16.mxu0 %v4114
  %4184 = vmatpush1.bf16.msra.mxu0 %v4113
  %4185 = vmatprep.subr.bf16.mxu0 %v4112
  %4186 = vmatpush1.bf16.msra.mxu0 %v4111
  %4187 = vmatprep.subr.bf16.mxu0 %v4110
  %4188 = vmatpush1.bf16.msra.mxu0 %v4109
  %4189 = vmatprep.subr.bf16.mxu0 %v4140
  %4190 = vmatpush2.bf16.msra.mxu0 %v4139
  %4191 = vmatprep.subr.bf16.mxu0 %v4138
  %4192 = vmatpush2.bf16.msra.mxu0 %v4137
  %4193 = vmatprep.subr.bf16.mxu0 %v4136
  %4194 = vmatpush2.bf16.msra.mxu0 %v4135
  %4195 = vmatprep.subr.bf16.mxu0 %v4134
  %4196 = vmatpush2.bf16.msra.mxu0 %v4133
  %4197 = vmatprep.subr.bf16.mxu0 %v4132
  %4198 = vmatpush2.bf16.msra.mxu0 %v4131
  %4199 = vmatprep.subr.bf16.mxu0 %v4130
  %4200 = vmatpush2.bf16.msra.mxu0 %v4129
  %4201 = vmatprep.subr.bf16.mxu0 %v4128
  %4202 = vmatpush2.bf16.msra.mxu0 %v4127
  %4203 = vmatprep.subr.bf16.mxu0 %v4126
  %4204 = vmatpush2.bf16.msra.mxu0 %v4125
  %4205 = vmatprep.mubr.bf16.mxu0 %v4012
  %4206 = vmatmul.mubr.bf16.gmra.mxu0 %v4011
  %v4207 = vpop.f32.mrf.mxu0
  %v4208 = vadd.f32 0.0, %v4207
  %v4209 = vpop.f32.mrf.mxu0
  %v4210 = vadd.f32 0.0, %v4209
  %v4211 = vpop.f32.mrf.mxu0
  %v4212 = vadd.f32 0.0, %v4211
  %v4213 = vpop.f32.mrf.mxu0
  %v4214 = vadd.f32 0.0, %v4213
  %4215 = vdwg.mxu0
  %v4216 = vadd.f32 %v3952, %v4208
  %v4217 = vadd.f32 %v3954, %v4210
  %v4218 = vadd.f32 %v3956, %v4212
  %v4219 = vadd.f32 %v3958, %v4214
  %v4222 = vunpack.c.l.b16 %v3313
  %v4223 = vunpack.c.l.b16 %v3314
  %v4224 = vpack.c.b16 %v4223, %v4222
  %v4226 = vsel %vm3452, %v4224, 0
  %4228 = vmatprep.subr.bf16.mxu0 0
  %4229 = vmatpush1.bf16.msra.mxu0 0
  %4230 = vmatprep.subr.bf16.mxu0 0
  %4231 = vmatpush1.bf16.msra.mxu0 0
  %4232 = vmatprep.subr.bf16.mxu0 0
  %4233 = vmatpush1.bf16.msra.mxu0 0
  %4234 = vmatprep.subr.bf16.mxu0 0
  %4235 = vmatpush1.bf16.msra.mxu0 0
  %4236 = vmatprep.subr.bf16.mxu0 0
  %4237 = vmatpush1.bf16.msra.mxu0 0
  %4238 = vmatprep.subr.bf16.mxu0 0
  %4239 = vmatpush1.bf16.msra.mxu0 0
  %4240 = vmatprep.subr.bf16.mxu0 %v3303
  %4241 = vmatpush1.bf16.msra.mxu0 %v3302
  %4242 = vmatprep.subr.bf16.mxu0 %v3301
  %4243 = vmatpush1.bf16.msra.mxu0 %v3300
  %4244 = vmatprep.subr.bf16.mxu0 0
  %4245 = vmatpush2.bf16.msra.mxu0 0
  %4246 = vmatprep.subr.bf16.mxu0 0
  %4247 = vmatpush2.bf16.msra.mxu0 0
  %4248 = vmatprep.subr.bf16.mxu0 0
  %4249 = vmatpush2.bf16.msra.mxu0 0
  %4250 = vmatprep.subr.bf16.mxu0 0
  %4251 = vmatpush2.bf16.msra.mxu0 0
  %4252 = vmatprep.subr.bf16.mxu0 0
  %4253 = vmatpush2.bf16.msra.mxu0 0
  %4254 = vmatprep.subr.bf16.mxu0 0
  %4255 = vmatpush2.bf16.msra.mxu0 0
  %4256 = vmatprep.subr.bf16.mxu0 0
  %4257 = vmatpush2.bf16.msra.mxu0 0
  %4258 = vmatprep.subr.bf16.mxu0 0
  %4259 = vmatpush2.bf16.msra.mxu0 0
  %4260 = vmatprep.mubr.bf16.mxu0 0
  %4261 = vmatmul.mubr.bf16.gmra.mxu0 %v4226
  %v4262 = vpop.f32.mrf.mxu0
  %v4263 = vadd.f32 0.0, %v4262
  %v4264 = vpop.f32.mrf.mxu0
  %v4265 = vadd.f32 0.0, %v4264
  %v4266 = vpop.f32.mrf.mxu0
  %v4267 = vadd.f32 0.0, %v4266
  %v4268 = vpop.f32.mrf.mxu0
  %v4269 = vadd.f32 0.0, %v4268
  %4270 = vdwg.mxu0
  %v4271 = vpack.c.bf16 %v4267, %v4263
  %v4272 = vpack.c.bf16 %v4269, %v4265
  %v4305 = vunpack.c.l.b16 %v3415
  %v4306 = vunpack.c.h.b16 %v3415
  %v4307 = vunpack.c.l.b16 %v3416
  %v4308 = vunpack.c.h.b16 %v3416
  %v4309 = vunpack.c.l.b16 %v3417
  %v4310 = vunpack.c.h.b16 %v3417
  %v4311 = vunpack.c.l.b16 %v3418
  %v4312 = vunpack.c.h.b16 %v3418
  %v4313 = vunpack.c.l.b16 %v3419
  %v4314 = vunpack.c.h.b16 %v3419
  %v4315 = vunpack.c.l.b16 %v3420
  %v4316 = vunpack.c.h.b16 %v3420
  %v4317 = vunpack.c.l.b16 %v3421
  %v4318 = vunpack.c.h.b16 %v3421
  %v4319 = vunpack.c.l.b16 %v3422
  %v4320 = vunpack.c.h.b16 %v3422
  %v4321 = vunpack.c.l.b16 %v3423
  %v4322 = vunpack.c.h.b16 %v3423
  %v4323 = vunpack.c.l.b16 %v3424
  %v4324 = vunpack.c.h.b16 %v3424
  %v4325 = vunpack.c.l.b16 %v3425
  %v4326 = vunpack.c.h.b16 %v3425
  %v4327 = vunpack.c.l.b16 %v3426
  %v4328 = vunpack.c.h.b16 %v3426
  %v4329 = vunpack.c.l.b16 %v3427
  %v4330 = vunpack.c.h.b16 %v3427
  %v4331 = vunpack.c.l.b16 %v3428
  %v4332 = vunpack.c.h.b16 %v3428
  %v4333 = vunpack.c.l.b16 %v3429
  %v4334 = vunpack.c.h.b16 %v3429
  %v4335 = vunpack.c.l.b16 %v3430
  %v4336 = vunpack.c.h.b16 %v3430
  %v4337 = vunpack.c.l.b16 %v3431
  %v4338 = vunpack.c.h.b16 %v3431
  %v4339 = vunpack.c.l.b16 %v3432
  %v4340 = vunpack.c.h.b16 %v3432
  %v4341 = vunpack.c.l.b16 %v3433
  %v4342 = vunpack.c.h.b16 %v3433
  %v4343 = vunpack.c.l.b16 %v3434
  %v4344 = vunpack.c.h.b16 %v3434
  %v4345 = vunpack.c.l.b16 %v3435
  %v4346 = vunpack.c.h.b16 %v3435
  %v4347 = vunpack.c.l.b16 %v3436
  %v4348 = vunpack.c.h.b16 %v3436
  %v4349 = vunpack.c.l.b16 %v3437
  %v4350 = vunpack.c.h.b16 %v3437
  %v4351 = vunpack.c.l.b16 %v3438
  %v4352 = vunpack.c.h.b16 %v3438
  %v4353 = vunpack.c.l.b16 %v3439
  %v4354 = vunpack.c.h.b16 %v3439
  %v4355 = vunpack.c.l.b16 %v3440
  %v4356 = vunpack.c.h.b16 %v3440
  %v4357 = vunpack.c.l.b16 %v3441
  %v4358 = vunpack.c.h.b16 %v3441
  %v4359 = vunpack.c.l.b16 %v3442
  %v4360 = vunpack.c.h.b16 %v3442
  %v4361 = vunpack.c.l.b16 %v3443
  %v4362 = vunpack.c.h.b16 %v3443
  %v4363 = vunpack.c.l.b16 %v3444
  %v4364 = vunpack.c.h.b16 %v3444
  %v4365 = vunpack.c.l.b16 %v3445
  %v4366 = vunpack.c.h.b16 %v3445
  %v4367 = vunpack.c.l.b16 %v3446
  %v4368 = vunpack.c.h.b16 %v3446
  %v4369 = vpack.c.b16 %v4307, %v4305
  %v4370 = vpack.c.b16 %v4308, %v4306
  %v4371 = vpack.c.b16 %v4311, %v4309
  %v4372 = vpack.c.b16 %v4312, %v4310
  %v4373 = vpack.c.b16 %v4315, %v4313
  %v4374 = vpack.c.b16 %v4316, %v4314
  %v4375 = vpack.c.b16 %v4319, %v4317
  %v4376 = vpack.c.b16 %v4320, %v4318
  %v4377 = vpack.c.b16 %v4323, %v4321
  %v4378 = vpack.c.b16 %v4324, %v4322
  %v4379 = vpack.c.b16 %v4327, %v4325
  %v4380 = vpack.c.b16 %v4328, %v4326
  %v4381 = vpack.c.b16 %v4331, %v4329
  %v4382 = vpack.c.b16 %v4332, %v4330
  %v4383 = vpack.c.b16 %v4335, %v4333
  %v4384 = vpack.c.b16 %v4336, %v4334
  %v4385 = vpack.c.b16 %v4339, %v4337
  %v4386 = vpack.c.b16 %v4340, %v4338
  %v4387 = vpack.c.b16 %v4343, %v4341
  %v4388 = vpack.c.b16 %v4344, %v4342
  %v4389 = vpack.c.b16 %v4347, %v4345
  %v4390 = vpack.c.b16 %v4348, %v4346
  %v4391 = vpack.c.b16 %v4351, %v4349
  %v4392 = vpack.c.b16 %v4352, %v4350
  %v4393 = vpack.c.b16 %v4355, %v4353
  %v4394 = vpack.c.b16 %v4356, %v4354
  %v4395 = vpack.c.b16 %v4359, %v4357
  %v4396 = vpack.c.b16 %v4360, %v4358
  %v4397 = vpack.c.b16 %v4363, %v4361
  %v4398 = vpack.c.b16 %v4364, %v4362
  %v4399 = vpack.c.b16 %v4367, %v4365
  %v4400 = vpack.c.b16 %v4368, %v4366
  %4433 = vmatprep.subr.bf16.mxu0 %v4384
  %4434 = vmatpush1.bf16.msra.mxu0 %v4383
  %4435 = vmatprep.subr.bf16.mxu0 %v4382
  %4436 = vmatpush1.bf16.msra.mxu0 %v4381
  %4437 = vmatprep.subr.bf16.mxu0 %v4380
  %4438 = vmatpush1.bf16.msra.mxu0 %v4379
  %4439 = vmatprep.subr.bf16.mxu0 %v4378
  %4440 = vmatpush1.bf16.msra.mxu0 %v4377
  %4441 = vmatprep.subr.bf16.mxu0 %v4376
  %4442 = vmatpush1.bf16.msra.mxu0 %v4375
  %4443 = vmatprep.subr.bf16.mxu0 %v4374
  %4444 = vmatpush1.bf16.msra.mxu0 %v4373
  %4445 = vmatprep.subr.bf16.mxu0 %v4372
  %4446 = vmatpush1.bf16.msra.mxu0 %v4371
  %4447 = vmatprep.subr.bf16.mxu0 %v4370
  %4448 = vmatpush1.bf16.msra.mxu0 %v4369
  %4449 = vmatprep.subr.bf16.mxu0 %v4400
  %4450 = vmatpush2.bf16.msra.mxu0 %v4399
  %4451 = vmatprep.subr.bf16.mxu0 %v4398
  %4452 = vmatpush2.bf16.msra.mxu0 %v4397
  %4453 = vmatprep.subr.bf16.mxu0 %v4396
  %4454 = vmatpush2.bf16.msra.mxu0 %v4395
  %4455 = vmatprep.subr.bf16.mxu0 %v4394
  %4456 = vmatpush2.bf16.msra.mxu0 %v4393
  %4457 = vmatprep.subr.bf16.mxu0 %v4392
  %4458 = vmatpush2.bf16.msra.mxu0 %v4391
  %4459 = vmatprep.subr.bf16.mxu0 %v4390
  %4460 = vmatpush2.bf16.msra.mxu0 %v4389
  %4461 = vmatprep.subr.bf16.mxu0 %v4388
  %4462 = vmatpush2.bf16.msra.mxu0 %v4387
  %4463 = vmatprep.subr.bf16.mxu0 %v4386
  %4464 = vmatpush2.bf16.msra.mxu0 %v4385
  %4465 = vmatprep.mubr.bf16.mxu0 %v4272
  %4466 = vmatmul.mubr.bf16.gmra.mxu0 %v4271
  %v4467 = vpop.f32.mrf.mxu0
  %v4468 = vadd.f32 0.0, %v4467
  %v4469 = vpop.f32.mrf.mxu0
  %v4470 = vadd.f32 0.0, %v4469
  %v4471 = vpop.f32.mrf.mxu0
  %v4472 = vadd.f32 0.0, %v4471
  %v4473 = vpop.f32.mrf.mxu0
  %v4474 = vadd.f32 0.0, %v4473
  %4475 = vdwg.mxu0
  %v4476 = vadd.f32 %v4216, %v4468
  %v4477 = vadd.f32 %v4217, %v4470
  %v4478 = vadd.f32 %v4218, %v4472
  %v4479 = vadd.f32 %v4219, %v4474
  %s4480 = scalar_lea.vmem %s10, 512
  %v4481 = vld [vmem:[%s4480] sm:$0xff]
  %v4482 = vld [vmem:[%s4480 + $0x8] sm:$0xff]
  %v4483 = vld [vmem:[%s4480 + $0x10] sm:$0xff]
  %v4484 = vld [vmem:[%s4480 + $0x18] sm:$0xff]
  %v4485 = vld [vmem:[%s4480 + $0x20] sm:$0xff]
  %v4486 = vld [vmem:[%s4480 + $0x28] sm:$0xff]
  %v4487 = vld [vmem:[%s4480 + $0x30] sm:$0xff]
  %v4488 = vld [vmem:[%s4480 + $0x38] sm:$0xff]
  %v4489 = vld [vmem:[%s4480 + $0x40] sm:$0xff]
  %v4490 = vld [vmem:[%s4480 + $0x48] sm:$0xff]
  %v4491 = vld [vmem:[%s4480 + $0x50] sm:$0xff]
  %v4492 = vld [vmem:[%s4480 + $0x58] sm:$0xff]
  %v4493 = vld [vmem:[%s4480 + $0x60] sm:$0xff]
  %v4494 = vld [vmem:[%s4480 + $0x68] sm:$0xff]
  %v4495 = vld [vmem:[%s4480 + $0x70] sm:$0xff]
  %v4496 = vld [vmem:[%s4480 + $0x78] sm:$0xff]
  %v4497 = vld [vmem:[%s4480 + $0x80] sm:$0xff]
  %v4498 = vld [vmem:[%s4480 + $0x88] sm:$0xff]
  %v4499 = vld [vmem:[%s4480 + $0x90] sm:$0xff]
  %v4500 = vld [vmem:[%s4480 + $0x98] sm:$0xff]
  %v4501 = vld [vmem:[%s4480 + $0xa0] sm:$0xff]
  %v4502 = vld [vmem:[%s4480 + $0xa8] sm:$0xff]
  %v4503 = vld [vmem:[%s4480 + $0xb0] sm:$0xff]
  %v4504 = vld [vmem:[%s4480 + $0xb8] sm:$0xff]
  %v4505 = vld [vmem:[%s4480 + $0xc0] sm:$0xff]
  %v4506 = vld [vmem:[%s4480 + $0xc8] sm:$0xff]
  %v4507 = vld [vmem:[%s4480 + $0xd0] sm:$0xff]
  %v4508 = vld [vmem:[%s4480 + $0xd8] sm:$0xff]
  %v4509 = vld [vmem:[%s4480 + $0xe0] sm:$0xff]
  %v4510 = vld [vmem:[%s4480 + $0xe8] sm:$0xff]
  %v4511 = vld [vmem:[%s4480 + $0xf0] sm:$0xff]
  %v4512 = vld [vmem:[%s4480 + $0xf8] sm:$0xff]
  %v4513 = vld [vmem:[%s4480 + $0x100] sm:$0xff]
  %v4514 = vld [vmem:[%s4480 + $0x108] sm:$0xff]
  %v4515 = vld [vmem:[%s4480 + $0x110] sm:$0xff]
  %v4516 = vld [vmem:[%s4480 + $0x118] sm:$0xff]
  %v4517 = vld [vmem:[%s4480 + $0x120] sm:$0xff]
  %v4518 = vld [vmem:[%s4480 + $0x128] sm:$0xff]
  %v4519 = vld [vmem:[%s4480 + $0x130] sm:$0xff]
  %v4520 = vld [vmem:[%s4480 + $0x138] sm:$0xff]
  %v4521 = vld [vmem:[%s4480 + $0x140] sm:$0xff]
  %v4522 = vld [vmem:[%s4480 + $0x148] sm:$0xff]
  %v4523 = vld [vmem:[%s4480 + $0x150] sm:$0xff]
  %v4524 = vld [vmem:[%s4480 + $0x158] sm:$0xff]
  %v4525 = vld [vmem:[%s4480 + $0x160] sm:$0xff]
  %v4526 = vld [vmem:[%s4480 + $0x168] sm:$0xff]
  %v4527 = vld [vmem:[%s4480 + $0x170] sm:$0xff]
  %v4528 = vld [vmem:[%s4480 + $0x178] sm:$0xff]
  %v4529 = vld [vmem:[%s4480 + $0x180] sm:$0xff]
  %v4530 = vld [vmem:[%s4480 + $0x188] sm:$0xff]
  %v4531 = vld [vmem:[%s4480 + $0x190] sm:$0xff]
  %v4532 = vld [vmem:[%s4480 + $0x198] sm:$0xff]
  %v4533 = vld [vmem:[%s4480 + $0x1a0] sm:$0xff]
  %v4534 = vld [vmem:[%s4480 + $0x1a8] sm:$0xff]
  %v4535 = vld [vmem:[%s4480 + $0x1b0] sm:$0xff]
  %v4536 = vld [vmem:[%s4480 + $0x1b8] sm:$0xff]
  %v4537 = vld [vmem:[%s4480 + $0x1c0] sm:$0xff]
  %v4538 = vld [vmem:[%s4480 + $0x1c8] sm:$0xff]
  %v4539 = vld [vmem:[%s4480 + $0x1d0] sm:$0xff]
  %v4540 = vld [vmem:[%s4480 + $0x1d8] sm:$0xff]
  %v4541 = vld [vmem:[%s4480 + $0x1e0] sm:$0xff]
  %v4542 = vld [vmem:[%s4480 + $0x1e8] sm:$0xff]
  %v4543 = vld [vmem:[%s4480 + $0x1f0] sm:$0xff]
  %v4544 = vld [vmem:[%s4480 + $0x1f8] sm:$0xff]
  %v4545 = vadd.f32 %v4476, %v4478
  %v4546 = vrot.slane %v4545, 4
  %v4547 = vadd.f32 %v4545, %v4546
  %v4548 = vrot.slane %v4547, 2
  %v4549 = vadd.f32 %v4547, %v4548
  %v4550 = vrot.slane %v4549, 1
  %v4551 = vadd.f32 %v4549, %v4550
  %v4552 = vadd.f32 %v4477, %v4479
  %v4553 = vrot.slane %v4552, 4
  %v4554 = vadd.f32 %v4552, %v4553
  %v4555 = vrot.slane %v4554, 2
  %v4556 = vadd.f32 %v4554, %v4555
  %v4557 = vrot.slane %v4556, 1
  %v4558 = vadd.f32 %v4556, %v4557
  %v4559 = vrcp.pop 16.0
  %v4560 = vmul.f32 %v4551, %v4559
  %v4561 = vmul.f32 %v4558, %v4559
  %4562 = vmatprep.subr.mxu0 %v4512
  %4563 = vmatpush1.msra.mxu0 %v4511
  %4564 = vmatprep.subr.mxu0 %v4510
  %4565 = vmatpush1.msra.mxu0 %v4509
  %4566 = vmatprep.subr.mxu0 %v4508
  %4567 = vmatpush1.msra.mxu0 %v4507
  %4568 = vmatprep.subr.mxu0 %v4506
  %4569 = vmatpush1.msra.mxu0 %v4505
  %4570 = vmatprep.subr.mxu0 %v4504
  %4571 = vmatpush1.msra.mxu0 %v4503
  %4572 = vmatprep.subr.mxu0 %v4502
  %4573 = vmatpush1.msra.mxu0 %v4501
  %4574 = vmatprep.subr.mxu0 %v4500
  %4575 = vmatpush1.msra.mxu0 %v4499
  %4576 = vmatprep.subr.mxu0 %v4498
  %4577 = vmatpush1.msra.mxu0 %v4497
  %4578 = vmatprep.subr.mxu0 %v4496
  %4579 = vmatpush1.msra.mxu0 %v4495
  %4580 = vmatprep.subr.mxu0 %v4494
  %4581 = vmatpush1.msra.mxu0 %v4493
  %4582 = vmatprep.subr.mxu0 %v4492
  %4583 = vmatpush1.msra.mxu0 %v4491
  %4584 = vmatprep.subr.mxu0 %v4490
  %4585 = vmatpush1.msra.mxu0 %v4489
  %4586 = vmatprep.subr.mxu0 %v4488
  %4587 = vmatpush1.msra.mxu0 %v4487
  %4588 = vmatprep.subr.mxu0 %v4486
  %4589 = vmatpush1.msra.mxu0 %v4485
  %4590 = vmatprep.subr.mxu0 %v4484
  %4591 = vmatpush1.msra.mxu0 %v4483
  %4592 = vmatprep.subr.mxu0 %v4482
  %4593 = vmatpush1.msra.mxu0 %v4481
  %4594 = vmatprep.subr.mxu0 %v4544
  %4595 = vmatpush2.msra.mxu0 %v4543
  %4596 = vmatprep.subr.mxu0 %v4542
  %4597 = vmatpush2.msra.mxu0 %v4541
  %4598 = vmatprep.subr.mxu0 %v4540
  %4599 = vmatpush2.msra.mxu0 %v4539
  %4600 = vmatprep.subr.mxu0 %v4538
  %4601 = vmatpush2.msra.mxu0 %v4537
  %4602 = vmatprep.subr.mxu0 %v4536
  %4603 = vmatpush2.msra.mxu0 %v4535
  %4604 = vmatprep.subr.mxu0 %v4534
  %4605 = vmatpush2.msra.mxu0 %v4533
  %4606 = vmatprep.subr.mxu0 %v4532
  %4607 = vmatpush2.msra.mxu0 %v4531
  %4608 = vmatprep.subr.mxu0 %v4530
  %4609 = vmatpush2.msra.mxu0 %v4529
  %4610 = vmatprep.subr.mxu0 %v4528
  %4611 = vmatpush2.msra.mxu0 %v4527
  %4612 = vmatprep.subr.mxu0 %v4526
  %4613 = vmatpush2.msra.mxu0 %v4525
  %4614 = vmatprep.subr.mxu0 %v4524
  %4615 = vmatpush2.msra.mxu0 %v4523
  %4616 = vmatprep.subr.mxu0 %v4522
  %4617 = vmatpush2.msra.mxu0 %v4521
  %4618 = vmatprep.subr.mxu0 %v4520
  %4619 = vmatpush2.msra.mxu0 %v4519
  %4620 = vmatprep.subr.mxu0 %v4518
  %4621 = vmatpush2.msra.mxu0 %v4517
  %4622 = vmatprep.subr.mxu0 %v4516
  %4623 = vmatpush2.msra.mxu0 %v4515
  %4624 = vmatprep.subr.mxu0 %v4514
  %4625 = vmatpush2.msra.mxu0 %v4513
  %4626 = vmatprep.mubr.f32.mxu0 %v4561
  %4627 = vmatmul.mubr.f32.gmra.mxu0 %v4560
  %v4628 = vpop.f32.mrf.mxu0
  %v4629 = vadd.f32 0.0, %v4628
  %v4630 = vpop.f32.mrf.mxu0
  %v4631 = vadd.f32 0.0, %v4630
  %4632 = vdwg.mxu0
  %v4633 = vlaneseq
  %v4634 = vshrl.u32 %v4633, 7
  %v4635 = vsub.s32 0, %v4634
  %v4636 = vrot.slane %v4629, %v4635
  %v4637 = vlaneseq
  %v4638 = vshrl.u32 %v4637, 7
  %v4639 = vsub.s32 0, %v4638
  %v4640 = vrot.slane %v4631, %v4639
  %v4641 = vsub.f32 %v4476, %v4636
  %v4642 = vsub.f32 %v4477, %v4640
  %v4643 = vsub.f32 %v4478, %v4636
  %v4644 = vsub.f32 %v4479, %v4640
  %v4645 = vmul.f32 %v4641, %v4641
  %v4646 = vmul.f32 %v4642, %v4642
  %v4647 = vmul.f32 %v4643, %v4643
  %v4648 = vmul.f32 %v4644, %v4644
  %v4649 = vadd.f32 %v4645, %v4647
  %v4650 = vrot.slane %v4649, 4
  %v4651 = vadd.f32 %v4649, %v4650
  %v4652 = vrot.slane %v4651, 2
  %v4653 = vadd.f32 %v4651, %v4652
  %v4654 = vrot.slane %v4653, 1
  %v4655 = vadd.f32 %v4653, %v4654
  %v4656 = vadd.f32 %v4646, %v4648
  %v4657 = vrot.slane %v4656, 4
  %v4658 = vadd.f32 %v4656, %v4657
  %v4659 = vrot.slane %v4658, 2
  %v4660 = vadd.f32 %v4658, %v4659
  %v4661 = vrot.slane %v4660, 1
  %v4662 = vadd.f32 %v4660, %v4661
  %v4663 = vmul.f32 %v4655, %v4559
  %v4664 = vmul.f32 %v4662, %v4559
  %4665 = vmatprep.subr.mxu0 %v4512
  %4666 = vmatpush1.msra.mxu0 %v4511
  %4667 = vmatprep.subr.mxu0 %v4510
  %4668 = vmatpush1.msra.mxu0 %v4509
  %4669 = vmatprep.subr.mxu0 %v4508
  %4670 = vmatpush1.msra.mxu0 %v4507
  %4671 = vmatprep.subr.mxu0 %v4506
  %4672 = vmatpush1.msra.mxu0 %v4505
  %4673 = vmatprep.subr.mxu0 %v4504
  %4674 = vmatpush1.msra.mxu0 %v4503
  %4675 = vmatprep.subr.mxu0 %v4502
  %4676 = vmatpush1.msra.mxu0 %v4501
  %4677 = vmatprep.subr.mxu0 %v4500
  %4678 = vmatpush1.msra.mxu0 %v4499
  %4679 = vmatprep.subr.mxu0 %v4498
  %4680 = vmatpush1.msra.mxu0 %v4497
  %4681 = vmatprep.subr.mxu0 %v4496
  %4682 = vmatpush1.msra.mxu0 %v4495
  %4683 = vmatprep.subr.mxu0 %v4494
  %4684 = vmatpush1.msra.mxu0 %v4493
  %4685 = vmatprep.subr.mxu0 %v4492
  %4686 = vmatpush1.msra.mxu0 %v4491
  %4687 = vmatprep.subr.mxu0 %v4490
  %4688 = vmatpush1.msra.mxu0 %v4489
  %4689 = vmatprep.subr.mxu0 %v4488
  %4690 = vmatpush1.msra.mxu0 %v4487
  %4691 = vmatprep.subr.mxu0 %v4486
  %4692 = vmatpush1.msra.mxu0 %v4485
  %4693 = vmatprep.subr.mxu0 %v4484
  %4694 = vmatpush1.msra.mxu0 %v4483
  %4695 = vmatprep.subr.mxu0 %v4482
  %4696 = vmatpush1.msra.mxu0 %v4481
  %4697 = vmatprep.subr.mxu0 %v4544
  %4698 = vmatpush2.msra.mxu0 %v4543
  %4699 = vmatprep.subr.mxu0 %v4542
  %4700 = vmatpush2.msra.mxu0 %v4541
  %4701 = vmatprep.subr.mxu0 %v4540
  %4702 = vmatpush2.msra.mxu0 %v4539
  %4703 = vmatprep.subr.mxu0 %v4538
  %4704 = vmatpush2.msra.mxu0 %v4537
  %4705 = vmatprep.subr.mxu0 %v4536
  %4706 = vmatpush2.msra.mxu0 %v4535
  %4707 = vmatprep.subr.mxu0 %v4534
  %4708 = vmatpush2.msra.mxu0 %v4533
  %4709 = vmatprep.subr.mxu0 %v4532
  %4710 = vmatpush2.msra.mxu0 %v4531
  %4711 = vmatprep.subr.mxu0 %v4530
  %4712 = vmatpush2.msra.mxu0 %v4529
  %4713 = vmatprep.subr.mxu0 %v4528
  %4714 = vmatpush2.msra.mxu0 %v4527
  %4715 = vmatprep.subr.mxu0 %v4526
  %4716 = vmatpush2.msra.mxu0 %v4525
  %4717 = vmatprep.subr.mxu0 %v4524
  %4718 = vmatpush2.msra.mxu0 %v4523
  %4719 = vmatprep.subr.mxu0 %v4522
  %4720 = vmatpush2.msra.mxu0 %v4521
  %4721 = vmatprep.subr.mxu0 %v4520
  %4722 = vmatpush2.msra.mxu0 %v4519
  %4723 = vmatprep.subr.mxu0 %v4518
  %4724 = vmatpush2.msra.mxu0 %v4517
  %4725 = vmatprep.subr.mxu0 %v4516
  %4726 = vmatpush2.msra.mxu0 %v4515
  %4727 = vmatprep.subr.mxu0 %v4514
  %4728 = vmatpush2.msra.mxu0 %v4513
  %4729 = vmatprep.mubr.f32.mxu0 %v4664
  %4730 = vmatmul.mubr.f32.gmra.mxu0 %v4663
  %v4731 = vpop.f32.mrf.mxu0
  %v4732 = vadd.f32 1e-05, %v4731
  %v4733 = vpop.f32.mrf.mxu0
  %v4734 = vadd.f32 1e-05, %v4733
  %4735 = vdwg.mxu0
  %v4736 = vrsqrt.pop %v4732
  %v4737 = vrsqrt.pop %v4734
  %v4738 = vlaneseq
  %v4739 = vshrl.u32 %v4738, 7
  %v4740 = vsub.s32 0, %v4739
  %v4741 = vrot.slane %v4736, %v4740
  %v4742 = vlaneseq
  %v4743 = vshrl.u32 %v4742, 7
  %v4744 = vsub.s32 0, %v4743
  %v4745 = vrot.slane %v4737, %v4744
  %v4746 = vmul.f32 %v4641, %v4741
  %v4747 = vmul.f32 %v4642, %v4745
  %v4748 = vmul.f32 %v4643, %v4741
  %v4749 = vmul.f32 %v4644, %v4745
  %s4750 = scalar_lea.vmem %s8, 2
  %v4751 = vld [vmem:[%s4750] sm:$0x3]
  %v4753 = vlaneseq
  %v4754 = vshrl.u32 %v4753, 7
  %v4755 = vsub.s32 0, %v4754
  %v4756 = vrot.slane %v4751, %v4755
  %v4757 = vlaneseq
  %v4758 = vshrl.u32 %v4757, 7
  %v4759 = vsub.s32 1, %v4758
  %v4760 = vrot.slane %v4751, %v4759
  %v4763 = vmul.f32 %v4746, %v4756
  %v4764 = vmul.f32 %v4747, %v4760
  %v4765 = vmul.f32 %v4748, %v4756
  %v4766 = vmul.f32 %v4749, %v4760
  %s4767 = scalar_lea.vmem %s9, 2
  %v4768 = vld [vmem:[%s4767] sm:$0x3]
  %v4770 = vlaneseq
  %v4771 = vshrl.u32 %v4770, 7
  %v4772 = vsub.s32 0, %v4771
  %v4773 = vrot.slane %v4768, %v4772
  %v4774 = vlaneseq
  %v4775 = vshrl.u32 %v4774, 7
  %v4776 = vsub.s32 1, %v4775
  %v4777 = vrot.slane %v4768, %v4776
  %v4780 = vadd.f32 %v4763, %v4773
  %v4781 = vadd.f32 %v4764, %v4777
  %v4782 = vadd.f32 %v4765, %v4773
  %v4783 = vadd.f32 %v4766, %v4777
  %vm4784 = vcmp.gt.f32.partialorder %v4780, 0.0
  %vm4785 = vcmp.gt.f32.partialorder %v4781, 0.0
  %vm4786 = vcmp.gt.f32.partialorder %v4782, 0.0
  %vm4787 = vcmp.gt.f32.partialorder %v4783, 0.0
  %v4788 = vmul.f32 %v4780, 0.2
  %v4789 = vmul.f32 %v4781, 0.2
  %v4790 = vmul.f32 %v4782, 0.2
  %v4791 = vmul.f32 %v4783, 0.2
  %v4792 = vsel %vm4784, %v4780, %v4788
  %v4793 = vsel %vm4785, %v4781, %v4789
  %v4794 = vsel %vm4786, %v4782, %v4790
  %v4795 = vsel %vm4787, %v4783, %v4791
  %v4796 = vpack.c.bf16 %v4794, %v4792
  %v4797 = vpack.c.bf16 %v4795, %v4793
  %v4798 = vld [vmem:[%s6] sm:$0xf]
  %s4799 = scalar_lea.vmem %s6, 4
  %v4800 = vld [vmem:[%s4799] sm:$0xf]
  %s4801 = scalar_lea.vmem %s6, 8
  %v4802 = vld [vmem:[%s4801] sm:$0xf]
  %s4803 = scalar_lea.vmem %s6, 12
  %v4804 = vld [vmem:[%s4803] sm:$0xf]
  %s4805 = scalar_lea.vmem %s7, 2048
  %v4806 = vld [vmem:[%s4805] sm:$0xff]
  %v4807 = vld [vmem:[%s4805 + $0x8] sm:$0xff]
  %v4808 = vld [vmem:[%s4805 + $0x10] sm:$0xff]
  %v4809 = vld [vmem:[%s4805 + $0x18] sm:$0xff]
  %v4810 = vld [vmem:[%s4805 + $0x20] sm:$0xff]
  %v4811 = vld [vmem:[%s4805 + $0x28] sm:$0xff]
  %v4812 = vld [vmem:[%s4805 + $0x30] sm:$0xff]
  %v4813 = vld [vmem:[%s4805 + $0x38] sm:$0xff]
  %v4814 = vld [vmem:[%s4805 + $0x40] sm:$0xff]
  %v4815 = vld [vmem:[%s4805 + $0x48] sm:$0xff]
  %v4816 = vld [vmem:[%s4805 + $0x50] sm:$0xff]
  %v4817 = vld [vmem:[%s4805 + $0x58] sm:$0xff]
  %v4818 = vld [vmem:[%s4805 + $0x60] sm:$0xff]
  %v4819 = vld [vmem:[%s4805 + $0x68] sm:$0xff]
  %v4820 = vld [vmem:[%s4805 + $0x70] sm:$0xff]
  %v4821 = vld [vmem:[%s4805 + $0x78] sm:$0xff]
  %v4822 = vld [vmem:[%s4805 + $0x80] sm:$0xff]
  %v4823 = vld [vmem:[%s4805 + $0x88] sm:$0xff]
  %v4824 = vld [vmem:[%s4805 + $0x90] sm:$0xff]
  %v4825 = vld [vmem:[%s4805 + $0x98] sm:$0xff]
  %v4826 = vld [vmem:[%s4805 + $0xa0] sm:$0xff]
  %v4827 = vld [vmem:[%s4805 + $0xa8] sm:$0xff]
  %v4828 = vld [vmem:[%s4805 + $0xb0] sm:$0xff]
  %v4829 = vld [vmem:[%s4805 + $0xb8] sm:$0xff]
  %v4830 = vld [vmem:[%s4805 + $0xc0] sm:$0xff]
  %v4831 = vld [vmem:[%s4805 + $0xc8] sm:$0xff]
  %v4832 = vld [vmem:[%s4805 + $0xd0] sm:$0xff]
  %v4833 = vld [vmem:[%s4805 + $0xd8] sm:$0xff]
  %v4834 = vld [vmem:[%s4805 + $0xe0] sm:$0xff]
  %v4835 = vld [vmem:[%s4805 + $0xe8] sm:$0xff]
  %v4836 = vld [vmem:[%s4805 + $0xf0] sm:$0xff]
  %v4837 = vld [vmem:[%s4805 + $0xf8] sm:$0xff]
  %s4838 = scalar_lea.vmem %s7, 2304
  %v4839 = vld [vmem:[%s4838] sm:$0xff]
  %v4840 = vld [vmem:[%s4838 + $0x8] sm:$0xff]
  %v4841 = vld [vmem:[%s4838 + $0x10] sm:$0xff]
  %v4842 = vld [vmem:[%s4838 + $0x18] sm:$0xff]
  %v4843 = vld [vmem:[%s4838 + $0x20] sm:$0xff]
  %v4844 = vld [vmem:[%s4838 + $0x28] sm:$0xff]
  %v4845 = vld [vmem:[%s4838 + $0x30] sm:$0xff]
  %v4846 = vld [vmem:[%s4838 + $0x38] sm:$0xff]
  %v4847 = vld [vmem:[%s4838 + $0x40] sm:$0xff]
  %v4848 = vld [vmem:[%s4838 + $0x48] sm:$0xff]
  %v4849 = vld [vmem:[%s4838 + $0x50] sm:$0xff]
  %v4850 = vld [vmem:[%s4838 + $0x58] sm:$0xff]
  %v4851 = vld [vmem:[%s4838 + $0x60] sm:$0xff]
  %v4852 = vld [vmem:[%s4838 + $0x68] sm:$0xff]
  %v4853 = vld [vmem:[%s4838 + $0x70] sm:$0xff]
  %v4854 = vld [vmem:[%s4838 + $0x78] sm:$0xff]
  %v4855 = vld [vmem:[%s4838 + $0x80] sm:$0xff]
  %v4856 = vld [vmem:[%s4838 + $0x88] sm:$0xff]
  %v4857 = vld [vmem:[%s4838 + $0x90] sm:$0xff]
  %v4858 = vld [vmem:[%s4838 + $0x98] sm:$0xff]
  %v4859 = vld [vmem:[%s4838 + $0xa0] sm:$0xff]
  %v4860 = vld [vmem:[%s4838 + $0xa8] sm:$0xff]
  %v4861 = vld [vmem:[%s4838 + $0xb0] sm:$0xff]
  %v4862 = vld [vmem:[%s4838 + $0xb8] sm:$0xff]
  %v4863 = vld [vmem:[%s4838 + $0xc0] sm:$0xff]
  %v4864 = vld [vmem:[%s4838 + $0xc8] sm:$0xff]
  %v4865 = vld [vmem:[%s4838 + $0xd0] sm:$0xff]
  %v4866 = vld [vmem:[%s4838 + $0xd8] sm:$0xff]
  %v4867 = vld [vmem:[%s4838 + $0xe0] sm:$0xff]
  %v4868 = vld [vmem:[%s4838 + $0xe8] sm:$0xff]
  %v4869 = vld [vmem:[%s4838 + $0xf0] sm:$0xff]
  %v4870 = vld [vmem:[%s4838 + $0xf8] sm:$0xff]
  %s4871 = scalar_lea.vmem %s7, 2560
  %v4872 = vld [vmem:[%s4871] sm:$0xff]
  %v4873 = vld [vmem:[%s4871 + $0x8] sm:$0xff]
  %v4874 = vld [vmem:[%s4871 + $0x10] sm:$0xff]
  %v4875 = vld [vmem:[%s4871 + $0x18] sm:$0xff]
  %v4876 = vld [vmem:[%s4871 + $0x20] sm:$0xff]
  %v4877 = vld [vmem:[%s4871 + $0x28] sm:$0xff]
  %v4878 = vld [vmem:[%s4871 + $0x30] sm:$0xff]
  %v4879 = vld [vmem:[%s4871 + $0x38] sm:$0xff]
  %v4880 = vld [vmem:[%s4871 + $0x40] sm:$0xff]
  %v4881 = vld [vmem:[%s4871 + $0x48] sm:$0xff]
  %v4882 = vld [vmem:[%s4871 + $0x50] sm:$0xff]
  %v4883 = vld [vmem:[%s4871 + $0x58] sm:$0xff]
  %v4884 = vld [vmem:[%s4871 + $0x60] sm:$0xff]
  %v4885 = vld [vmem:[%s4871 + $0x68] sm:$0xff]
  %v4886 = vld [vmem:[%s4871 + $0x70] sm:$0xff]
  %v4887 = vld [vmem:[%s4871 + $0x78] sm:$0xff]
  %v4888 = vld [vmem:[%s4871 + $0x80] sm:$0xff]
  %v4889 = vld [vmem:[%s4871 + $0x88] sm:$0xff]
  %v4890 = vld [vmem:[%s4871 + $0x90] sm:$0xff]
  %v4891 = vld [vmem:[%s4871 + $0x98] sm:$0xff]
  %v4892 = vld [vmem:[%s4871 + $0xa0] sm:$0xff]
  %v4893 = vld [vmem:[%s4871 + $0xa8] sm:$0xff]
  %v4894 = vld [vmem:[%s4871 + $0xb0] sm:$0xff]
  %v4895 = vld [vmem:[%s4871 + $0xb8] sm:$0xff]
  %v4896 = vld [vmem:[%s4871 + $0xc0] sm:$0xff]
  %v4897 = vld [vmem:[%s4871 + $0xc8] sm:$0xff]
  %v4898 = vld [vmem:[%s4871 + $0xd0] sm:$0xff]
  %v4899 = vld [vmem:[%s4871 + $0xd8] sm:$0xff]
  %v4900 = vld [vmem:[%s4871 + $0xe0] sm:$0xff]
  %v4901 = vld [vmem:[%s4871 + $0xe8] sm:$0xff]
  %v4902 = vld [vmem:[%s4871 + $0xf0] sm:$0xff]
  %v4903 = vld [vmem:[%s4871 + $0xf8] sm:$0xff]
  %s4904 = scalar_lea.vmem %s7, 2816
  %v4905 = vld [vmem:[%s4904] sm:$0xff]
  %v4906 = vld [vmem:[%s4904 + $0x8] sm:$0xff]
  %v4907 = vld [vmem:[%s4904 + $0x10] sm:$0xff]
  %v4908 = vld [vmem:[%s4904 + $0x18] sm:$0xff]
  %v4909 = vld [vmem:[%s4904 + $0x20] sm:$0xff]
  %v4910 = vld [vmem:[%s4904 + $0x28] sm:$0xff]
  %v4911 = vld [vmem:[%s4904 + $0x30] sm:$0xff]
  %v4912 = vld [vmem:[%s4904 + $0x38] sm:$0xff]
  %v4913 = vld [vmem:[%s4904 + $0x40] sm:$0xff]
  %v4914 = vld [vmem:[%s4904 + $0x48] sm:$0xff]
  %v4915 = vld [vmem:[%s4904 + $0x50] sm:$0xff]
  %v4916 = vld [vmem:[%s4904 + $0x58] sm:$0xff]
  %v4917 = vld [vmem:[%s4904 + $0x60] sm:$0xff]
  %v4918 = vld [vmem:[%s4904 + $0x68] sm:$0xff]
  %v4919 = vld [vmem:[%s4904 + $0x70] sm:$0xff]
  %v4920 = vld [vmem:[%s4904 + $0x78] sm:$0xff]
  %v4921 = vld [vmem:[%s4904 + $0x80] sm:$0xff]
  %v4922 = vld [vmem:[%s4904 + $0x88] sm:$0xff]
  %v4923 = vld [vmem:[%s4904 + $0x90] sm:$0xff]
  %v4924 = vld [vmem:[%s4904 + $0x98] sm:$0xff]
  %v4925 = vld [vmem:[%s4904 + $0xa0] sm:$0xff]
  %v4926 = vld [vmem:[%s4904 + $0xa8] sm:$0xff]
  %v4927 = vld [vmem:[%s4904 + $0xb0] sm:$0xff]
  %v4928 = vld [vmem:[%s4904 + $0xb8] sm:$0xff]
  %v4929 = vld [vmem:[%s4904 + $0xc0] sm:$0xff]
  %v4930 = vld [vmem:[%s4904 + $0xc8] sm:$0xff]
  %v4931 = vld [vmem:[%s4904 + $0xd0] sm:$0xff]
  %v4932 = vld [vmem:[%s4904 + $0xd8] sm:$0xff]
  %v4933 = vld [vmem:[%s4904 + $0xe0] sm:$0xff]
  %v4934 = vld [vmem:[%s4904 + $0xe8] sm:$0xff]
  %v4935 = vld [vmem:[%s4904 + $0xf0] sm:$0xff]
  %v4936 = vld [vmem:[%s4904 + $0xf8] sm:$0xff]
  %vm4937 = vcmask 130048
  %v4939 = vsel %vm4937, %v4798, 0
  %4941 = vmatprep.subr.bf16.mxu0 0
  %4942 = vmatpush1.bf16.msra.mxu0 0
  %4943 = vmatprep.subr.bf16.mxu0 0
  %4944 = vmatpush1.bf16.msra.mxu0 0
  %4945 = vmatprep.subr.bf16.mxu0 0
  %4946 = vmatpush1.bf16.msra.mxu0 0
  %4947 = vmatprep.subr.bf16.mxu0 0
  %4948 = vmatpush1.bf16.msra.mxu0 0
  %4949 = vmatprep.subr.bf16.mxu0 0
  %4950 = vmatpush1.bf16.msra.mxu0 0
  %4951 = vmatprep.subr.bf16.mxu0 0
  %4952 = vmatpush1.bf16.msra.mxu0 0
  %4953 = vmatprep.subr.bf16.mxu0 0
  %4954 = vmatpush1.bf16.msra.mxu0 0
  %4955 = vmatprep.subr.bf16.mxu0 %v4797
  %4956 = vmatpush1.bf16.msra.mxu0 %v4796
  %4957 = vmatprep.subr.bf16.mxu0 0
  %4958 = vmatpush2.bf16.msra.mxu0 0
  %4959 = vmatprep.subr.bf16.mxu0 0
  %4960 = vmatpush2.bf16.msra.mxu0 0
  %4961 = vmatprep.subr.bf16.mxu0 0
  %4962 = vmatpush2.bf16.msra.mxu0 0
  %4963 = vmatprep.subr.bf16.mxu0 0
  %4964 = vmatpush2.bf16.msra.mxu0 0
  %4965 = vmatprep.subr.bf16.mxu0 0
  %4966 = vmatpush2.bf16.msra.mxu0 0
  %4967 = vmatprep.subr.bf16.mxu0 0
  %4968 = vmatpush2.bf16.msra.mxu0 0
  %4969 = vmatprep.subr.bf16.mxu0 0
  %4970 = vmatpush2.bf16.msra.mxu0 0
  %4971 = vmatprep.subr.bf16.mxu0 0
  %4972 = vmatpush2.bf16.msra.mxu0 0
  %4973 = vmatprep.mubr.bf16.mxu0 0
  %4974 = vmatmul.mubr.bf16.gmra.mxu0 %v4939
  %v4975 = vpop.f32.mrf.mxu0
  %v4976 = vadd.f32 0.0, %v4975
  %v4977 = vpop.f32.mrf.mxu0
  %v4978 = vadd.f32 0.0, %v4977
  %v4979 = vpop.f32.mrf.mxu0
  %v4980 = vpop.f32.mrf.mxu0
  %4981 = vdwg.mxu0
  %v4982 = vpack.c.bf16 %v4976, %v4976
  %v4983 = vpack.c.bf16 %v4978, %v4978
  %v4985 = vsel %vm4937, %v4800, 0
  %4987 = vmatprep.subr.bf16.mxu0 0
  %4988 = vmatpush1.bf16.msra.mxu0 0
  %4989 = vmatprep.subr.bf16.mxu0 0
  %4990 = vmatpush1.bf16.msra.mxu0 0
  %4991 = vmatprep.subr.bf16.mxu0 0
  %4992 = vmatpush1.bf16.msra.mxu0 0
  %4993 = vmatprep.subr.bf16.mxu0 0
  %4994 = vmatpush1.bf16.msra.mxu0 0
  %4995 = vmatprep.subr.bf16.mxu0 0
  %4996 = vmatpush1.bf16.msra.mxu0 0
  %4997 = vmatprep.subr.bf16.mxu0 0
  %4998 = vmatpush1.bf16.msra.mxu0 0
  %4999 = vmatprep.subr.bf16.mxu0 0
  %5000 = vmatpush1.bf16.msra.mxu0 0
  %5001 = vmatprep.subr.bf16.mxu0 %v4797
  %5002 = vmatpush1.bf16.msra.mxu0 %v4796
  %5003 = vmatprep.subr.bf16.mxu0 0
  %5004 = vmatpush2.bf16.msra.mxu0 0
  %5005 = vmatprep.subr.bf16.mxu0 0
  %5006 = vmatpush2.bf16.msra.mxu0 0
  %5007 = vmatprep.subr.bf16.mxu0 0
  %5008 = vmatpush2.bf16.msra.mxu0 0
  %5009 = vmatprep.subr.bf16.mxu0 0
  %5010 = vmatpush2.bf16.msra.mxu0 0
  %5011 = vmatprep.subr.bf16.mxu0 0
  %5012 = vmatpush2.bf16.msra.mxu0 0
  %5013 = vmatprep.subr.bf16.mxu0 0
  %5014 = vmatpush2.bf16.msra.mxu0 0
  %5015 = vmatprep.subr.bf16.mxu0 0
  %5016 = vmatpush2.bf16.msra.mxu0 0
  %5017 = vmatprep.subr.bf16.mxu0 0
  %5018 = vmatpush2.bf16.msra.mxu0 0
  %5019 = vmatprep.mubr.bf16.mxu0 0
  %5020 = vmatmul.mubr.bf16.gmra.mxu0 %v4985
  %v5021 = vpop.f32.mrf.mxu0
  %v5022 = vadd.f32 0.0, %v5021
  %v5023 = vpop.f32.mrf.mxu0
  %v5024 = vadd.f32 0.0, %v5023
  %v5025 = vpop.f32.mrf.mxu0
  %v5026 = vpop.f32.mrf.mxu0
  %5027 = vdwg.mxu0
  %v5028 = vpack.c.bf16 %v5022, %v5022
  %v5029 = vpack.c.bf16 %v5024, %v5024
  %v5062 = vunpack.c.l.b16 %v4839
  %v5063 = vunpack.c.h.b16 %v4839
  %v5064 = vunpack.c.l.b16 %v4840
  %v5065 = vunpack.c.h.b16 %v4840
  %v5066 = vunpack.c.l.b16 %v4841
  %v5067 = vunpack.c.h.b16 %v4841
  %v5068 = vunpack.c.l.b16 %v4842
  %v5069 = vunpack.c.h.b16 %v4842
  %v5070 = vunpack.c.l.b16 %v4843
  %v5071 = vunpack.c.h.b16 %v4843
  %v5072 = vunpack.c.l.b16 %v4844
  %v5073 = vunpack.c.h.b16 %v4844
  %v5074 = vunpack.c.l.b16 %v4845
  %v5075 = vunpack.c.h.b16 %v4845
  %v5076 = vunpack.c.l.b16 %v4846
  %v5077 = vunpack.c.h.b16 %v4846
  %v5078 = vunpack.c.l.b16 %v4847
  %v5079 = vunpack.c.h.b16 %v4847
  %v5080 = vunpack.c.l.b16 %v4848
  %v5081 = vunpack.c.h.b16 %v4848
  %v5082 = vunpack.c.l.b16 %v4849
  %v5083 = vunpack.c.h.b16 %v4849
  %v5084 = vunpack.c.l.b16 %v4850
  %v5085 = vunpack.c.h.b16 %v4850
  %v5086 = vunpack.c.l.b16 %v4851
  %v5087 = vunpack.c.h.b16 %v4851
  %v5088 = vunpack.c.l.b16 %v4852
  %v5089 = vunpack.c.h.b16 %v4852
  %v5090 = vunpack.c.l.b16 %v4853
  %v5091 = vunpack.c.h.b16 %v4853
  %v5092 = vunpack.c.l.b16 %v4854
  %v5093 = vunpack.c.h.b16 %v4854
  %v5094 = vunpack.c.l.b16 %v4855
  %v5095 = vunpack.c.h.b16 %v4855
  %v5096 = vunpack.c.l.b16 %v4856
  %v5097 = vunpack.c.h.b16 %v4856
  %v5098 = vunpack.c.l.b16 %v4857
  %v5099 = vunpack.c.h.b16 %v4857
  %v5100 = vunpack.c.l.b16 %v4858
  %v5101 = vunpack.c.h.b16 %v4858
  %v5102 = vunpack.c.l.b16 %v4859
  %v5103 = vunpack.c.h.b16 %v4859
  %v5104 = vunpack.c.l.b16 %v4860
  %v5105 = vunpack.c.h.b16 %v4860
  %v5106 = vunpack.c.l.b16 %v4861
  %v5107 = vunpack.c.h.b16 %v4861
  %v5108 = vunpack.c.l.b16 %v4862
  %v5109 = vunpack.c.h.b16 %v4862
  %v5110 = vunpack.c.l.b16 %v4863
  %v5111 = vunpack.c.h.b16 %v4863
  %v5112 = vunpack.c.l.b16 %v4864
  %v5113 = vunpack.c.h.b16 %v4864
  %v5114 = vunpack.c.l.b16 %v4865
  %v5115 = vunpack.c.h.b16 %v4865
  %v5116 = vunpack.c.l.b16 %v4866
  %v5117 = vunpack.c.h.b16 %v4866
  %v5118 = vunpack.c.l.b16 %v4867
  %v5119 = vunpack.c.h.b16 %v4867
  %v5120 = vunpack.c.l.b16 %v4868
  %v5121 = vunpack.c.h.b16 %v4868
  %v5122 = vunpack.c.l.b16 %v4869
  %v5123 = vunpack.c.h.b16 %v4869
  %v5124 = vunpack.c.l.b16 %v4870
  %v5125 = vunpack.c.h.b16 %v4870
  %v5126 = vpack.c.b16 %v5064, %v5062
  %v5127 = vpack.c.b16 %v5065, %v5063
  %v5128 = vpack.c.b16 %v5068, %v5066
  %v5129 = vpack.c.b16 %v5069, %v5067
  %v5130 = vpack.c.b16 %v5072, %v5070
  %v5131 = vpack.c.b16 %v5073, %v5071
  %v5132 = vpack.c.b16 %v5076, %v5074
  %v5133 = vpack.c.b16 %v5077, %v5075
  %v5134 = vpack.c.b16 %v5080, %v5078
  %v5135 = vpack.c.b16 %v5081, %v5079
  %v5136 = vpack.c.b16 %v5084, %v5082
  %v5137 = vpack.c.b16 %v5085, %v5083
  %v5138 = vpack.c.b16 %v5088, %v5086
  %v5139 = vpack.c.b16 %v5089, %v5087
  %v5140 = vpack.c.b16 %v5092, %v5090
  %v5141 = vpack.c.b16 %v5093, %v5091
  %v5142 = vpack.c.b16 %v5096, %v5094
  %v5143 = vpack.c.b16 %v5097, %v5095
  %v5144 = vpack.c.b16 %v5100, %v5098
  %v5145 = vpack.c.b16 %v5101, %v5099
  %v5146 = vpack.c.b16 %v5104, %v5102
  %v5147 = vpack.c.b16 %v5105, %v5103
  %v5148 = vpack.c.b16 %v5108, %v5106
  %v5149 = vpack.c.b16 %v5109, %v5107
  %v5150 = vpack.c.b16 %v5112, %v5110
  %v5151 = vpack.c.b16 %v5113, %v5111
  %v5152 = vpack.c.b16 %v5116, %v5114
  %v5153 = vpack.c.b16 %v5117, %v5115
  %v5154 = vpack.c.b16 %v5120, %v5118
  %v5155 = vpack.c.b16 %v5121, %v5119
  %v5156 = vpack.c.b16 %v5124, %v5122
  %v5157 = vpack.c.b16 %v5125, %v5123
  %5190 = vmatprep.subr.bf16.mxu0 %v5141
  %5191 = vmatpush1.bf16.msra.mxu0 %v5140
  %5192 = vmatprep.subr.bf16.mxu0 %v5139
  %5193 = vmatpush1.bf16.msra.mxu0 %v5138
  %5194 = vmatprep.subr.bf16.mxu0 %v5137
  %5195 = vmatpush1.bf16.msra.mxu0 %v5136
  %5196 = vmatprep.subr.bf16.mxu0 %v5135
  %5197 = vmatpush1.bf16.msra.mxu0 %v5134
  %5198 = vmatprep.subr.bf16.mxu0 %v5133
  %5199 = vmatpush1.bf16.msra.mxu0 %v5132
  %5200 = vmatprep.subr.bf16.mxu0 %v5131
  %5201 = vmatpush1.bf16.msra.mxu0 %v5130
  %5202 = vmatprep.subr.bf16.mxu0 %v5129
  %5203 = vmatpush1.bf16.msra.mxu0 %v5128
  %5204 = vmatprep.subr.bf16.mxu0 %v5127
  %5205 = vmatpush1.bf16.msra.mxu0 %v5126
  %5206 = vmatprep.subr.bf16.mxu0 %v5157
  %5207 = vmatpush2.bf16.msra.mxu0 %v5156
  %5208 = vmatprep.subr.bf16.mxu0 %v5155
  %5209 = vmatpush2.bf16.msra.mxu0 %v5154
  %5210 = vmatprep.subr.bf16.mxu0 %v5153
  %5211 = vmatpush2.bf16.msra.mxu0 %v5152
  %5212 = vmatprep.subr.bf16.mxu0 %v5151
  %5213 = vmatpush2.bf16.msra.mxu0 %v5150
  %5214 = vmatprep.subr.bf16.mxu0 %v5149
  %5215 = vmatpush2.bf16.msra.mxu0 %v5148
  %5216 = vmatprep.subr.bf16.mxu0 %v5147
  %5217 = vmatpush2.bf16.msra.mxu0 %v5146
  %5218 = vmatprep.subr.bf16.mxu0 %v5145
  %5219 = vmatpush2.bf16.msra.mxu0 %v5144
  %5220 = vmatprep.subr.bf16.mxu0 %v5143
  %5221 = vmatpush2.bf16.msra.mxu0 %v5142
  %5222 = vmatprep.mubr.bf16.mxu0 %v5029
  %5223 = vmatmul.mubr.bf16.gmra.mxu0 %v5028
  %v5224 = vpop.f32.mrf.mxu0
  %v5225 = vadd.f32 0.0, %v5224
  %v5226 = vpop.f32.mrf.mxu0
  %v5227 = vadd.f32 0.0, %v5226
  %v5228 = vpop.f32.mrf.mxu0
  %v5229 = vpop.f32.mrf.mxu0
  %5230 = vdwg.mxu0
  %v5263 = vunpack.c.l.b16 %v4806
  %v5264 = vunpack.c.h.b16 %v4806
  %v5265 = vunpack.c.l.b16 %v4807
  %v5266 = vunpack.c.h.b16 %v4807
  %v5267 = vunpack.c.l.b16 %v4808
  %v5268 = vunpack.c.h.b16 %v4808
  %v5269 = vunpack.c.l.b16 %v4809
  %v5270 = vunpack.c.h.b16 %v4809
  %v5271 = vunpack.c.l.b16 %v4810
  %v5272 = vunpack.c.h.b16 %v4810
  %v5273 = vunpack.c.l.b16 %v4811
  %v5274 = vunpack.c.h.b16 %v4811
  %v5275 = vunpack.c.l.b16 %v4812
  %v5276 = vunpack.c.h.b16 %v4812
  %v5277 = vunpack.c.l.b16 %v4813
  %v5278 = vunpack.c.h.b16 %v4813
  %v5279 = vunpack.c.l.b16 %v4814
  %v5280 = vunpack.c.h.b16 %v4814
  %v5281 = vunpack.c.l.b16 %v4815
  %v5282 = vunpack.c.h.b16 %v4815
  %v5283 = vunpack.c.l.b16 %v4816
  %v5284 = vunpack.c.h.b16 %v4816
  %v5285 = vunpack.c.l.b16 %v4817
  %v5286 = vunpack.c.h.b16 %v4817
  %v5287 = vunpack.c.l.b16 %v4818
  %v5288 = vunpack.c.h.b16 %v4818
  %v5289 = vunpack.c.l.b16 %v4819
  %v5290 = vunpack.c.h.b16 %v4819
  %v5291 = vunpack.c.l.b16 %v4820
  %v5292 = vunpack.c.h.b16 %v4820
  %v5293 = vunpack.c.l.b16 %v4821
  %v5294 = vunpack.c.h.b16 %v4821
  %v5295 = vunpack.c.l.b16 %v4822
  %v5296 = vunpack.c.h.b16 %v4822
  %v5297 = vunpack.c.l.b16 %v4823
  %v5298 = vunpack.c.h.b16 %v4823
  %v5299 = vunpack.c.l.b16 %v4824
  %v5300 = vunpack.c.h.b16 %v4824
  %v5301 = vunpack.c.l.b16 %v4825
  %v5302 = vunpack.c.h.b16 %v4825
  %v5303 = vunpack.c.l.b16 %v4826
  %v5304 = vunpack.c.h.b16 %v4826
  %v5305 = vunpack.c.l.b16 %v4827
  %v5306 = vunpack.c.h.b16 %v4827
  %v5307 = vunpack.c.l.b16 %v4828
  %v5308 = vunpack.c.h.b16 %v4828
  %v5309 = vunpack.c.l.b16 %v4829
  %v5310 = vunpack.c.h.b16 %v4829
  %v5311 = vunpack.c.l.b16 %v4830
  %v5312 = vunpack.c.h.b16 %v4830
  %v5313 = vunpack.c.l.b16 %v4831
  %v5314 = vunpack.c.h.b16 %v4831
  %v5315 = vunpack.c.l.b16 %v4832
  %v5316 = vunpack.c.h.b16 %v4832
  %v5317 = vunpack.c.l.b16 %v4833
  %v5318 = vunpack.c.h.b16 %v4833
  %v5319 = vunpack.c.l.b16 %v4834
  %v5320 = vunpack.c.h.b16 %v4834
  %v5321 = vunpack.c.l.b16 %v4835
  %v5322 = vunpack.c.h.b16 %v4835
  %v5323 = vunpack.c.l.b16 %v4836
  %v5324 = vunpack.c.h.b16 %v4836
  %v5325 = vunpack.c.l.b16 %v4837
  %v5326 = vunpack.c.h.b16 %v4837
  %v5327 = vpack.c.b16 %v5265, %v5263
  %v5328 = vpack.c.b16 %v5266, %v5264
  %v5329 = vpack.c.b16 %v5269, %v5267
  %v5330 = vpack.c.b16 %v5270, %v5268
  %v5331 = vpack.c.b16 %v5273, %v5271
  %v5332 = vpack.c.b16 %v5274, %v5272
  %v5333 = vpack.c.b16 %v5277, %v5275
  %v5334 = vpack.c.b16 %v5278, %v5276
  %v5335 = vpack.c.b16 %v5281, %v5279
  %v5336 = vpack.c.b16 %v5282, %v5280
  %v5337 = vpack.c.b16 %v5285, %v5283
  %v5338 = vpack.c.b16 %v5286, %v5284
  %v5339 = vpack.c.b16 %v5289, %v5287
  %v5340 = vpack.c.b16 %v5290, %v5288
  %v5341 = vpack.c.b16 %v5293, %v5291
  %v5342 = vpack.c.b16 %v5294, %v5292
  %v5343 = vpack.c.b16 %v5297, %v5295
  %v5344 = vpack.c.b16 %v5298, %v5296
  %v5345 = vpack.c.b16 %v5301, %v5299
  %v5346 = vpack.c.b16 %v5302, %v5300
  %v5347 = vpack.c.b16 %v5305, %v5303
  %v5348 = vpack.c.b16 %v5306, %v5304
  %v5349 = vpack.c.b16 %v5309, %v5307
  %v5350 = vpack.c.b16 %v5310, %v5308
  %v5351 = vpack.c.b16 %v5313, %v5311
  %v5352 = vpack.c.b16 %v5314, %v5312
  %v5353 = vpack.c.b16 %v5317, %v5315
  %v5354 = vpack.c.b16 %v5318, %v5316
  %v5355 = vpack.c.b16 %v5321, %v5319
  %v5356 = vpack.c.b16 %v5322, %v5320
  %v5357 = vpack.c.b16 %v5325, %v5323
  %v5358 = vpack.c.b16 %v5326, %v5324
  %5391 = vmatprep.subr.bf16.mxu0 %v5342
  %5392 = vmatpush1.bf16.msra.mxu0 %v5341
  %5393 = vmatprep.subr.bf16.mxu0 %v5340
  %5394 = vmatpush1.bf16.msra.mxu0 %v5339
  %5395 = vmatprep.subr.bf16.mxu0 %v5338
  %5396 = vmatpush1.bf16.msra.mxu0 %v5337
  %5397 = vmatprep.subr.bf16.mxu0 %v5336
  %5398 = vmatpush1.bf16.msra.mxu0 %v5335
  %5399 = vmatprep.subr.bf16.mxu0 %v5334
  %5400 = vmatpush1.bf16.msra.mxu0 %v5333
  %5401 = vmatprep.subr.bf16.mxu0 %v5332
  %5402 = vmatpush1.bf16.msra.mxu0 %v5331
  %5403 = vmatprep.subr.bf16.mxu0 %v5330
  %5404 = vmatpush1.bf16.msra.mxu0 %v5329
  %5405 = vmatprep.subr.bf16.mxu0 %v5328
  %5406 = vmatpush1.bf16.msra.mxu0 %v5327
  %5407 = vmatprep.subr.bf16.mxu0 %v5358
  %5408 = vmatpush2.bf16.msra.mxu0 %v5357
  %5409 = vmatprep.subr.bf16.mxu0 %v5356
  %5410 = vmatpush2.bf16.msra.mxu0 %v5355
  %5411 = vmatprep.subr.bf16.mxu0 %v5354
  %5412 = vmatpush2.bf16.msra.mxu0 %v5353
  %5413 = vmatprep.subr.bf16.mxu0 %v5352
  %5414 = vmatpush2.bf16.msra.mxu0 %v5351
  %5415 = vmatprep.subr.bf16.mxu0 %v5350
  %5416 = vmatpush2.bf16.msra.mxu0 %v5349
  %5417 = vmatprep.subr.bf16.mxu0 %v5348
  %5418 = vmatpush2.bf16.msra.mxu0 %v5347
  %5419 = vmatprep.subr.bf16.mxu0 %v5346
  %5420 = vmatpush2.bf16.msra.mxu0 %v5345
  %5421 = vmatprep.subr.bf16.mxu0 %v5344
  %5422 = vmatpush2.bf16.msra.mxu0 %v5343
  %5423 = vmatprep.mubr.bf16.mxu0 %v4983
  %5424 = vmatmul.mubr.bf16.gmra.mxu0 %v4982
  %v5425 = vpop.f32.mrf.mxu0
  %v5426 = vadd.f32 %v5225, %v5425
  %v5427 = vpop.f32.mrf.mxu0
  %v5428 = vadd.f32 %v5227, %v5427
  %v5429 = vpop.f32.mrf.mxu0
  %v5430 = vpop.f32.mrf.mxu0
  %5431 = vdwg.mxu0
  %v5433 = vsel %vm4937, %v4802, 0
  %5435 = vmatprep.subr.bf16.mxu0 0
  %5436 = vmatpush1.bf16.msra.mxu0 0
  %5437 = vmatprep.subr.bf16.mxu0 0
  %5438 = vmatpush1.bf16.msra.mxu0 0
  %5439 = vmatprep.subr.bf16.mxu0 0
  %5440 = vmatpush1.bf16.msra.mxu0 0
  %5441 = vmatprep.subr.bf16.mxu0 0
  %5442 = vmatpush1.bf16.msra.mxu0 0
  %5443 = vmatprep.subr.bf16.mxu0 0
  %5444 = vmatpush1.bf16.msra.mxu0 0
  %5445 = vmatprep.subr.bf16.mxu0 0
  %5446 = vmatpush1.bf16.msra.mxu0 0
  %5447 = vmatprep.subr.bf16.mxu0 0
  %5448 = vmatpush1.bf16.msra.mxu0 0
  %5449 = vmatprep.subr.bf16.mxu0 %v4797
  %5450 = vmatpush1.bf16.msra.mxu0 %v4796
  %5451 = vmatprep.subr.bf16.mxu0 0
  %5452 = vmatpush2.bf16.msra.mxu0 0
  %5453 = vmatprep.subr.bf16.mxu0 0
  %5454 = vmatpush2.bf16.msra.mxu0 0
  %5455 = vmatprep.subr.bf16.mxu0 0
  %5456 = vmatpush2.bf16.msra.mxu0 0
  %5457 = vmatprep.subr.bf16.mxu0 0
  %5458 = vmatpush2.bf16.msra.mxu0 0
  %5459 = vmatprep.subr.bf16.mxu0 0
  %5460 = vmatpush2.bf16.msra.mxu0 0
  %5461 = vmatprep.subr.bf16.mxu0 0
  %5462 = vmatpush2.bf16.msra.mxu0 0
  %5463 = vmatprep.subr.bf16.mxu0 0
  %5464 = vmatpush2.bf16.msra.mxu0 0
  %5465 = vmatprep.subr.bf16.mxu0 0
  %5466 = vmatpush2.bf16.msra.mxu0 0
  %5467 = vmatprep.mubr.bf16.mxu0 0
  %5468 = vmatmul.mubr.bf16.gmra.mxu0 %v5433
  %v5469 = vpop.f32.mrf.mxu0
  %v5470 = vadd.f32 0.0, %v5469
  %v5471 = vpop.f32.mrf.mxu0
  %v5472 = vadd.f32 0.0, %v5471
  %v5473 = vpop.f32.mrf.mxu0
  %v5474 = vpop.f32.mrf.mxu0
  %5475 = vdwg.mxu0
  %v5476 = vpack.c.bf16 %v5470, %v5470
  %v5477 = vpack.c.bf16 %v5472, %v5472
  %v5510 = vunpack.c.l.b16 %v4872
  %v5511 = vunpack.c.h.b16 %v4872
  %v5512 = vunpack.c.l.b16 %v4873
  %v5513 = vunpack.c.h.b16 %v4873
  %v5514 = vunpack.c.l.b16 %v4874
  %v5515 = vunpack.c.h.b16 %v4874
  %v5516 = vunpack.c.l.b16 %v4875
  %v5517 = vunpack.c.h.b16 %v4875
  %v5518 = vunpack.c.l.b16 %v4876
  %v5519 = vunpack.c.h.b16 %v4876
  %v5520 = vunpack.c.l.b16 %v4877
  %v5521 = vunpack.c.h.b16 %v4877
  %v5522 = vunpack.c.l.b16 %v4878
  %v5523 = vunpack.c.h.b16 %v4878
  %v5524 = vunpack.c.l.b16 %v4879
  %v5525 = vunpack.c.h.b16 %v4879
  %v5526 = vunpack.c.l.b16 %v4880
  %v5527 = vunpack.c.h.b16 %v4880
  %v5528 = vunpack.c.l.b16 %v4881
  %v5529 = vunpack.c.h.b16 %v4881
  %v5530 = vunpack.c.l.b16 %v4882
  %v5531 = vunpack.c.h.b16 %v4882
  %v5532 = vunpack.c.l.b16 %v4883
  %v5533 = vunpack.c.h.b16 %v4883
  %v5534 = vunpack.c.l.b16 %v4884
  %v5535 = vunpack.c.h.b16 %v4884
  %v5536 = vunpack.c.l.b16 %v4885
  %v5537 = vunpack.c.h.b16 %v4885
  %v5538 = vunpack.c.l.b16 %v4886
  %v5539 = vunpack.c.h.b16 %v4886
  %v5540 = vunpack.c.l.b16 %v4887
  %v5541 = vunpack.c.h.b16 %v4887
  %v5542 = vunpack.c.l.b16 %v4888
  %v5543 = vunpack.c.h.b16 %v4888
  %v5544 = vunpack.c.l.b16 %v4889
  %v5545 = vunpack.c.h.b16 %v4889
  %v5546 = vunpack.c.l.b16 %v4890
  %v5547 = vunpack.c.h.b16 %v4890
  %v5548 = vunpack.c.l.b16 %v4891
  %v5549 = vunpack.c.h.b16 %v4891
  %v5550 = vunpack.c.l.b16 %v4892
  %v5551 = vunpack.c.h.b16 %v4892
  %v5552 = vunpack.c.l.b16 %v4893
  %v5553 = vunpack.c.h.b16 %v4893
  %v5554 = vunpack.c.l.b16 %v4894
  %v5555 = vunpack.c.h.b16 %v4894
  %v5556 = vunpack.c.l.b16 %v4895
  %v5557 = vunpack.c.h.b16 %v4895
  %v5558 = vunpack.c.l.b16 %v4896
  %v5559 = vunpack.c.h.b16 %v4896
  %v5560 = vunpack.c.l.b16 %v4897
  %v5561 = vunpack.c.h.b16 %v4897
  %v5562 = vunpack.c.l.b16 %v4898
  %v5563 = vunpack.c.h.b16 %v4898
  %v5564 = vunpack.c.l.b16 %v4899
  %v5565 = vunpack.c.h.b16 %v4899
  %v5566 = vunpack.c.l.b16 %v4900
  %v5567 = vunpack.c.h.b16 %v4900
  %v5568 = vunpack.c.l.b16 %v4901
  %v5569 = vunpack.c.h.b16 %v4901
  %v5570 = vunpack.c.l.b16 %v4902
  %v5571 = vunpack.c.h.b16 %v4902
  %v5572 = vunpack.c.l.b16 %v4903
  %v5573 = vunpack.c.h.b16 %v4903
  %v5574 = vpack.c.b16 %v5512, %v5510
  %v5575 = vpack.c.b16 %v5513, %v5511
  %v5576 = vpack.c.b16 %v5516, %v5514
  %v5577 = vpack.c.b16 %v5517, %v5515
  %v5578 = vpack.c.b16 %v5520, %v5518
  %v5579 = vpack.c.b16 %v5521, %v5519
  %v5580 = vpack.c.b16 %v5524, %v5522
  %v5581 = vpack.c.b16 %v5525, %v5523
  %v5582 = vpack.c.b16 %v5528, %v5526
  %v5583 = vpack.c.b16 %v5529, %v5527
  %v5584 = vpack.c.b16 %v5532, %v5530
  %v5585 = vpack.c.b16 %v5533, %v5531
  %v5586 = vpack.c.b16 %v5536, %v5534
  %v5587 = vpack.c.b16 %v5537, %v5535
  %v5588 = vpack.c.b16 %v5540, %v5538
  %v5589 = vpack.c.b16 %v5541, %v5539
  %v5590 = vpack.c.b16 %v5544, %v5542
  %v5591 = vpack.c.b16 %v5545, %v5543
  %v5592 = vpack.c.b16 %v5548, %v5546
  %v5593 = vpack.c.b16 %v5549, %v5547
  %v5594 = vpack.c.b16 %v5552, %v5550
  %v5595 = vpack.c.b16 %v5553, %v5551
  %v5596 = vpack.c.b16 %v5556, %v5554
  %v5597 = vpack.c.b16 %v5557, %v5555
  %v5598 = vpack.c.b16 %v5560, %v5558
  %v5599 = vpack.c.b16 %v5561, %v5559
  %v5600 = vpack.c.b16 %v5564, %v5562
  %v5601 = vpack.c.b16 %v5565, %v5563
  %v5602 = vpack.c.b16 %v5568, %v5566
  %v5603 = vpack.c.b16 %v5569, %v5567
  %v5604 = vpack.c.b16 %v5572, %v5570
  %v5605 = vpack.c.b16 %v5573, %v5571
  %5638 = vmatprep.subr.bf16.mxu0 %v5589
  %5639 = vmatpush1.bf16.msra.mxu0 %v5588
  %5640 = vmatprep.subr.bf16.mxu0 %v5587
  %5641 = vmatpush1.bf16.msra.mxu0 %v5586
  %5642 = vmatprep.subr.bf16.mxu0 %v5585
  %5643 = vmatpush1.bf16.msra.mxu0 %v5584
  %5644 = vmatprep.subr.bf16.mxu0 %v5583
  %5645 = vmatpush1.bf16.msra.mxu0 %v5582
  %5646 = vmatprep.subr.bf16.mxu0 %v5581
  %5647 = vmatpush1.bf16.msra.mxu0 %v5580
  %5648 = vmatprep.subr.bf16.mxu0 %v5579
  %5649 = vmatpush1.bf16.msra.mxu0 %v5578
  %5650 = vmatprep.subr.bf16.mxu0 %v5577
  %5651 = vmatpush1.bf16.msra.mxu0 %v5576
  %5652 = vmatprep.subr.bf16.mxu0 %v5575
  %5653 = vmatpush1.bf16.msra.mxu0 %v5574
  %5654 = vmatprep.subr.bf16.mxu0 %v5605
  %5655 = vmatpush2.bf16.msra.mxu0 %v5604
  %5656 = vmatprep.subr.bf16.mxu0 %v5603
  %5657 = vmatpush2.bf16.msra.mxu0 %v5602
  %5658 = vmatprep.subr.bf16.mxu0 %v5601
  %5659 = vmatpush2.bf16.msra.mxu0 %v5600
  %5660 = vmatprep.subr.bf16.mxu0 %v5599
  %5661 = vmatpush2.bf16.msra.mxu0 %v5598
  %5662 = vmatprep.subr.bf16.mxu0 %v5597
  %5663 = vmatpush2.bf16.msra.mxu0 %v5596
  %5664 = vmatprep.subr.bf16.mxu0 %v5595
  %5665 = vmatpush2.bf16.msra.mxu0 %v5594
  %5666 = vmatprep.subr.bf16.mxu0 %v5593
  %5667 = vmatpush2.bf16.msra.mxu0 %v5592
  %5668 = vmatprep.subr.bf16.mxu0 %v5591
  %5669 = vmatpush2.bf16.msra.mxu0 %v5590
  %5670 = vmatprep.mubr.bf16.mxu0 %v5477
  %5671 = vmatmul.mubr.bf16.gmra.mxu0 %v5476
  %v5672 = vpop.f32.mrf.mxu0
  %v5673 = vadd.f32 0.0, %v5672
  %v5674 = vpop.f32.mrf.mxu0
  %v5675 = vadd.f32 0.0, %v5674
  %v5676 = vpop.f32.mrf.mxu0
  %v5677 = vpop.f32.mrf.mxu0
  %5678 = vdwg.mxu0
  %v5679 = vadd.f32 %v5426, %v5673
  %v5680 = vadd.f32 %v5428, %v5675
  %v5682 = vsel %vm4937, %v4804, 0
  %5684 = vmatprep.subr.bf16.mxu0 0
  %5685 = vmatpush1.bf16.msra.mxu0 0
  %5686 = vmatprep.subr.bf16.mxu0 0
  %5687 = vmatpush1.bf16.msra.mxu0 0
  %5688 = vmatprep.subr.bf16.mxu0 0
  %5689 = vmatpush1.bf16.msra.mxu0 0
  %5690 = vmatprep.subr.bf16.mxu0 0
  %5691 = vmatpush1.bf16.msra.mxu0 0
  %5692 = vmatprep.subr.bf16.mxu0 0
  %5693 = vmatpush1.bf16.msra.mxu0 0
  %5694 = vmatprep.subr.bf16.mxu0 0
  %5695 = vmatpush1.bf16.msra.mxu0 0
  %5696 = vmatprep.subr.bf16.mxu0 0
  %5697 = vmatpush1.bf16.msra.mxu0 0
  %5698 = vmatprep.subr.bf16.mxu0 %v4797
  %5699 = vmatpush1.bf16.msra.mxu0 %v4796
  %5700 = vmatprep.subr.bf16.mxu0 0
  %5701 = vmatpush2.bf16.msra.mxu0 0
  %5702 = vmatprep.subr.bf16.mxu0 0
  %5703 = vmatpush2.bf16.msra.mxu0 0
  %5704 = vmatprep.subr.bf16.mxu0 0
  %5705 = vmatpush2.bf16.msra.mxu0 0
  %5706 = vmatprep.subr.bf16.mxu0 0
  %5707 = vmatpush2.bf16.msra.mxu0 0
  %5708 = vmatprep.subr.bf16.mxu0 0
  %5709 = vmatpush2.bf16.msra.mxu0 0
  %5710 = vmatprep.subr.bf16.mxu0 0
  %5711 = vmatpush2.bf16.msra.mxu0 0
  %5712 = vmatprep.subr.bf16.mxu0 0
  %5713 = vmatpush2.bf16.msra.mxu0 0
  %5714 = vmatprep.subr.bf16.mxu0 0
  %5715 = vmatpush2.bf16.msra.mxu0 0
  %5716 = vmatprep.mubr.bf16.mxu0 0
  %5717 = vmatmul.mubr.bf16.gmra.mxu0 %v5682
  %v5718 = vpop.f32.mrf.mxu0
  %v5719 = vadd.f32 0.0, %v5718
  %v5720 = vpop.f32.mrf.mxu0
  %v5721 = vadd.f32 0.0, %v5720
  %v5722 = vpop.f32.mrf.mxu0
  %v5723 = vpop.f32.mrf.mxu0
  %5724 = vdwg.mxu0
  %v5725 = vpack.c.bf16 %v5719, %v5719
  %v5726 = vpack.c.bf16 %v5721, %v5721
  %v5759 = vunpack.c.l.b16 %v4905
  %v5760 = vunpack.c.h.b16 %v4905
  %v5761 = vunpack.c.l.b16 %v4906
  %v5762 = vunpack.c.h.b16 %v4906
  %v5763 = vunpack.c.l.b16 %v4907
  %v5764 = vunpack.c.h.b16 %v4907
  %v5765 = vunpack.c.l.b16 %v4908
  %v5766 = vunpack.c.h.b16 %v4908
  %v5767 = vunpack.c.l.b16 %v4909
  %v5768 = vunpack.c.h.b16 %v4909
  %v5769 = vunpack.c.l.b16 %v4910
  %v5770 = vunpack.c.h.b16 %v4910
  %v5771 = vunpack.c.l.b16 %v4911
  %v5772 = vunpack.c.h.b16 %v4911
  %v5773 = vunpack.c.l.b16 %v4912
  %v5774 = vunpack.c.h.b16 %v4912
  %v5775 = vunpack.c.l.b16 %v4913
  %v5776 = vunpack.c.h.b16 %v4913
  %v5777 = vunpack.c.l.b16 %v4914
  %v5778 = vunpack.c.h.b16 %v4914
  %v5779 = vunpack.c.l.b16 %v4915
  %v5780 = vunpack.c.h.b16 %v4915
  %v5781 = vunpack.c.l.b16 %v4916
  %v5782 = vunpack.c.h.b16 %v4916
  %v5783 = vunpack.c.l.b16 %v4917
  %v5784 = vunpack.c.h.b16 %v4917
  %v5785 = vunpack.c.l.b16 %v4918
  %v5786 = vunpack.c.h.b16 %v4918
  %v5787 = vunpack.c.l.b16 %v4919
  %v5788 = vunpack.c.h.b16 %v4919
  %v5789 = vunpack.c.l.b16 %v4920
  %v5790 = vunpack.c.h.b16 %v4920
  %v5791 = vunpack.c.l.b16 %v4921
  %v5792 = vunpack.c.h.b16 %v4921
  %v5793 = vunpack.c.l.b16 %v4922
  %v5794 = vunpack.c.h.b16 %v4922
  %v5795 = vunpack.c.l.b16 %v4923
  %v5796 = vunpack.c.h.b16 %v4923
  %v5797 = vunpack.c.l.b16 %v4924
  %v5798 = vunpack.c.h.b16 %v4924
  %v5799 = vunpack.c.l.b16 %v4925
  %v5800 = vunpack.c.h.b16 %v4925
  %v5801 = vunpack.c.l.b16 %v4926
  %v5802 = vunpack.c.h.b16 %v4926
  %v5803 = vunpack.c.l.b16 %v4927
  %v5804 = vunpack.c.h.b16 %v4927
  %v5805 = vunpack.c.l.b16 %v4928
  %v5806 = vunpack.c.h.b16 %v4928
  %v5807 = vunpack.c.l.b16 %v4929
  %v5808 = vunpack.c.h.b16 %v4929
  %v5809 = vunpack.c.l.b16 %v4930
  %v5810 = vunpack.c.h.b16 %v4930
  %v5811 = vunpack.c.l.b16 %v4931
  %v5812 = vunpack.c.h.b16 %v4931
  %v5813 = vunpack.c.l.b16 %v4932
  %v5814 = vunpack.c.h.b16 %v4932
  %v5815 = vunpack.c.l.b16 %v4933
  %v5816 = vunpack.c.h.b16 %v4933
  %v5817 = vunpack.c.l.b16 %v4934
  %v5818 = vunpack.c.h.b16 %v4934
  %v5819 = vunpack.c.l.b16 %v4935
  %v5820 = vunpack.c.h.b16 %v4935
  %v5821 = vunpack.c.l.b16 %v4936
  %v5822 = vunpack.c.h.b16 %v4936
  %v5823 = vpack.c.b16 %v5761, %v5759
  %v5824 = vpack.c.b16 %v5762, %v5760
  %v5825 = vpack.c.b16 %v5765, %v5763
  %v5826 = vpack.c.b16 %v5766, %v5764
  %v5827 = vpack.c.b16 %v5769, %v5767
  %v5828 = vpack.c.b16 %v5770, %v5768
  %v5829 = vpack.c.b16 %v5773, %v5771
  %v5830 = vpack.c.b16 %v5774, %v5772
  %v5831 = vpack.c.b16 %v5777, %v5775
  %v5832 = vpack.c.b16 %v5778, %v5776
  %v5833 = vpack.c.b16 %v5781, %v5779
  %v5834 = vpack.c.b16 %v5782, %v5780
  %v5835 = vpack.c.b16 %v5785, %v5783
  %v5836 = vpack.c.b16 %v5786, %v5784
  %v5837 = vpack.c.b16 %v5789, %v5787
  %v5838 = vpack.c.b16 %v5790, %v5788
  %v5839 = vpack.c.b16 %v5793, %v5791
  %v5840 = vpack.c.b16 %v5794, %v5792
  %v5841 = vpack.c.b16 %v5797, %v5795
  %v5842 = vpack.c.b16 %v5798, %v5796
  %v5843 = vpack.c.b16 %v5801, %v5799
  %v5844 = vpack.c.b16 %v5802, %v5800
  %v5845 = vpack.c.b16 %v5805, %v5803
  %v5846 = vpack.c.b16 %v5806, %v5804
  %v5847 = vpack.c.b16 %v5809, %v5807
  %v5848 = vpack.c.b16 %v5810, %v5808
  %v5849 = vpack.c.b16 %v5813, %v5811
  %v5850 = vpack.c.b16 %v5814, %v5812
  %v5851 = vpack.c.b16 %v5817, %v5815
  %v5852 = vpack.c.b16 %v5818, %v5816
  %v5853 = vpack.c.b16 %v5821, %v5819
  %v5854 = vpack.c.b16 %v5822, %v5820
  %5887 = vmatprep.subr.bf16.mxu0 %v5838
  %5888 = vmatpush1.bf16.msra.mxu0 %v5837
  %5889 = vmatprep.subr.bf16.mxu0 %v5836
  %5890 = vmatpush1.bf16.msra.mxu0 %v5835
  %5891 = vmatprep.subr.bf16.mxu0 %v5834
  %5892 = vmatpush1.bf16.msra.mxu0 %v5833
  %5893 = vmatprep.subr.bf16.mxu0 %v5832
  %5894 = vmatpush1.bf16.msra.mxu0 %v5831
  %5895 = vmatprep.subr.bf16.mxu0 %v5830
  %5896 = vmatpush1.bf16.msra.mxu0 %v5829
  %5897 = vmatprep.subr.bf16.mxu0 %v5828
  %5898 = vmatpush1.bf16.msra.mxu0 %v5827
  %5899 = vmatprep.subr.bf16.mxu0 %v5826
  %5900 = vmatpush1.bf16.msra.mxu0 %v5825
  %5901 = vmatprep.subr.bf16.mxu0 %v5824
  %5902 = vmatpush1.bf16.msra.mxu0 %v5823
  %5903 = vmatprep.subr.bf16.mxu0 %v5854
  %5904 = vmatpush2.bf16.msra.mxu0 %v5853
  %5905 = vmatprep.subr.bf16.mxu0 %v5852
  %5906 = vmatpush2.bf16.msra.mxu0 %v5851
  %5907 = vmatprep.subr.bf16.mxu0 %v5850
  %5908 = vmatpush2.bf16.msra.mxu0 %v5849
  %5909 = vmatprep.subr.bf16.mxu0 %v5848
  %5910 = vmatpush2.bf16.msra.mxu0 %v5847
  %5911 = vmatprep.subr.bf16.mxu0 %v5846
  %5912 = vmatpush2.bf16.msra.mxu0 %v5845
  %5913 = vmatprep.subr.bf16.mxu0 %v5844
  %5914 = vmatpush2.bf16.msra.mxu0 %v5843
  %5915 = vmatprep.subr.bf16.mxu0 %v5842
  %5916 = vmatpush2.bf16.msra.mxu0 %v5841
  %5917 = vmatprep.subr.bf16.mxu0 %v5840
  %5918 = vmatpush2.bf16.msra.mxu0 %v5839
  %5919 = vmatprep.mubr.bf16.mxu0 %v5726
  %5920 = vmatmul.mubr.bf16.gmra.mxu0 %v5725
  %v5921 = vpop.f32.mrf.mxu0
  %v5922 = vadd.f32 0.0, %v5921
  %v5923 = vpop.f32.mrf.mxu0
  %v5924 = vadd.f32 0.0, %v5923
  %v5925 = vpop.f32.mrf.mxu0
  %v5926 = vpop.f32.mrf.mxu0
  %5927 = vdwg.mxu0
  %v5928 = vadd.f32 %v5679, %v5922
  %v5929 = vadd.f32 %v5680, %v5924
  %s5930 = scalar_lea.vmem %s10, 1024
  %v5931 = vld [vmem:[%s5930] sm:$0xff]
  %v5932 = vld [vmem:[%s5930 + $0x8] sm:$0xff]
  %v5933 = vld [vmem:[%s5930 + $0x10] sm:$0xff]
  %v5934 = vld [vmem:[%s5930 + $0x18] sm:$0xff]
  %v5935 = vld [vmem:[%s5930 + $0x20] sm:$0xff]
  %v5936 = vld [vmem:[%s5930 + $0x28] sm:$0xff]
  %v5937 = vld [vmem:[%s5930 + $0x30] sm:$0xff]
  %v5938 = vld [vmem:[%s5930 + $0x38] sm:$0xff]
  %v5939 = vld [vmem:[%s5930 + $0x40] sm:$0xff]
  %v5940 = vld [vmem:[%s5930 + $0x48] sm:$0xff]
  %v5941 = vld [vmem:[%s5930 + $0x50] sm:$0xff]
  %v5942 = vld [vmem:[%s5930 + $0x58] sm:$0xff]
  %v5943 = vld [vmem:[%s5930 + $0x60] sm:$0xff]
  %v5944 = vld [vmem:[%s5930 + $0x68] sm:$0xff]
  %v5945 = vld [vmem:[%s5930 + $0x70] sm:$0xff]
  %v5946 = vld [vmem:[%s5930 + $0x78] sm:$0xff]
  %v5947 = vld [vmem:[%s5930 + $0x80] sm:$0xff]
  %v5948 = vld [vmem:[%s5930 + $0x88] sm:$0xff]
  %v5949 = vld [vmem:[%s5930 + $0x90] sm:$0xff]
  %v5950 = vld [vmem:[%s5930 + $0x98] sm:$0xff]
  %v5951 = vld [vmem:[%s5930 + $0xa0] sm:$0xff]
  %v5952 = vld [vmem:[%s5930 + $0xa8] sm:$0xff]
  %v5953 = vld [vmem:[%s5930 + $0xb0] sm:$0xff]
  %v5954 = vld [vmem:[%s5930 + $0xb8] sm:$0xff]
  %v5955 = vld [vmem:[%s5930 + $0xc0] sm:$0xff]
  %v5956 = vld [vmem:[%s5930 + $0xc8] sm:$0xff]
  %v5957 = vld [vmem:[%s5930 + $0xd0] sm:$0xff]
  %v5958 = vld [vmem:[%s5930 + $0xd8] sm:$0xff]
  %v5959 = vld [vmem:[%s5930 + $0xe0] sm:$0xff]
  %v5960 = vld [vmem:[%s5930 + $0xe8] sm:$0xff]
  %v5961 = vld [vmem:[%s5930 + $0xf0] sm:$0xff]
  %v5962 = vld [vmem:[%s5930 + $0xf8] sm:$0xff]
  %v5963 = vld [vmem:[%s5930 + $0x100] sm:$0xff]
  %v5964 = vld [vmem:[%s5930 + $0x108] sm:$0xff]
  %v5965 = vld [vmem:[%s5930 + $0x110] sm:$0xff]
  %v5966 = vld [vmem:[%s5930 + $0x118] sm:$0xff]
  %v5967 = vld [vmem:[%s5930 + $0x120] sm:$0xff]
  %v5968 = vld [vmem:[%s5930 + $0x128] sm:$0xff]
  %v5969 = vld [vmem:[%s5930 + $0x130] sm:$0xff]
  %v5970 = vld [vmem:[%s5930 + $0x138] sm:$0xff]
  %v5971 = vld [vmem:[%s5930 + $0x140] sm:$0xff]
  %v5972 = vld [vmem:[%s5930 + $0x148] sm:$0xff]
  %v5973 = vld [vmem:[%s5930 + $0x150] sm:$0xff]
  %v5974 = vld [vmem:[%s5930 + $0x158] sm:$0xff]
  %v5975 = vld [vmem:[%s5930 + $0x160] sm:$0xff]
  %v5976 = vld [vmem:[%s5930 + $0x168] sm:$0xff]
  %v5977 = vld [vmem:[%s5930 + $0x170] sm:$0xff]
  %v5978 = vld [vmem:[%s5930 + $0x178] sm:$0xff]
  %v5979 = vld [vmem:[%s5930 + $0x180] sm:$0xff]
  %v5980 = vld [vmem:[%s5930 + $0x188] sm:$0xff]
  %v5981 = vld [vmem:[%s5930 + $0x190] sm:$0xff]
  %v5982 = vld [vmem:[%s5930 + $0x198] sm:$0xff]
  %v5983 = vld [vmem:[%s5930 + $0x1a0] sm:$0xff]
  %v5984 = vld [vmem:[%s5930 + $0x1a8] sm:$0xff]
  %v5985 = vld [vmem:[%s5930 + $0x1b0] sm:$0xff]
  %v5986 = vld [vmem:[%s5930 + $0x1b8] sm:$0xff]
  %v5987 = vld [vmem:[%s5930 + $0x1c0] sm:$0xff]
  %v5988 = vld [vmem:[%s5930 + $0x1c8] sm:$0xff]
  %v5989 = vld [vmem:[%s5930 + $0x1d0] sm:$0xff]
  %v5990 = vld [vmem:[%s5930 + $0x1d8] sm:$0xff]
  %v5991 = vld [vmem:[%s5930 + $0x1e0] sm:$0xff]
  %v5992 = vld [vmem:[%s5930 + $0x1e8] sm:$0xff]
  %v5993 = vld [vmem:[%s5930 + $0x1f0] sm:$0xff]
  %v5994 = vld [vmem:[%s5930 + $0x1f8] sm:$0xff]
  %v5995 = vrot.slane %v5928, 4
  %v5996 = vadd.f32 %v5928, %v5995
  %v5997 = vrot.slane %v5996, 2
  %v5998 = vadd.f32 %v5996, %v5997
  %v5999 = vrot.slane %v5998, 1
  %v6000 = vadd.f32 %v5998, %v5999
  %v6001 = vrot.slane %v5929, 4
  %v6002 = vadd.f32 %v5929, %v6001
  %v6003 = vrot.slane %v6002, 2
  %v6004 = vadd.f32 %v6002, %v6003
  %v6005 = vrot.slane %v6004, 1
  %v6006 = vadd.f32 %v6004, %v6005
  %v6007 = vrcp.pop 8.0
  %v6008 = vmul.f32 %v6000, %v6007
  %v6009 = vmul.f32 %v6006, %v6007
  %6010 = vmatprep.subr.mxu0 %v5962
  %6011 = vmatpush1.msra.mxu0 %v5961
  %6012 = vmatprep.subr.mxu0 %v5960
  %6013 = vmatpush1.msra.mxu0 %v5959
  %6014 = vmatprep.subr.mxu0 %v5958
  %6015 = vmatpush1.msra.mxu0 %v5957
  %6016 = vmatprep.subr.mxu0 %v5956
  %6017 = vmatpush1.msra.mxu0 %v5955
  %6018 = vmatprep.subr.mxu0 %v5954
  %6019 = vmatpush1.msra.mxu0 %v5953
  %6020 = vmatprep.subr.mxu0 %v5952
  %6021 = vmatpush1.msra.mxu0 %v5951
  %6022 = vmatprep.subr.mxu0 %v5950
  %6023 = vmatpush1.msra.mxu0 %v5949
  %6024 = vmatprep.subr.mxu0 %v5948
  %6025 = vmatpush1.msra.mxu0 %v5947
  %6026 = vmatprep.subr.mxu0 %v5946
  %6027 = vmatpush1.msra.mxu0 %v5945
  %6028 = vmatprep.subr.mxu0 %v5944
  %6029 = vmatpush1.msra.mxu0 %v5943
  %6030 = vmatprep.subr.mxu0 %v5942
  %6031 = vmatpush1.msra.mxu0 %v5941
  %6032 = vmatprep.subr.mxu0 %v5940
  %6033 = vmatpush1.msra.mxu0 %v5939
  %6034 = vmatprep.subr.mxu0 %v5938
  %6035 = vmatpush1.msra.mxu0 %v5937
  %6036 = vmatprep.subr.mxu0 %v5936
  %6037 = vmatpush1.msra.mxu0 %v5935
  %6038 = vmatprep.subr.mxu0 %v5934
  %6039 = vmatpush1.msra.mxu0 %v5933
  %6040 = vmatprep.subr.mxu0 %v5932
  %6041 = vmatpush1.msra.mxu0 %v5931
  %6042 = vmatprep.subr.mxu0 %v5994
  %6043 = vmatpush2.msra.mxu0 %v5993
  %6044 = vmatprep.subr.mxu0 %v5992
  %6045 = vmatpush2.msra.mxu0 %v5991
  %6046 = vmatprep.subr.mxu0 %v5990
  %6047 = vmatpush2.msra.mxu0 %v5989
  %6048 = vmatprep.subr.mxu0 %v5988
  %6049 = vmatpush2.msra.mxu0 %v5987
  %6050 = vmatprep.subr.mxu0 %v5986
  %6051 = vmatpush2.msra.mxu0 %v5985
  %6052 = vmatprep.subr.mxu0 %v5984
  %6053 = vmatpush2.msra.mxu0 %v5983
  %6054 = vmatprep.subr.mxu0 %v5982
  %6055 = vmatpush2.msra.mxu0 %v5981
  %6056 = vmatprep.subr.mxu0 %v5980
  %6057 = vmatpush2.msra.mxu0 %v5979
  %6058 = vmatprep.subr.mxu0 %v5978
  %6059 = vmatpush2.msra.mxu0 %v5977
  %6060 = vmatprep.subr.mxu0 %v5976
  %6061 = vmatpush2.msra.mxu0 %v5975
  %6062 = vmatprep.subr.mxu0 %v5974
  %6063 = vmatpush2.msra.mxu0 %v5973
  %6064 = vmatprep.subr.mxu0 %v5972
  %6065 = vmatpush2.msra.mxu0 %v5971
  %6066 = vmatprep.subr.mxu0 %v5970
  %6067 = vmatpush2.msra.mxu0 %v5969
  %6068 = vmatprep.subr.mxu0 %v5968
  %6069 = vmatpush2.msra.mxu0 %v5967
  %6070 = vmatprep.subr.mxu0 %v5966
  %6071 = vmatpush2.msra.mxu0 %v5965
  %6072 = vmatprep.subr.mxu0 %v5964
  %6073 = vmatpush2.msra.mxu0 %v5963
  %6074 = vmatprep.mubr.f32.mxu0 %v6009
  %6075 = vmatmul.mubr.f32.gmra.mxu0 %v6008
  %v6076 = vpop.f32.mrf.mxu0
  %v6077 = vadd.f32 0.0, %v6076
  %v6078 = vpop.f32.mrf.mxu0
  %v6079 = vadd.f32 0.0, %v6078
  %6080 = vdwg.mxu0
  %v6081 = vlaneseq
  %v6082 = vshrl.u32 %v6081, 7
  %v6083 = vsub.s32 0, %v6082
  %v6084 = vrot.slane %v6077, %v6083
  %v6085 = vlaneseq
  %v6086 = vshrl.u32 %v6085, 7
  %v6087 = vsub.s32 0, %v6086
  %v6088 = vrot.slane %v6079, %v6087
  %v6089 = vsub.f32 %v5928, %v6084
  %v6090 = vsub.f32 %v5929, %v6088
  %v6091 = vmul.f32 %v6089, %v6089
  %v6092 = vmul.f32 %v6090, %v6090
  %v6093 = vrot.slane %v6091, 4
  %v6094 = vadd.f32 %v6091, %v6093
  %v6095 = vrot.slane %v6094, 2
  %v6096 = vadd.f32 %v6094, %v6095
  %v6097 = vrot.slane %v6096, 1
  %v6098 = vadd.f32 %v6096, %v6097
  %v6099 = vrot.slane %v6092, 4
  %v6100 = vadd.f32 %v6092, %v6099
  %v6101 = vrot.slane %v6100, 2
  %v6102 = vadd.f32 %v6100, %v6101
  %v6103 = vrot.slane %v6102, 1
  %v6104 = vadd.f32 %v6102, %v6103
  %v6105 = vmul.f32 %v6098, %v6007
  %v6106 = vmul.f32 %v6104, %v6007
  %6107 = vmatprep.subr.mxu0 %v5962
  %6108 = vmatpush1.msra.mxu0 %v5961
  %6109 = vmatprep.subr.mxu0 %v5960
  %6110 = vmatpush1.msra.mxu0 %v5959
  %6111 = vmatprep.subr.mxu0 %v5958
  %6112 = vmatpush1.msra.mxu0 %v5957
  %6113 = vmatprep.subr.mxu0 %v5956
  %6114 = vmatpush1.msra.mxu0 %v5955
  %6115 = vmatprep.subr.mxu0 %v5954
  %6116 = vmatpush1.msra.mxu0 %v5953
  %6117 = vmatprep.subr.mxu0 %v5952
  %6118 = vmatpush1.msra.mxu0 %v5951
  %6119 = vmatprep.subr.mxu0 %v5950
  %6120 = vmatpush1.msra.mxu0 %v5949
  %6121 = vmatprep.subr.mxu0 %v5948
  %6122 = vmatpush1.msra.mxu0 %v5947
  %6123 = vmatprep.subr.mxu0 %v5946
  %6124 = vmatpush1.msra.mxu0 %v5945
  %6125 = vmatprep.subr.mxu0 %v5944
  %6126 = vmatpush1.msra.mxu0 %v5943
  %6127 = vmatprep.subr.mxu0 %v5942
  %6128 = vmatpush1.msra.mxu0 %v5941
  %6129 = vmatprep.subr.mxu0 %v5940
  %6130 = vmatpush1.msra.mxu0 %v5939
  %6131 = vmatprep.subr.mxu0 %v5938
  %6132 = vmatpush1.msra.mxu0 %v5937
  %6133 = vmatprep.subr.mxu0 %v5936
  %6134 = vmatpush1.msra.mxu0 %v5935
  %6135 = vmatprep.subr.mxu0 %v5934
  %6136 = vmatpush1.msra.mxu0 %v5933
  %6137 = vmatprep.subr.mxu0 %v5932
  %6138 = vmatpush1.msra.mxu0 %v5931
  %6139 = vmatprep.subr.mxu0 %v5994
  %6140 = vmatpush2.msra.mxu0 %v5993
  %6141 = vmatprep.subr.mxu0 %v5992
  %6142 = vmatpush2.msra.mxu0 %v5991
  %6143 = vmatprep.subr.mxu0 %v5990
  %6144 = vmatpush2.msra.mxu0 %v5989
  %6145 = vmatprep.subr.mxu0 %v5988
  %6146 = vmatpush2.msra.mxu0 %v5987
  %6147 = vmatprep.subr.mxu0 %v5986
  %6148 = vmatpush2.msra.mxu0 %v5985
  %6149 = vmatprep.subr.mxu0 %v5984
  %6150 = vmatpush2.msra.mxu0 %v5983
  %6151 = vmatprep.subr.mxu0 %v5982
  %6152 = vmatpush2.msra.mxu0 %v5981
  %6153 = vmatprep.subr.mxu0 %v5980
  %6154 = vmatpush2.msra.mxu0 %v5979
  %6155 = vmatprep.subr.mxu0 %v5978
  %6156 = vmatpush2.msra.mxu0 %v5977
  %6157 = vmatprep.subr.mxu0 %v5976
  %6158 = vmatpush2.msra.mxu0 %v5975
  %6159 = vmatprep.subr.mxu0 %v5974
  %6160 = vmatpush2.msra.mxu0 %v5973
  %6161 = vmatprep.subr.mxu0 %v5972
  %6162 = vmatpush2.msra.mxu0 %v5971
  %6163 = vmatprep.subr.mxu0 %v5970
  %6164 = vmatpush2.msra.mxu0 %v5969
  %6165 = vmatprep.subr.mxu0 %v5968
  %6166 = vmatpush2.msra.mxu0 %v5967
  %6167 = vmatprep.subr.mxu0 %v5966
  %6168 = vmatpush2.msra.mxu0 %v5965
  %6169 = vmatprep.subr.mxu0 %v5964
  %6170 = vmatpush2.msra.mxu0 %v5963
  %6171 = vmatprep.mubr.f32.mxu0 %v6106
  %6172 = vmatmul.mubr.f32.gmra.mxu0 %v6105
  %v6173 = vpop.f32.mrf.mxu0
  %v6174 = vadd.f32 1e-05, %v6173
  %v6175 = vpop.f32.mrf.mxu0
  %v6176 = vadd.f32 1e-05, %v6175
  %6177 = vdwg.mxu0
  %v6178 = vrsqrt.pop %v6174
  %v6179 = vrsqrt.pop %v6176
  %v6180 = vlaneseq
  %v6181 = vshrl.u32 %v6180, 7
  %v6182 = vsub.s32 0, %v6181
  %v6183 = vrot.slane %v6178, %v6182
  %v6184 = vlaneseq
  %v6185 = vshrl.u32 %v6184, 7
  %v6186 = vsub.s32 0, %v6185
  %v6187 = vrot.slane %v6179, %v6186
  %v6188 = vmul.f32 %v6089, %v6183
  %v6189 = vmul.f32 %v6090, %v6187
  %s6190 = scalar_lea.vmem %s8, 4
  %v6191 = vld [vmem:[%s6190] sm:$0x3]
  %v6193 = vlaneseq
  %v6194 = vshrl.u32 %v6193, 7
  %v6195 = vsub.s32 0, %v6194
  %v6196 = vrot.slane %v6191, %v6195
  %v6197 = vlaneseq
  %v6198 = vshrl.u32 %v6197, 7
  %v6199 = vsub.s32 1, %v6198
  %v6200 = vrot.slane %v6191, %v6199
  %v6203 = vmul.f32 %v6188, %v6196
  %v6204 = vmul.f32 %v6189, %v6200
  %s6205 = scalar_lea.vmem %s9, 4
  %v6206 = vld [vmem:[%s6205] sm:$0x3]
  %v6208 = vlaneseq
  %v6209 = vshrl.u32 %v6208, 7
  %v6210 = vsub.s32 0, %v6209
  %v6211 = vrot.slane %v6206, %v6210
  %v6212 = vlaneseq
  %v6213 = vshrl.u32 %v6212, 7
  %v6214 = vsub.s32 1, %v6213
  %v6215 = vrot.slane %v6206, %v6214
  %v6218 = vadd.f32 %v6203, %v6211
  %v6219 = vadd.f32 %v6204, %v6215
  %vm6220 = vcmp.gt.f32.partialorder %v6218, 0.0
  %vm6221 = vcmp.gt.f32.partialorder %v6219, 0.0
  %v6222 = vmul.f32 %v6218, 0.2
  %v6223 = vmul.f32 %v6219, 0.2
  %v6224 = vsel %vm6220, %v6218, %v6222
  %v6225 = vsel %vm6221, %v6219, %v6223
  %v6226 = vpack.c.bf16 %v6224, %v6224
  %v6227 = vpack.c.bf16 %v6225, %v6225
  %v6228 = vld [vmem:[%s11] sm:$0x1]
  %vm6229 = vcmask 64512
  %v6231 = vsel %vm6229, %v6228, 0
  %vm6233 = vcmask 1043456
  %v6235 = vsel %vm6233, %v6226, 0
  %v6238 = vsel %vm6233, %v6227, 0
  %6240 = vmatprep.subr.bf16.mxu0 0
  %6241 = vmatpush1.bf16.msra.mxu0 0
  %6242 = vmatprep.subr.bf16.mxu0 0
  %6243 = vmatpush1.bf16.msra.mxu0 0
  %6244 = vmatprep.subr.bf16.mxu0 0
  %6245 = vmatpush1.bf16.msra.mxu0 0
  %6246 = vmatprep.subr.bf16.mxu0 0
  %6247 = vmatpush1.bf16.msra.mxu0 0
  %6248 = vmatprep.subr.bf16.mxu0 0
  %6249 = vmatpush1.bf16.msra.mxu0 0
  %6250 = vmatprep.subr.bf16.mxu0 0
  %6251 = vmatpush1.bf16.msra.mxu0 0
  %6252 = vmatprep.subr.bf16.mxu0 0
  %6253 = vmatpush1.bf16.msra.mxu0 0
  %6254 = vmatprep.subr.bf16.mxu0 %v6238
  %6255 = vmatpush1.bf16.msra.mxu0 %v6235
  %6256 = vmatprep.subr.bf16.mxu0 0
  %6257 = vmatpush2.bf16.msra.mxu0 0
  %6258 = vmatprep.subr.bf16.mxu0 0
  %6259 = vmatpush2.bf16.msra.mxu0 0
  %6260 = vmatprep.subr.bf16.mxu0 0
  %6261 = vmatpush2.bf16.msra.mxu0 0
  %6262 = vmatprep.subr.bf16.mxu0 0
  %6263 = vmatpush2.bf16.msra.mxu0 0
  %6264 = vmatprep.subr.bf16.mxu0 0
  %6265 = vmatpush2.bf16.msra.mxu0 0
  %6266 = vmatprep.subr.bf16.mxu0 0
  %6267 = vmatpush2.bf16.msra.mxu0 0
  %6268 = vmatprep.subr.bf16.mxu0 0
  %6269 = vmatpush2.bf16.msra.mxu0 0
  %6270 = vmatprep.subr.bf16.mxu0 0
  %6271 = vmatpush2.bf16.msra.mxu0 0
  %6272 = vmatprep.mubr.bf16.mxu0 0
  %6273 = vmatmul.mubr.bf16.gmra.mxu0 %v6231
  %v6274 = vpop.f32.mrf.mxu0
  %v6275 = vadd.f32 0.0, %v6274
  %v6276 = vpop.f32.mrf.mxu0
  %v6277 = vadd.f32 0.0, %v6276
  %v6278 = vpop.f32.mrf.mxu0
  %v6279 = vpop.f32.mrf.mxu0
  %6280 = vdwg.mxu0
  %v6281 = vld [vmem:[%s12] sm:$0x3]
  %v6283 = vlaneseq
  %v6284 = vshrl.u32 %v6283, 7
  %v6285 = vsub.s32 0, %v6284
  %v6286 = vrot.slane %v6281, %v6285
  %v6287 = vlaneseq
  %v6288 = vshrl.u32 %v6287, 7
  %v6289 = vsub.s32 1, %v6288
  %v6290 = vrot.slane %v6281, %v6289
  %v6293 = vmul.f32 %v6275, %v6286
  %v6294 = vmul.f32 %v6277, %v6290
  %vm6295 = vcmask 1041408
  %v6296 = vsel %vm6295, %v6293, 0.0
  %v6297 = vsel %vm6295, %v6294, 0.0
  %v6298 = vadd.f32 %v6296, %v6297
  %6299 = vadd.xlane.f32.xlu0 %v6298
  %v6300 = vpop.xlane.xlu0 %6299
  %s6301 = scalar_lea.vmem %s11, 1
  %v6302 = vld [vmem:[%s6301] sm:$0x1]
  %v6304 = vsel %vm6229, %v6302, 0
  %6306 = vmatprep.subr.bf16.mxu0 0
  %6307 = vmatpush1.bf16.msra.mxu0 0
  %6308 = vmatprep.subr.bf16.mxu0 0
  %6309 = vmatpush1.bf16.msra.mxu0 0
  %6310 = vmatprep.subr.bf16.mxu0 0
  %6311 = vmatpush1.bf16.msra.mxu0 0
  %6312 = vmatprep.subr.bf16.mxu0 0
  %6313 = vmatpush1.bf16.msra.mxu0 0
  %6314 = vmatprep.subr.bf16.mxu0 0
  %6315 = vmatpush1.bf16.msra.mxu0 0
  %6316 = vmatprep.subr.bf16.mxu0 0
  %6317 = vmatpush1.bf16.msra.mxu0 0
  %6318 = vmatprep.subr.bf16.mxu0 0
  %6319 = vmatpush1.bf16.msra.mxu0 0
  %6320 = vmatprep.subr.bf16.mxu0 %v6238
  %6321 = vmatpush1.bf16.msra.mxu0 %v6235
  %6322 = vmatprep.subr.bf16.mxu0 0
  %6323 = vmatpush2.bf16.msra.mxu0 0
  %6324 = vmatprep.subr.bf16.mxu0 0
  %6325 = vmatpush2.bf16.msra.mxu0 0
  %6326 = vmatprep.subr.bf16.mxu0 0
  %6327 = vmatpush2.bf16.msra.mxu0 0
  %6328 = vmatprep.subr.bf16.mxu0 0
  %6329 = vmatpush2.bf16.msra.mxu0 0
  %6330 = vmatprep.subr.bf16.mxu0 0
  %6331 = vmatpush2.bf16.msra.mxu0 0
  %6332 = vmatprep.subr.bf16.mxu0 0
  %6333 = vmatpush2.bf16.msra.mxu0 0
  %6334 = vmatprep.subr.bf16.mxu0 0
  %6335 = vmatpush2.bf16.msra.mxu0 0
  %6336 = vmatprep.subr.bf16.mxu0 0
  %6337 = vmatpush2.bf16.msra.mxu0 0
  %6338 = vmatprep.mubr.bf16.mxu0 0
  %6339 = vmatmul.mubr.bf16.gmra.mxu0 %v6304
  %v6340 = vpop.f32.mrf.mxu0
  %v6341 = vadd.f32 0.0, %v6340
  %v6342 = vpop.f32.mrf.mxu0
  %v6343 = vadd.f32 0.0, %v6342
  %v6344 = vpop.f32.mrf.mxu0
  %v6345 = vpop.f32.mrf.mxu0
  %6346 = vdwg.mxu0
  %s6347 = scalar_lea.vmem %s12, 2
  %v6348 = vld [vmem:[%s6347] sm:$0x3]
  %v6350 = vlaneseq
  %v6351 = vshrl.u32 %v6350, 7
  %v6352 = vsub.s32 0, %v6351
  %v6353 = vrot.slane %v6348, %v6352
  %v6354 = vlaneseq
  %v6355 = vshrl.u32 %v6354, 7
  %v6356 = vsub.s32 1, %v6355
  %v6357 = vrot.slane %v6348, %v6356
  %v6360 = vmul.f32 %v6341, %v6353
  %v6361 = vmul.f32 %v6343, %v6357
  %v6362 = vsel %vm6295, %v6360, 0.0
  %v6363 = vsel %vm6295, %v6361, 0.0
  %v6364 = vadd.f32 %v6362, %v6363
  %6365 = vadd.xlane.f32.xlu0 %v6364
  %v6366 = vpop.xlane.xlu0 %6365
  %v6367 = vadd.f32 %v6300, %v6366
  %s6368 = scalar_lea.vmem %s11, 2
  %v6369 = vld [vmem:[%s6368] sm:$0x1]
  %v6371 = vsel %vm6229, %v6369, 0
  %6373 = vmatprep.subr.bf16.mxu0 0
  %6374 = vmatpush1.bf16.msra.mxu0 0
  %6375 = vmatprep.subr.bf16.mxu0 0
  %6376 = vmatpush1.bf16.msra.mxu0 0
  %6377 = vmatprep.subr.bf16.mxu0 0
  %6378 = vmatpush1.bf16.msra.mxu0 0
  %6379 = vmatprep.subr.bf16.mxu0 0
  %6380 = vmatpush1.bf16.msra.mxu0 0
  %6381 = vmatprep.subr.bf16.mxu0 0
  %6382 = vmatpush1.bf16.msra.mxu0 0
  %6383 = vmatprep.subr.bf16.mxu0 0
  %6384 = vmatpush1.bf16.msra.mxu0 0
  %6385 = vmatprep.subr.bf16.mxu0 0
  %6386 = vmatpush1.bf16.msra.mxu0 0
  %6387 = vmatprep.subr.bf16.mxu0 %v6238
  %6388 = vmatpush1.bf16.msra.mxu0 %v6235
  %6389 = vmatprep.subr.bf16.mxu0 0
  %6390 = vmatpush2.bf16.msra.mxu0 0
  %6391 = vmatprep.subr.bf16.mxu0 0
  %6392 = vmatpush2.bf16.msra.mxu0 0
  %6393 = vmatprep.subr.bf16.mxu0 0
  %6394 = vmatpush2.bf16.msra.mxu0 0
  %6395 = vmatprep.subr.bf16.mxu0 0
  %6396 = vmatpush2.bf16.msra.mxu0 0
  %6397 = vmatprep.subr.bf16.mxu0 0
  %6398 = vmatpush2.bf16.msra.mxu0 0
  %6399 = vmatprep.subr.bf16.mxu0 0
  %6400 = vmatpush2.bf16.msra.mxu0 0
  %6401 = vmatprep.subr.bf16.mxu0 0
  %6402 = vmatpush2.bf16.msra.mxu0 0
  %6403 = vmatprep.subr.bf16.mxu0 0
  %6404 = vmatpush2.bf16.msra.mxu0 0
  %6405 = vmatprep.mubr.bf16.mxu0 0
  %6406 = vmatmul.mubr.bf16.gmra.mxu0 %v6371
  %v6407 = vpop.f32.mrf.mxu0
  %v6408 = vadd.f32 0.0, %v6407
  %v6409 = vpop.f32.mrf.mxu0
  %v6410 = vadd.f32 0.0, %v6409
  %v6411 = vpop.f32.mrf.mxu0
  %v6412 = vpop.f32.mrf.mxu0
  %6413 = vdwg.mxu0
  %s6414 = scalar_lea.vmem %s12, 4
  %v6415 = vld [vmem:[%s6414] sm:$0x3]
  %v6417 = vlaneseq
  %v6418 = vshrl.u32 %v6417, 7
  %v6419 = vsub.s32 0, %v6418
  %v6420 = vrot.slane %v6415, %v6419
  %v6421 = vlaneseq
  %v6422 = vshrl.u32 %v6421, 7
  %v6423 = vsub.s32 1, %v6422
  %v6424 = vrot.slane %v6415, %v6423
  %v6427 = vmul.f32 %v6408, %v6420
  %v6428 = vmul.f32 %v6410, %v6424
  %v6429 = vsel %vm6295, %v6427, 0.0
  %v6430 = vsel %vm6295, %v6428, 0.0
  %v6431 = vadd.f32 %v6429, %v6430
  %6432 = vadd.xlane.f32.xlu0 %v6431
  %v6433 = vpop.xlane.xlu0 %6432
  %v6434 = vadd.f32 %v6367, %v6433
  %s6435 = scalar_lea.vmem %s11, 3
  %v6436 = vld [vmem:[%s6435] sm:$0x1]
  %v6438 = vsel %vm6229, %v6436, 0
  %6440 = vmatprep.subr.bf16.mxu0 0
  %6441 = vmatpush1.bf16.msra.mxu0 0
  %6442 = vmatprep.subr.bf16.mxu0 0
  %6443 = vmatpush1.bf16.msra.mxu0 0
  %6444 = vmatprep.subr.bf16.mxu0 0
  %6445 = vmatpush1.bf16.msra.mxu0 0
  %6446 = vmatprep.subr.bf16.mxu0 0
  %6447 = vmatpush1.bf16.msra.mxu0 0
  %6448 = vmatprep.subr.bf16.mxu0 0
  %6449 = vmatpush1.bf16.msra.mxu0 0
  %6450 = vmatprep.subr.bf16.mxu0 0
  %6451 = vmatpush1.bf16.msra.mxu0 0
  %6452 = vmatprep.subr.bf16.mxu0 0
  %6453 = vmatpush1.bf16.msra.mxu0 0
  %6454 = vmatprep.subr.bf16.mxu0 %v6238
  %6455 = vmatpush1.bf16.msra.mxu0 %v6235
  %6456 = vmatprep.subr.bf16.mxu0 0
  %6457 = vmatpush2.bf16.msra.mxu0 0
  %6458 = vmatprep.subr.bf16.mxu0 0
  %6459 = vmatpush2.bf16.msra.mxu0 0
  %6460 = vmatprep.subr.bf16.mxu0 0
  %6461 = vmatpush2.bf16.msra.mxu0 0
  %6462 = vmatprep.subr.bf16.mxu0 0
  %6463 = vmatpush2.bf16.msra.mxu0 0
  %6464 = vmatprep.subr.bf16.mxu0 0
  %6465 = vmatpush2.bf16.msra.mxu0 0
  %6466 = vmatprep.subr.bf16.mxu0 0
  %6467 = vmatpush2.bf16.msra.mxu0 0
  %6468 = vmatprep.subr.bf16.mxu0 0
  %6469 = vmatpush2.bf16.msra.mxu0 0
  %6470 = vmatprep.subr.bf16.mxu0 0
  %6471 = vmatpush2.bf16.msra.mxu0 0
  %6472 = vmatprep.mubr.bf16.mxu0 0
  %6473 = vmatmul.mubr.bf16.gmra.mxu0 %v6438
  %v6474 = vpop.f32.mrf.mxu0
  %v6475 = vadd.f32 0.0, %v6474
  %v6476 = vpop.f32.mrf.mxu0
  %v6477 = vadd.f32 0.0, %v6476
  %v6478 = vpop.f32.mrf.mxu0
  %v6479 = vpop.f32.mrf.mxu0
  %6480 = vdwg.mxu0
  %s6481 = scalar_lea.vmem %s12, 6
  %v6482 = vld [vmem:[%s6481] sm:$0x3]
  %v6484 = vlaneseq
  %v6485 = vshrl.u32 %v6484, 7
  %v6486 = vsub.s32 0, %v6485
  %v6487 = vrot.slane %v6482, %v6486
  %v6488 = vlaneseq
  %v6489 = vshrl.u32 %v6488, 7
  %v6490 = vsub.s32 1, %v6489
  %v6491 = vrot.slane %v6482, %v6490
  %v6494 = vmul.f32 %v6475, %v6487
  %v6495 = vmul.f32 %v6477, %v6491
  %v6496 = vsel %vm6295, %v6494, 0.0
  %v6497 = vsel %vm6295, %v6495, 0.0
  %v6498 = vadd.f32 %v6496, %v6497
  %6499 = vadd.xlane.f32.xlu0 %v6498
  %v6500 = vpop.xlane.xlu0 %6499
  %v6501 = vadd.f32 %v6434, %v6500
  %v6502 = vld [vmem:[#allocation2] sm:$0x1]
  %v6504 = vlaneseq
  %v6505 = vshrl.u32 %v6504, 7
  %v6506 = vsub.s32 0, %v6505
  %v6507 = vrot.slane %v6502, %v6506
  %v6509 = vadd.f32 %v6501, %v6507
  %vm6510 = vcmask 1024
  %6511 = vst.msk [vmem:[%s14] sm:$0x3] %vm6510, %v6509
  // Predicated region
  $region58: #{discriminator_forward.1} parent=0 // pred_check
    _
  $region59: #{discriminator_forward.1} parent=0 // pred_check_branch
    %6513 = sbr.rel (0) target = $region61
  $region60: #{discriminator_forward.1} parent=0 // pred_region
    _
  $region61: #{discriminator_forward.1} parent=0 // pred_fallthru
    _
  // Predicated region
  $region62: #{discriminator_forward.1} parent=0 // pred_check
    _
  $region63: #{discriminator_forward.1} parent=0 // pred_check_branch
    %6515 = sbr.rel (0) target = $region65
  $region64: #{discriminator_forward.1} parent=0 // pred_region
    _
  $region65: #{discriminator_forward.1} parent=0 // pred_fallthru
    _

</llo_original>
